<compile_context>
chip_gen: v5e
topology: v5e:2x2
jax: 0.10.0
libtpu: 0.0.40
codegen_flags: <defaults>
</compile_context>

<pallas_src>
import jax
import jax.numpy as jnp
from jax.experimental import pallas as pl
from jax.experimental.pallas import tpu as pltpu


def _gates_split(g, H):
    """PyTorch LSTM gate order: i, f, g, o."""
    i = jax.nn.sigmoid(g[:, 0 * H:1 * H])
    f = jax.nn.sigmoid(g[:, 1 * H:2 * H])
    gg = jnp.tanh(g[:, 2 * H:3 * H])
    o = jax.nn.sigmoid(g[:, 3 * H:4 * H])
    return i, f, gg, o


def _cell_pre(pre_t, h, c, whh, H):
    """LSTM cell where the input projection (+ bias) is already precomputed."""
    g = pre_t + jnp.dot(h, whh, preferred_element_type=jnp.float32)
    i, f, gg, o = _gates_split(g, H)
    c_new = f * c + i * gg
    h_new = o * jnp.tanh(c_new)
    return h_new, c_new


def make_elmo_kernel(F, B, H):
    G = 4 * H

    def elmo_kernel(x_ref, w_l1_ref, b_l1_ref, whh_f1_ref, whh_b1_ref,
                    wih_f2_ref, b_f2_ref, wih_b2_ref, b_b2_ref,
                    whh_f2_ref, whh_b2_ref,
                    w_dec_f_ref, b_dec_f_ref,
                    wih_db_ref, whh_db_ref, b_db_ref,
                    outw_ref, outb_ref,
                    out_ref, loss_ref):
        x = x_ref[...].astype(jnp.float32)                       # (F*B, H) time-major
        xs = [x[t * B:(t + 1) * B] for t in range(F)]            # per-step (B, H)
        zero = jnp.zeros((B, H), jnp.float32)

        # ---- hoisted level-1 input projections: ONE matmul for both directions ----
        p1 = (jnp.dot(x, w_l1_ref[...], preferred_element_type=jnp.float32)
              + b_l1_ref[...])                                   # (F*B, 8H)
        p1f = p1[:, :G]                                          # forward  encoder proj
        p1b = p1[:, G:]                                          # backward encoder proj
        whh_f1 = whh_f1_ref[...]
        whh_b1 = whh_b1_ref[...]

        # ---- level-1 encoders: forward & backward branches interleaved ------------
        h1f, c1f, h1b, c1b = zero, zero, zero, zero
        h1f_list, h1b_list = [], []
        for t in range(F):
            h1f, c1f = _cell_pre(p1f[t * B:(t + 1) * B], h1f, c1f, whh_f1, H)
            rt = F - 1 - t                    # backward branch consumes reversed x
            h1b, c1b = _cell_pre(p1b[rt * B:(rt + 1) * B], h1b, c1b, whh_b1, H)
            h1f_list.append(h1f)
            h1b_list.append(h1b)

        # ---- hoisted input projections for level-2 encoders ------------------------
        h1f_all = jnp.concatenate(h1f_list, axis=0)              # (F*B, H)
        h1b_all = jnp.concatenate(h1b_list, axis=0)
        p2f = (jnp.dot(h1f_all, wih_f2_ref[...], preferred_element_type=jnp.float32)
               + b_f2_ref[...])
        p2b = (jnp.dot(h1b_all, wih_b2_ref[...], preferred_element_type=jnp.float32)
               + b_b2_ref[...])
        whh_f2 = whh_f2_ref[...]
        whh_b2 = whh_b2_ref[...]

        # ---- level-2 encoders interleaved; pooled residual sum on the fly ----------
        # (time reversal of the backward encodings is irrelevant under a sum;
        #  softmax over a size-1 axis is identically 1.0, so attention == sum)
        h2f, c2f, h2b, c2b = zero, zero, zero, zero
        pooled = zero
        for t in range(F):
            h2f, c2f = _cell_pre(p2f[t * B:(t + 1) * B], h2f, c2f, whh_f2, H)
            h2b, c2b = _cell_pre(p2b[t * B:(t + 1) * B], h2b, c2b, whh_b2, H)
            pooled = pooled + h2f + h2b + xs[t]

        # ---- decoders (interleaved) -------------------------------------------------
        # forward decoder: its input always equals its previous hidden state, so
        # x@W_ih + h@W_hh == h@(W_ih + W_hh); the summed weight is precomputed
        # in the wrapper -> single (B,H)@(H,4H) matmul per step.
        w_dec_f = w_dec_f_ref[...]                               # (H, 4H) = W_ih + W_hh
        b_dec_f = jnp.broadcast_to(b_dec_f_ref[...], (B, G))     # hoisted broadcast
        # backward decoder: the reference PyTorch code never re-assigns its state
        # (stale-state bug), so every step sees the SAME (h2b, c2b); the
        # h @ W_hh + b term is therefore a constant, computed once here.
        wib = wih_db_ref[...]                                    # (H, 4H)
        const_b = (jnp.dot(h2b, whh_db_ref[...], preferred_element_type=jnp.float32)
                   + b_db_ref[...])                              # (B, 4H)
        cb_stale = c2b

        hdf, cdf = h2f, c2f
        dec_b = h2b
        sq_f, sq_b = zero, zero
        for t in range(F):
            # forward decoder cell (single K = H matmul)
            gf = jnp.dot(hdf, w_dec_f, preferred_element_type=jnp.float32) + b_dec_f
            i, f, gg, o = _gates_split(gf, H)
            cdf = f * cdf + i * gg
            hdf = o * jnp.tanh(cdf)

            # backward decoder cell (stale state, single matmul per step)
            gb = jnp.dot(dec_b, wib, preferred_element_type=jnp.float32) + const_b
            i, f, gg, o = _gates_split(gb, H)
            cnb = f * cb_stale + i * gg
            dec_b = o * jnp.tanh(cnb)

            # MSE accumulation — off the h/c dependency chains (pure filler work)
            sq_f = sq_f + (xs[t] - hdf) ** 2
            sq_b = sq_b + (xs[F - 1 - t] - dec_b) ** 2

        loss = (jnp.sum(sq_f) + jnp.sum(sq_b)) / jnp.float32(F * B * H)

        # ---- output head ------------------------------------------------------------
        out = (jnp.dot(pooled, outw_ref[...], preferred_element_type=jnp.float32)
               + outb_ref[...])

        out_ref[...] = out.astype(out_ref.dtype)
        loss_ref[...] = jnp.broadcast_to(loss.astype(jnp.float32), (1, 1))

    return elmo_kernel


def init_params(key, embed_size, out_size):
    """Deterministic synthetic parameters (shapes match the nn.Module)."""
    H = 2 * embed_size
    E = embed_size
    ks = jax.random.split(key, 10)

    def u(k, shape, bound):
        return jax.random.uniform(k, shape, jnp.float32, -bound, bound)

    kb = 1.0 / (H ** 0.5)
    # 6 LSTMs: [for1, for2, for_decoder, back1, back2, back_decoder]
    wih = u(ks[0], (6, H, 4 * H), kb)                 # (input, 4*hidden), pre-transposed
    whh = u(ks[1], (6, H, 4 * H), kb)
    b = u(ks[2], (6, 1, 4 * H), kb) + u(ks[3], (6, 1, 4 * H), kb)   # b_ih + b_hh
    attw = u(ks[4], (H, E), kb)                       # set_att_W (pre-transposed)
    attwb = u(ks[5], (1, E), kb)
    attu = u(ks[6], (E, 1), 1.0 / (E ** 0.5))         # set_att_u (pre-transposed)
    attub = u(ks[7], (1, 1), 1.0 / (E ** 0.5))
    outw = u(ks[8], (H, out_size), kb)                # out (pre-transposed)
    outb = u(ks[9], (1, out_size), kb)
    return (wih, whh, b, attw, attwb, attu, attub, outw, outb)


def elmo_forward(inputs, params):
    (wih, whh, b, attw, attwb, attu, attub, outw, outb) = params
    B, F = inputs.shape[0], inputs.shape[1]
    H = wih.shape[1]
    O = outw.shape[1]

    x = inputs.reshape(B, F, -1).astype(jnp.float32)            # (B, F, H)
    assert x.shape[-1] == H
    x_tm = jnp.transpose(x, (1, 0, 2)).reshape(F * B, H)        # time-major, flattened

    # Repack weights for the kernel.  The attention weights are mathematically
    # dead in this module (softmax over a size-1 axis) and are not passed in.
    w_l1 = jnp.concatenate([wih[0], wih[3]], axis=1)            # (H, 8H)  for1 | back1
    b_l1 = jnp.concatenate([b[0], b[3]], axis=1)                # (1, 8H)
    w_dec_f = wih[2] + whh[2]                                   # forward decoder x==h
    b_dec_f = b[2]

    vmem = pl.BlockSpec(memory_space=pltpu.MemorySpace.VMEM)
    kernel = make_elmo_kernel(F, B, H)
    out, loss = pl.pallas_call(
        kernel,
        out_shape=(jax.ShapeDtypeStruct((B, O), jnp.float32),
                   jax.ShapeDtypeStruct((1, 1), jnp.float32)),
        in_specs=[vmem] * 18,
        out_specs=(vmem, vmem),
        compiler_params=pltpu.CompilerParams(vmem_limit_bytes=16 * 1024 * 1024),
    )(x_tm, w_l1, b_l1, whh[0], whh[3],
      wih[1], b[1], wih[4], b[4], whh[1], whh[4],
      w_dec_f, b_dec_f, wih[5], whh[5], b[5],
      outw, outb)
    return out.reshape(B, 1, 1, O), loss.reshape(())


def elmo_reference(inputs, params):
    """Pure-JAX faithful mirror of the PyTorch forward (for correctness checking).

    Keeps the (dead) attention math and the backward decoder's stale-state bug
    exactly as written in the reference module.
    """
    (wih, whh, b, attw, attwb, attu, attub, outw, outb) = params
    B, F = inputs.shape[0], inputs.shape[1]
    H = wih.shape[1]
    x = inputs.reshape(B, F, -1).astype(jnp.float32)

    def cell(xt, h, c, W):
        wi, wh, bb = W
        g = xt @ wi + h @ wh + bb
        i = jax.nn.sigmoid(g[:, :H]); f = jax.nn.sigmoid(g[:, H:2 * H])
        gg = jnp.tanh(g[:, 2 * H:3 * H]); o = jax.nn.sigmoid(g[:, 3 * H:])
        c = f * c + i * gg
        return o * jnp.tanh(c), c

    def seq(xseq, W):
        h = jnp.zeros((B, H)); c = jnp.zeros((B, H)); outs = []
        for t in range(F):
            h, c = cell(xseq[:, t], h, c, W)
            outs.append(h)
        return jnp.stack(outs, 1), h, c

    W = lambda i: (wih[i], whh[i], b[i])

    ef1, _, _ = seq(x, W(0))
    ef2, hf, cf = seq(ef1, W(1))
    dec_in, h, c = ef2[:, -1], hf, cf
    dec_for = []
    for _ in range(F):
        h, c = cell(dec_in, h, c, W(2)); dec_in = h; dec_for.append(h)
    ae_for = jnp.mean((x - jnp.stack(dec_for, 1)) ** 2)

    xb = x[:, ::-1]
    eb1, _, _ = seq(xb, W(3))
    eb2, hb, cb = seq(eb1, W(4))
    dec_in = eb2[:, -1]
    dec_back = []
    for _ in range(F):
        # reproduces the stale-state bug of the PyTorch code (state never updated)
        h, c = cell(dec_in, hb, cb, W(5)); dec_in = h; dec_back.append(h)
    ae_back = jnp.mean((xb - jnp.stack(dec_back, 1)) ** 2)

    enc = x + ef2 + eb2[:, ::-1]
    att = jnp.tanh(enc @ attw + attwb)
    aw = jax.nn.softmax(att @ attu + attub, axis=2)   # size-1 axis -> all ones
    pooled = jnp.sum(enc * aw, axis=1)
    out = pooled @ outw + outb
    return out.reshape(B, 1, 1, -1), ae_for + ae_back


if __name__ == "__main__":
    embed_size, out_size = 64, 64          # H = 2*embed_size = 128
    B, FEW = 2, 8
    key = jax.random.PRNGKey(0)
    kx, kp = jax.random.split(key)
    # inputs flatten to (B, FEW, 2*embed_size) inside forward, as in the module
    inputs = jax.random.normal(kx, (B, FEW, 2, embed_size), jnp.float32)
    params = init_params(kp, embed_size, out_size)

    out, loss = elmo_forward(inputs, params)
    out, loss = jax.block_until_ready((out, loss))

    ref_out, ref_loss = elmo_reference(inputs, params)
    assert out.shape == (B, 1, 1, out_size)
    assert jnp.allclose(out, ref_out, rtol=1e-3, atol=1e-3)
    assert jnp.allclose(loss, ref_loss, rtol=1e-3, atol=1e-3)
    print("KERNEL_OK")
</pallas_src>

<mosaic_0001>
module attributes {stable_mosaic.version = 11 : i64} {
  func.func @elmo_kernel(%arg0: memref<16x128xf32, #tpu.memory_space<vmem>>, %arg1: memref<128x1024xf32, #tpu.memory_space<vmem>>, %arg2: memref<1x1024xf32, #tpu.memory_space<vmem>>, %arg3: memref<128x512xf32, #tpu.memory_space<vmem>>, %arg4: memref<128x512xf32, #tpu.memory_space<vmem>>, %arg5: memref<128x512xf32, #tpu.memory_space<vmem>>, %arg6: memref<1x512xf32, #tpu.memory_space<vmem>>, %arg7: memref<128x512xf32, #tpu.memory_space<vmem>>, %arg8: memref<1x512xf32, #tpu.memory_space<vmem>>, %arg9: memref<128x512xf32, #tpu.memory_space<vmem>>, %arg10: memref<128x512xf32, #tpu.memory_space<vmem>>, %arg11: memref<128x512xf32, #tpu.memory_space<vmem>>, %arg12: memref<1x512xf32, #tpu.memory_space<vmem>>, %arg13: memref<128x512xf32, #tpu.memory_space<vmem>>, %arg14: memref<128x512xf32, #tpu.memory_space<vmem>>, %arg15: memref<1x512xf32, #tpu.memory_space<vmem>>, %arg16: memref<128x64xf32, #tpu.memory_space<vmem>>, %arg17: memref<1x64xf32, #tpu.memory_space<vmem>>, %arg18: memref<2x64xf32, #tpu.memory_space<vmem>>, %arg19: memref<1x1xf32, #tpu.memory_space<vmem>>) attributes {dimension_semantics = [], scalar_prefetch = 0 : i64, scratch_operands = 0 : i64, tpu.core_type = #tpu.core_type<tc>} {
    %c0 = arith.constant 0 : index
    %c0_0 = arith.constant 0 : index
    %0 = vector.load %arg0[%c0, %c0_0] : memref<16x128xf32, #tpu.memory_space<vmem>>, vector<16x128xf32>
    %1 = vector.extract_strided_slice %0 {offsets = [0, 0], sizes = [2, 128], strides = [1, 1]} : vector<16x128xf32> to vector<2x128xf32>
    %2 = vector.extract_strided_slice %0 {offsets = [2, 0], sizes = [2, 128], strides = [1, 1]} : vector<16x128xf32> to vector<2x128xf32>
    %3 = vector.extract_strided_slice %0 {offsets = [4, 0], sizes = [2, 128], strides = [1, 1]} : vector<16x128xf32> to vector<2x128xf32>
    %4 = vector.extract_strided_slice %0 {offsets = [6, 0], sizes = [2, 128], strides = [1, 1]} : vector<16x128xf32> to vector<2x128xf32>
    %5 = vector.extract_strided_slice %0 {offsets = [8, 0], sizes = [2, 128], strides = [1, 1]} : vector<16x128xf32> to vector<2x128xf32>
    %6 = vector.extract_strided_slice %0 {offsets = [10, 0], sizes = [2, 128], strides = [1, 1]} : vector<16x128xf32> to vector<2x128xf32>
    %7 = vector.extract_strided_slice %0 {offsets = [12, 0], sizes = [2, 128], strides = [1, 1]} : vector<16x128xf32> to vector<2x128xf32>
    %8 = vector.extract_strided_slice %0 {offsets = [14, 0], sizes = [2, 128], strides = [1, 1]} : vector<16x128xf32> to vector<2x128xf32>
    %cst = arith.constant 0.000000e+00 : f32
    %9 = vector.broadcast %cst : f32 to vector<2x128xf32>
    %c0_1 = arith.constant 0 : index
    %c0_2 = arith.constant 0 : index
    %10 = vector.load %arg1[%c0_1, %c0_2] : memref<128x1024xf32, #tpu.memory_space<vmem>>, vector<128x1024xf32>
    %cst_3 = arith.constant dense<0.000000e+00> : vector<16x1024xf32>
    %11 = tpu.matmul %0, %10, %cst_3 {dimension_numbers = #tpu.dot_dimension_numbers<[1], [0], [0], [1], [0, 0, 1, 1], [], []>} : vector<16x128xf32>, vector<128x1024xf32>, vector<16x1024xf32> -> vector<16x1024xf32>
    %c0_4 = arith.constant 0 : index
    %c0_5 = arith.constant 0 : index
    %12 = vector.load %arg2[%c0_4, %c0_5] : memref<1x1024xf32, #tpu.memory_space<vmem>>, vector<1x1024xf32>
    %13 = vector.broadcast %12 : vector<1x1024xf32> to vector<16x1024xf32>
    %14 = arith.addf %11, %13 : vector<16x1024xf32>
    %15 = vector.extract_strided_slice %14 {offsets = [0, 0], sizes = [16, 512], strides = [1, 1]} : vector<16x1024xf32> to vector<16x512xf32>
    %16 = vector.extract_strided_slice %14 {offsets = [0, 512], sizes = [16, 512], strides = [1, 1]} : vector<16x1024xf32> to vector<16x512xf32>
    %c0_6 = arith.constant 0 : index
    %c0_7 = arith.constant 0 : index
    %17 = vector.load %arg3[%c0_6, %c0_7] : memref<128x512xf32, #tpu.memory_space<vmem>>, vector<128x512xf32>
    %c0_8 = arith.constant 0 : index
    %c0_9 = arith.constant 0 : index
    %18 = vector.load %arg4[%c0_8, %c0_9] : memref<128x512xf32, #tpu.memory_space<vmem>>, vector<128x512xf32>
    %19 = vector.extract_strided_slice %15 {offsets = [0, 0], sizes = [2, 512], strides = [1, 1]} : vector<16x512xf32> to vector<2x512xf32>
    %cst_10 = arith.constant dense<0.000000e+00> : vector<2x512xf32>
    %20 = tpu.matmul %9, %17, %cst_10 {dimension_numbers = #tpu.dot_dimension_numbers<[1], [0], [0], [1], [0, 0, 1, 1], [], []>} : vector<2x128xf32>, vector<128x512xf32>, vector<2x512xf32> -> vector<2x512xf32>
    %21 = arith.addf %19, %20 : vector<2x512xf32>
    %22 = vector.extract_strided_slice %21 {offsets = [0, 0], sizes = [2, 128], strides = [1, 1]} : vector<2x512xf32> to vector<2x128xf32>
    %23 = arith.negf %22 : vector<2x128xf32>
    %24 = math.exp %23 : vector<2x128xf32>
    %cst_11 = arith.constant 1.000000e+00 : f32
    %25 = vector.broadcast %cst_11 : f32 to vector<2x128xf32>
    %26 = arith.addf %25, %24 : vector<2x128xf32>
    %27 = arith.divf %25, %26 : vector<2x128xf32>
    %28 = vector.extract_strided_slice %21 {offsets = [0, 128], sizes = [2, 128], strides = [1, 1]} : vector<2x512xf32> to vector<2x128xf32>
    %29 = arith.negf %28 : vector<2x128xf32>
    %30 = math.exp %29 : vector<2x128xf32>
    %cst_12 = arith.constant 1.000000e+00 : f32
    %31 = vector.broadcast %cst_12 : f32 to vector<2x128xf32>
    %32 = arith.addf %31, %30 : vector<2x128xf32>
    %33 = arith.divf %31, %32 : vector<2x128xf32>
    %34 = vector.extract_strided_slice %21 {offsets = [0, 256], sizes = [2, 128], strides = [1, 1]} : vector<2x512xf32> to vector<2x128xf32>
    %35 = math.tanh %34 : vector<2x128xf32>
    %36 = vector.extract_strided_slice %21 {offsets = [0, 384], sizes = [2, 128], strides = [1, 1]} : vector<2x512xf32> to vector<2x128xf32>
    %37 = arith.negf %36 : vector<2x128xf32>
    %38 = math.exp %37 : vector<2x128xf32>
    %cst_13 = arith.constant 1.000000e+00 : f32
    %39 = vector.broadcast %cst_13 : f32 to vector<2x128xf32>
    %40 = arith.addf %39, %38 : vector<2x128xf32>
    %41 = arith.divf %39, %40 : vector<2x128xf32>
    %42 = arith.mulf %33, %9 : vector<2x128xf32>
    %43 = arith.mulf %27, %35 : vector<2x128xf32>
    %44 = arith.addf %42, %43 : vector<2x128xf32>
    %45 = math.tanh %44 : vector<2x128xf32>
    %46 = arith.mulf %41, %45 : vector<2x128xf32>
    %47 = vector.extract_strided_slice %16 {offsets = [14, 0], sizes = [2, 512], strides = [1, 1]} : vector<16x512xf32> to vector<2x512xf32>
    %cst_14 = arith.constant dense<0.000000e+00> : vector<2x512xf32>
    %48 = tpu.matmul %9, %18, %cst_14 {dimension_numbers = #tpu.dot_dimension_numbers<[1], [0], [0], [1], [0, 0, 1, 1], [], []>} : vector<2x128xf32>, vector<128x512xf32>, vector<2x512xf32> -> vector<2x512xf32>
    %49 = arith.addf %47, %48 : vector<2x512xf32>
    %50 = vector.extract_strided_slice %49 {offsets = [0, 0], sizes = [2, 128], strides = [1, 1]} : vector<2x512xf32> to vector<2x128xf32>
    %51 = arith.negf %50 : vector<2x128xf32>
    %52 = math.exp %51 : vector<2x128xf32>
    %cst_15 = arith.constant 1.000000e+00 : f32
    %53 = vector.broadcast %cst_15 : f32 to vector<2x128xf32>
    %54 = arith.addf %53, %52 : vector<2x128xf32>
    %55 = arith.divf %53, %54 : vector<2x128xf32>
    %56 = vector.extract_strided_slice %49 {offsets = [0, 128], sizes = [2, 128], strides = [1, 1]} : vector<2x512xf32> to vector<2x128xf32>
    %57 = arith.negf %56 : vector<2x128xf32>
    %58 = math.exp %57 : vector<2x128xf32>
    %cst_16 = arith.constant 1.000000e+00 : f32
    %59 = vector.broadcast %cst_16 : f32 to vector<2x128xf32>
    %60 = arith.addf %59, %58 : vector<2x128xf32>
    %61 = arith.divf %59, %60 : vector<2x128xf32>
    %62 = vector.extract_strided_slice %49 {offsets = [0, 256], sizes = [2, 128], strides = [1, 1]} : vector<2x512xf32> to vector<2x128xf32>
    %63 = math.tanh %62 : vector<2x128xf32>
    %64 = vector.extract_strided_slice %49 {offsets = [0, 384], sizes = [2, 128], strides = [1, 1]} : vector<2x512xf32> to vector<2x128xf32>
    %65 = arith.negf %64 : vector<2x128xf32>
    %66 = math.exp %65 : vector<2x128xf32>
    %cst_17 = arith.constant 1.000000e+00 : f32
    %67 = vector.broadcast %cst_17 : f32 to vector<2x128xf32>
    %68 = arith.addf %67, %66 : vector<2x128xf32>
    %69 = arith.divf %67, %68 : vector<2x128xf32>
    %70 = arith.mulf %61, %9 : vector<2x128xf32>
    %71 = arith.mulf %55, %63 : vector<2x128xf32>
    %72 = arith.addf %70, %71 : vector<2x128xf32>
    %73 = math.tanh %72 : vector<2x128xf32>
    %74 = arith.mulf %69, %73 : vector<2x128xf32>
    %75 = vector.extract_strided_slice %15 {offsets = [2, 0], sizes = [2, 512], strides = [1, 1]} : vector<16x512xf32> to vector<2x512xf32>
    %cst_18 = arith.constant dense<0.000000e+00> : vector<2x512xf32>
    %76 = tpu.matmul %46, %17, %cst_18 {dimension_numbers = #tpu.dot_dimension_numbers<[1], [0], [0], [1], [0, 0, 1, 1], [], []>} : vector<2x128xf32>, vector<128x512xf32>, vector<2x512xf32> -> vector<2x512xf32>
    %77 = arith.addf %75, %76 : vector<2x512xf32>
    %78 = vector.extract_strided_slice %77 {offsets = [0, 0], sizes = [2, 128], strides = [1, 1]} : vector<2x512xf32> to vector<2x128xf32>
    %79 = arith.negf %78 : vector<2x128xf32>
    %80 = math.exp %79 : vector<2x128xf32>
    %cst_19 = arith.constant 1.000000e+00 : f32
    %81 = vector.broadcast %cst_19 : f32 to vector<2x128xf32>
    %82 = arith.addf %81, %80 : vector<2x128xf32>
    %83 = arith.divf %81, %82 : vector<2x128xf32>
    %84 = vector.extract_strided_slice %77 {offsets = [0, 128], sizes = [2, 128], strides = [1, 1]} : vector<2x512xf32> to vector<2x128xf32>
    %85 = arith.negf %84 : vector<2x128xf32>
    %86 = math.exp %85 : vector<2x128xf32>
    %cst_20 = arith.constant 1.000000e+00 : f32
    %87 = vector.broadcast %cst_20 : f32 to vector<2x128xf32>
    %88 = arith.addf %87, %86 : vector<2x128xf32>
    %89 = arith.divf %87, %88 : vector<2x128xf32>
    %90 = vector.extract_strided_slice %77 {offsets = [0, 256], sizes = [2, 128], strides = [1, 1]} : vector<2x512xf32> to vector<2x128xf32>
    %91 = math.tanh %90 : vector<2x128xf32>
    %92 = vector.extract_strided_slice %77 {offsets = [0, 384], sizes = [2, 128], strides = [1, 1]} : vector<2x512xf32> to vector<2x128xf32>
    %93 = arith.negf %92 : vector<2x128xf32>
    %94 = math.exp %93 : vector<2x128xf32>
    %cst_21 = arith.constant 1.000000e+00 : f32
    %95 = vector.broadcast %cst_21 : f32 to vector<2x128xf32>
    %96 = arith.addf %95, %94 : vector<2x128xf32>
    %97 = arith.divf %95, %96 : vector<2x128xf32>
    %98 = arith.mulf %89, %44 : vector<2x128xf32>
    %99 = arith.mulf %83, %91 : vector<2x128xf32>
    %100 = arith.addf %98, %99 : vector<2x128xf32>
    %101 = math.tanh %100 : vector<2x128xf32>
    %102 = arith.mulf %97, %101 : vector<2x128xf32>
    %103 = vector.extract_strided_slice %16 {offsets = [12, 0], sizes = [2, 512], strides = [1, 1]} : vector<16x512xf32> to vector<2x512xf32>
    %cst_22 = arith.constant dense<0.000000e+00> : vector<2x512xf32>
    %104 = tpu.matmul %74, %18, %cst_22 {dimension_numbers = #tpu.dot_dimension_numbers<[1], [0], [0], [1], [0, 0, 1, 1], [], []>} : vector<2x128xf32>, vector<128x512xf32>, vector<2x512xf32> -> vector<2x512xf32>
    %105 = arith.addf %103, %104 : vector<2x512xf32>
    %106 = vector.extract_strided_slice %105 {offsets = [0, 0], sizes = [2, 128], strides = [1, 1]} : vector<2x512xf32> to vector<2x128xf32>
    %107 = arith.negf %106 : vector<2x128xf32>
    %108 = math.exp %107 : vector<2x128xf32>
    %cst_23 = arith.constant 1.000000e+00 : f32
    %109 = vector.broadcast %cst_23 : f32 to vector<2x128xf32>
    %110 = arith.addf %109, %108 : vector<2x128xf32>
    %111 = arith.divf %109, %110 : vector<2x128xf32>
    %112 = vector.extract_strided_slice %105 {offsets = [0, 128], sizes = [2, 128], strides = [1, 1]} : vector<2x512xf32> to vector<2x128xf32>
    %113 = arith.negf %112 : vector<2x128xf32>
    %114 = math.exp %113 : vector<2x128xf32>
    %cst_24 = arith.constant 1.000000e+00 : f32
    %115 = vector.broadcast %cst_24 : f32 to vector<2x128xf32>
    %116 = arith.addf %115, %114 : vector<2x128xf32>
    %117 = arith.divf %115, %116 : vector<2x128xf32>
    %118 = vector.extract_strided_slice %105 {offsets = [0, 256], sizes = [2, 128], strides = [1, 1]} : vector<2x512xf32> to vector<2x128xf32>
    %119 = math.tanh %118 : vector<2x128xf32>
    %120 = vector.extract_strided_slice %105 {offsets = [0, 384], sizes = [2, 128], strides = [1, 1]} : vector<2x512xf32> to vector<2x128xf32>
    %121 = arith.negf %120 : vector<2x128xf32>
    %122 = math.exp %121 : vector<2x128xf32>
    %cst_25 = arith.constant 1.000000e+00 : f32
    %123 = vector.broadcast %cst_25 : f32 to vector<2x128xf32>
    %124 = arith.addf %123, %122 : vector<2x128xf32>
    %125 = arith.divf %123, %124 : vector<2x128xf32>
    %126 = arith.mulf %117, %72 : vector<2x128xf32>
    %127 = arith.mulf %111, %119 : vector<2x128xf32>
    %128 = arith.addf %126, %127 : vector<2x128xf32>
    %129 = math.tanh %128 : vector<2x128xf32>
    %130 = arith.mulf %125, %129 : vector<2x128xf32>
    %131 = vector.extract_strided_slice %15 {offsets = [4, 0], sizes = [2, 512], strides = [1, 1]} : vector<16x512xf32> to vector<2x512xf32>
    %cst_26 = arith.constant dense<0.000000e+00> : vector<2x512xf32>
    %132 = tpu.matmul %102, %17, %cst_26 {dimension_numbers = #tpu.dot_dimension_numbers<[1], [0], [0], [1], [0, 0, 1, 1], [], []>} : vector<2x128xf32>, vector<128x512xf32>, vector<2x512xf32> -> vector<2x512xf32>
    %133 = arith.addf %131, %132 : vector<2x512xf32>
    %134 = vector.extract_strided_slice %133 {offsets = [0, 0], sizes = [2, 128], strides = [1, 1]} : vector<2x512xf32> to vector<2x128xf32>
    %135 = arith.negf %134 : vector<2x128xf32>
    %136 = math.exp %135 : vector<2x128xf32>
    %cst_27 = arith.constant 1.000000e+00 : f32
    %137 = vector.broadcast %cst_27 : f32 to vector<2x128xf32>
    %138 = arith.addf %137, %136 : vector<2x128xf32>
    %139 = arith.divf %137, %138 : vector<2x128xf32>
    %140 = vector.extract_strided_slice %133 {offsets = [0, 128], sizes = [2, 128], strides = [1, 1]} : vector<2x512xf32> to vector<2x128xf32>
    %141 = arith.negf %140 : vector<2x128xf32>
    %142 = math.exp %141 : vector<2x128xf32>
    %cst_28 = arith.constant 1.000000e+00 : f32
    %143 = vector.broadcast %cst_28 : f32 to vector<2x128xf32>
    %144 = arith.addf %143, %142 : vector<2x128xf32>
    %145 = arith.divf %143, %144 : vector<2x128xf32>
    %146 = vector.extract_strided_slice %133 {offsets = [0, 256], sizes = [2, 128], strides = [1, 1]} : vector<2x512xf32> to vector<2x128xf32>
    %147 = math.tanh %146 : vector<2x128xf32>
    %148 = vector.extract_strided_slice %133 {offsets = [0, 384], sizes = [2, 128], strides = [1, 1]} : vector<2x512xf32> to vector<2x128xf32>
    %149 = arith.negf %148 : vector<2x128xf32>
    %150 = math.exp %149 : vector<2x128xf32>
    %cst_29 = arith.constant 1.000000e+00 : f32
    %151 = vector.broadcast %cst_29 : f32 to vector<2x128xf32>
    %152 = arith.addf %151, %150 : vector<2x128xf32>
    %153 = arith.divf %151, %152 : vector<2x128xf32>
    %154 = arith.mulf %145, %100 : vector<2x128xf32>
    %155 = arith.mulf %139, %147 : vector<2x128xf32>
    %156 = arith.addf %154, %155 : vector<2x128xf32>
    %157 = math.tanh %156 : vector<2x128xf32>
    %158 = arith.mulf %153, %157 : vector<2x128xf32>
    %159 = vector.extract_strided_slice %16 {offsets = [10, 0], sizes = [2, 512], strides = [1, 1]} : vector<16x512xf32> to vector<2x512xf32>
    %cst_30 = arith.constant dense<0.000000e+00> : vector<2x512xf32>
    %160 = tpu.matmul %130, %18, %cst_30 {dimension_numbers = #tpu.dot_dimension_numbers<[1], [0], [0], [1], [0, 0, 1, 1], [], []>} : vector<2x128xf32>, vector<128x512xf32>, vector<2x512xf32> -> vector<2x512xf32>
    %161 = arith.addf %159, %160 : vector<2x512xf32>
    %162 = vector.extract_strided_slice %161 {offsets = [0, 0], sizes = [2, 128], strides = [1, 1]} : vector<2x512xf32> to vector<2x128xf32>
    %163 = arith.negf %162 : vector<2x128xf32>
    %164 = math.exp %163 : vector<2x128xf32>
    %cst_31 = arith.constant 1.000000e+00 : f32
    %165 = vector.broadcast %cst_31 : f32 to vector<2x128xf32>
    %166 = arith.addf %165, %164 : vector<2x128xf32>
    %167 = arith.divf %165, %166 : vector<2x128xf32>
    %168 = vector.extract_strided_slice %161 {offsets = [0, 128], sizes = [2, 128], strides = [1, 1]} : vector<2x512xf32> to vector<2x128xf32>
    %169 = arith.negf %168 : vector<2x128xf32>
    %170 = math.exp %169 : vector<2x128xf32>
    %cst_32 = arith.constant 1.000000e+00 : f32
    %171 = vector.broadcast %cst_32 : f32 to vector<2x128xf32>
    %172 = arith.addf %171, %170 : vector<2x128xf32>
    %173 = arith.divf %171, %172 : vector<2x128xf32>
    %174 = vector.extract_strided_slice %161 {offsets = [0, 256], sizes = [2, 128], strides = [1, 1]} : vector<2x512xf32> to vector<2x128xf32>
    %175 = math.tanh %174 : vector<2x128xf32>
    %176 = vector.extract_strided_slice %161 {offsets = [0, 384], sizes = [2, 128], strides = [1, 1]} : vector<2x512xf32> to vector<2x128xf32>
    %177 = arith.negf %176 : vector<2x128xf32>
    %178 = math.exp %177 : vector<2x128xf32>
    %cst_33 = arith.constant 1.000000e+00 : f32
    %179 = vector.broadcast %cst_33 : f32 to vector<2x128xf32>
    %180 = arith.addf %179, %178 : vector<2x128xf32>
    %181 = arith.divf %179, %180 : vector<2x128xf32>
    %182 = arith.mulf %173, %128 : vector<2x128xf32>
    %183 = arith.mulf %167, %175 : vector<2x128xf32>
    %184 = arith.addf %182, %183 : vector<2x128xf32>
    %185 = math.tanh %184 : vector<2x128xf32>
    %186 = arith.mulf %181, %185 : vector<2x128xf32>
    %187 = vector.extract_strided_slice %15 {offsets = [6, 0], sizes = [2, 512], strides = [1, 1]} : vector<16x512xf32> to vector<2x512xf32>
    %cst_34 = arith.constant dense<0.000000e+00> : vector<2x512xf32>
    %188 = tpu.matmul %158, %17, %cst_34 {dimension_numbers = #tpu.dot_dimension_numbers<[1], [0], [0], [1], [0, 0, 1, 1], [], []>} : vector<2x128xf32>, vector<128x512xf32>, vector<2x512xf32> -> vector<2x512xf32>
    %189 = arith.addf %187, %188 : vector<2x512xf32>
    %190 = vector.extract_strided_slice %189 {offsets = [0, 0], sizes = [2, 128], strides = [1, 1]} : vector<2x512xf32> to vector<2x128xf32>
    %191 = arith.negf %190 : vector<2x128xf32>
    %192 = math.exp %191 : vector<2x128xf32>
    %cst_35 = arith.constant 1.000000e+00 : f32
    %193 = vector.broadcast %cst_35 : f32 to vector<2x128xf32>
    %194 = arith.addf %193, %192 : vector<2x128xf32>
    %195 = arith.divf %193, %194 : vector<2x128xf32>
    %196 = vector.extract_strided_slice %189 {offsets = [0, 128], sizes = [2, 128], strides = [1, 1]} : vector<2x512xf32> to vector<2x128xf32>
    %197 = arith.negf %196 : vector<2x128xf32>
    %198 = math.exp %197 : vector<2x128xf32>
    %cst_36 = arith.constant 1.000000e+00 : f32
    %199 = vector.broadcast %cst_36 : f32 to vector<2x128xf32>
    %200 = arith.addf %199, %198 : vector<2x128xf32>
    %201 = arith.divf %199, %200 : vector<2x128xf32>
    %202 = vector.extract_strided_slice %189 {offsets = [0, 256], sizes = [2, 128], strides = [1, 1]} : vector<2x512xf32> to vector<2x128xf32>
    %203 = math.tanh %202 : vector<2x128xf32>
    %204 = vector.extract_strided_slice %189 {offsets = [0, 384], sizes = [2, 128], strides = [1, 1]} : vector<2x512xf32> to vector<2x128xf32>
    %205 = arith.negf %204 : vector<2x128xf32>
    %206 = math.exp %205 : vector<2x128xf32>
    %cst_37 = arith.constant 1.000000e+00 : f32
    %207 = vector.broadcast %cst_37 : f32 to vector<2x128xf32>
    %208 = arith.addf %207, %206 : vector<2x128xf32>
    %209 = arith.divf %207, %208 : vector<2x128xf32>
    %210 = arith.mulf %201, %156 : vector<2x128xf32>
    %211 = arith.mulf %195, %203 : vector<2x128xf32>
    %212 = arith.addf %210, %211 : vector<2x128xf32>
    %213 = math.tanh %212 : vector<2x128xf32>
    %214 = arith.mulf %209, %213 : vector<2x128xf32>
    %215 = vector.extract_strided_slice %16 {offsets = [8, 0], sizes = [2, 512], strides = [1, 1]} : vector<16x512xf32> to vector<2x512xf32>
    %cst_38 = arith.constant dense<0.000000e+00> : vector<2x512xf32>
    %216 = tpu.matmul %186, %18, %cst_38 {dimension_numbers = #tpu.dot_dimension_numbers<[1], [0], [0], [1], [0, 0, 1, 1], [], []>} : vector<2x128xf32>, vector<128x512xf32>, vector<2x512xf32> -> vector<2x512xf32>
    %217 = arith.addf %215, %216 : vector<2x512xf32>
    %218 = vector.extract_strided_slice %217 {offsets = [0, 0], sizes = [2, 128], strides = [1, 1]} : vector<2x512xf32> to vector<2x128xf32>
    %219 = arith.negf %218 : vector<2x128xf32>
    %220 = math.exp %219 : vector<2x128xf32>
    %cst_39 = arith.constant 1.000000e+00 : f32
    %221 = vector.broadcast %cst_39 : f32 to vector<2x128xf32>
    %222 = arith.addf %221, %220 : vector<2x128xf32>
    %223 = arith.divf %221, %222 : vector<2x128xf32>
    %224 = vector.extract_strided_slice %217 {offsets = [0, 128], sizes = [2, 128], strides = [1, 1]} : vector<2x512xf32> to vector<2x128xf32>
    %225 = arith.negf %224 : vector<2x128xf32>
    %226 = math.exp %225 : vector<2x128xf32>
    %cst_40 = arith.constant 1.000000e+00 : f32
    %227 = vector.broadcast %cst_40 : f32 to vector<2x128xf32>
    %228 = arith.addf %227, %226 : vector<2x128xf32>
    %229 = arith.divf %227, %228 : vector<2x128xf32>
    %230 = vector.extract_strided_slice %217 {offsets = [0, 256], sizes = [2, 128], strides = [1, 1]} : vector<2x512xf32> to vector<2x128xf32>
    %231 = math.tanh %230 : vector<2x128xf32>
    %232 = vector.extract_strided_slice %217 {offsets = [0, 384], sizes = [2, 128], strides = [1, 1]} : vector<2x512xf32> to vector<2x128xf32>
    %233 = arith.negf %232 : vector<2x128xf32>
    %234 = math.exp %233 : vector<2x128xf32>
    %cst_41 = arith.constant 1.000000e+00 : f32
    %235 = vector.broadcast %cst_41 : f32 to vector<2x128xf32>
    %236 = arith.addf %235, %234 : vector<2x128xf32>
    %237 = arith.divf %235, %236 : vector<2x128xf32>
    %238 = arith.mulf %229, %184 : vector<2x128xf32>
    %239 = arith.mulf %223, %231 : vector<2x128xf32>
    %240 = arith.addf %238, %239 : vector<2x128xf32>
    %241 = math.tanh %240 : vector<2x128xf32>
    %242 = arith.mulf %237, %241 : vector<2x128xf32>
    %243 = vector.extract_strided_slice %15 {offsets = [8, 0], sizes = [2, 512], strides = [1, 1]} : vector<16x512xf32> to vector<2x512xf32>
    %cst_42 = arith.constant dense<0.000000e+00> : vector<2x512xf32>
    %244 = tpu.matmul %214, %17, %cst_42 {dimension_numbers = #tpu.dot_dimension_numbers<[1], [0], [0], [1], [0, 0, 1, 1], [], []>} : vector<2x128xf32>, vector<128x512xf32>, vector<2x512xf32> -> vector<2x512xf32>
    %245 = arith.addf %243, %244 : vector<2x512xf32>
    %246 = vector.extract_strided_slice %245 {offsets = [0, 0], sizes = [2, 128], strides = [1, 1]} : vector<2x512xf32> to vector<2x128xf32>
    %247 = arith.negf %246 : vector<2x128xf32>
    %248 = math.exp %247 : vector<2x128xf32>
    %cst_43 = arith.constant 1.000000e+00 : f32
    %249 = vector.broadcast %cst_43 : f32 to vector<2x128xf32>
    %250 = arith.addf %249, %248 : vector<2x128xf32>
    %251 = arith.divf %249, %250 : vector<2x128xf32>
    %252 = vector.extract_strided_slice %245 {offsets = [0, 128], sizes = [2, 128], strides = [1, 1]} : vector<2x512xf32> to vector<2x128xf32>
    %253 = arith.negf %252 : vector<2x128xf32>
    %254 = math.exp %253 : vector<2x128xf32>
    %cst_44 = arith.constant 1.000000e+00 : f32
    %255 = vector.broadcast %cst_44 : f32 to vector<2x128xf32>
    %256 = arith.addf %255, %254 : vector<2x128xf32>
    %257 = arith.divf %255, %256 : vector<2x128xf32>
    %258 = vector.extract_strided_slice %245 {offsets = [0, 256], sizes = [2, 128], strides = [1, 1]} : vector<2x512xf32> to vector<2x128xf32>
    %259 = math.tanh %258 : vector<2x128xf32>
    %260 = vector.extract_strided_slice %245 {offsets = [0, 384], sizes = [2, 128], strides = [1, 1]} : vector<2x512xf32> to vector<2x128xf32>
    %261 = arith.negf %260 : vector<2x128xf32>
    %262 = math.exp %261 : vector<2x128xf32>
    %cst_45 = arith.constant 1.000000e+00 : f32
    %263 = vector.broadcast %cst_45 : f32 to vector<2x128xf32>
    %264 = arith.addf %263, %262 : vector<2x128xf32>
    %265 = arith.divf %263, %264 : vector<2x128xf32>
    %266 = arith.mulf %257, %212 : vector<2x128xf32>
    %267 = arith.mulf %251, %259 : vector<2x128xf32>
    %268 = arith.addf %266, %267 : vector<2x128xf32>
    %269 = math.tanh %268 : vector<2x128xf32>
    %270 = arith.mulf %265, %269 : vector<2x128xf32>
    %271 = vector.extract_strided_slice %16 {offsets = [6, 0], sizes = [2, 512], strides = [1, 1]} : vector<16x512xf32> to vector<2x512xf32>
    %cst_46 = arith.constant dense<0.000000e+00> : vector<2x512xf32>
    %272 = tpu.matmul %242, %18, %cst_46 {dimension_numbers = #tpu.dot_dimension_numbers<[1], [0], [0], [1], [0, 0, 1, 1], [], []>} : vector<2x128xf32>, vector<128x512xf32>, vector<2x512xf32> -> vector<2x512xf32>
    %273 = arith.addf %271, %272 : vector<2x512xf32>
    %274 = vector.extract_strided_slice %273 {offsets = [0, 0], sizes = [2, 128], strides = [1, 1]} : vector<2x512xf32> to vector<2x128xf32>
    %275 = arith.negf %274 : vector<2x128xf32>
    %276 = math.exp %275 : vector<2x128xf32>
    %cst_47 = arith.constant 1.000000e+00 : f32
    %277 = vector.broadcast %cst_47 : f32 to vector<2x128xf32>
    %278 = arith.addf %277, %276 : vector<2x128xf32>
    %279 = arith.divf %277, %278 : vector<2x128xf32>
    %280 = vector.extract_strided_slice %273 {offsets = [0, 128], sizes = [2, 128], strides = [1, 1]} : vector<2x512xf32> to vector<2x128xf32>
    %281 = arith.negf %280 : vector<2x128xf32>
    %282 = math.exp %281 : vector<2x128xf32>
    %cst_48 = arith.constant 1.000000e+00 : f32
    %283 = vector.broadcast %cst_48 : f32 to vector<2x128xf32>
    %284 = arith.addf %283, %282 : vector<2x128xf32>
    %285 = arith.divf %283, %284 : vector<2x128xf32>
    %286 = vector.extract_strided_slice %273 {offsets = [0, 256], sizes = [2, 128], strides = [1, 1]} : vector<2x512xf32> to vector<2x128xf32>
    %287 = math.tanh %286 : vector<2x128xf32>
    %288 = vector.extract_strided_slice %273 {offsets = [0, 384], sizes = [2, 128], strides = [1, 1]} : vector<2x512xf32> to vector<2x128xf32>
    %289 = arith.negf %288 : vector<2x128xf32>
    %290 = math.exp %289 : vector<2x128xf32>
    %cst_49 = arith.constant 1.000000e+00 : f32
    %291 = vector.broadcast %cst_49 : f32 to vector<2x128xf32>
    %292 = arith.addf %291, %290 : vector<2x128xf32>
    %293 = arith.divf %291, %292 : vector<2x128xf32>
    %294 = arith.mulf %285, %240 : vector<2x128xf32>
    %295 = arith.mulf %279, %287 : vector<2x128xf32>
    %296 = arith.addf %294, %295 : vector<2x128xf32>
    %297 = math.tanh %296 : vector<2x128xf32>
    %298 = arith.mulf %293, %297 : vector<2x128xf32>
    %299 = vector.extract_strided_slice %15 {offsets = [10, 0], sizes = [2, 512], strides = [1, 1]} : vector<16x512xf32> to vector<2x512xf32>
    %cst_50 = arith.constant dense<0.000000e+00> : vector<2x512xf32>
    %300 = tpu.matmul %270, %17, %cst_50 {dimension_numbers = #tpu.dot_dimension_numbers<[1], [0], [0], [1], [0, 0, 1, 1], [], []>} : vector<2x128xf32>, vector<128x512xf32>, vector<2x512xf32> -> vector<2x512xf32>
    %301 = arith.addf %299, %300 : vector<2x512xf32>
    %302 = vector.extract_strided_slice %301 {offsets = [0, 0], sizes = [2, 128], strides = [1, 1]} : vector<2x512xf32> to vector<2x128xf32>
    %303 = arith.negf %302 : vector<2x128xf32>
    %304 = math.exp %303 : vector<2x128xf32>
    %cst_51 = arith.constant 1.000000e+00 : f32
    %305 = vector.broadcast %cst_51 : f32 to vector<2x128xf32>
    %306 = arith.addf %305, %304 : vector<2x128xf32>
    %307 = arith.divf %305, %306 : vector<2x128xf32>
    %308 = vector.extract_strided_slice %301 {offsets = [0, 128], sizes = [2, 128], strides = [1, 1]} : vector<2x512xf32> to vector<2x128xf32>
    %309 = arith.negf %308 : vector<2x128xf32>
    %310 = math.exp %309 : vector<2x128xf32>
    %cst_52 = arith.constant 1.000000e+00 : f32
    %311 = vector.broadcast %cst_52 : f32 to vector<2x128xf32>
    %312 = arith.addf %311, %310 : vector<2x128xf32>
    %313 = arith.divf %311, %312 : vector<2x128xf32>
    %314 = vector.extract_strided_slice %301 {offsets = [0, 256], sizes = [2, 128], strides = [1, 1]} : vector<2x512xf32> to vector<2x128xf32>
    %315 = math.tanh %314 : vector<2x128xf32>
    %316 = vector.extract_strided_slice %301 {offsets = [0, 384], sizes = [2, 128], strides = [1, 1]} : vector<2x512xf32> to vector<2x128xf32>
    %317 = arith.negf %316 : vector<2x128xf32>
    %318 = math.exp %317 : vector<2x128xf32>
    %cst_53 = arith.constant 1.000000e+00 : f32
    %319 = vector.broadcast %cst_53 : f32 to vector<2x128xf32>
    %320 = arith.addf %319, %318 : vector<2x128xf32>
    %321 = arith.divf %319, %320 : vector<2x128xf32>
    %322 = arith.mulf %313, %268 : vector<2x128xf32>
    %323 = arith.mulf %307, %315 : vector<2x128xf32>
    %324 = arith.addf %322, %323 : vector<2x128xf32>
    %325 = math.tanh %324 : vector<2x128xf32>
    %326 = arith.mulf %321, %325 : vector<2x128xf32>
    %327 = vector.extract_strided_slice %16 {offsets = [4, 0], sizes = [2, 512], strides = [1, 1]} : vector<16x512xf32> to vector<2x512xf32>
    %cst_54 = arith.constant dense<0.000000e+00> : vector<2x512xf32>
    %328 = tpu.matmul %298, %18, %cst_54 {dimension_numbers = #tpu.dot_dimension_numbers<[1], [0], [0], [1], [0, 0, 1, 1], [], []>} : vector<2x128xf32>, vector<128x512xf32>, vector<2x512xf32> -> vector<2x512xf32>
    %329 = arith.addf %327, %328 : vector<2x512xf32>
    %330 = vector.extract_strided_slice %329 {offsets = [0, 0], sizes = [2, 128], strides = [1, 1]} : vector<2x512xf32> to vector<2x128xf32>
    %331 = arith.negf %330 : vector<2x128xf32>
    %332 = math.exp %331 : vector<2x128xf32>
    %cst_55 = arith.constant 1.000000e+00 : f32
    %333 = vector.broadcast %cst_55 : f32 to vector<2x128xf32>
    %334 = arith.addf %333, %332 : vector<2x128xf32>
    %335 = arith.divf %333, %334 : vector<2x128xf32>
    %336 = vector.extract_strided_slice %329 {offsets = [0, 128], sizes = [2, 128], strides = [1, 1]} : vector<2x512xf32> to vector<2x128xf32>
    %337 = arith.negf %336 : vector<2x128xf32>
    %338 = math.exp %337 : vector<2x128xf32>
    %cst_56 = arith.constant 1.000000e+00 : f32
    %339 = vector.broadcast %cst_56 : f32 to vector<2x128xf32>
    %340 = arith.addf %339, %338 : vector<2x128xf32>
    %341 = arith.divf %339, %340 : vector<2x128xf32>
    %342 = vector.extract_strided_slice %329 {offsets = [0, 256], sizes = [2, 128], strides = [1, 1]} : vector<2x512xf32> to vector<2x128xf32>
    %343 = math.tanh %342 : vector<2x128xf32>
    %344 = vector.extract_strided_slice %329 {offsets = [0, 384], sizes = [2, 128], strides = [1, 1]} : vector<2x512xf32> to vector<2x128xf32>
    %345 = arith.negf %344 : vector<2x128xf32>
    %346 = math.exp %345 : vector<2x128xf32>
    %cst_57 = arith.constant 1.000000e+00 : f32
    %347 = vector.broadcast %cst_57 : f32 to vector<2x128xf32>
    %348 = arith.addf %347, %346 : vector<2x128xf32>
    %349 = arith.divf %347, %348 : vector<2x128xf32>
    %350 = arith.mulf %341, %296 : vector<2x128xf32>
    %351 = arith.mulf %335, %343 : vector<2x128xf32>
    %352 = arith.addf %350, %351 : vector<2x128xf32>
    %353 = math.tanh %352 : vector<2x128xf32>
    %354 = arith.mulf %349, %353 : vector<2x128xf32>
    %355 = vector.extract_strided_slice %15 {offsets = [12, 0], sizes = [2, 512], strides = [1, 1]} : vector<16x512xf32> to vector<2x512xf32>
    %cst_58 = arith.constant dense<0.000000e+00> : vector<2x512xf32>
    %356 = tpu.matmul %326, %17, %cst_58 {dimension_numbers = #tpu.dot_dimension_numbers<[1], [0], [0], [1], [0, 0, 1, 1], [], []>} : vector<2x128xf32>, vector<128x512xf32>, vector<2x512xf32> -> vector<2x512xf32>
    %357 = arith.addf %355, %356 : vector<2x512xf32>
    %358 = vector.extract_strided_slice %357 {offsets = [0, 0], sizes = [2, 128], strides = [1, 1]} : vector<2x512xf32> to vector<2x128xf32>
    %359 = arith.negf %358 : vector<2x128xf32>
    %360 = math.exp %359 : vector<2x128xf32>
    %cst_59 = arith.constant 1.000000e+00 : f32
    %361 = vector.broadcast %cst_59 : f32 to vector<2x128xf32>
    %362 = arith.addf %361, %360 : vector<2x128xf32>
    %363 = arith.divf %361, %362 : vector<2x128xf32>
    %364 = vector.extract_strided_slice %357 {offsets = [0, 128], sizes = [2, 128], strides = [1, 1]} : vector<2x512xf32> to vector<2x128xf32>
    %365 = arith.negf %364 : vector<2x128xf32>
    %366 = math.exp %365 : vector<2x128xf32>
    %cst_60 = arith.constant 1.000000e+00 : f32
    %367 = vector.broadcast %cst_60 : f32 to vector<2x128xf32>
    %368 = arith.addf %367, %366 : vector<2x128xf32>
    %369 = arith.divf %367, %368 : vector<2x128xf32>
    %370 = vector.extract_strided_slice %357 {offsets = [0, 256], sizes = [2, 128], strides = [1, 1]} : vector<2x512xf32> to vector<2x128xf32>
    %371 = math.tanh %370 : vector<2x128xf32>
    %372 = vector.extract_strided_slice %357 {offsets = [0, 384], sizes = [2, 128], strides = [1, 1]} : vector<2x512xf32> to vector<2x128xf32>
    %373 = arith.negf %372 : vector<2x128xf32>
    %374 = math.exp %373 : vector<2x128xf32>
    %cst_61 = arith.constant 1.000000e+00 : f32
    %375 = vector.broadcast %cst_61 : f32 to vector<2x128xf32>
    %376 = arith.addf %375, %374 : vector<2x128xf32>
    %377 = arith.divf %375, %376 : vector<2x128xf32>
    %378 = arith.mulf %369, %324 : vector<2x128xf32>
    %379 = arith.mulf %363, %371 : vector<2x128xf32>
    %380 = arith.addf %378, %379 : vector<2x128xf32>
    %381 = math.tanh %380 : vector<2x128xf32>
    %382 = arith.mulf %377, %381 : vector<2x128xf32>
    %383 = vector.extract_strided_slice %16 {offsets = [2, 0], sizes = [2, 512], strides = [1, 1]} : vector<16x512xf32> to vector<2x512xf32>
    %cst_62 = arith.constant dense<0.000000e+00> : vector<2x512xf32>
    %384 = tpu.matmul %354, %18, %cst_62 {dimension_numbers = #tpu.dot_dimension_numbers<[1], [0], [0], [1], [0, 0, 1, 1], [], []>} : vector<2x128xf32>, vector<128x512xf32>, vector<2x512xf32> -> vector<2x512xf32>
    %385 = arith.addf %383, %384 : vector<2x512xf32>
    %386 = vector.extract_strided_slice %385 {offsets = [0, 0], sizes = [2, 128], strides = [1, 1]} : vector<2x512xf32> to vector<2x128xf32>
    %387 = arith.negf %386 : vector<2x128xf32>
    %388 = math.exp %387 : vector<2x128xf32>
    %cst_63 = arith.constant 1.000000e+00 : f32
    %389 = vector.broadcast %cst_63 : f32 to vector<2x128xf32>
    %390 = arith.addf %389, %388 : vector<2x128xf32>
    %391 = arith.divf %389, %390 : vector<2x128xf32>
    %392 = vector.extract_strided_slice %385 {offsets = [0, 128], sizes = [2, 128], strides = [1, 1]} : vector<2x512xf32> to vector<2x128xf32>
    %393 = arith.negf %392 : vector<2x128xf32>
    %394 = math.exp %393 : vector<2x128xf32>
    %cst_64 = arith.constant 1.000000e+00 : f32
    %395 = vector.broadcast %cst_64 : f32 to vector<2x128xf32>
    %396 = arith.addf %395, %394 : vector<2x128xf32>
    %397 = arith.divf %395, %396 : vector<2x128xf32>
    %398 = vector.extract_strided_slice %385 {offsets = [0, 256], sizes = [2, 128], strides = [1, 1]} : vector<2x512xf32> to vector<2x128xf32>
    %399 = math.tanh %398 : vector<2x128xf32>
    %400 = vector.extract_strided_slice %385 {offsets = [0, 384], sizes = [2, 128], strides = [1, 1]} : vector<2x512xf32> to vector<2x128xf32>
    %401 = arith.negf %400 : vector<2x128xf32>
    %402 = math.exp %401 : vector<2x128xf32>
    %cst_65 = arith.constant 1.000000e+00 : f32
    %403 = vector.broadcast %cst_65 : f32 to vector<2x128xf32>
    %404 = arith.addf %403, %402 : vector<2x128xf32>
    %405 = arith.divf %403, %404 : vector<2x128xf32>
    %406 = arith.mulf %397, %352 : vector<2x128xf32>
    %407 = arith.mulf %391, %399 : vector<2x128xf32>
    %408 = arith.addf %406, %407 : vector<2x128xf32>
    %409 = math.tanh %408 : vector<2x128xf32>
    %410 = arith.mulf %405, %409 : vector<2x128xf32>
    %411 = vector.extract_strided_slice %15 {offsets = [14, 0], sizes = [2, 512], strides = [1, 1]} : vector<16x512xf32> to vector<2x512xf32>
    %cst_66 = arith.constant dense<0.000000e+00> : vector<2x512xf32>
    %412 = tpu.matmul %382, %17, %cst_66 {dimension_numbers = #tpu.dot_dimension_numbers<[1], [0], [0], [1], [0, 0, 1, 1], [], []>} : vector<2x128xf32>, vector<128x512xf32>, vector<2x512xf32> -> vector<2x512xf32>
    %413 = arith.addf %411, %412 : vector<2x512xf32>
    %414 = vector.extract_strided_slice %413 {offsets = [0, 0], sizes = [2, 128], strides = [1, 1]} : vector<2x512xf32> to vector<2x128xf32>
    %415 = arith.negf %414 : vector<2x128xf32>
    %416 = math.exp %415 : vector<2x128xf32>
    %cst_67 = arith.constant 1.000000e+00 : f32
    %417 = vector.broadcast %cst_67 : f32 to vector<2x128xf32>
    %418 = arith.addf %417, %416 : vector<2x128xf32>
    %419 = arith.divf %417, %418 : vector<2x128xf32>
    %420 = vector.extract_strided_slice %413 {offsets = [0, 128], sizes = [2, 128], strides = [1, 1]} : vector<2x512xf32> to vector<2x128xf32>
    %421 = arith.negf %420 : vector<2x128xf32>
    %422 = math.exp %421 : vector<2x128xf32>
    %cst_68 = arith.constant 1.000000e+00 : f32
    %423 = vector.broadcast %cst_68 : f32 to vector<2x128xf32>
    %424 = arith.addf %423, %422 : vector<2x128xf32>
    %425 = arith.divf %423, %424 : vector<2x128xf32>
    %426 = vector.extract_strided_slice %413 {offsets = [0, 256], sizes = [2, 128], strides = [1, 1]} : vector<2x512xf32> to vector<2x128xf32>
    %427 = math.tanh %426 : vector<2x128xf32>
    %428 = vector.extract_strided_slice %413 {offsets = [0, 384], sizes = [2, 128], strides = [1, 1]} : vector<2x512xf32> to vector<2x128xf32>
    %429 = arith.negf %428 : vector<2x128xf32>
    %430 = math.exp %429 : vector<2x128xf32>
    %cst_69 = arith.constant 1.000000e+00 : f32
    %431 = vector.broadcast %cst_69 : f32 to vector<2x128xf32>
    %432 = arith.addf %431, %430 : vector<2x128xf32>
    %433 = arith.divf %431, %432 : vector<2x128xf32>
    %434 = arith.mulf %425, %380 : vector<2x128xf32>
    %435 = arith.mulf %419, %427 : vector<2x128xf32>
    %436 = arith.addf %434, %435 : vector<2x128xf32>
    %437 = math.tanh %436 : vector<2x128xf32>
    %438 = arith.mulf %433, %437 : vector<2x128xf32>
    %439 = vector.extract_strided_slice %16 {offsets = [0, 0], sizes = [2, 512], strides = [1, 1]} : vector<16x512xf32> to vector<2x512xf32>
    %cst_70 = arith.constant dense<0.000000e+00> : vector<2x512xf32>
    %440 = tpu.matmul %410, %18, %cst_70 {dimension_numbers = #tpu.dot_dimension_numbers<[1], [0], [0], [1], [0, 0, 1, 1], [], []>} : vector<2x128xf32>, vector<128x512xf32>, vector<2x512xf32> -> vector<2x512xf32>
    %441 = arith.addf %439, %440 : vector<2x512xf32>
    %442 = vector.extract_strided_slice %441 {offsets = [0, 0], sizes = [2, 128], strides = [1, 1]} : vector<2x512xf32> to vector<2x128xf32>
    %443 = arith.negf %442 : vector<2x128xf32>
    %444 = math.exp %443 : vector<2x128xf32>
    %cst_71 = arith.constant 1.000000e+00 : f32
    %445 = vector.broadcast %cst_71 : f32 to vector<2x128xf32>
    %446 = arith.addf %445, %444 : vector<2x128xf32>
    %447 = arith.divf %445, %446 : vector<2x128xf32>
    %448 = vector.extract_strided_slice %441 {offsets = [0, 128], sizes = [2, 128], strides = [1, 1]} : vector<2x512xf32> to vector<2x128xf32>
    %449 = arith.negf %448 : vector<2x128xf32>
    %450 = math.exp %449 : vector<2x128xf32>
    %cst_72 = arith.constant 1.000000e+00 : f32
    %451 = vector.broadcast %cst_72 : f32 to vector<2x128xf32>
    %452 = arith.addf %451, %450 : vector<2x128xf32>
    %453 = arith.divf %451, %452 : vector<2x128xf32>
    %454 = vector.extract_strided_slice %441 {offsets = [0, 256], sizes = [2, 128], strides = [1, 1]} : vector<2x512xf32> to vector<2x128xf32>
    %455 = math.tanh %454 : vector<2x128xf32>
    %456 = vector.extract_strided_slice %441 {offsets = [0, 384], sizes = [2, 128], strides = [1, 1]} : vector<2x512xf32> to vector<2x128xf32>
    %457 = arith.negf %456 : vector<2x128xf32>
    %458 = math.exp %457 : vector<2x128xf32>
    %cst_73 = arith.constant 1.000000e+00 : f32
    %459 = vector.broadcast %cst_73 : f32 to vector<2x128xf32>
    %460 = arith.addf %459, %458 : vector<2x128xf32>
    %461 = arith.divf %459, %460 : vector<2x128xf32>
    %462 = arith.mulf %453, %408 : vector<2x128xf32>
    %463 = arith.mulf %447, %455 : vector<2x128xf32>
    %464 = arith.addf %462, %463 : vector<2x128xf32>
    %465 = math.tanh %464 : vector<2x128xf32>
    %466 = arith.mulf %461, %465 : vector<2x128xf32>
    %467 = tpu.concatenate %46, %102, %158, %214, %270, %326, %382, %438 in 0 : vector<2x128xf32>, vector<2x128xf32>, vector<2x128xf32>, vector<2x128xf32>, vector<2x128xf32>, vector<2x128xf32>, vector<2x128xf32>, vector<2x128xf32> -> vector<16x128xf32>
    %468 = tpu.concatenate %74, %130, %186, %242, %298, %354, %410, %466 in 0 : vector<2x128xf32>, vector<2x128xf32>, vector<2x128xf32>, vector<2x128xf32>, vector<2x128xf32>, vector<2x128xf32>, vector<2x128xf32>, vector<2x128xf32> -> vector<16x128xf32>
    %c0_74 = arith.constant 0 : index
    %c0_75 = arith.constant 0 : index
    %469 = vector.load %arg5[%c0_74, %c0_75] : memref<128x512xf32, #tpu.memory_space<vmem>>, vector<128x512xf32>
    %cst_76 = arith.constant dense<0.000000e+00> : vector<16x512xf32>
    %470 = tpu.matmul %467, %469, %cst_76 {dimension_numbers = #tpu.dot_dimension_numbers<[1], [0], [0], [1], [0, 0, 1, 1], [], []>} : vector<16x128xf32>, vector<128x512xf32>, vector<16x512xf32> -> vector<16x512xf32>
    %c0_77 = arith.constant 0 : index
    %c0_78 = arith.constant 0 : index
    %471 = vector.load %arg6[%c0_77, %c0_78] : memref<1x512xf32, #tpu.memory_space<vmem>>, vector<1x512xf32>
    %472 = vector.broadcast %471 : vector<1x512xf32> to vector<16x512xf32>
    %473 = arith.addf %470, %472 : vector<16x512xf32>
    %c0_79 = arith.constant 0 : index
    %c0_80 = arith.constant 0 : index
    %474 = vector.load %arg7[%c0_79, %c0_80] : memref<128x512xf32, #tpu.memory_space<vmem>>, vector<128x512xf32>
    %cst_81 = arith.constant dense<0.000000e+00> : vector<16x512xf32>
    %475 = tpu.matmul %468, %474, %cst_81 {dimension_numbers = #tpu.dot_dimension_numbers<[1], [0], [0], [1], [0, 0, 1, 1], [], []>} : vector<16x128xf32>, vector<128x512xf32>, vector<16x512xf32> -> vector<16x512xf32>
    %c0_82 = arith.constant 0 : index
    %c0_83 = arith.constant 0 : index
    %476 = vector.load %arg8[%c0_82, %c0_83] : memref<1x512xf32, #tpu.memory_space<vmem>>, vector<1x512xf32>
    %477 = vector.broadcast %476 : vector<1x512xf32> to vector<16x512xf32>
    %478 = arith.addf %475, %477 : vector<16x512xf32>
    %c0_84 = arith.constant 0 : index
    %c0_85 = arith.constant 0 : index
    %479 = vector.load %arg9[%c0_84, %c0_85] : memref<128x512xf32, #tpu.memory_space<vmem>>, vector<128x512xf32>
    %c0_86 = arith.constant 0 : index
    %c0_87 = arith.constant 0 : index
    %480 = vector.load %arg10[%c0_86, %c0_87] : memref<128x512xf32, #tpu.memory_space<vmem>>, vector<128x512xf32>
    %481 = vector.extract_strided_slice %473 {offsets = [0, 0], sizes = [2, 512], strides = [1, 1]} : vector<16x512xf32> to vector<2x512xf32>
    %cst_88 = arith.constant dense<0.000000e+00> : vector<2x512xf32>
    %482 = tpu.matmul %9, %479, %cst_88 {dimension_numbers = #tpu.dot_dimension_numbers<[1], [0], [0], [1], [0, 0, 1, 1], [], []>} : vector<2x128xf32>, vector<128x512xf32>, vector<2x512xf32> -> vector<2x512xf32>
    %483 = arith.addf %481, %482 : vector<2x512xf32>
    %484 = vector.extract_strided_slice %483 {offsets = [0, 0], sizes = [2, 128], strides = [1, 1]} : vector<2x512xf32> to vector<2x128xf32>
    %485 = arith.negf %484 : vector<2x128xf32>
    %486 = math.exp %485 : vector<2x128xf32>
    %cst_89 = arith.constant 1.000000e+00 : f32
    %487 = vector.broadcast %cst_89 : f32 to vector<2x128xf32>
    %488 = arith.addf %487, %486 : vector<2x128xf32>
    %489 = arith.divf %487, %488 : vector<2x128xf32>
    %490 = vector.extract_strided_slice %483 {offsets = [0, 128], sizes = [2, 128], strides = [1, 1]} : vector<2x512xf32> to vector<2x128xf32>
    %491 = arith.negf %490 : vector<2x128xf32>
    %492 = math.exp %491 : vector<2x128xf32>
    %cst_90 = arith.constant 1.000000e+00 : f32
    %493 = vector.broadcast %cst_90 : f32 to vector<2x128xf32>
    %494 = arith.addf %493, %492 : vector<2x128xf32>
    %495 = arith.divf %493, %494 : vector<2x128xf32>
    %496 = vector.extract_strided_slice %483 {offsets = [0, 256], sizes = [2, 128], strides = [1, 1]} : vector<2x512xf32> to vector<2x128xf32>
    %497 = math.tanh %496 : vector<2x128xf32>
    %498 = vector.extract_strided_slice %483 {offsets = [0, 384], sizes = [2, 128], strides = [1, 1]} : vector<2x512xf32> to vector<2x128xf32>
    %499 = arith.negf %498 : vector<2x128xf32>
    %500 = math.exp %499 : vector<2x128xf32>
    %cst_91 = arith.constant 1.000000e+00 : f32
    %501 = vector.broadcast %cst_91 : f32 to vector<2x128xf32>
    %502 = arith.addf %501, %500 : vector<2x128xf32>
    %503 = arith.divf %501, %502 : vector<2x128xf32>
    %504 = arith.mulf %495, %9 : vector<2x128xf32>
    %505 = arith.mulf %489, %497 : vector<2x128xf32>
    %506 = arith.addf %504, %505 : vector<2x128xf32>
    %507 = math.tanh %506 : vector<2x128xf32>
    %508 = arith.mulf %503, %507 : vector<2x128xf32>
    %509 = vector.extract_strided_slice %478 {offsets = [0, 0], sizes = [2, 512], strides = [1, 1]} : vector<16x512xf32> to vector<2x512xf32>
    %cst_92 = arith.constant dense<0.000000e+00> : vector<2x512xf32>
    %510 = tpu.matmul %9, %480, %cst_92 {dimension_numbers = #tpu.dot_dimension_numbers<[1], [0], [0], [1], [0, 0, 1, 1], [], []>} : vector<2x128xf32>, vector<128x512xf32>, vector<2x512xf32> -> vector<2x512xf32>
    %511 = arith.addf %509, %510 : vector<2x512xf32>
    %512 = vector.extract_strided_slice %511 {offsets = [0, 0], sizes = [2, 128], strides = [1, 1]} : vector<2x512xf32> to vector<2x128xf32>
    %513 = arith.negf %512 : vector<2x128xf32>
    %514 = math.exp %513 : vector<2x128xf32>
    %cst_93 = arith.constant 1.000000e+00 : f32
    %515 = vector.broadcast %cst_93 : f32 to vector<2x128xf32>
    %516 = arith.addf %515, %514 : vector<2x128xf32>
    %517 = arith.divf %515, %516 : vector<2x128xf32>
    %518 = vector.extract_strided_slice %511 {offsets = [0, 128], sizes = [2, 128], strides = [1, 1]} : vector<2x512xf32> to vector<2x128xf32>
    %519 = arith.negf %518 : vector<2x128xf32>
    %520 = math.exp %519 : vector<2x128xf32>
    %cst_94 = arith.constant 1.000000e+00 : f32
    %521 = vector.broadcast %cst_94 : f32 to vector<2x128xf32>
    %522 = arith.addf %521, %520 : vector<2x128xf32>
    %523 = arith.divf %521, %522 : vector<2x128xf32>
    %524 = vector.extract_strided_slice %511 {offsets = [0, 256], sizes = [2, 128], strides = [1, 1]} : vector<2x512xf32> to vector<2x128xf32>
    %525 = math.tanh %524 : vector<2x128xf32>
    %526 = vector.extract_strided_slice %511 {offsets = [0, 384], sizes = [2, 128], strides = [1, 1]} : vector<2x512xf32> to vector<2x128xf32>
    %527 = arith.negf %526 : vector<2x128xf32>
    %528 = math.exp %527 : vector<2x128xf32>
    %cst_95 = arith.constant 1.000000e+00 : f32
    %529 = vector.broadcast %cst_95 : f32 to vector<2x128xf32>
    %530 = arith.addf %529, %528 : vector<2x128xf32>
    %531 = arith.divf %529, %530 : vector<2x128xf32>
    %532 = arith.mulf %523, %9 : vector<2x128xf32>
    %533 = arith.mulf %517, %525 : vector<2x128xf32>
    %534 = arith.addf %532, %533 : vector<2x128xf32>
    %535 = math.tanh %534 : vector<2x128xf32>
    %536 = arith.mulf %531, %535 : vector<2x128xf32>
    %537 = arith.addf %9, %508 : vector<2x128xf32>
    %538 = arith.addf %537, %536 : vector<2x128xf32>
    %539 = arith.addf %538, %1 : vector<2x128xf32>
    %540 = vector.extract_strided_slice %473 {offsets = [2, 0], sizes = [2, 512], strides = [1, 1]} : vector<16x512xf32> to vector<2x512xf32>
    %cst_96 = arith.constant dense<0.000000e+00> : vector<2x512xf32>
    %541 = tpu.matmul %508, %479, %cst_96 {dimension_numbers = #tpu.dot_dimension_numbers<[1], [0], [0], [1], [0, 0, 1, 1], [], []>} : vector<2x128xf32>, vector<128x512xf32>, vector<2x512xf32> -> vector<2x512xf32>
    %542 = arith.addf %540, %541 : vector<2x512xf32>
    %543 = vector.extract_strided_slice %542 {offsets = [0, 0], sizes = [2, 128], strides = [1, 1]} : vector<2x512xf32> to vector<2x128xf32>
    %544 = arith.negf %543 : vector<2x128xf32>
    %545 = math.exp %544 : vector<2x128xf32>
    %cst_97 = arith.constant 1.000000e+00 : f32
    %546 = vector.broadcast %cst_97 : f32 to vector<2x128xf32>
    %547 = arith.addf %546, %545 : vector<2x128xf32>
    %548 = arith.divf %546, %547 : vector<2x128xf32>
    %549 = vector.extract_strided_slice %542 {offsets = [0, 128], sizes = [2, 128], strides = [1, 1]} : vector<2x512xf32> to vector<2x128xf32>
    %550 = arith.negf %549 : vector<2x128xf32>
    %551 = math.exp %550 : vector<2x128xf32>
    %cst_98 = arith.constant 1.000000e+00 : f32
    %552 = vector.broadcast %cst_98 : f32 to vector<2x128xf32>
    %553 = arith.addf %552, %551 : vector<2x128xf32>
    %554 = arith.divf %552, %553 : vector<2x128xf32>
    %555 = vector.extract_strided_slice %542 {offsets = [0, 256], sizes = [2, 128], strides = [1, 1]} : vector<2x512xf32> to vector<2x128xf32>
    %556 = math.tanh %555 : vector<2x128xf32>
    %557 = vector.extract_strided_slice %542 {offsets = [0, 384], sizes = [2, 128], strides = [1, 1]} : vector<2x512xf32> to vector<2x128xf32>
    %558 = arith.negf %557 : vector<2x128xf32>
    %559 = math.exp %558 : vector<2x128xf32>
    %cst_99 = arith.constant 1.000000e+00 : f32
    %560 = vector.broadcast %cst_99 : f32 to vector<2x128xf32>
    %561 = arith.addf %560, %559 : vector<2x128xf32>
    %562 = arith.divf %560, %561 : vector<2x128xf32>
    %563 = arith.mulf %554, %506 : vector<2x128xf32>
    %564 = arith.mulf %548, %556 : vector<2x128xf32>
    %565 = arith.addf %563, %564 : vector<2x128xf32>
    %566 = math.tanh %565 : vector<2x128xf32>
    %567 = arith.mulf %562, %566 : vector<2x128xf32>
    %568 = vector.extract_strided_slice %478 {offsets = [2, 0], sizes = [2, 512], strides = [1, 1]} : vector<16x512xf32> to vector<2x512xf32>
    %cst_100 = arith.constant dense<0.000000e+00> : vector<2x512xf32>
    %569 = tpu.matmul %536, %480, %cst_100 {dimension_numbers = #tpu.dot_dimension_numbers<[1], [0], [0], [1], [0, 0, 1, 1], [], []>} : vector<2x128xf32>, vector<128x512xf32>, vector<2x512xf32> -> vector<2x512xf32>
    %570 = arith.addf %568, %569 : vector<2x512xf32>
    %571 = vector.extract_strided_slice %570 {offsets = [0, 0], sizes = [2, 128], strides = [1, 1]} : vector<2x512xf32> to vector<2x128xf32>
    %572 = arith.negf %571 : vector<2x128xf32>
    %573 = math.exp %572 : vector<2x128xf32>
    %cst_101 = arith.constant 1.000000e+00 : f32
    %574 = vector.broadcast %cst_101 : f32 to vector<2x128xf32>
    %575 = arith.addf %574, %573 : vector<2x128xf32>
    %576 = arith.divf %574, %575 : vector<2x128xf32>
    %577 = vector.extract_strided_slice %570 {offsets = [0, 128], sizes = [2, 128], strides = [1, 1]} : vector<2x512xf32> to vector<2x128xf32>
    %578 = arith.negf %577 : vector<2x128xf32>
    %579 = math.exp %578 : vector<2x128xf32>
    %cst_102 = arith.constant 1.000000e+00 : f32
    %580 = vector.broadcast %cst_102 : f32 to vector<2x128xf32>
    %581 = arith.addf %580, %579 : vector<2x128xf32>
    %582 = arith.divf %580, %581 : vector<2x128xf32>
    %583 = vector.extract_strided_slice %570 {offsets = [0, 256], sizes = [2, 128], strides = [1, 1]} : vector<2x512xf32> to vector<2x128xf32>
    %584 = math.tanh %583 : vector<2x128xf32>
    %585 = vector.extract_strided_slice %570 {offsets = [0, 384], sizes = [2, 128], strides = [1, 1]} : vector<2x512xf32> to vector<2x128xf32>
    %586 = arith.negf %585 : vector<2x128xf32>
    %587 = math.exp %586 : vector<2x128xf32>
    %cst_103 = arith.constant 1.000000e+00 : f32
    %588 = vector.broadcast %cst_103 : f32 to vector<2x128xf32>
    %589 = arith.addf %588, %587 : vector<2x128xf32>
    %590 = arith.divf %588, %589 : vector<2x128xf32>
    %591 = arith.mulf %582, %534 : vector<2x128xf32>
    %592 = arith.mulf %576, %584 : vector<2x128xf32>
    %593 = arith.addf %591, %592 : vector<2x128xf32>
    %594 = math.tanh %593 : vector<2x128xf32>
    %595 = arith.mulf %590, %594 : vector<2x128xf32>
    %596 = arith.addf %539, %567 : vector<2x128xf32>
    %597 = arith.addf %596, %595 : vector<2x128xf32>
    %598 = arith.addf %597, %2 : vector<2x128xf32>
    %599 = vector.extract_strided_slice %473 {offsets = [4, 0], sizes = [2, 512], strides = [1, 1]} : vector<16x512xf32> to vector<2x512xf32>
    %cst_104 = arith.constant dense<0.000000e+00> : vector<2x512xf32>
    %600 = tpu.matmul %567, %479, %cst_104 {dimension_numbers = #tpu.dot_dimension_numbers<[1], [0], [0], [1], [0, 0, 1, 1], [], []>} : vector<2x128xf32>, vector<128x512xf32>, vector<2x512xf32> -> vector<2x512xf32>
    %601 = arith.addf %599, %600 : vector<2x512xf32>
    %602 = vector.extract_strided_slice %601 {offsets = [0, 0], sizes = [2, 128], strides = [1, 1]} : vector<2x512xf32> to vector<2x128xf32>
    %603 = arith.negf %602 : vector<2x128xf32>
    %604 = math.exp %603 : vector<2x128xf32>
    %cst_105 = arith.constant 1.000000e+00 : f32
    %605 = vector.broadcast %cst_105 : f32 to vector<2x128xf32>
    %606 = arith.addf %605, %604 : vector<2x128xf32>
    %607 = arith.divf %605, %606 : vector<2x128xf32>
    %608 = vector.extract_strided_slice %601 {offsets = [0, 128], sizes = [2, 128], strides = [1, 1]} : vector<2x512xf32> to vector<2x128xf32>
    %609 = arith.negf %608 : vector<2x128xf32>
    %610 = math.exp %609 : vector<2x128xf32>
    %cst_106 = arith.constant 1.000000e+00 : f32
    %611 = vector.broadcast %cst_106 : f32 to vector<2x128xf32>
    %612 = arith.addf %611, %610 : vector<2x128xf32>
    %613 = arith.divf %611, %612 : vector<2x128xf32>
    %614 = vector.extract_strided_slice %601 {offsets = [0, 256], sizes = [2, 128], strides = [1, 1]} : vector<2x512xf32> to vector<2x128xf32>
    %615 = math.tanh %614 : vector<2x128xf32>
    %616 = vector.extract_strided_slice %601 {offsets = [0, 384], sizes = [2, 128], strides = [1, 1]} : vector<2x512xf32> to vector<2x128xf32>
    %617 = arith.negf %616 : vector<2x128xf32>
    %618 = math.exp %617 : vector<2x128xf32>
    %cst_107 = arith.constant 1.000000e+00 : f32
    %619 = vector.broadcast %cst_107 : f32 to vector<2x128xf32>
    %620 = arith.addf %619, %618 : vector<2x128xf32>
    %621 = arith.divf %619, %620 : vector<2x128xf32>
    %622 = arith.mulf %613, %565 : vector<2x128xf32>
    %623 = arith.mulf %607, %615 : vector<2x128xf32>
    %624 = arith.addf %622, %623 : vector<2x128xf32>
    %625 = math.tanh %624 : vector<2x128xf32>
    %626 = arith.mulf %621, %625 : vector<2x128xf32>
    %627 = vector.extract_strided_slice %478 {offsets = [4, 0], sizes = [2, 512], strides = [1, 1]} : vector<16x512xf32> to vector<2x512xf32>
    %cst_108 = arith.constant dense<0.000000e+00> : vector<2x512xf32>
    %628 = tpu.matmul %595, %480, %cst_108 {dimension_numbers = #tpu.dot_dimension_numbers<[1], [0], [0], [1], [0, 0, 1, 1], [], []>} : vector<2x128xf32>, vector<128x512xf32>, vector<2x512xf32> -> vector<2x512xf32>
    %629 = arith.addf %627, %628 : vector<2x512xf32>
    %630 = vector.extract_strided_slice %629 {offsets = [0, 0], sizes = [2, 128], strides = [1, 1]} : vector<2x512xf32> to vector<2x128xf32>
    %631 = arith.negf %630 : vector<2x128xf32>
    %632 = math.exp %631 : vector<2x128xf32>
    %cst_109 = arith.constant 1.000000e+00 : f32
    %633 = vector.broadcast %cst_109 : f32 to vector<2x128xf32>
    %634 = arith.addf %633, %632 : vector<2x128xf32>
    %635 = arith.divf %633, %634 : vector<2x128xf32>
    %636 = vector.extract_strided_slice %629 {offsets = [0, 128], sizes = [2, 128], strides = [1, 1]} : vector<2x512xf32> to vector<2x128xf32>
    %637 = arith.negf %636 : vector<2x128xf32>
    %638 = math.exp %637 : vector<2x128xf32>
    %cst_110 = arith.constant 1.000000e+00 : f32
    %639 = vector.broadcast %cst_110 : f32 to vector<2x128xf32>
    %640 = arith.addf %639, %638 : vector<2x128xf32>
    %641 = arith.divf %639, %640 : vector<2x128xf32>
    %642 = vector.extract_strided_slice %629 {offsets = [0, 256], sizes = [2, 128], strides = [1, 1]} : vector<2x512xf32> to vector<2x128xf32>
    %643 = math.tanh %642 : vector<2x128xf32>
    %644 = vector.extract_strided_slice %629 {offsets = [0, 384], sizes = [2, 128], strides = [1, 1]} : vector<2x512xf32> to vector<2x128xf32>
    %645 = arith.negf %644 : vector<2x128xf32>
    %646 = math.exp %645 : vector<2x128xf32>
    %cst_111 = arith.constant 1.000000e+00 : f32
    %647 = vector.broadcast %cst_111 : f32 to vector<2x128xf32>
    %648 = arith.addf %647, %646 : vector<2x128xf32>
    %649 = arith.divf %647, %648 : vector<2x128xf32>
    %650 = arith.mulf %641, %593 : vector<2x128xf32>
    %651 = arith.mulf %635, %643 : vector<2x128xf32>
    %652 = arith.addf %650, %651 : vector<2x128xf32>
    %653 = math.tanh %652 : vector<2x128xf32>
    %654 = arith.mulf %649, %653 : vector<2x128xf32>
    %655 = arith.addf %598, %626 : vector<2x128xf32>
    %656 = arith.addf %655, %654 : vector<2x128xf32>
    %657 = arith.addf %656, %3 : vector<2x128xf32>
    %658 = vector.extract_strided_slice %473 {offsets = [6, 0], sizes = [2, 512], strides = [1, 1]} : vector<16x512xf32> to vector<2x512xf32>
    %cst_112 = arith.constant dense<0.000000e+00> : vector<2x512xf32>
    %659 = tpu.matmul %626, %479, %cst_112 {dimension_numbers = #tpu.dot_dimension_numbers<[1], [0], [0], [1], [0, 0, 1, 1], [], []>} : vector<2x128xf32>, vector<128x512xf32>, vector<2x512xf32> -> vector<2x512xf32>
    %660 = arith.addf %658, %659 : vector<2x512xf32>
    %661 = vector.extract_strided_slice %660 {offsets = [0, 0], sizes = [2, 128], strides = [1, 1]} : vector<2x512xf32> to vector<2x128xf32>
    %662 = arith.negf %661 : vector<2x128xf32>
    %663 = math.exp %662 : vector<2x128xf32>
    %cst_113 = arith.constant 1.000000e+00 : f32
    %664 = vector.broadcast %cst_113 : f32 to vector<2x128xf32>
    %665 = arith.addf %664, %663 : vector<2x128xf32>
    %666 = arith.divf %664, %665 : vector<2x128xf32>
    %667 = vector.extract_strided_slice %660 {offsets = [0, 128], sizes = [2, 128], strides = [1, 1]} : vector<2x512xf32> to vector<2x128xf32>
    %668 = arith.negf %667 : vector<2x128xf32>
    %669 = math.exp %668 : vector<2x128xf32>
    %cst_114 = arith.constant 1.000000e+00 : f32
    %670 = vector.broadcast %cst_114 : f32 to vector<2x128xf32>
    %671 = arith.addf %670, %669 : vector<2x128xf32>
    %672 = arith.divf %670, %671 : vector<2x128xf32>
    %673 = vector.extract_strided_slice %660 {offsets = [0, 256], sizes = [2, 128], strides = [1, 1]} : vector<2x512xf32> to vector<2x128xf32>
    %674 = math.tanh %673 : vector<2x128xf32>
    %675 = vector.extract_strided_slice %660 {offsets = [0, 384], sizes = [2, 128], strides = [1, 1]} : vector<2x512xf32> to vector<2x128xf32>
    %676 = arith.negf %675 : vector<2x128xf32>
    %677 = math.exp %676 : vector<2x128xf32>
    %cst_115 = arith.constant 1.000000e+00 : f32
    %678 = vector.broadcast %cst_115 : f32 to vector<2x128xf32>
    %679 = arith.addf %678, %677 : vector<2x128xf32>
    %680 = arith.divf %678, %679 : vector<2x128xf32>
    %681 = arith.mulf %672, %624 : vector<2x128xf32>
    %682 = arith.mulf %666, %674 : vector<2x128xf32>
    %683 = arith.addf %681, %682 : vector<2x128xf32>
    %684 = math.tanh %683 : vector<2x128xf32>
    %685 = arith.mulf %680, %684 : vector<2x128xf32>
    %686 = vector.extract_strided_slice %478 {offsets = [6, 0], sizes = [2, 512], strides = [1, 1]} : vector<16x512xf32> to vector<2x512xf32>
    %cst_116 = arith.constant dense<0.000000e+00> : vector<2x512xf32>
    %687 = tpu.matmul %654, %480, %cst_116 {dimension_numbers = #tpu.dot_dimension_numbers<[1], [0], [0], [1], [0, 0, 1, 1], [], []>} : vector<2x128xf32>, vector<128x512xf32>, vector<2x512xf32> -> vector<2x512xf32>
    %688 = arith.addf %686, %687 : vector<2x512xf32>
    %689 = vector.extract_strided_slice %688 {offsets = [0, 0], sizes = [2, 128], strides = [1, 1]} : vector<2x512xf32> to vector<2x128xf32>
    %690 = arith.negf %689 : vector<2x128xf32>
    %691 = math.exp %690 : vector<2x128xf32>
    %cst_117 = arith.constant 1.000000e+00 : f32
    %692 = vector.broadcast %cst_117 : f32 to vector<2x128xf32>
    %693 = arith.addf %692, %691 : vector<2x128xf32>
    %694 = arith.divf %692, %693 : vector<2x128xf32>
    %695 = vector.extract_strided_slice %688 {offsets = [0, 128], sizes = [2, 128], strides = [1, 1]} : vector<2x512xf32> to vector<2x128xf32>
    %696 = arith.negf %695 : vector<2x128xf32>
    %697 = math.exp %696 : vector<2x128xf32>
    %cst_118 = arith.constant 1.000000e+00 : f32
    %698 = vector.broadcast %cst_118 : f32 to vector<2x128xf32>
    %699 = arith.addf %698, %697 : vector<2x128xf32>
    %700 = arith.divf %698, %699 : vector<2x128xf32>
    %701 = vector.extract_strided_slice %688 {offsets = [0, 256], sizes = [2, 128], strides = [1, 1]} : vector<2x512xf32> to vector<2x128xf32>
    %702 = math.tanh %701 : vector<2x128xf32>
    %703 = vector.extract_strided_slice %688 {offsets = [0, 384], sizes = [2, 128], strides = [1, 1]} : vector<2x512xf32> to vector<2x128xf32>
    %704 = arith.negf %703 : vector<2x128xf32>
    %705 = math.exp %704 : vector<2x128xf32>
    %cst_119 = arith.constant 1.000000e+00 : f32
    %706 = vector.broadcast %cst_119 : f32 to vector<2x128xf32>
    %707 = arith.addf %706, %705 : vector<2x128xf32>
    %708 = arith.divf %706, %707 : vector<2x128xf32>
    %709 = arith.mulf %700, %652 : vector<2x128xf32>
    %710 = arith.mulf %694, %702 : vector<2x128xf32>
    %711 = arith.addf %709, %710 : vector<2x128xf32>
    %712 = math.tanh %711 : vector<2x128xf32>
    %713 = arith.mulf %708, %712 : vector<2x128xf32>
    %714 = arith.addf %657, %685 : vector<2x128xf32>
    %715 = arith.addf %714, %713 : vector<2x128xf32>
    %716 = arith.addf %715, %4 : vector<2x128xf32>
    %717 = vector.extract_strided_slice %473 {offsets = [8, 0], sizes = [2, 512], strides = [1, 1]} : vector<16x512xf32> to vector<2x512xf32>
    %cst_120 = arith.constant dense<0.000000e+00> : vector<2x512xf32>
    %718 = tpu.matmul %685, %479, %cst_120 {dimension_numbers = #tpu.dot_dimension_numbers<[1], [0], [0], [1], [0, 0, 1, 1], [], []>} : vector<2x128xf32>, vector<128x512xf32>, vector<2x512xf32> -> vector<2x512xf32>
    %719 = arith.addf %717, %718 : vector<2x512xf32>
    %720 = vector.extract_strided_slice %719 {offsets = [0, 0], sizes = [2, 128], strides = [1, 1]} : vector<2x512xf32> to vector<2x128xf32>
    %721 = arith.negf %720 : vector<2x128xf32>
    %722 = math.exp %721 : vector<2x128xf32>
    %cst_121 = arith.constant 1.000000e+00 : f32
    %723 = vector.broadcast %cst_121 : f32 to vector<2x128xf32>
    %724 = arith.addf %723, %722 : vector<2x128xf32>
    %725 = arith.divf %723, %724 : vector<2x128xf32>
    %726 = vector.extract_strided_slice %719 {offsets = [0, 128], sizes = [2, 128], strides = [1, 1]} : vector<2x512xf32> to vector<2x128xf32>
    %727 = arith.negf %726 : vector<2x128xf32>
    %728 = math.exp %727 : vector<2x128xf32>
    %cst_122 = arith.constant 1.000000e+00 : f32
    %729 = vector.broadcast %cst_122 : f32 to vector<2x128xf32>
    %730 = arith.addf %729, %728 : vector<2x128xf32>
    %731 = arith.divf %729, %730 : vector<2x128xf32>
    %732 = vector.extract_strided_slice %719 {offsets = [0, 256], sizes = [2, 128], strides = [1, 1]} : vector<2x512xf32> to vector<2x128xf32>
    %733 = math.tanh %732 : vector<2x128xf32>
    %734 = vector.extract_strided_slice %719 {offsets = [0, 384], sizes = [2, 128], strides = [1, 1]} : vector<2x512xf32> to vector<2x128xf32>
    %735 = arith.negf %734 : vector<2x128xf32>
    %736 = math.exp %735 : vector<2x128xf32>
    %cst_123 = arith.constant 1.000000e+00 : f32
    %737 = vector.broadcast %cst_123 : f32 to vector<2x128xf32>
    %738 = arith.addf %737, %736 : vector<2x128xf32>
    %739 = arith.divf %737, %738 : vector<2x128xf32>
    %740 = arith.mulf %731, %683 : vector<2x128xf32>
    %741 = arith.mulf %725, %733 : vector<2x128xf32>
    %742 = arith.addf %740, %741 : vector<2x128xf32>
    %743 = math.tanh %742 : vector<2x128xf32>
    %744 = arith.mulf %739, %743 : vector<2x128xf32>
    %745 = vector.extract_strided_slice %478 {offsets = [8, 0], sizes = [2, 512], strides = [1, 1]} : vector<16x512xf32> to vector<2x512xf32>
    %cst_124 = arith.constant dense<0.000000e+00> : vector<2x512xf32>
    %746 = tpu.matmul %713, %480, %cst_124 {dimension_numbers = #tpu.dot_dimension_numbers<[1], [0], [0], [1], [0, 0, 1, 1], [], []>} : vector<2x128xf32>, vector<128x512xf32>, vector<2x512xf32> -> vector<2x512xf32>
    %747 = arith.addf %745, %746 : vector<2x512xf32>
    %748 = vector.extract_strided_slice %747 {offsets = [0, 0], sizes = [2, 128], strides = [1, 1]} : vector<2x512xf32> to vector<2x128xf32>
    %749 = arith.negf %748 : vector<2x128xf32>
    %750 = math.exp %749 : vector<2x128xf32>
    %cst_125 = arith.constant 1.000000e+00 : f32
    %751 = vector.broadcast %cst_125 : f32 to vector<2x128xf32>
    %752 = arith.addf %751, %750 : vector<2x128xf32>
    %753 = arith.divf %751, %752 : vector<2x128xf32>
    %754 = vector.extract_strided_slice %747 {offsets = [0, 128], sizes = [2, 128], strides = [1, 1]} : vector<2x512xf32> to vector<2x128xf32>
    %755 = arith.negf %754 : vector<2x128xf32>
    %756 = math.exp %755 : vector<2x128xf32>
    %cst_126 = arith.constant 1.000000e+00 : f32
    %757 = vector.broadcast %cst_126 : f32 to vector<2x128xf32>
    %758 = arith.addf %757, %756 : vector<2x128xf32>
    %759 = arith.divf %757, %758 : vector<2x128xf32>
    %760 = vector.extract_strided_slice %747 {offsets = [0, 256], sizes = [2, 128], strides = [1, 1]} : vector<2x512xf32> to vector<2x128xf32>
    %761 = math.tanh %760 : vector<2x128xf32>
    %762 = vector.extract_strided_slice %747 {offsets = [0, 384], sizes = [2, 128], strides = [1, 1]} : vector<2x512xf32> to vector<2x128xf32>
    %763 = arith.negf %762 : vector<2x128xf32>
    %764 = math.exp %763 : vector<2x128xf32>
    %cst_127 = arith.constant 1.000000e+00 : f32
    %765 = vector.broadcast %cst_127 : f32 to vector<2x128xf32>
    %766 = arith.addf %765, %764 : vector<2x128xf32>
    %767 = arith.divf %765, %766 : vector<2x128xf32>
    %768 = arith.mulf %759, %711 : vector<2x128xf32>
    %769 = arith.mulf %753, %761 : vector<2x128xf32>
    %770 = arith.addf %768, %769 : vector<2x128xf32>
    %771 = math.tanh %770 : vector<2x128xf32>
    %772 = arith.mulf %767, %771 : vector<2x128xf32>
    %773 = arith.addf %716, %744 : vector<2x128xf32>
    %774 = arith.addf %773, %772 : vector<2x128xf32>
    %775 = arith.addf %774, %5 : vector<2x128xf32>
    %776 = vector.extract_strided_slice %473 {offsets = [10, 0], sizes = [2, 512], strides = [1, 1]} : vector<16x512xf32> to vector<2x512xf32>
    %cst_128 = arith.constant dense<0.000000e+00> : vector<2x512xf32>
    %777 = tpu.matmul %744, %479, %cst_128 {dimension_numbers = #tpu.dot_dimension_numbers<[1], [0], [0], [1], [0, 0, 1, 1], [], []>} : vector<2x128xf32>, vector<128x512xf32>, vector<2x512xf32> -> vector<2x512xf32>
    %778 = arith.addf %776, %777 : vector<2x512xf32>
    %779 = vector.extract_strided_slice %778 {offsets = [0, 0], sizes = [2, 128], strides = [1, 1]} : vector<2x512xf32> to vector<2x128xf32>
    %780 = arith.negf %779 : vector<2x128xf32>
    %781 = math.exp %780 : vector<2x128xf32>
    %cst_129 = arith.constant 1.000000e+00 : f32
    %782 = vector.broadcast %cst_129 : f32 to vector<2x128xf32>
    %783 = arith.addf %782, %781 : vector<2x128xf32>
    %784 = arith.divf %782, %783 : vector<2x128xf32>
    %785 = vector.extract_strided_slice %778 {offsets = [0, 128], sizes = [2, 128], strides = [1, 1]} : vector<2x512xf32> to vector<2x128xf32>
    %786 = arith.negf %785 : vector<2x128xf32>
    %787 = math.exp %786 : vector<2x128xf32>
    %cst_130 = arith.constant 1.000000e+00 : f32
    %788 = vector.broadcast %cst_130 : f32 to vector<2x128xf32>
    %789 = arith.addf %788, %787 : vector<2x128xf32>
    %790 = arith.divf %788, %789 : vector<2x128xf32>
    %791 = vector.extract_strided_slice %778 {offsets = [0, 256], sizes = [2, 128], strides = [1, 1]} : vector<2x512xf32> to vector<2x128xf32>
    %792 = math.tanh %791 : vector<2x128xf32>
    %793 = vector.extract_strided_slice %778 {offsets = [0, 384], sizes = [2, 128], strides = [1, 1]} : vector<2x512xf32> to vector<2x128xf32>
    %794 = arith.negf %793 : vector<2x128xf32>
    %795 = math.exp %794 : vector<2x128xf32>
    %cst_131 = arith.constant 1.000000e+00 : f32
    %796 = vector.broadcast %cst_131 : f32 to vector<2x128xf32>
    %797 = arith.addf %796, %795 : vector<2x128xf32>
    %798 = arith.divf %796, %797 : vector<2x128xf32>
    %799 = arith.mulf %790, %742 : vector<2x128xf32>
    %800 = arith.mulf %784, %792 : vector<2x128xf32>
    %801 = arith.addf %799, %800 : vector<2x128xf32>
    %802 = math.tanh %801 : vector<2x128xf32>
    %803 = arith.mulf %798, %802 : vector<2x128xf32>
    %804 = vector.extract_strided_slice %478 {offsets = [10, 0], sizes = [2, 512], strides = [1, 1]} : vector<16x512xf32> to vector<2x512xf32>
    %cst_132 = arith.constant dense<0.000000e+00> : vector<2x512xf32>
    %805 = tpu.matmul %772, %480, %cst_132 {dimension_numbers = #tpu.dot_dimension_numbers<[1], [0], [0], [1], [0, 0, 1, 1], [], []>} : vector<2x128xf32>, vector<128x512xf32>, vector<2x512xf32> -> vector<2x512xf32>
    %806 = arith.addf %804, %805 : vector<2x512xf32>
    %807 = vector.extract_strided_slice %806 {offsets = [0, 0], sizes = [2, 128], strides = [1, 1]} : vector<2x512xf32> to vector<2x128xf32>
    %808 = arith.negf %807 : vector<2x128xf32>
    %809 = math.exp %808 : vector<2x128xf32>
    %cst_133 = arith.constant 1.000000e+00 : f32
    %810 = vector.broadcast %cst_133 : f32 to vector<2x128xf32>
    %811 = arith.addf %810, %809 : vector<2x128xf32>
    %812 = arith.divf %810, %811 : vector<2x128xf32>
    %813 = vector.extract_strided_slice %806 {offsets = [0, 128], sizes = [2, 128], strides = [1, 1]} : vector<2x512xf32> to vector<2x128xf32>
    %814 = arith.negf %813 : vector<2x128xf32>
    %815 = math.exp %814 : vector<2x128xf32>
    %cst_134 = arith.constant 1.000000e+00 : f32
    %816 = vector.broadcast %cst_134 : f32 to vector<2x128xf32>
    %817 = arith.addf %816, %815 : vector<2x128xf32>
    %818 = arith.divf %816, %817 : vector<2x128xf32>
    %819 = vector.extract_strided_slice %806 {offsets = [0, 256], sizes = [2, 128], strides = [1, 1]} : vector<2x512xf32> to vector<2x128xf32>
    %820 = math.tanh %819 : vector<2x128xf32>
    %821 = vector.extract_strided_slice %806 {offsets = [0, 384], sizes = [2, 128], strides = [1, 1]} : vector<2x512xf32> to vector<2x128xf32>
    %822 = arith.negf %821 : vector<2x128xf32>
    %823 = math.exp %822 : vector<2x128xf32>
    %cst_135 = arith.constant 1.000000e+00 : f32
    %824 = vector.broadcast %cst_135 : f32 to vector<2x128xf32>
    %825 = arith.addf %824, %823 : vector<2x128xf32>
    %826 = arith.divf %824, %825 : vector<2x128xf32>
    %827 = arith.mulf %818, %770 : vector<2x128xf32>
    %828 = arith.mulf %812, %820 : vector<2x128xf32>
    %829 = arith.addf %827, %828 : vector<2x128xf32>
    %830 = math.tanh %829 : vector<2x128xf32>
    %831 = arith.mulf %826, %830 : vector<2x128xf32>
    %832 = arith.addf %775, %803 : vector<2x128xf32>
    %833 = arith.addf %832, %831 : vector<2x128xf32>
    %834 = arith.addf %833, %6 : vector<2x128xf32>
    %835 = vector.extract_strided_slice %473 {offsets = [12, 0], sizes = [2, 512], strides = [1, 1]} : vector<16x512xf32> to vector<2x512xf32>
    %cst_136 = arith.constant dense<0.000000e+00> : vector<2x512xf32>
    %836 = tpu.matmul %803, %479, %cst_136 {dimension_numbers = #tpu.dot_dimension_numbers<[1], [0], [0], [1], [0, 0, 1, 1], [], []>} : vector<2x128xf32>, vector<128x512xf32>, vector<2x512xf32> -> vector<2x512xf32>
    %837 = arith.addf %835, %836 : vector<2x512xf32>
    %838 = vector.extract_strided_slice %837 {offsets = [0, 0], sizes = [2, 128], strides = [1, 1]} : vector<2x512xf32> to vector<2x128xf32>
    %839 = arith.negf %838 : vector<2x128xf32>
    %840 = math.exp %839 : vector<2x128xf32>
    %cst_137 = arith.constant 1.000000e+00 : f32
    %841 = vector.broadcast %cst_137 : f32 to vector<2x128xf32>
    %842 = arith.addf %841, %840 : vector<2x128xf32>
    %843 = arith.divf %841, %842 : vector<2x128xf32>
    %844 = vector.extract_strided_slice %837 {offsets = [0, 128], sizes = [2, 128], strides = [1, 1]} : vector<2x512xf32> to vector<2x128xf32>
    %845 = arith.negf %844 : vector<2x128xf32>
    %846 = math.exp %845 : vector<2x128xf32>
    %cst_138 = arith.constant 1.000000e+00 : f32
    %847 = vector.broadcast %cst_138 : f32 to vector<2x128xf32>
    %848 = arith.addf %847, %846 : vector<2x128xf32>
    %849 = arith.divf %847, %848 : vector<2x128xf32>
    %850 = vector.extract_strided_slice %837 {offsets = [0, 256], sizes = [2, 128], strides = [1, 1]} : vector<2x512xf32> to vector<2x128xf32>
    %851 = math.tanh %850 : vector<2x128xf32>
    %852 = vector.extract_strided_slice %837 {offsets = [0, 384], sizes = [2, 128], strides = [1, 1]} : vector<2x512xf32> to vector<2x128xf32>
    %853 = arith.negf %852 : vector<2x128xf32>
    %854 = math.exp %853 : vector<2x128xf32>
    %cst_139 = arith.constant 1.000000e+00 : f32
    %855 = vector.broadcast %cst_139 : f32 to vector<2x128xf32>
    %856 = arith.addf %855, %854 : vector<2x128xf32>
    %857 = arith.divf %855, %856 : vector<2x128xf32>
    %858 = arith.mulf %849, %801 : vector<2x128xf32>
    %859 = arith.mulf %843, %851 : vector<2x128xf32>
    %860 = arith.addf %858, %859 : vector<2x128xf32>
    %861 = math.tanh %860 : vector<2x128xf32>
    %862 = arith.mulf %857, %861 : vector<2x128xf32>
    %863 = vector.extract_strided_slice %478 {offsets = [12, 0], sizes = [2, 512], strides = [1, 1]} : vector<16x512xf32> to vector<2x512xf32>
    %cst_140 = arith.constant dense<0.000000e+00> : vector<2x512xf32>
    %864 = tpu.matmul %831, %480, %cst_140 {dimension_numbers = #tpu.dot_dimension_numbers<[1], [0], [0], [1], [0, 0, 1, 1], [], []>} : vector<2x128xf32>, vector<128x512xf32>, vector<2x512xf32> -> vector<2x512xf32>
    %865 = arith.addf %863, %864 : vector<2x512xf32>
    %866 = vector.extract_strided_slice %865 {offsets = [0, 0], sizes = [2, 128], strides = [1, 1]} : vector<2x512xf32> to vector<2x128xf32>
    %867 = arith.negf %866 : vector<2x128xf32>
    %868 = math.exp %867 : vector<2x128xf32>
    %cst_141 = arith.constant 1.000000e+00 : f32
    %869 = vector.broadcast %cst_141 : f32 to vector<2x128xf32>
    %870 = arith.addf %869, %868 : vector<2x128xf32>
    %871 = arith.divf %869, %870 : vector<2x128xf32>
    %872 = vector.extract_strided_slice %865 {offsets = [0, 128], sizes = [2, 128], strides = [1, 1]} : vector<2x512xf32> to vector<2x128xf32>
    %873 = arith.negf %872 : vector<2x128xf32>
    %874 = math.exp %873 : vector<2x128xf32>
    %cst_142 = arith.constant 1.000000e+00 : f32
    %875 = vector.broadcast %cst_142 : f32 to vector<2x128xf32>
    %876 = arith.addf %875, %874 : vector<2x128xf32>
    %877 = arith.divf %875, %876 : vector<2x128xf32>
    %878 = vector.extract_strided_slice %865 {offsets = [0, 256], sizes = [2, 128], strides = [1, 1]} : vector<2x512xf32> to vector<2x128xf32>
    %879 = math.tanh %878 : vector<2x128xf32>
    %880 = vector.extract_strided_slice %865 {offsets = [0, 384], sizes = [2, 128], strides = [1, 1]} : vector<2x512xf32> to vector<2x128xf32>
    %881 = arith.negf %880 : vector<2x128xf32>
    %882 = math.exp %881 : vector<2x128xf32>
    %cst_143 = arith.constant 1.000000e+00 : f32
    %883 = vector.broadcast %cst_143 : f32 to vector<2x128xf32>
    %884 = arith.addf %883, %882 : vector<2x128xf32>
    %885 = arith.divf %883, %884 : vector<2x128xf32>
    %886 = arith.mulf %877, %829 : vector<2x128xf32>
    %887 = arith.mulf %871, %879 : vector<2x128xf32>
    %888 = arith.addf %886, %887 : vector<2x128xf32>
    %889 = math.tanh %888 : vector<2x128xf32>
    %890 = arith.mulf %885, %889 : vector<2x128xf32>
    %891 = arith.addf %834, %862 : vector<2x128xf32>
    %892 = arith.addf %891, %890 : vector<2x128xf32>
    %893 = arith.addf %892, %7 : vector<2x128xf32>
    %894 = vector.extract_strided_slice %473 {offsets = [14, 0], sizes = [2, 512], strides = [1, 1]} : vector<16x512xf32> to vector<2x512xf32>
    %cst_144 = arith.constant dense<0.000000e+00> : vector<2x512xf32>
    %895 = tpu.matmul %862, %479, %cst_144 {dimension_numbers = #tpu.dot_dimension_numbers<[1], [0], [0], [1], [0, 0, 1, 1], [], []>} : vector<2x128xf32>, vector<128x512xf32>, vector<2x512xf32> -> vector<2x512xf32>
    %896 = arith.addf %894, %895 : vector<2x512xf32>
    %897 = vector.extract_strided_slice %896 {offsets = [0, 0], sizes = [2, 128], strides = [1, 1]} : vector<2x512xf32> to vector<2x128xf32>
    %898 = arith.negf %897 : vector<2x128xf32>
    %899 = math.exp %898 : vector<2x128xf32>
    %cst_145 = arith.constant 1.000000e+00 : f32
    %900 = vector.broadcast %cst_145 : f32 to vector<2x128xf32>
    %901 = arith.addf %900, %899 : vector<2x128xf32>
    %902 = arith.divf %900, %901 : vector<2x128xf32>
    %903 = vector.extract_strided_slice %896 {offsets = [0, 128], sizes = [2, 128], strides = [1, 1]} : vector<2x512xf32> to vector<2x128xf32>
    %904 = arith.negf %903 : vector<2x128xf32>
    %905 = math.exp %904 : vector<2x128xf32>
    %cst_146 = arith.constant 1.000000e+00 : f32
    %906 = vector.broadcast %cst_146 : f32 to vector<2x128xf32>
    %907 = arith.addf %906, %905 : vector<2x128xf32>
    %908 = arith.divf %906, %907 : vector<2x128xf32>
    %909 = vector.extract_strided_slice %896 {offsets = [0, 256], sizes = [2, 128], strides = [1, 1]} : vector<2x512xf32> to vector<2x128xf32>
    %910 = math.tanh %909 : vector<2x128xf32>
    %911 = vector.extract_strided_slice %896 {offsets = [0, 384], sizes = [2, 128], strides = [1, 1]} : vector<2x512xf32> to vector<2x128xf32>
    %912 = arith.negf %911 : vector<2x128xf32>
    %913 = math.exp %912 : vector<2x128xf32>
    %cst_147 = arith.constant 1.000000e+00 : f32
    %914 = vector.broadcast %cst_147 : f32 to vector<2x128xf32>
    %915 = arith.addf %914, %913 : vector<2x128xf32>
    %916 = arith.divf %914, %915 : vector<2x128xf32>
    %917 = arith.mulf %908, %860 : vector<2x128xf32>
    %918 = arith.mulf %902, %910 : vector<2x128xf32>
    %919 = arith.addf %917, %918 : vector<2x128xf32>
    %920 = math.tanh %919 : vector<2x128xf32>
    %921 = arith.mulf %916, %920 : vector<2x128xf32>
    %922 = vector.extract_strided_slice %478 {offsets = [14, 0], sizes = [2, 512], strides = [1, 1]} : vector<16x512xf32> to vector<2x512xf32>
    %cst_148 = arith.constant dense<0.000000e+00> : vector<2x512xf32>
    %923 = tpu.matmul %890, %480, %cst_148 {dimension_numbers = #tpu.dot_dimension_numbers<[1], [0], [0], [1], [0, 0, 1, 1], [], []>} : vector<2x128xf32>, vector<128x512xf32>, vector<2x512xf32> -> vector<2x512xf32>
    %924 = arith.addf %922, %923 : vector<2x512xf32>
    %925 = vector.extract_strided_slice %924 {offsets = [0, 0], sizes = [2, 128], strides = [1, 1]} : vector<2x512xf32> to vector<2x128xf32>
    %926 = arith.negf %925 : vector<2x128xf32>
    %927 = math.exp %926 : vector<2x128xf32>
    %cst_149 = arith.constant 1.000000e+00 : f32
    %928 = vector.broadcast %cst_149 : f32 to vector<2x128xf32>
    %929 = arith.addf %928, %927 : vector<2x128xf32>
    %930 = arith.divf %928, %929 : vector<2x128xf32>
    %931 = vector.extract_strided_slice %924 {offsets = [0, 128], sizes = [2, 128], strides = [1, 1]} : vector<2x512xf32> to vector<2x128xf32>
    %932 = arith.negf %931 : vector<2x128xf32>
    %933 = math.exp %932 : vector<2x128xf32>
    %cst_150 = arith.constant 1.000000e+00 : f32
    %934 = vector.broadcast %cst_150 : f32 to vector<2x128xf32>
    %935 = arith.addf %934, %933 : vector<2x128xf32>
    %936 = arith.divf %934, %935 : vector<2x128xf32>
    %937 = vector.extract_strided_slice %924 {offsets = [0, 256], sizes = [2, 128], strides = [1, 1]} : vector<2x512xf32> to vector<2x128xf32>
    %938 = math.tanh %937 : vector<2x128xf32>
    %939 = vector.extract_strided_slice %924 {offsets = [0, 384], sizes = [2, 128], strides = [1, 1]} : vector<2x512xf32> to vector<2x128xf32>
    %940 = arith.negf %939 : vector<2x128xf32>
    %941 = math.exp %940 : vector<2x128xf32>
    %cst_151 = arith.constant 1.000000e+00 : f32
    %942 = vector.broadcast %cst_151 : f32 to vector<2x128xf32>
    %943 = arith.addf %942, %941 : vector<2x128xf32>
    %944 = arith.divf %942, %943 : vector<2x128xf32>
    %945 = arith.mulf %936, %888 : vector<2x128xf32>
    %946 = arith.mulf %930, %938 : vector<2x128xf32>
    %947 = arith.addf %945, %946 : vector<2x128xf32>
    %948 = math.tanh %947 : vector<2x128xf32>
    %949 = arith.mulf %944, %948 : vector<2x128xf32>
    %950 = arith.addf %893, %921 : vector<2x128xf32>
    %951 = arith.addf %950, %949 : vector<2x128xf32>
    %952 = arith.addf %951, %8 : vector<2x128xf32>
    %c0_152 = arith.constant 0 : index
    %c0_153 = arith.constant 0 : index
    %953 = vector.load %arg11[%c0_152, %c0_153] : memref<128x512xf32, #tpu.memory_space<vmem>>, vector<128x512xf32>
    %c0_154 = arith.constant 0 : index
    %c0_155 = arith.constant 0 : index
    %954 = vector.load %arg12[%c0_154, %c0_155] : memref<1x512xf32, #tpu.memory_space<vmem>>, vector<1x512xf32>
    %955 = vector.shape_cast %954 : vector<1x512xf32> to vector<1x512xf32>
    %956 = vector.broadcast %955 : vector<1x512xf32> to vector<2x512xf32>
    %c0_156 = arith.constant 0 : index
    %c0_157 = arith.constant 0 : index
    %957 = vector.load %arg13[%c0_156, %c0_157] : memref<128x512xf32, #tpu.memory_space<vmem>>, vector<128x512xf32>
    %c0_158 = arith.constant 0 : index
    %c0_159 = arith.constant 0 : index
    %958 = vector.load %arg14[%c0_158, %c0_159] : memref<128x512xf32, #tpu.memory_space<vmem>>, vector<128x512xf32>
    %cst_160 = arith.constant dense<0.000000e+00> : vector<2x512xf32>
    %959 = tpu.matmul %949, %958, %cst_160 {dimension_numbers = #tpu.dot_dimension_numbers<[1], [0], [0], [1], [0, 0, 1, 1], [], []>} : vector<2x128xf32>, vector<128x512xf32>, vector<2x512xf32> -> vector<2x512xf32>
    %c0_161 = arith.constant 0 : index
    %c0_162 = arith.constant 0 : index
    %960 = vector.load %arg15[%c0_161, %c0_162] : memref<1x512xf32, #tpu.memory_space<vmem>>, vector<1x512xf32>
    %961 = vector.broadcast %960 : vector<1x512xf32> to vector<2x512xf32>
    %962 = arith.addf %959, %961 : vector<2x512xf32>
    %cst_163 = arith.constant dense<0.000000e+00> : vector<2x512xf32>
    %963 = tpu.matmul %921, %953, %cst_163 {dimension_numbers = #tpu.dot_dimension_numbers<[1], [0], [0], [1], [0, 0, 1, 1], [], []>} : vector<2x128xf32>, vector<128x512xf32>, vector<2x512xf32> -> vector<2x512xf32>
    %964 = arith.addf %963, %956 : vector<2x512xf32>
    %965 = vector.extract_strided_slice %964 {offsets = [0, 0], sizes = [2, 128], strides = [1, 1]} : vector<2x512xf32> to vector<2x128xf32>
    %966 = arith.negf %965 : vector<2x128xf32>
    %967 = math.exp %966 : vector<2x128xf32>
    %cst_164 = arith.constant 1.000000e+00 : f32
    %968 = vector.broadcast %cst_164 : f32 to vector<2x128xf32>
    %969 = arith.addf %968, %967 : vector<2x128xf32>
    %970 = arith.divf %968, %969 : vector<2x128xf32>
    %971 = vector.extract_strided_slice %964 {offsets = [0, 128], sizes = [2, 128], strides = [1, 1]} : vector<2x512xf32> to vector<2x128xf32>
    %972 = arith.negf %971 : vector<2x128xf32>
    %973 = math.exp %972 : vector<2x128xf32>
    %cst_165 = arith.constant 1.000000e+00 : f32
    %974 = vector.broadcast %cst_165 : f32 to vector<2x128xf32>
    %975 = arith.addf %974, %973 : vector<2x128xf32>
    %976 = arith.divf %974, %975 : vector<2x128xf32>
    %977 = vector.extract_strided_slice %964 {offsets = [0, 256], sizes = [2, 128], strides = [1, 1]} : vector<2x512xf32> to vector<2x128xf32>
    %978 = math.tanh %977 : vector<2x128xf32>
    %979 = vector.extract_strided_slice %964 {offsets = [0, 384], sizes = [2, 128], strides = [1, 1]} : vector<2x512xf32> to vector<2x128xf32>
    %980 = arith.negf %979 : vector<2x128xf32>
    %981 = math.exp %980 : vector<2x128xf32>
    %cst_166 = arith.constant 1.000000e+00 : f32
    %982 = vector.broadcast %cst_166 : f32 to vector<2x128xf32>
    %983 = arith.addf %982, %981 : vector<2x128xf32>
    %984 = arith.divf %982, %983 : vector<2x128xf32>
    %985 = arith.mulf %976, %919 : vector<2x128xf32>
    %986 = arith.mulf %970, %978 : vector<2x128xf32>
    %987 = arith.addf %985, %986 : vector<2x128xf32>
    %988 = math.tanh %987 : vector<2x128xf32>
    %989 = arith.mulf %984, %988 : vector<2x128xf32>
    %cst_167 = arith.constant dense<0.000000e+00> : vector<2x512xf32>
    %990 = tpu.matmul %949, %957, %cst_167 {dimension_numbers = #tpu.dot_dimension_numbers<[1], [0], [0], [1], [0, 0, 1, 1], [], []>} : vector<2x128xf32>, vector<128x512xf32>, vector<2x512xf32> -> vector<2x512xf32>
    %991 = arith.addf %990, %962 : vector<2x512xf32>
    %992 = vector.extract_strided_slice %991 {offsets = [0, 0], sizes = [2, 128], strides = [1, 1]} : vector<2x512xf32> to vector<2x128xf32>
    %993 = arith.negf %992 : vector<2x128xf32>
    %994 = math.exp %993 : vector<2x128xf32>
    %cst_168 = arith.constant 1.000000e+00 : f32
    %995 = vector.broadcast %cst_168 : f32 to vector<2x128xf32>
    %996 = arith.addf %995, %994 : vector<2x128xf32>
    %997 = arith.divf %995, %996 : vector<2x128xf32>
    %998 = vector.extract_strided_slice %991 {offsets = [0, 128], sizes = [2, 128], strides = [1, 1]} : vector<2x512xf32> to vector<2x128xf32>
    %999 = arith.negf %998 : vector<2x128xf32>
    %1000 = math.exp %999 : vector<2x128xf32>
    %cst_169 = arith.constant 1.000000e+00 : f32
    %1001 = vector.broadcast %cst_169 : f32 to vector<2x128xf32>
    %1002 = arith.addf %1001, %1000 : vector<2x128xf32>
    %1003 = arith.divf %1001, %1002 : vector<2x128xf32>
    %1004 = vector.extract_strided_slice %991 {offsets = [0, 256], sizes = [2, 128], strides = [1, 1]} : vector<2x512xf32> to vector<2x128xf32>
    %1005 = math.tanh %1004 : vector<2x128xf32>
    %1006 = vector.extract_strided_slice %991 {offsets = [0, 384], sizes = [2, 128], strides = [1, 1]} : vector<2x512xf32> to vector<2x128xf32>
    %1007 = arith.negf %1006 : vector<2x128xf32>
    %1008 = math.exp %1007 : vector<2x128xf32>
    %cst_170 = arith.constant 1.000000e+00 : f32
    %1009 = vector.broadcast %cst_170 : f32 to vector<2x128xf32>
    %1010 = arith.addf %1009, %1008 : vector<2x128xf32>
    %1011 = arith.divf %1009, %1010 : vector<2x128xf32>
    %1012 = arith.mulf %1003, %947 : vector<2x128xf32>
    %1013 = arith.mulf %997, %1005 : vector<2x128xf32>
    %1014 = arith.addf %1012, %1013 : vector<2x128xf32>
    %1015 = math.tanh %1014 : vector<2x128xf32>
    %1016 = arith.mulf %1011, %1015 : vector<2x128xf32>
    %1017 = arith.subf %1, %989 : vector<2x128xf32>
    %1018 = arith.mulf %1017, %1017 : vector<2x128xf32>
    %1019 = arith.addf %9, %1018 : vector<2x128xf32>
    %1020 = arith.subf %8, %1016 : vector<2x128xf32>
    %1021 = arith.mulf %1020, %1020 : vector<2x128xf32>
    %1022 = arith.addf %9, %1021 : vector<2x128xf32>
    %cst_171 = arith.constant dense<0.000000e+00> : vector<2x512xf32>
    %1023 = tpu.matmul %989, %953, %cst_171 {dimension_numbers = #tpu.dot_dimension_numbers<[1], [0], [0], [1], [0, 0, 1, 1], [], []>} : vector<2x128xf32>, vector<128x512xf32>, vector<2x512xf32> -> vector<2x512xf32>
    %1024 = arith.addf %1023, %956 : vector<2x512xf32>
    %1025 = vector.extract_strided_slice %1024 {offsets = [0, 0], sizes = [2, 128], strides = [1, 1]} : vector<2x512xf32> to vector<2x128xf32>
    %1026 = arith.negf %1025 : vector<2x128xf32>
    %1027 = math.exp %1026 : vector<2x128xf32>
    %cst_172 = arith.constant 1.000000e+00 : f32
    %1028 = vector.broadcast %cst_172 : f32 to vector<2x128xf32>
    %1029 = arith.addf %1028, %1027 : vector<2x128xf32>
    %1030 = arith.divf %1028, %1029 : vector<2x128xf32>
    %1031 = vector.extract_strided_slice %1024 {offsets = [0, 128], sizes = [2, 128], strides = [1, 1]} : vector<2x512xf32> to vector<2x128xf32>
    %1032 = arith.negf %1031 : vector<2x128xf32>
    %1033 = math.exp %1032 : vector<2x128xf32>
    %cst_173 = arith.constant 1.000000e+00 : f32
    %1034 = vector.broadcast %cst_173 : f32 to vector<2x128xf32>
    %1035 = arith.addf %1034, %1033 : vector<2x128xf32>
    %1036 = arith.divf %1034, %1035 : vector<2x128xf32>
    %1037 = vector.extract_strided_slice %1024 {offsets = [0, 256], sizes = [2, 128], strides = [1, 1]} : vector<2x512xf32> to vector<2x128xf32>
    %1038 = math.tanh %1037 : vector<2x128xf32>
    %1039 = vector.extract_strided_slice %1024 {offsets = [0, 384], sizes = [2, 128], strides = [1, 1]} : vector<2x512xf32> to vector<2x128xf32>
    %1040 = arith.negf %1039 : vector<2x128xf32>
    %1041 = math.exp %1040 : vector<2x128xf32>
    %cst_174 = arith.constant 1.000000e+00 : f32
    %1042 = vector.broadcast %cst_174 : f32 to vector<2x128xf32>
    %1043 = arith.addf %1042, %1041 : vector<2x128xf32>
    %1044 = arith.divf %1042, %1043 : vector<2x128xf32>
    %1045 = arith.mulf %1036, %987 : vector<2x128xf32>
    %1046 = arith.mulf %1030, %1038 : vector<2x128xf32>
    %1047 = arith.addf %1045, %1046 : vector<2x128xf32>
    %1048 = math.tanh %1047 : vector<2x128xf32>
    %1049 = arith.mulf %1044, %1048 : vector<2x128xf32>
    %cst_175 = arith.constant dense<0.000000e+00> : vector<2x512xf32>
    %1050 = tpu.matmul %1016, %957, %cst_175 {dimension_numbers = #tpu.dot_dimension_numbers<[1], [0], [0], [1], [0, 0, 1, 1], [], []>} : vector<2x128xf32>, vector<128x512xf32>, vector<2x512xf32> -> vector<2x512xf32>
    %1051 = arith.addf %1050, %962 : vector<2x512xf32>
    %1052 = vector.extract_strided_slice %1051 {offsets = [0, 0], sizes = [2, 128], strides = [1, 1]} : vector<2x512xf32> to vector<2x128xf32>
    %1053 = arith.negf %1052 : vector<2x128xf32>
    %1054 = math.exp %1053 : vector<2x128xf32>
    %cst_176 = arith.constant 1.000000e+00 : f32
    %1055 = vector.broadcast %cst_176 : f32 to vector<2x128xf32>
    %1056 = arith.addf %1055, %1054 : vector<2x128xf32>
    %1057 = arith.divf %1055, %1056 : vector<2x128xf32>
    %1058 = vector.extract_strided_slice %1051 {offsets = [0, 128], sizes = [2, 128], strides = [1, 1]} : vector<2x512xf32> to vector<2x128xf32>
    %1059 = arith.negf %1058 : vector<2x128xf32>
    %1060 = math.exp %1059 : vector<2x128xf32>
    %cst_177 = arith.constant 1.000000e+00 : f32
    %1061 = vector.broadcast %cst_177 : f32 to vector<2x128xf32>
    %1062 = arith.addf %1061, %1060 : vector<2x128xf32>
    %1063 = arith.divf %1061, %1062 : vector<2x128xf32>
    %1064 = vector.extract_strided_slice %1051 {offsets = [0, 256], sizes = [2, 128], strides = [1, 1]} : vector<2x512xf32> to vector<2x128xf32>
    %1065 = math.tanh %1064 : vector<2x128xf32>
    %1066 = vector.extract_strided_slice %1051 {offsets = [0, 384], sizes = [2, 128], strides = [1, 1]} : vector<2x512xf32> to vector<2x128xf32>
    %1067 = arith.negf %1066 : vector<2x128xf32>
    %1068 = math.exp %1067 : vector<2x128xf32>
    %cst_178 = arith.constant 1.000000e+00 : f32
    %1069 = vector.broadcast %cst_178 : f32 to vector<2x128xf32>
    %1070 = arith.addf %1069, %1068 : vector<2x128xf32>
    %1071 = arith.divf %1069, %1070 : vector<2x128xf32>
    %1072 = arith.mulf %1063, %947 : vector<2x128xf32>
    %1073 = arith.mulf %1057, %1065 : vector<2x128xf32>
    %1074 = arith.addf %1072, %1073 : vector<2x128xf32>
    %1075 = math.tanh %1074 : vector<2x128xf32>
    %1076 = arith.mulf %1071, %1075 : vector<2x128xf32>
    %1077 = arith.subf %2, %1049 : vector<2x128xf32>
    %1078 = arith.mulf %1077, %1077 : vector<2x128xf32>
    %1079 = arith.addf %1019, %1078 : vector<2x128xf32>
    %1080 = arith.subf %7, %1076 : vector<2x128xf32>
    %1081 = arith.mulf %1080, %1080 : vector<2x128xf32>
    %1082 = arith.addf %1022, %1081 : vector<2x128xf32>
    %cst_179 = arith.constant dense<0.000000e+00> : vector<2x512xf32>
    %1083 = tpu.matmul %1049, %953, %cst_179 {dimension_numbers = #tpu.dot_dimension_numbers<[1], [0], [0], [1], [0, 0, 1, 1], [], []>} : vector<2x128xf32>, vector<128x512xf32>, vector<2x512xf32> -> vector<2x512xf32>
    %1084 = arith.addf %1083, %956 : vector<2x512xf32>
    %1085 = vector.extract_strided_slice %1084 {offsets = [0, 0], sizes = [2, 128], strides = [1, 1]} : vector<2x512xf32> to vector<2x128xf32>
    %1086 = arith.negf %1085 : vector<2x128xf32>
    %1087 = math.exp %1086 : vector<2x128xf32>
    %cst_180 = arith.constant 1.000000e+00 : f32
    %1088 = vector.broadcast %cst_180 : f32 to vector<2x128xf32>
    %1089 = arith.addf %1088, %1087 : vector<2x128xf32>
    %1090 = arith.divf %1088, %1089 : vector<2x128xf32>
    %1091 = vector.extract_strided_slice %1084 {offsets = [0, 128], sizes = [2, 128], strides = [1, 1]} : vector<2x512xf32> to vector<2x128xf32>
    %1092 = arith.negf %1091 : vector<2x128xf32>
    %1093 = math.exp %1092 : vector<2x128xf32>
    %cst_181 = arith.constant 1.000000e+00 : f32
    %1094 = vector.broadcast %cst_181 : f32 to vector<2x128xf32>
    %1095 = arith.addf %1094, %1093 : vector<2x128xf32>
    %1096 = arith.divf %1094, %1095 : vector<2x128xf32>
    %1097 = vector.extract_strided_slice %1084 {offsets = [0, 256], sizes = [2, 128], strides = [1, 1]} : vector<2x512xf32> to vector<2x128xf32>
    %1098 = math.tanh %1097 : vector<2x128xf32>
    %1099 = vector.extract_strided_slice %1084 {offsets = [0, 384], sizes = [2, 128], strides = [1, 1]} : vector<2x512xf32> to vector<2x128xf32>
    %1100 = arith.negf %1099 : vector<2x128xf32>
    %1101 = math.exp %1100 : vector<2x128xf32>
    %cst_182 = arith.constant 1.000000e+00 : f32
    %1102 = vector.broadcast %cst_182 : f32 to vector<2x128xf32>
    %1103 = arith.addf %1102, %1101 : vector<2x128xf32>
    %1104 = arith.divf %1102, %1103 : vector<2x128xf32>
    %1105 = arith.mulf %1096, %1047 : vector<2x128xf32>
    %1106 = arith.mulf %1090, %1098 : vector<2x128xf32>
    %1107 = arith.addf %1105, %1106 : vector<2x128xf32>
    %1108 = math.tanh %1107 : vector<2x128xf32>
    %1109 = arith.mulf %1104, %1108 : vector<2x128xf32>
    %cst_183 = arith.constant dense<0.000000e+00> : vector<2x512xf32>
    %1110 = tpu.matmul %1076, %957, %cst_183 {dimension_numbers = #tpu.dot_dimension_numbers<[1], [0], [0], [1], [0, 0, 1, 1], [], []>} : vector<2x128xf32>, vector<128x512xf32>, vector<2x512xf32> -> vector<2x512xf32>
    %1111 = arith.addf %1110, %962 : vector<2x512xf32>
    %1112 = vector.extract_strided_slice %1111 {offsets = [0, 0], sizes = [2, 128], strides = [1, 1]} : vector<2x512xf32> to vector<2x128xf32>
    %1113 = arith.negf %1112 : vector<2x128xf32>
    %1114 = math.exp %1113 : vector<2x128xf32>
    %cst_184 = arith.constant 1.000000e+00 : f32
    %1115 = vector.broadcast %cst_184 : f32 to vector<2x128xf32>
    %1116 = arith.addf %1115, %1114 : vector<2x128xf32>
    %1117 = arith.divf %1115, %1116 : vector<2x128xf32>
    %1118 = vector.extract_strided_slice %1111 {offsets = [0, 128], sizes = [2, 128], strides = [1, 1]} : vector<2x512xf32> to vector<2x128xf32>
    %1119 = arith.negf %1118 : vector<2x128xf32>
    %1120 = math.exp %1119 : vector<2x128xf32>
    %cst_185 = arith.constant 1.000000e+00 : f32
    %1121 = vector.broadcast %cst_185 : f32 to vector<2x128xf32>
    %1122 = arith.addf %1121, %1120 : vector<2x128xf32>
    %1123 = arith.divf %1121, %1122 : vector<2x128xf32>
    %1124 = vector.extract_strided_slice %1111 {offsets = [0, 256], sizes = [2, 128], strides = [1, 1]} : vector<2x512xf32> to vector<2x128xf32>
    %1125 = math.tanh %1124 : vector<2x128xf32>
    %1126 = vector.extract_strided_slice %1111 {offsets = [0, 384], sizes = [2, 128], strides = [1, 1]} : vector<2x512xf32> to vector<2x128xf32>
    %1127 = arith.negf %1126 : vector<2x128xf32>
    %1128 = math.exp %1127 : vector<2x128xf32>
    %cst_186 = arith.constant 1.000000e+00 : f32
    %1129 = vector.broadcast %cst_186 : f32 to vector<2x128xf32>
    %1130 = arith.addf %1129, %1128 : vector<2x128xf32>
    %1131 = arith.divf %1129, %1130 : vector<2x128xf32>
    %1132 = arith.mulf %1123, %947 : vector<2x128xf32>
    %1133 = arith.mulf %1117, %1125 : vector<2x128xf32>
    %1134 = arith.addf %1132, %1133 : vector<2x128xf32>
    %1135 = math.tanh %1134 : vector<2x128xf32>
    %1136 = arith.mulf %1131, %1135 : vector<2x128xf32>
    %1137 = arith.subf %3, %1109 : vector<2x128xf32>
    %1138 = arith.mulf %1137, %1137 : vector<2x128xf32>
    %1139 = arith.addf %1079, %1138 : vector<2x128xf32>
    %1140 = arith.subf %6, %1136 : vector<2x128xf32>
    %1141 = arith.mulf %1140, %1140 : vector<2x128xf32>
    %1142 = arith.addf %1082, %1141 : vector<2x128xf32>
    %cst_187 = arith.constant dense<0.000000e+00> : vector<2x512xf32>
    %1143 = tpu.matmul %1109, %953, %cst_187 {dimension_numbers = #tpu.dot_dimension_numbers<[1], [0], [0], [1], [0, 0, 1, 1], [], []>} : vector<2x128xf32>, vector<128x512xf32>, vector<2x512xf32> -> vector<2x512xf32>
    %1144 = arith.addf %1143, %956 : vector<2x512xf32>
    %1145 = vector.extract_strided_slice %1144 {offsets = [0, 0], sizes = [2, 128], strides = [1, 1]} : vector<2x512xf32> to vector<2x128xf32>
    %1146 = arith.negf %1145 : vector<2x128xf32>
    %1147 = math.exp %1146 : vector<2x128xf32>
    %cst_188 = arith.constant 1.000000e+00 : f32
    %1148 = vector.broadcast %cst_188 : f32 to vector<2x128xf32>
    %1149 = arith.addf %1148, %1147 : vector<2x128xf32>
    %1150 = arith.divf %1148, %1149 : vector<2x128xf32>
    %1151 = vector.extract_strided_slice %1144 {offsets = [0, 128], sizes = [2, 128], strides = [1, 1]} : vector<2x512xf32> to vector<2x128xf32>
    %1152 = arith.negf %1151 : vector<2x128xf32>
    %1153 = math.exp %1152 : vector<2x128xf32>
    %cst_189 = arith.constant 1.000000e+00 : f32
    %1154 = vector.broadcast %cst_189 : f32 to vector<2x128xf32>
    %1155 = arith.addf %1154, %1153 : vector<2x128xf32>
    %1156 = arith.divf %1154, %1155 : vector<2x128xf32>
    %1157 = vector.extract_strided_slice %1144 {offsets = [0, 256], sizes = [2, 128], strides = [1, 1]} : vector<2x512xf32> to vector<2x128xf32>
    %1158 = math.tanh %1157 : vector<2x128xf32>
    %1159 = vector.extract_strided_slice %1144 {offsets = [0, 384], sizes = [2, 128], strides = [1, 1]} : vector<2x512xf32> to vector<2x128xf32>
    %1160 = arith.negf %1159 : vector<2x128xf32>
    %1161 = math.exp %1160 : vector<2x128xf32>
    %cst_190 = arith.constant 1.000000e+00 : f32
    %1162 = vector.broadcast %cst_190 : f32 to vector<2x128xf32>
    %1163 = arith.addf %1162, %1161 : vector<2x128xf32>
    %1164 = arith.divf %1162, %1163 : vector<2x128xf32>
    %1165 = arith.mulf %1156, %1107 : vector<2x128xf32>
    %1166 = arith.mulf %1150, %1158 : vector<2x128xf32>
    %1167 = arith.addf %1165, %1166 : vector<2x128xf32>
    %1168 = math.tanh %1167 : vector<2x128xf32>
    %1169 = arith.mulf %1164, %1168 : vector<2x128xf32>
    %cst_191 = arith.constant dense<0.000000e+00> : vector<2x512xf32>
    %1170 = tpu.matmul %1136, %957, %cst_191 {dimension_numbers = #tpu.dot_dimension_numbers<[1], [0], [0], [1], [0, 0, 1, 1], [], []>} : vector<2x128xf32>, vector<128x512xf32>, vector<2x512xf32> -> vector<2x512xf32>
    %1171 = arith.addf %1170, %962 : vector<2x512xf32>
    %1172 = vector.extract_strided_slice %1171 {offsets = [0, 0], sizes = [2, 128], strides = [1, 1]} : vector<2x512xf32> to vector<2x128xf32>
    %1173 = arith.negf %1172 : vector<2x128xf32>
    %1174 = math.exp %1173 : vector<2x128xf32>
    %cst_192 = arith.constant 1.000000e+00 : f32
    %1175 = vector.broadcast %cst_192 : f32 to vector<2x128xf32>
    %1176 = arith.addf %1175, %1174 : vector<2x128xf32>
    %1177 = arith.divf %1175, %1176 : vector<2x128xf32>
    %1178 = vector.extract_strided_slice %1171 {offsets = [0, 128], sizes = [2, 128], strides = [1, 1]} : vector<2x512xf32> to vector<2x128xf32>
    %1179 = arith.negf %1178 : vector<2x128xf32>
    %1180 = math.exp %1179 : vector<2x128xf32>
    %cst_193 = arith.constant 1.000000e+00 : f32
    %1181 = vector.broadcast %cst_193 : f32 to vector<2x128xf32>
    %1182 = arith.addf %1181, %1180 : vector<2x128xf32>
    %1183 = arith.divf %1181, %1182 : vector<2x128xf32>
    %1184 = vector.extract_strided_slice %1171 {offsets = [0, 256], sizes = [2, 128], strides = [1, 1]} : vector<2x512xf32> to vector<2x128xf32>
    %1185 = math.tanh %1184 : vector<2x128xf32>
    %1186 = vector.extract_strided_slice %1171 {offsets = [0, 384], sizes = [2, 128], strides = [1, 1]} : vector<2x512xf32> to vector<2x128xf32>
    %1187 = arith.negf %1186 : vector<2x128xf32>
    %1188 = math.exp %1187 : vector<2x128xf32>
    %cst_194 = arith.constant 1.000000e+00 : f32
    %1189 = vector.broadcast %cst_194 : f32 to vector<2x128xf32>
    %1190 = arith.addf %1189, %1188 : vector<2x128xf32>
    %1191 = arith.divf %1189, %1190 : vector<2x128xf32>
    %1192 = arith.mulf %1183, %947 : vector<2x128xf32>
    %1193 = arith.mulf %1177, %1185 : vector<2x128xf32>
    %1194 = arith.addf %1192, %1193 : vector<2x128xf32>
    %1195 = math.tanh %1194 : vector<2x128xf32>
    %1196 = arith.mulf %1191, %1195 : vector<2x128xf32>
    %1197 = arith.subf %4, %1169 : vector<2x128xf32>
    %1198 = arith.mulf %1197, %1197 : vector<2x128xf32>
    %1199 = arith.addf %1139, %1198 : vector<2x128xf32>
    %1200 = arith.subf %5, %1196 : vector<2x128xf32>
    %1201 = arith.mulf %1200, %1200 : vector<2x128xf32>
    %1202 = arith.addf %1142, %1201 : vector<2x128xf32>
    %cst_195 = arith.constant dense<0.000000e+00> : vector<2x512xf32>
    %1203 = tpu.matmul %1169, %953, %cst_195 {dimension_numbers = #tpu.dot_dimension_numbers<[1], [0], [0], [1], [0, 0, 1, 1], [], []>} : vector<2x128xf32>, vector<128x512xf32>, vector<2x512xf32> -> vector<2x512xf32>
    %1204 = arith.addf %1203, %956 : vector<2x512xf32>
    %1205 = vector.extract_strided_slice %1204 {offsets = [0, 0], sizes = [2, 128], strides = [1, 1]} : vector<2x512xf32> to vector<2x128xf32>
    %1206 = arith.negf %1205 : vector<2x128xf32>
    %1207 = math.exp %1206 : vector<2x128xf32>
    %cst_196 = arith.constant 1.000000e+00 : f32
    %1208 = vector.broadcast %cst_196 : f32 to vector<2x128xf32>
    %1209 = arith.addf %1208, %1207 : vector<2x128xf32>
    %1210 = arith.divf %1208, %1209 : vector<2x128xf32>
    %1211 = vector.extract_strided_slice %1204 {offsets = [0, 128], sizes = [2, 128], strides = [1, 1]} : vector<2x512xf32> to vector<2x128xf32>
    %1212 = arith.negf %1211 : vector<2x128xf32>
    %1213 = math.exp %1212 : vector<2x128xf32>
    %cst_197 = arith.constant 1.000000e+00 : f32
    %1214 = vector.broadcast %cst_197 : f32 to vector<2x128xf32>
    %1215 = arith.addf %1214, %1213 : vector<2x128xf32>
    %1216 = arith.divf %1214, %1215 : vector<2x128xf32>
    %1217 = vector.extract_strided_slice %1204 {offsets = [0, 256], sizes = [2, 128], strides = [1, 1]} : vector<2x512xf32> to vector<2x128xf32>
    %1218 = math.tanh %1217 : vector<2x128xf32>
    %1219 = vector.extract_strided_slice %1204 {offsets = [0, 384], sizes = [2, 128], strides = [1, 1]} : vector<2x512xf32> to vector<2x128xf32>
    %1220 = arith.negf %1219 : vector<2x128xf32>
    %1221 = math.exp %1220 : vector<2x128xf32>
    %cst_198 = arith.constant 1.000000e+00 : f32
    %1222 = vector.broadcast %cst_198 : f32 to vector<2x128xf32>
    %1223 = arith.addf %1222, %1221 : vector<2x128xf32>
    %1224 = arith.divf %1222, %1223 : vector<2x128xf32>
    %1225 = arith.mulf %1216, %1167 : vector<2x128xf32>
    %1226 = arith.mulf %1210, %1218 : vector<2x128xf32>
    %1227 = arith.addf %1225, %1226 : vector<2x128xf32>
    %1228 = math.tanh %1227 : vector<2x128xf32>
    %1229 = arith.mulf %1224, %1228 : vector<2x128xf32>
    %cst_199 = arith.constant dense<0.000000e+00> : vector<2x512xf32>
    %1230 = tpu.matmul %1196, %957, %cst_199 {dimension_numbers = #tpu.dot_dimension_numbers<[1], [0], [0], [1], [0, 0, 1, 1], [], []>} : vector<2x128xf32>, vector<128x512xf32>, vector<2x512xf32> -> vector<2x512xf32>
    %1231 = arith.addf %1230, %962 : vector<2x512xf32>
    %1232 = vector.extract_strided_slice %1231 {offsets = [0, 0], sizes = [2, 128], strides = [1, 1]} : vector<2x512xf32> to vector<2x128xf32>
    %1233 = arith.negf %1232 : vector<2x128xf32>
    %1234 = math.exp %1233 : vector<2x128xf32>
    %cst_200 = arith.constant 1.000000e+00 : f32
    %1235 = vector.broadcast %cst_200 : f32 to vector<2x128xf32>
    %1236 = arith.addf %1235, %1234 : vector<2x128xf32>
    %1237 = arith.divf %1235, %1236 : vector<2x128xf32>
    %1238 = vector.extract_strided_slice %1231 {offsets = [0, 128], sizes = [2, 128], strides = [1, 1]} : vector<2x512xf32> to vector<2x128xf32>
    %1239 = arith.negf %1238 : vector<2x128xf32>
    %1240 = math.exp %1239 : vector<2x128xf32>
    %cst_201 = arith.constant 1.000000e+00 : f32
    %1241 = vector.broadcast %cst_201 : f32 to vector<2x128xf32>
    %1242 = arith.addf %1241, %1240 : vector<2x128xf32>
    %1243 = arith.divf %1241, %1242 : vector<2x128xf32>
    %1244 = vector.extract_strided_slice %1231 {offsets = [0, 256], sizes = [2, 128], strides = [1, 1]} : vector<2x512xf32> to vector<2x128xf32>
    %1245 = math.tanh %1244 : vector<2x128xf32>
    %1246 = vector.extract_strided_slice %1231 {offsets = [0, 384], sizes = [2, 128], strides = [1, 1]} : vector<2x512xf32> to vector<2x128xf32>
    %1247 = arith.negf %1246 : vector<2x128xf32>
    %1248 = math.exp %1247 : vector<2x128xf32>
    %cst_202 = arith.constant 1.000000e+00 : f32
    %1249 = vector.broadcast %cst_202 : f32 to vector<2x128xf32>
    %1250 = arith.addf %1249, %1248 : vector<2x128xf32>
    %1251 = arith.divf %1249, %1250 : vector<2x128xf32>
    %1252 = arith.mulf %1243, %947 : vector<2x128xf32>
    %1253 = arith.mulf %1237, %1245 : vector<2x128xf32>
    %1254 = arith.addf %1252, %1253 : vector<2x128xf32>
    %1255 = math.tanh %1254 : vector<2x128xf32>
    %1256 = arith.mulf %1251, %1255 : vector<2x128xf32>
    %1257 = arith.subf %5, %1229 : vector<2x128xf32>
    %1258 = arith.mulf %1257, %1257 : vector<2x128xf32>
    %1259 = arith.addf %1199, %1258 : vector<2x128xf32>
    %1260 = arith.subf %4, %1256 : vector<2x128xf32>
    %1261 = arith.mulf %1260, %1260 : vector<2x128xf32>
    %1262 = arith.addf %1202, %1261 : vector<2x128xf32>
    %cst_203 = arith.constant dense<0.000000e+00> : vector<2x512xf32>
    %1263 = tpu.matmul %1229, %953, %cst_203 {dimension_numbers = #tpu.dot_dimension_numbers<[1], [0], [0], [1], [0, 0, 1, 1], [], []>} : vector<2x128xf32>, vector<128x512xf32>, vector<2x512xf32> -> vector<2x512xf32>
    %1264 = arith.addf %1263, %956 : vector<2x512xf32>
    %1265 = vector.extract_strided_slice %1264 {offsets = [0, 0], sizes = [2, 128], strides = [1, 1]} : vector<2x512xf32> to vector<2x128xf32>
    %1266 = arith.negf %1265 : vector<2x128xf32>
    %1267 = math.exp %1266 : vector<2x128xf32>
    %cst_204 = arith.constant 1.000000e+00 : f32
    %1268 = vector.broadcast %cst_204 : f32 to vector<2x128xf32>
    %1269 = arith.addf %1268, %1267 : vector<2x128xf32>
    %1270 = arith.divf %1268, %1269 : vector<2x128xf32>
    %1271 = vector.extract_strided_slice %1264 {offsets = [0, 128], sizes = [2, 128], strides = [1, 1]} : vector<2x512xf32> to vector<2x128xf32>
    %1272 = arith.negf %1271 : vector<2x128xf32>
    %1273 = math.exp %1272 : vector<2x128xf32>
    %cst_205 = arith.constant 1.000000e+00 : f32
    %1274 = vector.broadcast %cst_205 : f32 to vector<2x128xf32>
    %1275 = arith.addf %1274, %1273 : vector<2x128xf32>
    %1276 = arith.divf %1274, %1275 : vector<2x128xf32>
    %1277 = vector.extract_strided_slice %1264 {offsets = [0, 256], sizes = [2, 128], strides = [1, 1]} : vector<2x512xf32> to vector<2x128xf32>
    %1278 = math.tanh %1277 : vector<2x128xf32>
    %1279 = vector.extract_strided_slice %1264 {offsets = [0, 384], sizes = [2, 128], strides = [1, 1]} : vector<2x512xf32> to vector<2x128xf32>
    %1280 = arith.negf %1279 : vector<2x128xf32>
    %1281 = math.exp %1280 : vector<2x128xf32>
    %cst_206 = arith.constant 1.000000e+00 : f32
    %1282 = vector.broadcast %cst_206 : f32 to vector<2x128xf32>
    %1283 = arith.addf %1282, %1281 : vector<2x128xf32>
    %1284 = arith.divf %1282, %1283 : vector<2x128xf32>
    %1285 = arith.mulf %1276, %1227 : vector<2x128xf32>
    %1286 = arith.mulf %1270, %1278 : vector<2x128xf32>
    %1287 = arith.addf %1285, %1286 : vector<2x128xf32>
    %1288 = math.tanh %1287 : vector<2x128xf32>
    %1289 = arith.mulf %1284, %1288 : vector<2x128xf32>
    %cst_207 = arith.constant dense<0.000000e+00> : vector<2x512xf32>
    %1290 = tpu.matmul %1256, %957, %cst_207 {dimension_numbers = #tpu.dot_dimension_numbers<[1], [0], [0], [1], [0, 0, 1, 1], [], []>} : vector<2x128xf32>, vector<128x512xf32>, vector<2x512xf32> -> vector<2x512xf32>
    %1291 = arith.addf %1290, %962 : vector<2x512xf32>
    %1292 = vector.extract_strided_slice %1291 {offsets = [0, 0], sizes = [2, 128], strides = [1, 1]} : vector<2x512xf32> to vector<2x128xf32>
    %1293 = arith.negf %1292 : vector<2x128xf32>
    %1294 = math.exp %1293 : vector<2x128xf32>
    %cst_208 = arith.constant 1.000000e+00 : f32
    %1295 = vector.broadcast %cst_208 : f32 to vector<2x128xf32>
    %1296 = arith.addf %1295, %1294 : vector<2x128xf32>
    %1297 = arith.divf %1295, %1296 : vector<2x128xf32>
    %1298 = vector.extract_strided_slice %1291 {offsets = [0, 128], sizes = [2, 128], strides = [1, 1]} : vector<2x512xf32> to vector<2x128xf32>
    %1299 = arith.negf %1298 : vector<2x128xf32>
    %1300 = math.exp %1299 : vector<2x128xf32>
    %cst_209 = arith.constant 1.000000e+00 : f32
    %1301 = vector.broadcast %cst_209 : f32 to vector<2x128xf32>
    %1302 = arith.addf %1301, %1300 : vector<2x128xf32>
    %1303 = arith.divf %1301, %1302 : vector<2x128xf32>
    %1304 = vector.extract_strided_slice %1291 {offsets = [0, 256], sizes = [2, 128], strides = [1, 1]} : vector<2x512xf32> to vector<2x128xf32>
    %1305 = math.tanh %1304 : vector<2x128xf32>
    %1306 = vector.extract_strided_slice %1291 {offsets = [0, 384], sizes = [2, 128], strides = [1, 1]} : vector<2x512xf32> to vector<2x128xf32>
    %1307 = arith.negf %1306 : vector<2x128xf32>
    %1308 = math.exp %1307 : vector<2x128xf32>
    %cst_210 = arith.constant 1.000000e+00 : f32
    %1309 = vector.broadcast %cst_210 : f32 to vector<2x128xf32>
    %1310 = arith.addf %1309, %1308 : vector<2x128xf32>
    %1311 = arith.divf %1309, %1310 : vector<2x128xf32>
    %1312 = arith.mulf %1303, %947 : vector<2x128xf32>
    %1313 = arith.mulf %1297, %1305 : vector<2x128xf32>
    %1314 = arith.addf %1312, %1313 : vector<2x128xf32>
    %1315 = math.tanh %1314 : vector<2x128xf32>
    %1316 = arith.mulf %1311, %1315 : vector<2x128xf32>
    %1317 = arith.subf %6, %1289 : vector<2x128xf32>
    %1318 = arith.mulf %1317, %1317 : vector<2x128xf32>
    %1319 = arith.addf %1259, %1318 : vector<2x128xf32>
    %1320 = arith.subf %3, %1316 : vector<2x128xf32>
    %1321 = arith.mulf %1320, %1320 : vector<2x128xf32>
    %1322 = arith.addf %1262, %1321 : vector<2x128xf32>
    %cst_211 = arith.constant dense<0.000000e+00> : vector<2x512xf32>
    %1323 = tpu.matmul %1289, %953, %cst_211 {dimension_numbers = #tpu.dot_dimension_numbers<[1], [0], [0], [1], [0, 0, 1, 1], [], []>} : vector<2x128xf32>, vector<128x512xf32>, vector<2x512xf32> -> vector<2x512xf32>
    %1324 = arith.addf %1323, %956 : vector<2x512xf32>
    %1325 = vector.extract_strided_slice %1324 {offsets = [0, 0], sizes = [2, 128], strides = [1, 1]} : vector<2x512xf32> to vector<2x128xf32>
    %1326 = arith.negf %1325 : vector<2x128xf32>
    %1327 = math.exp %1326 : vector<2x128xf32>
    %cst_212 = arith.constant 1.000000e+00 : f32
    %1328 = vector.broadcast %cst_212 : f32 to vector<2x128xf32>
    %1329 = arith.addf %1328, %1327 : vector<2x128xf32>
    %1330 = arith.divf %1328, %1329 : vector<2x128xf32>
    %1331 = vector.extract_strided_slice %1324 {offsets = [0, 128], sizes = [2, 128], strides = [1, 1]} : vector<2x512xf32> to vector<2x128xf32>
    %1332 = arith.negf %1331 : vector<2x128xf32>
    %1333 = math.exp %1332 : vector<2x128xf32>
    %cst_213 = arith.constant 1.000000e+00 : f32
    %1334 = vector.broadcast %cst_213 : f32 to vector<2x128xf32>
    %1335 = arith.addf %1334, %1333 : vector<2x128xf32>
    %1336 = arith.divf %1334, %1335 : vector<2x128xf32>
    %1337 = vector.extract_strided_slice %1324 {offsets = [0, 256], sizes = [2, 128], strides = [1, 1]} : vector<2x512xf32> to vector<2x128xf32>
    %1338 = math.tanh %1337 : vector<2x128xf32>
    %1339 = vector.extract_strided_slice %1324 {offsets = [0, 384], sizes = [2, 128], strides = [1, 1]} : vector<2x512xf32> to vector<2x128xf32>
    %1340 = arith.negf %1339 : vector<2x128xf32>
    %1341 = math.exp %1340 : vector<2x128xf32>
    %cst_214 = arith.constant 1.000000e+00 : f32
    %1342 = vector.broadcast %cst_214 : f32 to vector<2x128xf32>
    %1343 = arith.addf %1342, %1341 : vector<2x128xf32>
    %1344 = arith.divf %1342, %1343 : vector<2x128xf32>
    %1345 = arith.mulf %1336, %1287 : vector<2x128xf32>
    %1346 = arith.mulf %1330, %1338 : vector<2x128xf32>
    %1347 = arith.addf %1345, %1346 : vector<2x128xf32>
    %1348 = math.tanh %1347 : vector<2x128xf32>
    %1349 = arith.mulf %1344, %1348 : vector<2x128xf32>
    %cst_215 = arith.constant dense<0.000000e+00> : vector<2x512xf32>
    %1350 = tpu.matmul %1316, %957, %cst_215 {dimension_numbers = #tpu.dot_dimension_numbers<[1], [0], [0], [1], [0, 0, 1, 1], [], []>} : vector<2x128xf32>, vector<128x512xf32>, vector<2x512xf32> -> vector<2x512xf32>
    %1351 = arith.addf %1350, %962 : vector<2x512xf32>
    %1352 = vector.extract_strided_slice %1351 {offsets = [0, 0], sizes = [2, 128], strides = [1, 1]} : vector<2x512xf32> to vector<2x128xf32>
    %1353 = arith.negf %1352 : vector<2x128xf32>
    %1354 = math.exp %1353 : vector<2x128xf32>
    %cst_216 = arith.constant 1.000000e+00 : f32
    %1355 = vector.broadcast %cst_216 : f32 to vector<2x128xf32>
    %1356 = arith.addf %1355, %1354 : vector<2x128xf32>
    %1357 = arith.divf %1355, %1356 : vector<2x128xf32>
    %1358 = vector.extract_strided_slice %1351 {offsets = [0, 128], sizes = [2, 128], strides = [1, 1]} : vector<2x512xf32> to vector<2x128xf32>
    %1359 = arith.negf %1358 : vector<2x128xf32>
    %1360 = math.exp %1359 : vector<2x128xf32>
    %cst_217 = arith.constant 1.000000e+00 : f32
    %1361 = vector.broadcast %cst_217 : f32 to vector<2x128xf32>
    %1362 = arith.addf %1361, %1360 : vector<2x128xf32>
    %1363 = arith.divf %1361, %1362 : vector<2x128xf32>
    %1364 = vector.extract_strided_slice %1351 {offsets = [0, 256], sizes = [2, 128], strides = [1, 1]} : vector<2x512xf32> to vector<2x128xf32>
    %1365 = math.tanh %1364 : vector<2x128xf32>
    %1366 = vector.extract_strided_slice %1351 {offsets = [0, 384], sizes = [2, 128], strides = [1, 1]} : vector<2x512xf32> to vector<2x128xf32>
    %1367 = arith.negf %1366 : vector<2x128xf32>
    %1368 = math.exp %1367 : vector<2x128xf32>
    %cst_218 = arith.constant 1.000000e+00 : f32
    %1369 = vector.broadcast %cst_218 : f32 to vector<2x128xf32>
    %1370 = arith.addf %1369, %1368 : vector<2x128xf32>
    %1371 = arith.divf %1369, %1370 : vector<2x128xf32>
    %1372 = arith.mulf %1363, %947 : vector<2x128xf32>
    %1373 = arith.mulf %1357, %1365 : vector<2x128xf32>
    %1374 = arith.addf %1372, %1373 : vector<2x128xf32>
    %1375 = math.tanh %1374 : vector<2x128xf32>
    %1376 = arith.mulf %1371, %1375 : vector<2x128xf32>
    %1377 = arith.subf %7, %1349 : vector<2x128xf32>
    %1378 = arith.mulf %1377, %1377 : vector<2x128xf32>
    %1379 = arith.addf %1319, %1378 : vector<2x128xf32>
    %1380 = arith.subf %2, %1376 : vector<2x128xf32>
    %1381 = arith.mulf %1380, %1380 : vector<2x128xf32>
    %1382 = arith.addf %1322, %1381 : vector<2x128xf32>
    %cst_219 = arith.constant dense<0.000000e+00> : vector<2x512xf32>
    %1383 = tpu.matmul %1349, %953, %cst_219 {dimension_numbers = #tpu.dot_dimension_numbers<[1], [0], [0], [1], [0, 0, 1, 1], [], []>} : vector<2x128xf32>, vector<128x512xf32>, vector<2x512xf32> -> vector<2x512xf32>
    %1384 = arith.addf %1383, %956 : vector<2x512xf32>
    %1385 = vector.extract_strided_slice %1384 {offsets = [0, 0], sizes = [2, 128], strides = [1, 1]} : vector<2x512xf32> to vector<2x128xf32>
    %1386 = arith.negf %1385 : vector<2x128xf32>
    %1387 = math.exp %1386 : vector<2x128xf32>
    %cst_220 = arith.constant 1.000000e+00 : f32
    %1388 = vector.broadcast %cst_220 : f32 to vector<2x128xf32>
    %1389 = arith.addf %1388, %1387 : vector<2x128xf32>
    %1390 = arith.divf %1388, %1389 : vector<2x128xf32>
    %1391 = vector.extract_strided_slice %1384 {offsets = [0, 128], sizes = [2, 128], strides = [1, 1]} : vector<2x512xf32> to vector<2x128xf32>
    %1392 = arith.negf %1391 : vector<2x128xf32>
    %1393 = math.exp %1392 : vector<2x128xf32>
    %cst_221 = arith.constant 1.000000e+00 : f32
    %1394 = vector.broadcast %cst_221 : f32 to vector<2x128xf32>
    %1395 = arith.addf %1394, %1393 : vector<2x128xf32>
    %1396 = arith.divf %1394, %1395 : vector<2x128xf32>
    %1397 = vector.extract_strided_slice %1384 {offsets = [0, 256], sizes = [2, 128], strides = [1, 1]} : vector<2x512xf32> to vector<2x128xf32>
    %1398 = math.tanh %1397 : vector<2x128xf32>
    %1399 = vector.extract_strided_slice %1384 {offsets = [0, 384], sizes = [2, 128], strides = [1, 1]} : vector<2x512xf32> to vector<2x128xf32>
    %1400 = arith.negf %1399 : vector<2x128xf32>
    %1401 = math.exp %1400 : vector<2x128xf32>
    %cst_222 = arith.constant 1.000000e+00 : f32
    %1402 = vector.broadcast %cst_222 : f32 to vector<2x128xf32>
    %1403 = arith.addf %1402, %1401 : vector<2x128xf32>
    %1404 = arith.divf %1402, %1403 : vector<2x128xf32>
    %1405 = arith.mulf %1396, %1347 : vector<2x128xf32>
    %1406 = arith.mulf %1390, %1398 : vector<2x128xf32>
    %1407 = arith.addf %1405, %1406 : vector<2x128xf32>
    %1408 = math.tanh %1407 : vector<2x128xf32>
    %1409 = arith.mulf %1404, %1408 : vector<2x128xf32>
    %cst_223 = arith.constant dense<0.000000e+00> : vector<2x512xf32>
    %1410 = tpu.matmul %1376, %957, %cst_223 {dimension_numbers = #tpu.dot_dimension_numbers<[1], [0], [0], [1], [0, 0, 1, 1], [], []>} : vector<2x128xf32>, vector<128x512xf32>, vector<2x512xf32> -> vector<2x512xf32>
    %1411 = arith.addf %1410, %962 : vector<2x512xf32>
    %1412 = vector.extract_strided_slice %1411 {offsets = [0, 0], sizes = [2, 128], strides = [1, 1]} : vector<2x512xf32> to vector<2x128xf32>
    %1413 = arith.negf %1412 : vector<2x128xf32>
    %1414 = math.exp %1413 : vector<2x128xf32>
    %cst_224 = arith.constant 1.000000e+00 : f32
    %1415 = vector.broadcast %cst_224 : f32 to vector<2x128xf32>
    %1416 = arith.addf %1415, %1414 : vector<2x128xf32>
    %1417 = arith.divf %1415, %1416 : vector<2x128xf32>
    %1418 = vector.extract_strided_slice %1411 {offsets = [0, 128], sizes = [2, 128], strides = [1, 1]} : vector<2x512xf32> to vector<2x128xf32>
    %1419 = arith.negf %1418 : vector<2x128xf32>
    %1420 = math.exp %1419 : vector<2x128xf32>
    %cst_225 = arith.constant 1.000000e+00 : f32
    %1421 = vector.broadcast %cst_225 : f32 to vector<2x128xf32>
    %1422 = arith.addf %1421, %1420 : vector<2x128xf32>
    %1423 = arith.divf %1421, %1422 : vector<2x128xf32>
    %1424 = vector.extract_strided_slice %1411 {offsets = [0, 256], sizes = [2, 128], strides = [1, 1]} : vector<2x512xf32> to vector<2x128xf32>
    %1425 = math.tanh %1424 : vector<2x128xf32>
    %1426 = vector.extract_strided_slice %1411 {offsets = [0, 384], sizes = [2, 128], strides = [1, 1]} : vector<2x512xf32> to vector<2x128xf32>
    %1427 = arith.negf %1426 : vector<2x128xf32>
    %1428 = math.exp %1427 : vector<2x128xf32>
    %cst_226 = arith.constant 1.000000e+00 : f32
    %1429 = vector.broadcast %cst_226 : f32 to vector<2x128xf32>
    %1430 = arith.addf %1429, %1428 : vector<2x128xf32>
    %1431 = arith.divf %1429, %1430 : vector<2x128xf32>
    %1432 = arith.mulf %1423, %947 : vector<2x128xf32>
    %1433 = arith.mulf %1417, %1425 : vector<2x128xf32>
    %1434 = arith.addf %1432, %1433 : vector<2x128xf32>
    %1435 = math.tanh %1434 : vector<2x128xf32>
    %1436 = arith.mulf %1431, %1435 : vector<2x128xf32>
    %1437 = arith.subf %8, %1409 : vector<2x128xf32>
    %1438 = arith.mulf %1437, %1437 : vector<2x128xf32>
    %1439 = arith.addf %1379, %1438 : vector<2x128xf32>
    %1440 = arith.subf %1, %1436 : vector<2x128xf32>
    %1441 = arith.mulf %1440, %1440 : vector<2x128xf32>
    %1442 = arith.addf %1382, %1441 : vector<2x128xf32>
    %1443 = vector.shape_cast %1439 : vector<2x128xf32> to vector<1x2x128xf32>
    %cst_227 = arith.constant dense<0.000000e+00> : vector<1xf32>
    %1444 = vector.multi_reduction <add>, %1443, %cst_227 [1, 2] : vector<1x2x128xf32> to vector<1xf32>
    %1445 = vector.shape_cast %1444 : vector<1xf32> to vector<1x1x1xf32>
    %1446 = vector.extract %1445[0, 0, 0] : f32 from vector<1x1x1xf32>
    %1447 = vector.shape_cast %1442 : vector<2x128xf32> to vector<1x2x128xf32>
    %cst_228 = arith.constant dense<0.000000e+00> : vector<1xf32>
    %1448 = vector.multi_reduction <add>, %1447, %cst_228 [1, 2] : vector<1x2x128xf32> to vector<1xf32>
    %1449 = vector.shape_cast %1448 : vector<1xf32> to vector<1x1x1xf32>
    %1450 = vector.extract %1449[0, 0, 0] : f32 from vector<1x1x1xf32>
    %1451 = arith.addf %1446, %1450 : f32
    %cst_229 = arith.constant 2.048000e+03 : f32
    %1452 = arith.divf %1451, %cst_229 : f32
    %c0_230 = arith.constant 0 : index
    %c0_231 = arith.constant 0 : index
    %1453 = vector.load %arg16[%c0_230, %c0_231] : memref<128x64xf32, #tpu.memory_space<vmem>>, vector<128x64xf32>
    %cst_232 = arith.constant dense<0.000000e+00> : vector<2x64xf32>
    %1454 = tpu.matmul %952, %1453, %cst_232 {dimension_numbers = #tpu.dot_dimension_numbers<[1], [0], [0], [1], [0, 0, 1, 1], [], []>} : vector<2x128xf32>, vector<128x64xf32>, vector<2x64xf32> -> vector<2x64xf32>
    %c0_233 = arith.constant 0 : index
    %c0_234 = arith.constant 0 : index
    %1455 = vector.load %arg17[%c0_233, %c0_234] : memref<1x64xf32, #tpu.memory_space<vmem>>, vector<1x64xf32>
    %1456 = vector.broadcast %1455 : vector<1x64xf32> to vector<2x64xf32>
    %1457 = arith.addf %1454, %1456 : vector<2x64xf32>
    %c0_235 = arith.constant 0 : index
    %c0_236 = arith.constant 0 : index
    %1458 = vector.load %arg18[%c0_235, %c0_236] : memref<2x64xf32, #tpu.memory_space<vmem>>, vector<2x64xf32>
    tpu.vector_store %arg18[%c0_235, %c0_236], %1457 {strides = array<i32>} : memref<2x64xf32, #tpu.memory_space<vmem>>, vector<2x64xf32>,
    %1459 = vector.broadcast %1452 : f32 to vector<1x1xf32>
    %c0_237 = arith.constant 0 : index
    %c0_238 = arith.constant 0 : index
    %1460 = vector.load %arg19[%c0_237, %c0_238] : memref<1x1xf32, #tpu.memory_space<vmem>>, vector<1x1xf32>
    tpu.vector_store %arg19[%c0_237, %c0_238], %1459 {strides = array<i32>} : memref<1x1xf32, #tpu.memory_space<vmem>>, vector<1x1xf32>,
    return
  }
}

</mosaic_0001>

<llo_original>
// kernel: tpu_custom_call.1
$region0: #{tpu_custom_call.1}
  #allocation0 [shape = 'u32[]', space=smem, size = 0x4, offset = 0x4, fixed_abs, tag = 'smem constant byte address 0x4 - core index']
  #allocation1 [shape = 'u32[72,128]{1,0:T(1,128)}', space=vmem, size = 0x9000, scoped, tag = 'internal scratch']
  %s0 = inlined_call_operand.vmem [shape: f32[16,128], index: 0, kind: input, shape index: {}]
  %s1 = inlined_call_operand.hbm [shape: f32[128,1024], index: 1, kind: input, shape index: {}]
  %s2 = inlined_call_operand.vmem [shape: f32[1,1024], index: 2, kind: input, shape index: {}]
  %s3 = inlined_call_operand.hbm [shape: f32[128,512], index: 3, kind: input, shape index: {}]
  %s4 = inlined_call_operand.hbm [shape: f32[128,512], index: 4, kind: input, shape index: {}]
  %s5 = inlined_call_operand.hbm [shape: f32[128,512], index: 5, kind: input, shape index: {}]
  %s6 = inlined_call_operand.vmem [shape: f32[1,512], index: 6, kind: input, shape index: {}]
  %s7 = inlined_call_operand.hbm [shape: f32[128,512], index: 7, kind: input, shape index: {}]
  %s8 = inlined_call_operand.vmem [shape: f32[1,512], index: 8, kind: input, shape index: {}]
  %s9 = inlined_call_operand.hbm [shape: f32[128,512], index: 9, kind: input, shape index: {}]
  %s10 = inlined_call_operand.hbm [shape: f32[128,512], index: 10, kind: input, shape index: {}]
  %s11 = inlined_call_operand.hbm [shape: f32[128,512], index: 11, kind: input, shape index: {}]
  %s12 = inlined_call_operand.vmem [shape: f32[1,512], index: 12, kind: input, shape index: {}]
  %s13 = inlined_call_operand.hbm [shape: f32[128,512], index: 13, kind: input, shape index: {}]
  %s14 = inlined_call_operand.hbm [shape: f32[128,512], index: 14, kind: input, shape index: {}]
  %s15 = inlined_call_operand.vmem [shape: f32[1,512], index: 15, kind: input, shape index: {}]
  %s16 = inlined_call_operand.vmem [shape: f32[128,64], index: 16, kind: input, shape index: {}]
  %s17 = inlined_call_operand.vmem [shape: f32[1,64], index: 17, kind: input, shape index: {}]
  %s18 = inlined_call_operand.hbm [shape: f32[2,64], index: 18, kind: output, shape index: {0}]
  %s19 = inlined_call_operand.hbm [shape: f32[1,1], index: 19, kind: output, shape index: {1}]
  %20 = xla_tuple %s18, %s19
  %s21 = sld [smem:[#allocation0]]
  $region130: #{tpu_custom_call.1} parent=0
    _
  %s23 = ssub.s32 1, %s21
  %s24 = scalar_select 0, %s23, %s21
  $region1: #{tpu_custom_call.1} parent=0
    #allocation2 [shape = 'u8[524288]{0}', space=vmem, size = 0x80000, scoped, tag = 'input window, operand 1, single buffered']
    #allocation3 [shape = 's32[1]{0}', space=sflag, size = 0x4, scoped, tag = 'scoped memory for tpu_custom_call.1']
    #allocation4 [shape = 's32[1]{0}', space=sflag, size = 0x4, scoped, tag = 'scoped memory for tpu_custom_call.1']
    #allocation5 [shape = 'u8[262144]{0}', space=vmem, size = 0x40000, scoped, tag = 'input window, operand 3, single buffered']
    #allocation6 [shape = 's32[1]{0}', space=sflag, size = 0x4, scoped, tag = 'scoped memory for tpu_custom_call.1']
    #allocation7 [shape = 'u8[262144]{0}', space=vmem, size = 0x40000, scoped, tag = 'input window, operand 4, single buffered']
    #allocation8 [shape = 'u8[262144]{0}', space=vmem, size = 0x40000, scoped, tag = 'input window, operand 5, single buffered']
    #allocation9 [shape = 's32[1]{0}', space=sflag, size = 0x4, scoped, tag = 'scoped memory for tpu_custom_call.1']
    #allocation10 [shape = 'u8[262144]{0}', space=vmem, size = 0x40000, scoped, tag = 'input window, operand 7, single buffered']
    #allocation11 [shape = 'u8[262144]{0}', space=vmem, size = 0x40000, scoped, tag = 'input window, operand 9, single buffered']
    #allocation12 [shape = 's32[1]{0}', space=sflag, size = 0x4, scoped, tag = 'scoped memory for tpu_custom_call.1']
    #allocation13 [shape = 'u8[262144]{0}', space=vmem, size = 0x40000, scoped, tag = 'input window, operand 10, single buffered']
    #allocation14 [shape = 'u8[262144]{0}', space=vmem, size = 0x40000, scoped, tag = 'input window, operand 11, single buffered']
    #allocation15 [shape = 's32[1]{0}', space=sflag, size = 0x4, scoped, tag = 'scoped memory for tpu_custom_call.1']
    #allocation16 [shape = 'u8[262144]{0}', space=vmem, size = 0x40000, scoped, tag = 'input window, operand 13, single buffered']
    #allocation17 [shape = 'u8[262144]{0}', space=vmem, size = 0x40000, scoped, tag = 'input window, operand 14, single buffered']
    #allocation18 [shape = 's32[1]{0}', space=sflag, size = 0x4, scoped, tag = 'scoped memory for tpu_custom_call.1']
    #allocation19 [shape = 'u8[1024]{0}', space=vmem, size = 0x400, scoped, tag = 'output window, operand 0, single buffered']
    #allocation20 [shape = 'u8[512]{0}', space=vmem, size = 0x400, scoped, tag = 'output window, operand 1, single buffered']
    #allocation21 [shape = 's32[1]{0}', space=sflag, size = 0x4, scoped, tag = 'scoped memory for tpu_custom_call.1']
    %25 = vsyncpa [#allocation3], 0
    %26 = vsyncpa [#allocation6], 0
    %27 = vsyncpa [#allocation9], 0
    %28 = vsyncpa [#allocation12], 0
    %29 = vsyncpa [#allocation15], 0
    %30 = vsyncpa [#allocation18], 0
    %31 = vsyncpa [#allocation4], 0
    %32 = vsyncpa [#allocation21], 0
    // Predicated region
    $region2: #{tpu_custom_call.1} parent=1 // pred_check
      _
    $region3: #{tpu_custom_call.1} parent=1 // pred_check_branch
      %34 = sbr.rel (0) target = $region5
    $region4: #{tpu_custom_call.1} parent=1 // pred_region
      _
    $region5: #{tpu_custom_call.1} parent=1 // pred_fallthru
      _
    // Predicated region
    $region6: #{tpu_custom_call.1} parent=1 // pred_check
      _
    $region7: #{tpu_custom_call.1} parent=1 // pred_check_branch
      %36 = sbr.rel (0) target = $region9
    $region8: #{tpu_custom_call.1} parent=1 // pred_region
      %38 = vsyncadd [#allocation3], 0
      %s39 = sshll.u32 %s1, 4
      %s40 = int_to_ptr.hbm [resolvable:$true] %s39
      %s41 = sshll.u32 [#allocation2], 4
      %s42 = int_to_ptr.vmem [resolvable:$true] %s41
      %47 = dma.hbm_to_vmem [thread:$0]  %s40, 16384, %s42, [#allocation3], 1024, 1024, 64
    $region9: #{tpu_custom_call.1} parent=1 // pred_fallthru
      _
    // Predicated region
    $region10: #{tpu_custom_call.1} parent=1 // pred_check
      _
    $region11: #{tpu_custom_call.1} parent=1 // pred_check_branch
      %49 = sbr.rel (0) target = $region13
    $region12: #{tpu_custom_call.1} parent=1 // pred_region
      _
    $region13: #{tpu_custom_call.1} parent=1 // pred_fallthru
      _
    // Predicated region
    $region14: #{tpu_custom_call.1} parent=1 // pred_check
      _
    $region15: #{tpu_custom_call.1} parent=1 // pred_check_branch
      %51 = sbr.rel (0) target = $region17
    $region16: #{tpu_custom_call.1} parent=1 // pred_region
      %53 = vsyncadd [#allocation6], 0
      %s54 = sshll.u32 %s3, 4
      %s55 = int_to_ptr.hbm [resolvable:$true] %s54
      %s56 = sshll.u32 [#allocation5], 4
      %s57 = int_to_ptr.vmem [resolvable:$true] %s56
      %62 = dma.hbm_to_vmem [thread:$0]  %s55, 8192, %s57, [#allocation6], 512, 512, 32
    $region17: #{tpu_custom_call.1} parent=1 // pred_fallthru
      _
    // Predicated region
    $region18: #{tpu_custom_call.1} parent=1 // pred_check
      _
    $region19: #{tpu_custom_call.1} parent=1 // pred_check_branch
      %64 = sbr.rel (0) target = $region21
    $region20: #{tpu_custom_call.1} parent=1 // pred_region
      %66 = vsyncadd [#allocation6], 0
      %s67 = sshll.u32 %s4, 4
      %s68 = int_to_ptr.hbm [resolvable:$true] %s67
      %s69 = sshll.u32 [#allocation7], 4
      %s70 = int_to_ptr.vmem [resolvable:$true] %s69
      %75 = dma.hbm_to_vmem [thread:$0]  %s68, 8192, %s70, [#allocation6], 512, 512, 32
    $region21: #{tpu_custom_call.1} parent=1 // pred_fallthru
      _
    // Predicated region
    $region22: #{tpu_custom_call.1} parent=1 // pred_check
      _
    $region23: #{tpu_custom_call.1} parent=1 // pred_check_branch
      %77 = sbr.rel (0) target = $region25
    $region24: #{tpu_custom_call.1} parent=1 // pred_region
      %79 = vsyncadd [#allocation9], 0
      %s80 = sshll.u32 %s5, 4
      %s81 = int_to_ptr.hbm [resolvable:$true] %s80
      %s82 = sshll.u32 [#allocation8], 4
      %s83 = int_to_ptr.vmem [resolvable:$true] %s82
      %88 = dma.hbm_to_vmem [thread:$0]  %s81, 8192, %s83, [#allocation9], 512, 512, 32
    $region25: #{tpu_custom_call.1} parent=1 // pred_fallthru
      _
    // Predicated region
    $region26: #{tpu_custom_call.1} parent=1 // pred_check
      _
    $region27: #{tpu_custom_call.1} parent=1 // pred_check_branch
      %90 = sbr.rel (0) target = $region29
    $region28: #{tpu_custom_call.1} parent=1 // pred_region
      _
    $region29: #{tpu_custom_call.1} parent=1 // pred_fallthru
      _
    // Predicated region
    $region30: #{tpu_custom_call.1} parent=1 // pred_check
      _
    $region31: #{tpu_custom_call.1} parent=1 // pred_check_branch
      %92 = sbr.rel (0) target = $region33
    $region32: #{tpu_custom_call.1} parent=1 // pred_region
      %94 = vsyncadd [#allocation9], 0
      %s95 = sshll.u32 %s7, 4
      %s96 = int_to_ptr.hbm [resolvable:$true] %s95
      %s97 = sshll.u32 [#allocation10], 4
      %s98 = int_to_ptr.vmem [resolvable:$true] %s97
      %103 = dma.hbm_to_vmem [thread:$0]  %s96, 8192, %s98, [#allocation9], 512, 512, 32
    $region33: #{tpu_custom_call.1} parent=1 // pred_fallthru
      _
    // Predicated region
    $region34: #{tpu_custom_call.1} parent=1 // pred_check
      _
    $region35: #{tpu_custom_call.1} parent=1 // pred_check_branch
      %105 = sbr.rel (0) target = $region37
    $region36: #{tpu_custom_call.1} parent=1 // pred_region
      _
    $region37: #{tpu_custom_call.1} parent=1 // pred_fallthru
      _
    // Predicated region
    $region38: #{tpu_custom_call.1} parent=1 // pred_check
      _
    $region39: #{tpu_custom_call.1} parent=1 // pred_check_branch
      %107 = sbr.rel (0) target = $region41
    $region40: #{tpu_custom_call.1} parent=1 // pred_region
      %109 = vsyncadd [#allocation12], 0
      %s110 = sshll.u32 %s9, 4
      %s111 = int_to_ptr.hbm [resolvable:$true] %s110
      %s112 = sshll.u32 [#allocation11], 4
      %s113 = int_to_ptr.vmem [resolvable:$true] %s112
      %118 = dma.hbm_to_vmem [thread:$0]  %s111, 8192, %s113, [#allocation12], 512, 512, 32
    $region41: #{tpu_custom_call.1} parent=1 // pred_fallthru
      _
    // Predicated region
    $region42: #{tpu_custom_call.1} parent=1 // pred_check
      _
    $region43: #{tpu_custom_call.1} parent=1 // pred_check_branch
      %120 = sbr.rel (0) target = $region45
    $region44: #{tpu_custom_call.1} parent=1 // pred_region
      %122 = vsyncadd [#allocation12], 0
      %s123 = sshll.u32 %s10, 4
      %s124 = int_to_ptr.hbm [resolvable:$true] %s123
      %s125 = sshll.u32 [#allocation13], 4
      %s126 = int_to_ptr.vmem [resolvable:$true] %s125
      %131 = dma.hbm_to_vmem [thread:$0]  %s124, 8192, %s126, [#allocation12], 512, 512, 32
    $region45: #{tpu_custom_call.1} parent=1 // pred_fallthru
      _
    // Predicated region
    $region46: #{tpu_custom_call.1} parent=1 // pred_check
      _
    $region47: #{tpu_custom_call.1} parent=1 // pred_check_branch
      %133 = sbr.rel (0) target = $region49
    $region48: #{tpu_custom_call.1} parent=1 // pred_region
      %135 = vsyncadd [#allocation15], 0
      %s136 = sshll.u32 %s11, 4
      %s137 = int_to_ptr.hbm [resolvable:$true] %s136
      %s138 = sshll.u32 [#allocation14], 4
      %s139 = int_to_ptr.vmem [resolvable:$true] %s138
      %144 = dma.hbm_to_vmem [thread:$0]  %s137, 8192, %s139, [#allocation15], 512, 512, 32
    $region49: #{tpu_custom_call.1} parent=1 // pred_fallthru
      _
    // Predicated region
    $region50: #{tpu_custom_call.1} parent=1 // pred_check
      _
    $region51: #{tpu_custom_call.1} parent=1 // pred_check_branch
      %146 = sbr.rel (0) target = $region53
    $region52: #{tpu_custom_call.1} parent=1 // pred_region
      _
    $region53: #{tpu_custom_call.1} parent=1 // pred_fallthru
      _
    // Predicated region
    $region54: #{tpu_custom_call.1} parent=1 // pred_check
      _
    $region55: #{tpu_custom_call.1} parent=1 // pred_check_branch
      %148 = sbr.rel (0) target = $region57
    $region56: #{tpu_custom_call.1} parent=1 // pred_region
      %150 = vsyncadd [#allocation15], 0
      %s151 = sshll.u32 %s13, 4
      %s152 = int_to_ptr.hbm [resolvable:$true] %s151
      %s153 = sshll.u32 [#allocation16], 4
      %s154 = int_to_ptr.vmem [resolvable:$true] %s153
      %159 = dma.hbm_to_vmem [thread:$0]  %s152, 8192, %s154, [#allocation15], 512, 512, 32
    $region57: #{tpu_custom_call.1} parent=1 // pred_fallthru
      _
    // Predicated region
    $region58: #{tpu_custom_call.1} parent=1 // pred_check
      _
    $region59: #{tpu_custom_call.1} parent=1 // pred_check_branch
      %161 = sbr.rel (0) target = $region61
    $region60: #{tpu_custom_call.1} parent=1 // pred_region
      %163 = vsyncadd [#allocation18], 0
      %s164 = sshll.u32 %s14, 4
      %s165 = int_to_ptr.hbm [resolvable:$true] %s164
      %s166 = sshll.u32 [#allocation17], 4
      %s167 = int_to_ptr.vmem [resolvable:$true] %s166
      %172 = dma.hbm_to_vmem [thread:$0]  %s165, 8192, %s167, [#allocation18], 512, 512, 32
    $region61: #{tpu_custom_call.1} parent=1 // pred_fallthru
      _
    // Predicated region
    $region62: #{tpu_custom_call.1} parent=1 // pred_check
      _
    $region63: #{tpu_custom_call.1} parent=1 // pred_check_branch
      %174 = sbr.rel (0) target = $region65
    $region64: #{tpu_custom_call.1} parent=1 // pred_region
      _
    $region65: #{tpu_custom_call.1} parent=1 // pred_fallthru
      _
    // Predicated region
    $region66: #{tpu_custom_call.1} parent=1 // pred_check
      _
    $region67: #{tpu_custom_call.1} parent=1 // pred_check_branch
      %176 = sbr.rel (0) target = $region69
    $region68: #{tpu_custom_call.1} parent=1 // pred_region
      _
    $region69: #{tpu_custom_call.1} parent=1 // pred_fallthru
      _
    // Predicated region
    $region70: #{tpu_custom_call.1} parent=1 // pred_check
      _
    $region71: #{tpu_custom_call.1} parent=1 // pred_check_branch
      %178 = sbr.rel (0) target = $region73
    $region72: #{tpu_custom_call.1} parent=1 // pred_region
      _
    $region73: #{tpu_custom_call.1} parent=1 // pred_fallthru
      _
    // Predicated region
    $region74: #{tpu_custom_call.1} parent=1 // pred_check
      _
    $region75: #{tpu_custom_call.1} parent=1 // pred_check_branch
      %180 = sbr.rel (0) target = $region77
    $region76: #{tpu_custom_call.1} parent=1 // pred_region
      %182 = dma.done [#allocation3], 16384
    $region77: #{tpu_custom_call.1} parent=1 // pred_fallthru
      _
    // Predicated region
    $region78: #{tpu_custom_call.1} parent=1 // pred_check
      _
    $region79: #{tpu_custom_call.1} parent=1 // pred_check_branch
      %184 = sbr.rel (0) target = $region81
    $region80: #{tpu_custom_call.1} parent=1 // pred_region
      %186 = dma.done [#allocation6], 8192
    $region81: #{tpu_custom_call.1} parent=1 // pred_fallthru
      _
    // Predicated region
    $region82: #{tpu_custom_call.1} parent=1 // pred_check
      _
    $region83: #{tpu_custom_call.1} parent=1 // pred_check_branch
      %188 = sbr.rel (0) target = $region85
    $region84: #{tpu_custom_call.1} parent=1 // pred_region
      %190 = dma.done [#allocation6], 8192
    $region85: #{tpu_custom_call.1} parent=1 // pred_fallthru
      _
    // Predicated region
    $region86: #{tpu_custom_call.1} parent=1 // pred_check
      _
    $region87: #{tpu_custom_call.1} parent=1 // pred_check_branch
      %192 = sbr.rel (0) target = $region89
    $region88: #{tpu_custom_call.1} parent=1 // pred_region
      %194 = dma.done [#allocation9], 8192
    $region89: #{tpu_custom_call.1} parent=1 // pred_fallthru
      _
    // Predicated region
    $region90: #{tpu_custom_call.1} parent=1 // pred_check
      _
    $region91: #{tpu_custom_call.1} parent=1 // pred_check_branch
      %196 = sbr.rel (0) target = $region93
    $region92: #{tpu_custom_call.1} parent=1 // pred_region
      %198 = dma.done [#allocation9], 8192
    $region93: #{tpu_custom_call.1} parent=1 // pred_fallthru
      _
    // Predicated region
    $region94: #{tpu_custom_call.1} parent=1 // pred_check
      _
    $region95: #{tpu_custom_call.1} parent=1 // pred_check_branch
      %200 = sbr.rel (0) target = $region97
    $region96: #{tpu_custom_call.1} parent=1 // pred_region
      %202 = dma.done [#allocation12], 8192
    $region97: #{tpu_custom_call.1} parent=1 // pred_fallthru
      _
    // Predicated region
    $region98: #{tpu_custom_call.1} parent=1 // pred_check
      _
    $region99: #{tpu_custom_call.1} parent=1 // pred_check_branch
      %204 = sbr.rel (0) target = $region101
    $region100: #{tpu_custom_call.1} parent=1 // pred_region
      %206 = dma.done [#allocation12], 8192
    $region101: #{tpu_custom_call.1} parent=1 // pred_fallthru
      _
    // Predicated region
    $region102: #{tpu_custom_call.1} parent=1 // pred_check
      _
    $region103: #{tpu_custom_call.1} parent=1 // pred_check_branch
      %208 = sbr.rel (0) target = $region105
    $region104: #{tpu_custom_call.1} parent=1 // pred_region
      %210 = dma.done [#allocation15], 8192
    $region105: #{tpu_custom_call.1} parent=1 // pred_fallthru
      _
    // Predicated region
    $region106: #{tpu_custom_call.1} parent=1 // pred_check
      _
    $region107: #{tpu_custom_call.1} parent=1 // pred_check_branch
      %212 = sbr.rel (0) target = $region109
    $region108: #{tpu_custom_call.1} parent=1 // pred_region
      %214 = dma.done [#allocation15], 8192
    $region109: #{tpu_custom_call.1} parent=1 // pred_fallthru
      _
    // Predicated region
    $region110: #{tpu_custom_call.1} parent=1 // pred_check
      _
    $region111: #{tpu_custom_call.1} parent=1 // pred_check_branch
      %216 = sbr.rel (0) target = $region113
    $region112: #{tpu_custom_call.1} parent=1 // pred_region
      %218 = dma.done [#allocation18], 8192
    $region113: #{tpu_custom_call.1} parent=1 // pred_fallthru
      _
    %v219 = vld [vmem:[%s0] sm:$0xff]
    %v220 = vld [vmem:[%s0 + $0x8] sm:$0xff]
    %v221 = vld [vmem:[#allocation2] sm:$0xff]
    %v222 = vld [vmem:[#allocation2 + $0x8] sm:$0xff]
    %v223 = vld [vmem:[#allocation2 + $0x10] sm:$0xff]
    %v224 = vld [vmem:[#allocation2 + $0x18] sm:$0xff]
    %v225 = vld [vmem:[#allocation2 + $0x20] sm:$0xff]
    %v226 = vld [vmem:[#allocation2 + $0x28] sm:$0xff]
    %v227 = vld [vmem:[#allocation2 + $0x30] sm:$0xff]
    %v228 = vld [vmem:[#allocation2 + $0x38] sm:$0xff]
    %v229 = vld [vmem:[#allocation2 + $0x40] sm:$0xff]
    %v230 = vld [vmem:[#allocation2 + $0x48] sm:$0xff]
    %v231 = vld [vmem:[#allocation2 + $0x50] sm:$0xff]
    %v232 = vld [vmem:[#allocation2 + $0x58] sm:$0xff]
    %v233 = vld [vmem:[#allocation2 + $0x60] sm:$0xff]
    %v234 = vld [vmem:[#allocation2 + $0x68] sm:$0xff]
    %v235 = vld [vmem:[#allocation2 + $0x70] sm:$0xff]
    %v236 = vld [vmem:[#allocation2 + $0x78] sm:$0xff]
    %v237 = vld [vmem:[#allocation2 + $0x80] sm:$0xff]
    %v238 = vld [vmem:[#allocation2 + $0x88] sm:$0xff]
    %v239 = vld [vmem:[#allocation2 + $0x90] sm:$0xff]
    %v240 = vld [vmem:[#allocation2 + $0x98] sm:$0xff]
    %v241 = vld [vmem:[#allocation2 + $0xa0] sm:$0xff]
    %v242 = vld [vmem:[#allocation2 + $0xa8] sm:$0xff]
    %v243 = vld [vmem:[#allocation2 + $0xb0] sm:$0xff]
    %v244 = vld [vmem:[#allocation2 + $0xb8] sm:$0xff]
    %v245 = vld [vmem:[#allocation2 + $0xc0] sm:$0xff]
    %v246 = vld [vmem:[#allocation2 + $0xc8] sm:$0xff]
    %v247 = vld [vmem:[#allocation2 + $0xd0] sm:$0xff]
    %v248 = vld [vmem:[#allocation2 + $0xd8] sm:$0xff]
    %v249 = vld [vmem:[#allocation2 + $0xe0] sm:$0xff]
    %v250 = vld [vmem:[#allocation2 + $0xe8] sm:$0xff]
    %v251 = vld [vmem:[#allocation2 + $0xf0] sm:$0xff]
    %v252 = vld [vmem:[#allocation2 + $0xf8] sm:$0xff]
    %v253 = vld [vmem:[#allocation2 + $0x100] sm:$0xff]
    %v254 = vld [vmem:[#allocation2 + $0x108] sm:$0xff]
    %v255 = vld [vmem:[#allocation2 + $0x110] sm:$0xff]
    %v256 = vld [vmem:[#allocation2 + $0x118] sm:$0xff]
    %v257 = vld [vmem:[#allocation2 + $0x120] sm:$0xff]
    %v258 = vld [vmem:[#allocation2 + $0x128] sm:$0xff]
    %v259 = vld [vmem:[#allocation2 + $0x130] sm:$0xff]
    %v260 = vld [vmem:[#allocation2 + $0x138] sm:$0xff]
    %v261 = vld [vmem:[#allocation2 + $0x140] sm:$0xff]
    %v262 = vld [vmem:[#allocation2 + $0x148] sm:$0xff]
    %v263 = vld [vmem:[#allocation2 + $0x150] sm:$0xff]
    %v264 = vld [vmem:[#allocation2 + $0x158] sm:$0xff]
    %v265 = vld [vmem:[#allocation2 + $0x160] sm:$0xff]
    %v266 = vld [vmem:[#allocation2 + $0x168] sm:$0xff]
    %v267 = vld [vmem:[#allocation2 + $0x170] sm:$0xff]
    %v268 = vld [vmem:[#allocation2 + $0x178] sm:$0xff]
    %v269 = vld [vmem:[#allocation2 + $0x180] sm:$0xff]
    %v270 = vld [vmem:[#allocation2 + $0x188] sm:$0xff]
    %v271 = vld [vmem:[#allocation2 + $0x190] sm:$0xff]
    %v272 = vld [vmem:[#allocation2 + $0x198] sm:$0xff]
    %v273 = vld [vmem:[#allocation2 + $0x1a0] sm:$0xff]
    %v274 = vld [vmem:[#allocation2 + $0x1a8] sm:$0xff]
    %v275 = vld [vmem:[#allocation2 + $0x1b0] sm:$0xff]
    %v276 = vld [vmem:[#allocation2 + $0x1b8] sm:$0xff]
    %v277 = vld [vmem:[#allocation2 + $0x1c0] sm:$0xff]
    %v278 = vld [vmem:[#allocation2 + $0x1c8] sm:$0xff]
    %v279 = vld [vmem:[#allocation2 + $0x1d0] sm:$0xff]
    %v280 = vld [vmem:[#allocation2 + $0x1d8] sm:$0xff]
    %v281 = vld [vmem:[#allocation2 + $0x1e0] sm:$0xff]
    %v282 = vld [vmem:[#allocation2 + $0x1e8] sm:$0xff]
    %v283 = vld [vmem:[#allocation2 + $0x1f0] sm:$0xff]
    %v284 = vld [vmem:[#allocation2 + $0x1f8] sm:$0xff]
    %v285 = vld [vmem:[#allocation2 + $0x200] sm:$0xff]
    %v286 = vld [vmem:[#allocation2 + $0x208] sm:$0xff]
    %v287 = vld [vmem:[#allocation2 + $0x210] sm:$0xff]
    %v288 = vld [vmem:[#allocation2 + $0x218] sm:$0xff]
    %v289 = vld [vmem:[#allocation2 + $0x220] sm:$0xff]
    %v290 = vld [vmem:[#allocation2 + $0x228] sm:$0xff]
    %v291 = vld [vmem:[#allocation2 + $0x230] sm:$0xff]
    %v292 = vld [vmem:[#allocation2 + $0x238] sm:$0xff]
    %v293 = vld [vmem:[#allocation2 + $0x240] sm:$0xff]
    %v294 = vld [vmem:[#allocation2 + $0x248] sm:$0xff]
    %v295 = vld [vmem:[#allocation2 + $0x250] sm:$0xff]
    %v296 = vld [vmem:[#allocation2 + $0x258] sm:$0xff]
    %v297 = vld [vmem:[#allocation2 + $0x260] sm:$0xff]
    %v298 = vld [vmem:[#allocation2 + $0x268] sm:$0xff]
    %v299 = vld [vmem:[#allocation2 + $0x270] sm:$0xff]
    %v300 = vld [vmem:[#allocation2 + $0x278] sm:$0xff]
    %v301 = vld [vmem:[#allocation2 + $0x280] sm:$0xff]
    %v302 = vld [vmem:[#allocation2 + $0x288] sm:$0xff]
    %v303 = vld [vmem:[#allocation2 + $0x290] sm:$0xff]
    %v304 = vld [vmem:[#allocation2 + $0x298] sm:$0xff]
    %v305 = vld [vmem:[#allocation2 + $0x2a0] sm:$0xff]
    %v306 = vld [vmem:[#allocation2 + $0x2a8] sm:$0xff]
    %v307 = vld [vmem:[#allocation2 + $0x2b0] sm:$0xff]
    %v308 = vld [vmem:[#allocation2 + $0x2b8] sm:$0xff]
    %v309 = vld [vmem:[#allocation2 + $0x2c0] sm:$0xff]
    %v310 = vld [vmem:[#allocation2 + $0x2c8] sm:$0xff]
    %v311 = vld [vmem:[#allocation2 + $0x2d0] sm:$0xff]
    %v312 = vld [vmem:[#allocation2 + $0x2d8] sm:$0xff]
    %v313 = vld [vmem:[#allocation2 + $0x2e0] sm:$0xff]
    %v314 = vld [vmem:[#allocation2 + $0x2e8] sm:$0xff]
    %v315 = vld [vmem:[#allocation2 + $0x2f0] sm:$0xff]
    %v316 = vld [vmem:[#allocation2 + $0x2f8] sm:$0xff]
    %v317 = vld [vmem:[#allocation2 + $0x300] sm:$0xff]
    %v318 = vld [vmem:[#allocation2 + $0x308] sm:$0xff]
    %v319 = vld [vmem:[#allocation2 + $0x310] sm:$0xff]
    %v320 = vld [vmem:[#allocation2 + $0x318] sm:$0xff]
    %v321 = vld [vmem:[#allocation2 + $0x320] sm:$0xff]
    %v322 = vld [vmem:[#allocation2 + $0x328] sm:$0xff]
    %v323 = vld [vmem:[#allocation2 + $0x330] sm:$0xff]
    %v324 = vld [vmem:[#allocation2 + $0x338] sm:$0xff]
    %v325 = vld [vmem:[#allocation2 + $0x340] sm:$0xff]
    %v326 = vld [vmem:[#allocation2 + $0x348] sm:$0xff]
    %v327 = vld [vmem:[#allocation2 + $0x350] sm:$0xff]
    %v328 = vld [vmem:[#allocation2 + $0x358] sm:$0xff]
    %v329 = vld [vmem:[#allocation2 + $0x360] sm:$0xff]
    %v330 = vld [vmem:[#allocation2 + $0x368] sm:$0xff]
    %v331 = vld [vmem:[#allocation2 + $0x370] sm:$0xff]
    %v332 = vld [vmem:[#allocation2 + $0x378] sm:$0xff]
    %v333 = vld [vmem:[#allocation2 + $0x380] sm:$0xff]
    %v334 = vld [vmem:[#allocation2 + $0x388] sm:$0xff]
    %v335 = vld [vmem:[#allocation2 + $0x390] sm:$0xff]
    %v336 = vld [vmem:[#allocation2 + $0x398] sm:$0xff]
    %v337 = vld [vmem:[#allocation2 + $0x3a0] sm:$0xff]
    %v338 = vld [vmem:[#allocation2 + $0x3a8] sm:$0xff]
    %v339 = vld [vmem:[#allocation2 + $0x3b0] sm:$0xff]
    %v340 = vld [vmem:[#allocation2 + $0x3b8] sm:$0xff]
    %v341 = vld [vmem:[#allocation2 + $0x3c0] sm:$0xff]
    %v342 = vld [vmem:[#allocation2 + $0x3c8] sm:$0xff]
    %v343 = vld [vmem:[#allocation2 + $0x3d0] sm:$0xff]
    %v344 = vld [vmem:[#allocation2 + $0x3d8] sm:$0xff]
    %v345 = vld [vmem:[#allocation2 + $0x3e0] sm:$0xff]
    %v346 = vld [vmem:[#allocation2 + $0x3e8] sm:$0xff]
    %v347 = vld [vmem:[#allocation2 + $0x3f0] sm:$0xff]
    %v348 = vld [vmem:[#allocation2 + $0x3f8] sm:$0xff]
    %v349 = vld [vmem:[%s2] sm:$0xff]
    %v351 = vperm.slane %v349, 0
    %v352 = vperm.slane %v349, 1
    %v353 = vperm.slane %v349, 2
    %v354 = vperm.slane %v349, 3
    %v355 = vperm.slane %v349, 4
    %v356 = vperm.slane %v349, 5
    %v357 = vperm.slane %v349, 6
    %v358 = vperm.slane %v349, 7
    %367 = vmatpush.msra.mxu0 %v341
    %368 = vmatpush.msra.mxu0 %v333
    %369 = vmatpush.msra.mxu0 %v325
    %370 = vmatpush.msra.mxu0 %v317
    %371 = vmatpush.msra.mxu0 %v309
    %372 = vmatpush.msra.mxu0 %v301
    %373 = vmatpush.msra.mxu0 %v293
    %374 = vmatpush.msra.mxu0 %v285
    %375 = vmatpush.msra.mxu0 %v277
    %376 = vmatpush.msra.mxu0 %v269
    %377 = vmatpush.msra.mxu0 %v261
    %378 = vmatpush.msra.mxu0 %v253
    %379 = vmatpush.msra.mxu0 %v245
    %380 = vmatpush.msra.mxu0 %v237
    %381 = vmatpush.msra.mxu0 %v229
    %382 = vmatpush.msra.mxu0 %v221
    %383 = vmatmul.f32.gmra.mxu0 %v219
    %v384 = vpop.f32.mrf.mxu0
    %v385 = vadd.f32 %v351, %v384
    %386 = vmatmul.f32.gmra.mxu0 %v220
    %v387 = vpop.f32.mrf.mxu0
    %v388 = vadd.f32 %v351, %v387
    %389 = vdwg.mxu0
    %390 = vmatpush.msra.mxu0 %v342
    %391 = vmatpush.msra.mxu0 %v334
    %392 = vmatpush.msra.mxu0 %v326
    %393 = vmatpush.msra.mxu0 %v318
    %394 = vmatpush.msra.mxu0 %v310
    %395 = vmatpush.msra.mxu0 %v302
    %396 = vmatpush.msra.mxu0 %v294
    %397 = vmatpush.msra.mxu0 %v286
    %398 = vmatpush.msra.mxu0 %v278
    %399 = vmatpush.msra.mxu0 %v270
    %400 = vmatpush.msra.mxu0 %v262
    %401 = vmatpush.msra.mxu0 %v254
    %402 = vmatpush.msra.mxu0 %v246
    %403 = vmatpush.msra.mxu0 %v238
    %404 = vmatpush.msra.mxu0 %v230
    %405 = vmatpush.msra.mxu0 %v222
    %406 = vmatmul.f32.gmra.mxu0 %v219
    %v407 = vpop.f32.mrf.mxu0
    %v408 = vadd.f32 %v352, %v407
    %409 = vmatmul.f32.gmra.mxu0 %v220
    %v410 = vpop.f32.mrf.mxu0
    %v411 = vadd.f32 %v352, %v410
    %412 = vdwg.mxu0
    %413 = vmatpush.msra.mxu0 %v343
    %414 = vmatpush.msra.mxu0 %v335
    %415 = vmatpush.msra.mxu0 %v327
    %416 = vmatpush.msra.mxu0 %v319
    %417 = vmatpush.msra.mxu0 %v311
    %418 = vmatpush.msra.mxu0 %v303
    %419 = vmatpush.msra.mxu0 %v295
    %420 = vmatpush.msra.mxu0 %v287
    %421 = vmatpush.msra.mxu0 %v279
    %422 = vmatpush.msra.mxu0 %v271
    %423 = vmatpush.msra.mxu0 %v263
    %424 = vmatpush.msra.mxu0 %v255
    %425 = vmatpush.msra.mxu0 %v247
    %426 = vmatpush.msra.mxu0 %v239
    %427 = vmatpush.msra.mxu0 %v231
    %428 = vmatpush.msra.mxu0 %v223
    %429 = vmatmul.f32.gmra.mxu0 %v219
    %v430 = vpop.f32.mrf.mxu0
    %v431 = vadd.f32 %v353, %v430
    %432 = vmatmul.f32.gmra.mxu0 %v220
    %v433 = vpop.f32.mrf.mxu0
    %v434 = vadd.f32 %v353, %v433
    %435 = vdwg.mxu0
    %436 = vmatpush.msra.mxu0 %v344
    %437 = vmatpush.msra.mxu0 %v336
    %438 = vmatpush.msra.mxu0 %v328
    %439 = vmatpush.msra.mxu0 %v320
    %440 = vmatpush.msra.mxu0 %v312
    %441 = vmatpush.msra.mxu0 %v304
    %442 = vmatpush.msra.mxu0 %v296
    %443 = vmatpush.msra.mxu0 %v288
    %444 = vmatpush.msra.mxu0 %v280
    %445 = vmatpush.msra.mxu0 %v272
    %446 = vmatpush.msra.mxu0 %v264
    %447 = vmatpush.msra.mxu0 %v256
    %448 = vmatpush.msra.mxu0 %v248
    %449 = vmatpush.msra.mxu0 %v240
    %450 = vmatpush.msra.mxu0 %v232
    %451 = vmatpush.msra.mxu0 %v224
    %452 = vmatmul.f32.gmra.mxu0 %v219
    %v453 = vpop.f32.mrf.mxu0
    %v454 = vadd.f32 %v354, %v453
    %455 = vmatmul.f32.gmra.mxu0 %v220
    %v456 = vpop.f32.mrf.mxu0
    %v457 = vadd.f32 %v354, %v456
    %458 = vdwg.mxu0
    %459 = vmatpush.msra.mxu0 %v345
    %460 = vmatpush.msra.mxu0 %v337
    %461 = vmatpush.msra.mxu0 %v329
    %462 = vmatpush.msra.mxu0 %v321
    %463 = vmatpush.msra.mxu0 %v313
    %464 = vmatpush.msra.mxu0 %v305
    %465 = vmatpush.msra.mxu0 %v297
    %466 = vmatpush.msra.mxu0 %v289
    %467 = vmatpush.msra.mxu0 %v281
    %468 = vmatpush.msra.mxu0 %v273
    %469 = vmatpush.msra.mxu0 %v265
    %470 = vmatpush.msra.mxu0 %v257
    %471 = vmatpush.msra.mxu0 %v249
    %472 = vmatpush.msra.mxu0 %v241
    %473 = vmatpush.msra.mxu0 %v233
    %474 = vmatpush.msra.mxu0 %v225
    %475 = vmatmul.f32.gmra.mxu0 %v219
    %v476 = vpop.f32.mrf.mxu0
    %v477 = vadd.f32 %v355, %v476
    %478 = vmatmul.f32.gmra.mxu0 %v220
    %v479 = vpop.f32.mrf.mxu0
    %v480 = vadd.f32 %v355, %v479
    %481 = vdwg.mxu0
    %482 = vmatpush.msra.mxu0 %v346
    %483 = vmatpush.msra.mxu0 %v338
    %484 = vmatpush.msra.mxu0 %v330
    %485 = vmatpush.msra.mxu0 %v322
    %486 = vmatpush.msra.mxu0 %v314
    %487 = vmatpush.msra.mxu0 %v306
    %488 = vmatpush.msra.mxu0 %v298
    %489 = vmatpush.msra.mxu0 %v290
    %490 = vmatpush.msra.mxu0 %v282
    %491 = vmatpush.msra.mxu0 %v274
    %492 = vmatpush.msra.mxu0 %v266
    %493 = vmatpush.msra.mxu0 %v258
    %494 = vmatpush.msra.mxu0 %v250
    %495 = vmatpush.msra.mxu0 %v242
    %496 = vmatpush.msra.mxu0 %v234
    %497 = vmatpush.msra.mxu0 %v226
    %498 = vmatmul.f32.gmra.mxu0 %v219
    %v499 = vpop.f32.mrf.mxu0
    %v500 = vadd.f32 %v356, %v499
    %501 = vmatmul.f32.gmra.mxu0 %v220
    %v502 = vpop.f32.mrf.mxu0
    %v503 = vadd.f32 %v356, %v502
    %504 = vdwg.mxu0
    %505 = vmatpush.msra.mxu0 %v347
    %506 = vmatpush.msra.mxu0 %v339
    %507 = vmatpush.msra.mxu0 %v331
    %508 = vmatpush.msra.mxu0 %v323
    %509 = vmatpush.msra.mxu0 %v315
    %510 = vmatpush.msra.mxu0 %v307
    %511 = vmatpush.msra.mxu0 %v299
    %512 = vmatpush.msra.mxu0 %v291
    %513 = vmatpush.msra.mxu0 %v283
    %514 = vmatpush.msra.mxu0 %v275
    %515 = vmatpush.msra.mxu0 %v267
    %516 = vmatpush.msra.mxu0 %v259
    %517 = vmatpush.msra.mxu0 %v251
    %518 = vmatpush.msra.mxu0 %v243
    %519 = vmatpush.msra.mxu0 %v235
    %520 = vmatpush.msra.mxu0 %v227
    %521 = vmatmul.f32.gmra.mxu0 %v219
    %v522 = vpop.f32.mrf.mxu0
    %v523 = vadd.f32 %v357, %v522
    %524 = vmatmul.f32.gmra.mxu0 %v220
    %v525 = vpop.f32.mrf.mxu0
    %v526 = vadd.f32 %v357, %v525
    %527 = vdwg.mxu0
    %528 = vmatpush.msra.mxu0 %v348
    %529 = vmatpush.msra.mxu0 %v340
    %530 = vmatpush.msra.mxu0 %v332
    %531 = vmatpush.msra.mxu0 %v324
    %532 = vmatpush.msra.mxu0 %v316
    %533 = vmatpush.msra.mxu0 %v308
    %534 = vmatpush.msra.mxu0 %v300
    %535 = vmatpush.msra.mxu0 %v292
    %536 = vmatpush.msra.mxu0 %v284
    %537 = vmatpush.msra.mxu0 %v276
    %538 = vmatpush.msra.mxu0 %v268
    %539 = vmatpush.msra.mxu0 %v260
    %540 = vmatpush.msra.mxu0 %v252
    %541 = vmatpush.msra.mxu0 %v244
    %542 = vmatpush.msra.mxu0 %v236
    %543 = vmatpush.msra.mxu0 %v228
    %544 = vmatmul.f32.gmra.mxu0 %v219
    %v545 = vpop.f32.mrf.mxu0
    %v546 = vadd.f32 %v358, %v545
    %547 = vmatmul.f32.gmra.mxu0 %v220
    %v548 = vpop.f32.mrf.mxu0
    %v549 = vadd.f32 %v358, %v548
    %550 = vdwg.mxu0
    %v551 = vld [vmem:[#allocation5] sm:$0xff]
    %v552 = vld [vmem:[#allocation5 + $0x8] sm:$0xff]
    %v553 = vld [vmem:[#allocation5 + $0x10] sm:$0xff]
    %v554 = vld [vmem:[#allocation5 + $0x18] sm:$0xff]
    %v555 = vld [vmem:[#allocation5 + $0x20] sm:$0xff]
    %v556 = vld [vmem:[#allocation5 + $0x28] sm:$0xff]
    %v557 = vld [vmem:[#allocation5 + $0x30] sm:$0xff]
    %v558 = vld [vmem:[#allocation5 + $0x38] sm:$0xff]
    %v559 = vld [vmem:[#allocation5 + $0x40] sm:$0xff]
    %v560 = vld [vmem:[#allocation5 + $0x48] sm:$0xff]
    %v561 = vld [vmem:[#allocation5 + $0x50] sm:$0xff]
    %v562 = vld [vmem:[#allocation5 + $0x58] sm:$0xff]
    %v563 = vld [vmem:[#allocation5 + $0x60] sm:$0xff]
    %v564 = vld [vmem:[#allocation5 + $0x68] sm:$0xff]
    %v565 = vld [vmem:[#allocation5 + $0x70] sm:$0xff]
    %v566 = vld [vmem:[#allocation5 + $0x78] sm:$0xff]
    %v567 = vld [vmem:[#allocation5 + $0x80] sm:$0xff]
    %v568 = vld [vmem:[#allocation5 + $0x88] sm:$0xff]
    %v569 = vld [vmem:[#allocation5 + $0x90] sm:$0xff]
    %v570 = vld [vmem:[#allocation5 + $0x98] sm:$0xff]
    %v571 = vld [vmem:[#allocation5 + $0xa0] sm:$0xff]
    %v572 = vld [vmem:[#allocation5 + $0xa8] sm:$0xff]
    %v573 = vld [vmem:[#allocation5 + $0xb0] sm:$0xff]
    %v574 = vld [vmem:[#allocation5 + $0xb8] sm:$0xff]
    %v575 = vld [vmem:[#allocation5 + $0xc0] sm:$0xff]
    %v576 = vld [vmem:[#allocation5 + $0xc8] sm:$0xff]
    %v577 = vld [vmem:[#allocation5 + $0xd0] sm:$0xff]
    %v578 = vld [vmem:[#allocation5 + $0xd8] sm:$0xff]
    %v579 = vld [vmem:[#allocation5 + $0xe0] sm:$0xff]
    %v580 = vld [vmem:[#allocation5 + $0xe8] sm:$0xff]
    %v581 = vld [vmem:[#allocation5 + $0xf0] sm:$0xff]
    %v582 = vld [vmem:[#allocation5 + $0xf8] sm:$0xff]
    %v583 = vld [vmem:[#allocation5 + $0x100] sm:$0xff]
    %v584 = vld [vmem:[#allocation5 + $0x108] sm:$0xff]
    %v585 = vld [vmem:[#allocation5 + $0x110] sm:$0xff]
    %v586 = vld [vmem:[#allocation5 + $0x118] sm:$0xff]
    %v587 = vld [vmem:[#allocation5 + $0x120] sm:$0xff]
    %v588 = vld [vmem:[#allocation5 + $0x128] sm:$0xff]
    %v589 = vld [vmem:[#allocation5 + $0x130] sm:$0xff]
    %v590 = vld [vmem:[#allocation5 + $0x138] sm:$0xff]
    %v591 = vld [vmem:[#allocation5 + $0x140] sm:$0xff]
    %v592 = vld [vmem:[#allocation5 + $0x148] sm:$0xff]
    %v593 = vld [vmem:[#allocation5 + $0x150] sm:$0xff]
    %v594 = vld [vmem:[#allocation5 + $0x158] sm:$0xff]
    %v595 = vld [vmem:[#allocation5 + $0x160] sm:$0xff]
    %v596 = vld [vmem:[#allocation5 + $0x168] sm:$0xff]
    %v597 = vld [vmem:[#allocation5 + $0x170] sm:$0xff]
    %v598 = vld [vmem:[#allocation5 + $0x178] sm:$0xff]
    %v599 = vld [vmem:[#allocation5 + $0x180] sm:$0xff]
    %v600 = vld [vmem:[#allocation5 + $0x188] sm:$0xff]
    %v601 = vld [vmem:[#allocation5 + $0x190] sm:$0xff]
    %v602 = vld [vmem:[#allocation5 + $0x198] sm:$0xff]
    %v603 = vld [vmem:[#allocation5 + $0x1a0] sm:$0xff]
    %v604 = vld [vmem:[#allocation5 + $0x1a8] sm:$0xff]
    %v605 = vld [vmem:[#allocation5 + $0x1b0] sm:$0xff]
    %v606 = vld [vmem:[#allocation5 + $0x1b8] sm:$0xff]
    %v607 = vld [vmem:[#allocation5 + $0x1c0] sm:$0xff]
    %v608 = vld [vmem:[#allocation5 + $0x1c8] sm:$0xff]
    %v609 = vld [vmem:[#allocation5 + $0x1d0] sm:$0xff]
    %v610 = vld [vmem:[#allocation5 + $0x1d8] sm:$0xff]
    %v611 = vld [vmem:[#allocation5 + $0x1e0] sm:$0xff]
    %v612 = vld [vmem:[#allocation5 + $0x1e8] sm:$0xff]
    %v613 = vld [vmem:[#allocation5 + $0x1f0] sm:$0xff]
    %v614 = vld [vmem:[#allocation5 + $0x1f8] sm:$0xff]
    %v615 = vld [vmem:[#allocation7] sm:$0xff]
    %v616 = vld [vmem:[#allocation7 + $0x8] sm:$0xff]
    %v617 = vld [vmem:[#allocation7 + $0x10] sm:$0xff]
    %v618 = vld [vmem:[#allocation7 + $0x18] sm:$0xff]
    %v619 = vld [vmem:[#allocation7 + $0x20] sm:$0xff]
    %v620 = vld [vmem:[#allocation7 + $0x28] sm:$0xff]
    %v621 = vld [vmem:[#allocation7 + $0x30] sm:$0xff]
    %v622 = vld [vmem:[#allocation7 + $0x38] sm:$0xff]
    %v623 = vld [vmem:[#allocation7 + $0x40] sm:$0xff]
    %v624 = vld [vmem:[#allocation7 + $0x48] sm:$0xff]
    %v625 = vld [vmem:[#allocation7 + $0x50] sm:$0xff]
    %v626 = vld [vmem:[#allocation7 + $0x58] sm:$0xff]
    %v627 = vld [vmem:[#allocation7 + $0x60] sm:$0xff]
    %v628 = vld [vmem:[#allocation7 + $0x68] sm:$0xff]
    %v629 = vld [vmem:[#allocation7 + $0x70] sm:$0xff]
    %v630 = vld [vmem:[#allocation7 + $0x78] sm:$0xff]
    %v631 = vld [vmem:[#allocation7 + $0x80] sm:$0xff]
    %v632 = vld [vmem:[#allocation7 + $0x88] sm:$0xff]
    %v633 = vld [vmem:[#allocation7 + $0x90] sm:$0xff]
    %v634 = vld [vmem:[#allocation7 + $0x98] sm:$0xff]
    %v635 = vld [vmem:[#allocation7 + $0xa0] sm:$0xff]
    %v636 = vld [vmem:[#allocation7 + $0xa8] sm:$0xff]
    %v637 = vld [vmem:[#allocation7 + $0xb0] sm:$0xff]
    %v638 = vld [vmem:[#allocation7 + $0xb8] sm:$0xff]
    %v639 = vld [vmem:[#allocation7 + $0xc0] sm:$0xff]
    %v640 = vld [vmem:[#allocation7 + $0xc8] sm:$0xff]
    %v641 = vld [vmem:[#allocation7 + $0xd0] sm:$0xff]
    %v642 = vld [vmem:[#allocation7 + $0xd8] sm:$0xff]
    %v643 = vld [vmem:[#allocation7 + $0xe0] sm:$0xff]
    %v644 = vld [vmem:[#allocation7 + $0xe8] sm:$0xff]
    %v645 = vld [vmem:[#allocation7 + $0xf0] sm:$0xff]
    %v646 = vld [vmem:[#allocation7 + $0xf8] sm:$0xff]
    %v647 = vld [vmem:[#allocation7 + $0x100] sm:$0xff]
    %v648 = vld [vmem:[#allocation7 + $0x108] sm:$0xff]
    %v649 = vld [vmem:[#allocation7 + $0x110] sm:$0xff]
    %v650 = vld [vmem:[#allocation7 + $0x118] sm:$0xff]
    %v651 = vld [vmem:[#allocation7 + $0x120] sm:$0xff]
    %v652 = vld [vmem:[#allocation7 + $0x128] sm:$0xff]
    %v653 = vld [vmem:[#allocation7 + $0x130] sm:$0xff]
    %v654 = vld [vmem:[#allocation7 + $0x138] sm:$0xff]
    %v655 = vld [vmem:[#allocation7 + $0x140] sm:$0xff]
    %v656 = vld [vmem:[#allocation7 + $0x148] sm:$0xff]
    %v657 = vld [vmem:[#allocation7 + $0x150] sm:$0xff]
    %v658 = vld [vmem:[#allocation7 + $0x158] sm:$0xff]
    %v659 = vld [vmem:[#allocation7 + $0x160] sm:$0xff]
    %v660 = vld [vmem:[#allocation7 + $0x168] sm:$0xff]
    %v661 = vld [vmem:[#allocation7 + $0x170] sm:$0xff]
    %v662 = vld [vmem:[#allocation7 + $0x178] sm:$0xff]
    %v663 = vld [vmem:[#allocation7 + $0x180] sm:$0xff]
    %v664 = vld [vmem:[#allocation7 + $0x188] sm:$0xff]
    %v665 = vld [vmem:[#allocation7 + $0x190] sm:$0xff]
    %v666 = vld [vmem:[#allocation7 + $0x198] sm:$0xff]
    %v667 = vld [vmem:[#allocation7 + $0x1a0] sm:$0xff]
    %v668 = vld [vmem:[#allocation7 + $0x1a8] sm:$0xff]
    %v669 = vld [vmem:[#allocation7 + $0x1b0] sm:$0xff]
    %v670 = vld [vmem:[#allocation7 + $0x1b8] sm:$0xff]
    %v671 = vld [vmem:[#allocation7 + $0x1c0] sm:$0xff]
    %v672 = vld [vmem:[#allocation7 + $0x1c8] sm:$0xff]
    %v673 = vld [vmem:[#allocation7 + $0x1d0] sm:$0xff]
    %v674 = vld [vmem:[#allocation7 + $0x1d8] sm:$0xff]
    %v675 = vld [vmem:[#allocation7 + $0x1e0] sm:$0xff]
    %v676 = vld [vmem:[#allocation7 + $0x1e8] sm:$0xff]
    %v677 = vld [vmem:[#allocation7 + $0x1f0] sm:$0xff]
    %v678 = vld [vmem:[#allocation7 + $0x1f8] sm:$0xff]
    %679 = vmatpush.msra.mxu0 %v611
    %680 = vmatpush.msra.mxu0 %v607
    %681 = vmatpush.msra.mxu0 %v603
    %682 = vmatpush.msra.mxu0 %v599
    %683 = vmatpush.msra.mxu0 %v595
    %684 = vmatpush.msra.mxu0 %v591
    %685 = vmatpush.msra.mxu0 %v587
    %686 = vmatpush.msra.mxu0 %v583
    %687 = vmatpush.msra.mxu0 %v579
    %688 = vmatpush.msra.mxu0 %v575
    %689 = vmatpush.msra.mxu0 %v571
    %690 = vmatpush.msra.mxu0 %v567
    %691 = vmatpush.msra.mxu0 %v563
    %692 = vmatpush.msra.mxu0 %v559
    %693 = vmatpush.msra.mxu0 %v555
    %694 = vmatpush.msra.mxu0 %v551
    %695 = vmatmul.f32.gmra.mxu0 0.0
    %v696 = vpop.f32.mrf.mxu0
    %v697 = vadd.f32 0.0, %v696
    %698 = vdwg.mxu0
    %699 = vmatpush.msra.mxu0 %v612
    %700 = vmatpush.msra.mxu0 %v608
    %701 = vmatpush.msra.mxu0 %v604
    %702 = vmatpush.msra.mxu0 %v600
    %703 = vmatpush.msra.mxu0 %v596
    %704 = vmatpush.msra.mxu0 %v592
    %705 = vmatpush.msra.mxu0 %v588
    %706 = vmatpush.msra.mxu0 %v584
    %707 = vmatpush.msra.mxu0 %v580
    %708 = vmatpush.msra.mxu0 %v576
    %709 = vmatpush.msra.mxu0 %v572
    %710 = vmatpush.msra.mxu0 %v568
    %711 = vmatpush.msra.mxu0 %v564
    %712 = vmatpush.msra.mxu0 %v560
    %713 = vmatpush.msra.mxu0 %v556
    %714 = vmatpush.msra.mxu0 %v552
    %715 = vmatmul.f32.gmra.mxu0 0.0
    %v716 = vpop.f32.mrf.mxu0
    %v717 = vadd.f32 0.0, %v716
    %718 = vdwg.mxu0
    %719 = vmatpush.msra.mxu0 %v613
    %720 = vmatpush.msra.mxu0 %v609
    %721 = vmatpush.msra.mxu0 %v605
    %722 = vmatpush.msra.mxu0 %v601
    %723 = vmatpush.msra.mxu0 %v597
    %724 = vmatpush.msra.mxu0 %v593
    %725 = vmatpush.msra.mxu0 %v589
    %726 = vmatpush.msra.mxu0 %v585
    %727 = vmatpush.msra.mxu0 %v581
    %728 = vmatpush.msra.mxu0 %v577
    %729 = vmatpush.msra.mxu0 %v573
    %730 = vmatpush.msra.mxu0 %v569
    %731 = vmatpush.msra.mxu0 %v565
    %732 = vmatpush.msra.mxu0 %v561
    %733 = vmatpush.msra.mxu0 %v557
    %734 = vmatpush.msra.mxu0 %v553
    %735 = vmatmul.f32.gmra.mxu0 0.0
    %v736 = vpop.f32.mrf.mxu0
    %v737 = vadd.f32 0.0, %v736
    %738 = vdwg.mxu0
    %739 = vmatpush.msra.mxu0 %v614
    %740 = vmatpush.msra.mxu0 %v610
    %741 = vmatpush.msra.mxu0 %v606
    %742 = vmatpush.msra.mxu0 %v602
    %743 = vmatpush.msra.mxu0 %v598
    %744 = vmatpush.msra.mxu0 %v594
    %745 = vmatpush.msra.mxu0 %v590
    %746 = vmatpush.msra.mxu0 %v586
    %747 = vmatpush.msra.mxu0 %v582
    %748 = vmatpush.msra.mxu0 %v578
    %749 = vmatpush.msra.mxu0 %v574
    %750 = vmatpush.msra.mxu0 %v570
    %751 = vmatpush.msra.mxu0 %v566
    %752 = vmatpush.msra.mxu0 %v562
    %753 = vmatpush.msra.mxu0 %v558
    %754 = vmatpush.msra.mxu0 %v554
    %755 = vmatmul.f32.gmra.mxu0 0.0
    %v756 = vpop.f32.mrf.mxu0
    %v757 = vadd.f32 0.0, %v756
    %758 = vdwg.mxu0
    %v759 = vadd.f32 %v385, %v697
    %v760 = vadd.f32 %v408, %v717
    %v761 = vadd.f32 %v431, %v737
    %v762 = vadd.f32 %v454, %v757
    %v763 = vxor.u32 %v759, 2147483648
    %v764 = vmul.f32 %v763, 1.442695
    %v765 = vpow.pop %v764
    %v766 = vadd.f32 %v765, 1.0
    %v767 = vrcp.pop %v766
    %v768 = vmul.f32 %v766, %v767
    %v769 = vsub.f32 1.0, %v768
    %v770 = vmul.f32 %v767, %v769
    %v771 = vadd.f32 %v767, %v770
    %vm772 = vweird.f32 %v766
    %vm773 = vweird.f32 %v767
    %vm774 = vmor %vm772, %vm773
    %v775 = vsel %vm774, %v767, %v771
    %v776 = vand.u32 2147483647, %v766
    %vm777 = vcmp.eq.f32.partialorder %v776, 8.507059e+37
    %v778 = vand.u32 %v766, 2147483648
    %v779 = vor.u32 1.1754944e-38, %v778
    %v780 = vsel %vm777, %v779, %v775
    %v781 = vmul.f32 1.0, %v780
    %v782 = vxor.u32 %v760, 2147483648
    %v783 = vmul.f32 %v782, 1.442695
    %v784 = vpow.pop %v783
    %v785 = vadd.f32 %v784, 1.0
    %v786 = vrcp.pop %v785
    %v787 = vmul.f32 %v785, %v786
    %v788 = vsub.f32 1.0, %v787
    %v789 = vmul.f32 %v786, %v788
    %v790 = vadd.f32 %v786, %v789
    %vm791 = vweird.f32 %v785
    %vm792 = vweird.f32 %v786
    %vm793 = vmor %vm791, %vm792
    %v794 = vsel %vm793, %v786, %v790
    %v795 = vand.u32 2147483647, %v785
    %vm796 = vcmp.eq.f32.partialorder %v795, 8.507059e+37
    %v797 = vand.u32 %v785, 2147483648
    %v798 = vor.u32 1.1754944e-38, %v797
    %v799 = vsel %vm796, %v798, %v794
    %v800 = vmul.f32 1.0, %v799
    %v801 = vtanh.pop %v761
    %v802 = vxor.u32 %v762, 2147483648
    %v803 = vmul.f32 %v802, 1.442695
    %v804 = vpow.pop %v803
    %v805 = vadd.f32 %v804, 1.0
    %v806 = vrcp.pop %v805
    %v807 = vmul.f32 %v805, %v806
    %v808 = vsub.f32 1.0, %v807
    %v809 = vmul.f32 %v806, %v808
    %v810 = vadd.f32 %v806, %v809
    %vm811 = vweird.f32 %v805
    %vm812 = vweird.f32 %v806
    %vm813 = vmor %vm811, %vm812
    %v814 = vsel %vm813, %v806, %v810
    %v815 = vand.u32 2147483647, %v805
    %vm816 = vcmp.eq.f32.partialorder %v815, 8.507059e+37
    %v817 = vand.u32 %v805, 2147483648
    %v818 = vor.u32 1.1754944e-38, %v817
    %v819 = vsel %vm816, %v818, %v814
    %v820 = vmul.f32 1.0, %v819
    %v821 = vmul.f32 %v800, 0.0
    %v822 = vmul.f32 %v781, %v801
    %v823 = vadd.f32 %v821, %v822
    %v824 = vtanh.pop %v823
    %v825 = vmul.f32 %v820, %v824
    %826 = vmatpush.msra.mxu0 %v675
    %827 = vmatpush.msra.mxu0 %v671
    %828 = vmatpush.msra.mxu0 %v667
    %829 = vmatpush.msra.mxu0 %v663
    %830 = vmatpush.msra.mxu0 %v659
    %831 = vmatpush.msra.mxu0 %v655
    %832 = vmatpush.msra.mxu0 %v651
    %833 = vmatpush.msra.mxu0 %v647
    %834 = vmatpush.msra.mxu0 %v643
    %835 = vmatpush.msra.mxu0 %v639
    %836 = vmatpush.msra.mxu0 %v635
    %837 = vmatpush.msra.mxu0 %v631
    %838 = vmatpush.msra.mxu0 %v627
    %839 = vmatpush.msra.mxu0 %v623
    %840 = vmatpush.msra.mxu0 %v619
    %841 = vmatpush.msra.mxu0 %v615
    %842 = vmatmul.f32.gmra.mxu0 0.0
    %v843 = vpop.f32.mrf.mxu0
    %v844 = vadd.f32 0.0, %v843
    %845 = vdwg.mxu0
    %846 = vmatpush.msra.mxu0 %v676
    %847 = vmatpush.msra.mxu0 %v672
    %848 = vmatpush.msra.mxu0 %v668
    %849 = vmatpush.msra.mxu0 %v664
    %850 = vmatpush.msra.mxu0 %v660
    %851 = vmatpush.msra.mxu0 %v656
    %852 = vmatpush.msra.mxu0 %v652
    %853 = vmatpush.msra.mxu0 %v648
    %854 = vmatpush.msra.mxu0 %v644
    %855 = vmatpush.msra.mxu0 %v640
    %856 = vmatpush.msra.mxu0 %v636
    %857 = vmatpush.msra.mxu0 %v632
    %858 = vmatpush.msra.mxu0 %v628
    %859 = vmatpush.msra.mxu0 %v624
    %860 = vmatpush.msra.mxu0 %v620
    %861 = vmatpush.msra.mxu0 %v616
    %862 = vmatmul.f32.gmra.mxu0 0.0
    %v863 = vpop.f32.mrf.mxu0
    %v864 = vadd.f32 0.0, %v863
    %865 = vdwg.mxu0
    %866 = vmatpush.msra.mxu0 %v677
    %867 = vmatpush.msra.mxu0 %v673
    %868 = vmatpush.msra.mxu0 %v669
    %869 = vmatpush.msra.mxu0 %v665
    %870 = vmatpush.msra.mxu0 %v661
    %871 = vmatpush.msra.mxu0 %v657
    %872 = vmatpush.msra.mxu0 %v653
    %873 = vmatpush.msra.mxu0 %v649
    %874 = vmatpush.msra.mxu0 %v645
    %875 = vmatpush.msra.mxu0 %v641
    %876 = vmatpush.msra.mxu0 %v637
    %877 = vmatpush.msra.mxu0 %v633
    %878 = vmatpush.msra.mxu0 %v629
    %879 = vmatpush.msra.mxu0 %v625
    %880 = vmatpush.msra.mxu0 %v621
    %881 = vmatpush.msra.mxu0 %v617
    %882 = vmatmul.f32.gmra.mxu0 0.0
    %v883 = vpop.f32.mrf.mxu0
    %v884 = vadd.f32 0.0, %v883
    %885 = vdwg.mxu0
    %886 = vmatpush.msra.mxu0 %v678
    %887 = vmatpush.msra.mxu0 %v674
    %888 = vmatpush.msra.mxu0 %v670
    %889 = vmatpush.msra.mxu0 %v666
    %890 = vmatpush.msra.mxu0 %v662
    %891 = vmatpush.msra.mxu0 %v658
    %892 = vmatpush.msra.mxu0 %v654
    %893 = vmatpush.msra.mxu0 %v650
    %894 = vmatpush.msra.mxu0 %v646
    %895 = vmatpush.msra.mxu0 %v642
    %896 = vmatpush.msra.mxu0 %v638
    %897 = vmatpush.msra.mxu0 %v634
    %898 = vmatpush.msra.mxu0 %v630
    %899 = vmatpush.msra.mxu0 %v626
    %900 = vmatpush.msra.mxu0 %v622
    %901 = vmatpush.msra.mxu0 %v618
    %902 = vmatmul.f32.gmra.mxu0 0.0
    %v903 = vpop.f32.mrf.mxu0
    %v904 = vadd.f32 0.0, %v903
    %905 = vdwg.mxu0
    %v910 = vrot.slane %v844, 2
    %v911 = vrot.slane %v864, 2
    %v912 = vrot.slane %v884, 2
    %v913 = vrot.slane %v904, 2
    %v918 = vadd.f32 %v480, %v910
    %v919 = vadd.f32 %v503, %v911
    %v920 = vadd.f32 %v526, %v912
    %v921 = vadd.f32 %v549, %v913
    %v922 = vxor.u32 %v918, 2147483648
    %v923 = vmul.f32 %v922, 1.442695
    %v924 = vpow.pop %v923
    %v925 = vadd.f32 %v924, 1.0
    %v926 = vrcp.pop %v925
    %v927 = vmul.f32 %v925, %v926
    %v928 = vsub.f32 1.0, %v927
    %v929 = vmul.f32 %v926, %v928
    %v930 = vadd.f32 %v926, %v929
    %vm931 = vweird.f32 %v925
    %vm932 = vweird.f32 %v926
    %vm933 = vmor %vm931, %vm932
    %v934 = vsel %vm933, %v926, %v930
    %v935 = vand.u32 2147483647, %v925
    %vm936 = vcmp.eq.f32.partialorder %v935, 8.507059e+37
    %v937 = vand.u32 %v925, 2147483648
    %v938 = vor.u32 1.1754944e-38, %v937
    %v939 = vsel %vm936, %v938, %v934
    %v940 = vmul.f32 1.0, %v939
    %v941 = vxor.u32 %v919, 2147483648
    %v942 = vmul.f32 %v941, 1.442695
    %v943 = vpow.pop %v942
    %v944 = vadd.f32 %v943, 1.0
    %v945 = vrcp.pop %v944
    %v946 = vmul.f32 %v944, %v945
    %v947 = vsub.f32 1.0, %v946
    %v948 = vmul.f32 %v945, %v947
    %v949 = vadd.f32 %v945, %v948
    %vm950 = vweird.f32 %v944
    %vm951 = vweird.f32 %v945
    %vm952 = vmor %vm950, %vm951
    %v953 = vsel %vm952, %v945, %v949
    %v954 = vand.u32 2147483647, %v944
    %vm955 = vcmp.eq.f32.partialorder %v954, 8.507059e+37
    %v956 = vand.u32 %v944, 2147483648
    %v957 = vor.u32 1.1754944e-38, %v956
    %v958 = vsel %vm955, %v957, %v953
    %v959 = vmul.f32 1.0, %v958
    %v960 = vtanh.pop %v920
    %v961 = vxor.u32 %v921, 2147483648
    %v962 = vmul.f32 %v961, 1.442695
    %v963 = vpow.pop %v962
    %v964 = vadd.f32 %v963, 1.0
    %v965 = vrcp.pop %v964
    %v966 = vmul.f32 %v964, %v965
    %v967 = vsub.f32 1.0, %v966
    %v968 = vmul.f32 %v965, %v967
    %v969 = vadd.f32 %v965, %v968
    %vm970 = vweird.f32 %v964
    %vm971 = vweird.f32 %v965
    %vm972 = vmor %vm970, %vm971
    %v973 = vsel %vm972, %v965, %v969
    %v974 = vand.u32 2147483647, %v964
    %vm975 = vcmp.eq.f32.partialorder %v974, 8.507059e+37
    %v976 = vand.u32 %v964, 2147483648
    %v977 = vor.u32 1.1754944e-38, %v976
    %v978 = vsel %vm975, %v977, %v973
    %v979 = vmul.f32 1.0, %v978
    %v980 = vmul.f32 %v959, 0.0
    %v981 = vmul.f32 %v940, %v960
    %v982 = vadd.f32 %v980, %v981
    %v983 = vtanh.pop %v982
    %v984 = vmul.f32 %v979, %v983
    %985 = vmatpush.msra.mxu0 %v611
    %986 = vmatpush.msra.mxu0 %v607
    %987 = vmatpush.msra.mxu0 %v603
    %988 = vmatpush.msra.mxu0 %v599
    %989 = vmatpush.msra.mxu0 %v595
    %990 = vmatpush.msra.mxu0 %v591
    %991 = vmatpush.msra.mxu0 %v587
    %992 = vmatpush.msra.mxu0 %v583
    %993 = vmatpush.msra.mxu0 %v579
    %994 = vmatpush.msra.mxu0 %v575
    %995 = vmatpush.msra.mxu0 %v571
    %996 = vmatpush.msra.mxu0 %v567
    %997 = vmatpush.msra.mxu0 %v563
    %998 = vmatpush.msra.mxu0 %v559
    %999 = vmatpush.msra.mxu0 %v555
    %1000 = vmatpush.msra.mxu0 %v551
    %1001 = vmatmul.f32.gmra.mxu0 %v825
    %v1002 = vpop.f32.mrf.mxu0
    %v1003 = vadd.f32 0.0, %v1002
    %1004 = vdwg.mxu0
    %1005 = vmatpush.msra.mxu0 %v612
    %1006 = vmatpush.msra.mxu0 %v608
    %1007 = vmatpush.msra.mxu0 %v604
    %1008 = vmatpush.msra.mxu0 %v600
    %1009 = vmatpush.msra.mxu0 %v596
    %1010 = vmatpush.msra.mxu0 %v592
    %1011 = vmatpush.msra.mxu0 %v588
    %1012 = vmatpush.msra.mxu0 %v584
    %1013 = vmatpush.msra.mxu0 %v580
    %1014 = vmatpush.msra.mxu0 %v576
    %1015 = vmatpush.msra.mxu0 %v572
    %1016 = vmatpush.msra.mxu0 %v568
    %1017 = vmatpush.msra.mxu0 %v564
    %1018 = vmatpush.msra.mxu0 %v560
    %1019 = vmatpush.msra.mxu0 %v556
    %1020 = vmatpush.msra.mxu0 %v552
    %1021 = vmatmul.f32.gmra.mxu0 %v825
    %v1022 = vpop.f32.mrf.mxu0
    %v1023 = vadd.f32 0.0, %v1022
    %1024 = vdwg.mxu0
    %1025 = vmatpush.msra.mxu0 %v613
    %1026 = vmatpush.msra.mxu0 %v609
    %1027 = vmatpush.msra.mxu0 %v605
    %1028 = vmatpush.msra.mxu0 %v601
    %1029 = vmatpush.msra.mxu0 %v597
    %1030 = vmatpush.msra.mxu0 %v593
    %1031 = vmatpush.msra.mxu0 %v589
    %1032 = vmatpush.msra.mxu0 %v585
    %1033 = vmatpush.msra.mxu0 %v581
    %1034 = vmatpush.msra.mxu0 %v577
    %1035 = vmatpush.msra.mxu0 %v573
    %1036 = vmatpush.msra.mxu0 %v569
    %1037 = vmatpush.msra.mxu0 %v565
    %1038 = vmatpush.msra.mxu0 %v561
    %1039 = vmatpush.msra.mxu0 %v557
    %1040 = vmatpush.msra.mxu0 %v553
    %1041 = vmatmul.f32.gmra.mxu0 %v825
    %v1042 = vpop.f32.mrf.mxu0
    %v1043 = vadd.f32 0.0, %v1042
    %1044 = vdwg.mxu0
    %1045 = vmatpush.msra.mxu0 %v614
    %1046 = vmatpush.msra.mxu0 %v610
    %1047 = vmatpush.msra.mxu0 %v606
    %1048 = vmatpush.msra.mxu0 %v602
    %1049 = vmatpush.msra.mxu0 %v598
    %1050 = vmatpush.msra.mxu0 %v594
    %1051 = vmatpush.msra.mxu0 %v590
    %1052 = vmatpush.msra.mxu0 %v586
    %1053 = vmatpush.msra.mxu0 %v582
    %1054 = vmatpush.msra.mxu0 %v578
    %1055 = vmatpush.msra.mxu0 %v574
    %1056 = vmatpush.msra.mxu0 %v570
    %1057 = vmatpush.msra.mxu0 %v566
    %1058 = vmatpush.msra.mxu0 %v562
    %1059 = vmatpush.msra.mxu0 %v558
    %1060 = vmatpush.msra.mxu0 %v554
    %1061 = vmatmul.f32.gmra.mxu0 %v825
    %v1062 = vpop.f32.mrf.mxu0
    %v1063 = vadd.f32 0.0, %v1062
    %1064 = vdwg.mxu0
    %v1069 = vrot.slane %v1003, 6
    %v1070 = vrot.slane %v1023, 6
    %v1071 = vrot.slane %v1043, 6
    %v1072 = vrot.slane %v1063, 6
    %v1077 = vadd.f32 %v385, %v1069
    %v1078 = vadd.f32 %v408, %v1070
    %v1079 = vadd.f32 %v431, %v1071
    %v1080 = vadd.f32 %v454, %v1072
    %v1081 = vxor.u32 %v1077, 2147483648
    %v1082 = vmul.f32 %v1081, 1.442695
    %v1083 = vpow.pop %v1082
    %v1084 = vadd.f32 %v1083, 1.0
    %v1085 = vrcp.pop %v1084
    %v1086 = vmul.f32 %v1084, %v1085
    %v1087 = vsub.f32 1.0, %v1086
    %v1088 = vmul.f32 %v1085, %v1087
    %v1089 = vadd.f32 %v1085, %v1088
    %vm1090 = vweird.f32 %v1084
    %vm1091 = vweird.f32 %v1085
    %vm1092 = vmor %vm1090, %vm1091
    %v1093 = vsel %vm1092, %v1085, %v1089
    %v1094 = vand.u32 2147483647, %v1084
    %vm1095 = vcmp.eq.f32.partialorder %v1094, 8.507059e+37
    %v1096 = vand.u32 %v1084, 2147483648
    %v1097 = vor.u32 1.1754944e-38, %v1096
    %v1098 = vsel %vm1095, %v1097, %v1093
    %v1099 = vmul.f32 1.0, %v1098
    %v1100 = vxor.u32 %v1078, 2147483648
    %v1101 = vmul.f32 %v1100, 1.442695
    %v1102 = vpow.pop %v1101
    %v1103 = vadd.f32 %v1102, 1.0
    %v1104 = vrcp.pop %v1103
    %v1105 = vmul.f32 %v1103, %v1104
    %v1106 = vsub.f32 1.0, %v1105
    %v1107 = vmul.f32 %v1104, %v1106
    %v1108 = vadd.f32 %v1104, %v1107
    %vm1109 = vweird.f32 %v1103
    %vm1110 = vweird.f32 %v1104
    %vm1111 = vmor %vm1109, %vm1110
    %v1112 = vsel %vm1111, %v1104, %v1108
    %v1113 = vand.u32 2147483647, %v1103
    %vm1114 = vcmp.eq.f32.partialorder %v1113, 8.507059e+37
    %v1115 = vand.u32 %v1103, 2147483648
    %v1116 = vor.u32 1.1754944e-38, %v1115
    %v1117 = vsel %vm1114, %v1116, %v1112
    %v1118 = vmul.f32 1.0, %v1117
    %v1119 = vtanh.pop %v1079
    %v1120 = vxor.u32 %v1080, 2147483648
    %v1121 = vmul.f32 %v1120, 1.442695
    %v1122 = vpow.pop %v1121
    %v1123 = vadd.f32 %v1122, 1.0
    %v1124 = vrcp.pop %v1123
    %v1125 = vmul.f32 %v1123, %v1124
    %v1126 = vsub.f32 1.0, %v1125
    %v1127 = vmul.f32 %v1124, %v1126
    %v1128 = vadd.f32 %v1124, %v1127
    %vm1129 = vweird.f32 %v1123
    %vm1130 = vweird.f32 %v1124
    %vm1131 = vmor %vm1129, %vm1130
    %v1132 = vsel %vm1131, %v1124, %v1128
    %v1133 = vand.u32 2147483647, %v1123
    %vm1134 = vcmp.eq.f32.partialorder %v1133, 8.507059e+37
    %v1135 = vand.u32 %v1123, 2147483648
    %v1136 = vor.u32 1.1754944e-38, %v1135
    %v1137 = vsel %vm1134, %v1136, %v1132
    %v1138 = vmul.f32 1.0, %v1137
    %v1140 = vrot.slane %v823, 6
    %v1142 = vmul.f32 %v1118, %v1140
    %v1143 = vmul.f32 %v1099, %v1119
    %v1144 = vadd.f32 %v1142, %v1143
    %v1145 = vtanh.pop %v1144
    %v1146 = vmul.f32 %v1138, %v1145
    %v1148 = vrot.slane %v984, 6
    %1150 = vmatpush.msra.mxu0 %v675
    %1151 = vmatpush.msra.mxu0 %v671
    %1152 = vmatpush.msra.mxu0 %v667
    %1153 = vmatpush.msra.mxu0 %v663
    %1154 = vmatpush.msra.mxu0 %v659
    %1155 = vmatpush.msra.mxu0 %v655
    %1156 = vmatpush.msra.mxu0 %v651
    %1157 = vmatpush.msra.mxu0 %v647
    %1158 = vmatpush.msra.mxu0 %v643
    %1159 = vmatpush.msra.mxu0 %v639
    %1160 = vmatpush.msra.mxu0 %v635
    %1161 = vmatpush.msra.mxu0 %v631
    %1162 = vmatpush.msra.mxu0 %v627
    %1163 = vmatpush.msra.mxu0 %v623
    %1164 = vmatpush.msra.mxu0 %v619
    %1165 = vmatpush.msra.mxu0 %v615
    %1166 = vmatmul.f32.gmra.mxu0 %v1148
    %v1167 = vpop.f32.mrf.mxu0
    %v1168 = vadd.f32 0.0, %v1167
    %1169 = vdwg.mxu0
    %1170 = vmatpush.msra.mxu0 %v676
    %1171 = vmatpush.msra.mxu0 %v672
    %1172 = vmatpush.msra.mxu0 %v668
    %1173 = vmatpush.msra.mxu0 %v664
    %1174 = vmatpush.msra.mxu0 %v660
    %1175 = vmatpush.msra.mxu0 %v656
    %1176 = vmatpush.msra.mxu0 %v652
    %1177 = vmatpush.msra.mxu0 %v648
    %1178 = vmatpush.msra.mxu0 %v644
    %1179 = vmatpush.msra.mxu0 %v640
    %1180 = vmatpush.msra.mxu0 %v636
    %1181 = vmatpush.msra.mxu0 %v632
    %1182 = vmatpush.msra.mxu0 %v628
    %1183 = vmatpush.msra.mxu0 %v624
    %1184 = vmatpush.msra.mxu0 %v620
    %1185 = vmatpush.msra.mxu0 %v616
    %1186 = vmatmul.f32.gmra.mxu0 %v1148
    %v1187 = vpop.f32.mrf.mxu0
    %v1188 = vadd.f32 0.0, %v1187
    %1189 = vdwg.mxu0
    %1190 = vmatpush.msra.mxu0 %v677
    %1191 = vmatpush.msra.mxu0 %v673
    %1192 = vmatpush.msra.mxu0 %v669
    %1193 = vmatpush.msra.mxu0 %v665
    %1194 = vmatpush.msra.mxu0 %v661
    %1195 = vmatpush.msra.mxu0 %v657
    %1196 = vmatpush.msra.mxu0 %v653
    %1197 = vmatpush.msra.mxu0 %v649
    %1198 = vmatpush.msra.mxu0 %v645
    %1199 = vmatpush.msra.mxu0 %v641
    %1200 = vmatpush.msra.mxu0 %v637
    %1201 = vmatpush.msra.mxu0 %v633
    %1202 = vmatpush.msra.mxu0 %v629
    %1203 = vmatpush.msra.mxu0 %v625
    %1204 = vmatpush.msra.mxu0 %v621
    %1205 = vmatpush.msra.mxu0 %v617
    %1206 = vmatmul.f32.gmra.mxu0 %v1148
    %v1207 = vpop.f32.mrf.mxu0
    %v1208 = vadd.f32 0.0, %v1207
    %1209 = vdwg.mxu0
    %1210 = vmatpush.msra.mxu0 %v678
    %1211 = vmatpush.msra.mxu0 %v674
    %1212 = vmatpush.msra.mxu0 %v670
    %1213 = vmatpush.msra.mxu0 %v666
    %1214 = vmatpush.msra.mxu0 %v662
    %1215 = vmatpush.msra.mxu0 %v658
    %1216 = vmatpush.msra.mxu0 %v654
    %1217 = vmatpush.msra.mxu0 %v650
    %1218 = vmatpush.msra.mxu0 %v646
    %1219 = vmatpush.msra.mxu0 %v642
    %1220 = vmatpush.msra.mxu0 %v638
    %1221 = vmatpush.msra.mxu0 %v634
    %1222 = vmatpush.msra.mxu0 %v630
    %1223 = vmatpush.msra.mxu0 %v626
    %1224 = vmatpush.msra.mxu0 %v622
    %1225 = vmatpush.msra.mxu0 %v618
    %1226 = vmatmul.f32.gmra.mxu0 %v1148
    %v1227 = vpop.f32.mrf.mxu0
    %v1228 = vadd.f32 0.0, %v1227
    %1229 = vdwg.mxu0
    %v1234 = vrot.slane %v1168, 4
    %v1235 = vrot.slane %v1188, 4
    %v1236 = vrot.slane %v1208, 4
    %v1237 = vrot.slane %v1228, 4
    %v1242 = vadd.f32 %v480, %v1234
    %v1243 = vadd.f32 %v503, %v1235
    %v1244 = vadd.f32 %v526, %v1236
    %v1245 = vadd.f32 %v549, %v1237
    %v1246 = vxor.u32 %v1242, 2147483648
    %v1247 = vmul.f32 %v1246, 1.442695
    %v1248 = vpow.pop %v1247
    %v1249 = vadd.f32 %v1248, 1.0
    %v1250 = vrcp.pop %v1249
    %v1251 = vmul.f32 %v1249, %v1250
    %v1252 = vsub.f32 1.0, %v1251
    %v1253 = vmul.f32 %v1250, %v1252
    %v1254 = vadd.f32 %v1250, %v1253
    %vm1255 = vweird.f32 %v1249
    %vm1256 = vweird.f32 %v1250
    %vm1257 = vmor %vm1255, %vm1256
    %v1258 = vsel %vm1257, %v1250, %v1254
    %v1259 = vand.u32 2147483647, %v1249
    %vm1260 = vcmp.eq.f32.partialorder %v1259, 8.507059e+37
    %v1261 = vand.u32 %v1249, 2147483648
    %v1262 = vor.u32 1.1754944e-38, %v1261
    %v1263 = vsel %vm1260, %v1262, %v1258
    %v1264 = vmul.f32 1.0, %v1263
    %v1265 = vxor.u32 %v1243, 2147483648
    %v1266 = vmul.f32 %v1265, 1.442695
    %v1267 = vpow.pop %v1266
    %v1268 = vadd.f32 %v1267, 1.0
    %v1269 = vrcp.pop %v1268
    %v1270 = vmul.f32 %v1268, %v1269
    %v1271 = vsub.f32 1.0, %v1270
    %v1272 = vmul.f32 %v1269, %v1271
    %v1273 = vadd.f32 %v1269, %v1272
    %vm1274 = vweird.f32 %v1268
    %vm1275 = vweird.f32 %v1269
    %vm1276 = vmor %vm1274, %vm1275
    %v1277 = vsel %vm1276, %v1269, %v1273
    %v1278 = vand.u32 2147483647, %v1268
    %vm1279 = vcmp.eq.f32.partialorder %v1278, 8.507059e+37
    %v1280 = vand.u32 %v1268, 2147483648
    %v1281 = vor.u32 1.1754944e-38, %v1280
    %v1282 = vsel %vm1279, %v1281, %v1277
    %v1283 = vmul.f32 1.0, %v1282
    %v1284 = vtanh.pop %v1244
    %v1285 = vxor.u32 %v1245, 2147483648
    %v1286 = vmul.f32 %v1285, 1.442695
    %v1287 = vpow.pop %v1286
    %v1288 = vadd.f32 %v1287, 1.0
    %v1289 = vrcp.pop %v1288
    %v1290 = vmul.f32 %v1288, %v1289
    %v1291 = vsub.f32 1.0, %v1290
    %v1292 = vmul.f32 %v1289, %v1291
    %v1293 = vadd.f32 %v1289, %v1292
    %vm1294 = vweird.f32 %v1288
    %vm1295 = vweird.f32 %v1289
    %vm1296 = vmor %vm1294, %vm1295
    %v1297 = vsel %vm1296, %v1289, %v1293
    %v1298 = vand.u32 2147483647, %v1288
    %vm1299 = vcmp.eq.f32.partialorder %v1298, 8.507059e+37
    %v1300 = vand.u32 %v1288, 2147483648
    %v1301 = vor.u32 1.1754944e-38, %v1300
    %v1302 = vsel %vm1299, %v1301, %v1297
    %v1303 = vmul.f32 1.0, %v1302
    %v1305 = vrot.slane %v982, 2
    %v1307 = vmul.f32 %v1283, %v1305
    %v1308 = vmul.f32 %v1264, %v1284
    %v1309 = vadd.f32 %v1307, %v1308
    %v1310 = vtanh.pop %v1309
    %v1311 = vmul.f32 %v1303, %v1310
    %v1313 = vrot.slane %v1146, 2
    %1315 = vmatpush.msra.mxu0 %v611
    %1316 = vmatpush.msra.mxu0 %v607
    %1317 = vmatpush.msra.mxu0 %v603
    %1318 = vmatpush.msra.mxu0 %v599
    %1319 = vmatpush.msra.mxu0 %v595
    %1320 = vmatpush.msra.mxu0 %v591
    %1321 = vmatpush.msra.mxu0 %v587
    %1322 = vmatpush.msra.mxu0 %v583
    %1323 = vmatpush.msra.mxu0 %v579
    %1324 = vmatpush.msra.mxu0 %v575
    %1325 = vmatpush.msra.mxu0 %v571
    %1326 = vmatpush.msra.mxu0 %v567
    %1327 = vmatpush.msra.mxu0 %v563
    %1328 = vmatpush.msra.mxu0 %v559
    %1329 = vmatpush.msra.mxu0 %v555
    %1330 = vmatpush.msra.mxu0 %v551
    %1331 = vmatmul.f32.gmra.mxu0 %v1313
    %v1332 = vpop.f32.mrf.mxu0
    %v1333 = vadd.f32 0.0, %v1332
    %1334 = vdwg.mxu0
    %1335 = vmatpush.msra.mxu0 %v612
    %1336 = vmatpush.msra.mxu0 %v608
    %1337 = vmatpush.msra.mxu0 %v604
    %1338 = vmatpush.msra.mxu0 %v600
    %1339 = vmatpush.msra.mxu0 %v596
    %1340 = vmatpush.msra.mxu0 %v592
    %1341 = vmatpush.msra.mxu0 %v588
    %1342 = vmatpush.msra.mxu0 %v584
    %1343 = vmatpush.msra.mxu0 %v580
    %1344 = vmatpush.msra.mxu0 %v576
    %1345 = vmatpush.msra.mxu0 %v572
    %1346 = vmatpush.msra.mxu0 %v568
    %1347 = vmatpush.msra.mxu0 %v564
    %1348 = vmatpush.msra.mxu0 %v560
    %1349 = vmatpush.msra.mxu0 %v556
    %1350 = vmatpush.msra.mxu0 %v552
    %1351 = vmatmul.f32.gmra.mxu0 %v1313
    %v1352 = vpop.f32.mrf.mxu0
    %v1353 = vadd.f32 0.0, %v1352
    %1354 = vdwg.mxu0
    %1355 = vmatpush.msra.mxu0 %v613
    %1356 = vmatpush.msra.mxu0 %v609
    %1357 = vmatpush.msra.mxu0 %v605
    %1358 = vmatpush.msra.mxu0 %v601
    %1359 = vmatpush.msra.mxu0 %v597
    %1360 = vmatpush.msra.mxu0 %v593
    %1361 = vmatpush.msra.mxu0 %v589
    %1362 = vmatpush.msra.mxu0 %v585
    %1363 = vmatpush.msra.mxu0 %v581
    %1364 = vmatpush.msra.mxu0 %v577
    %1365 = vmatpush.msra.mxu0 %v573
    %1366 = vmatpush.msra.mxu0 %v569
    %1367 = vmatpush.msra.mxu0 %v565
    %1368 = vmatpush.msra.mxu0 %v561
    %1369 = vmatpush.msra.mxu0 %v557
    %1370 = vmatpush.msra.mxu0 %v553
    %1371 = vmatmul.f32.gmra.mxu0 %v1313
    %v1372 = vpop.f32.mrf.mxu0
    %v1373 = vadd.f32 0.0, %v1372
    %1374 = vdwg.mxu0
    %1375 = vmatpush.msra.mxu0 %v614
    %1376 = vmatpush.msra.mxu0 %v610
    %1377 = vmatpush.msra.mxu0 %v606
    %1378 = vmatpush.msra.mxu0 %v602
    %1379 = vmatpush.msra.mxu0 %v598
    %1380 = vmatpush.msra.mxu0 %v594
    %1381 = vmatpush.msra.mxu0 %v590
    %1382 = vmatpush.msra.mxu0 %v586
    %1383 = vmatpush.msra.mxu0 %v582
    %1384 = vmatpush.msra.mxu0 %v578
    %1385 = vmatpush.msra.mxu0 %v574
    %1386 = vmatpush.msra.mxu0 %v570
    %1387 = vmatpush.msra.mxu0 %v566
    %1388 = vmatpush.msra.mxu0 %v562
    %1389 = vmatpush.msra.mxu0 %v558
    %1390 = vmatpush.msra.mxu0 %v554
    %1391 = vmatmul.f32.gmra.mxu0 %v1313
    %v1392 = vpop.f32.mrf.mxu0
    %v1393 = vadd.f32 0.0, %v1392
    %1394 = vdwg.mxu0
    %v1399 = vrot.slane %v1333, 4
    %v1400 = vrot.slane %v1353, 4
    %v1401 = vrot.slane %v1373, 4
    %v1402 = vrot.slane %v1393, 4
    %v1407 = vadd.f32 %v385, %v1399
    %v1408 = vadd.f32 %v408, %v1400
    %v1409 = vadd.f32 %v431, %v1401
    %v1410 = vadd.f32 %v454, %v1402
    %v1411 = vxor.u32 %v1407, 2147483648
    %v1412 = vmul.f32 %v1411, 1.442695
    %v1413 = vpow.pop %v1412
    %v1414 = vadd.f32 %v1413, 1.0
    %v1415 = vrcp.pop %v1414
    %v1416 = vmul.f32 %v1414, %v1415
    %v1417 = vsub.f32 1.0, %v1416
    %v1418 = vmul.f32 %v1415, %v1417
    %v1419 = vadd.f32 %v1415, %v1418
    %vm1420 = vweird.f32 %v1414
    %vm1421 = vweird.f32 %v1415
    %vm1422 = vmor %vm1420, %vm1421
    %v1423 = vsel %vm1422, %v1415, %v1419
    %v1424 = vand.u32 2147483647, %v1414
    %vm1425 = vcmp.eq.f32.partialorder %v1424, 8.507059e+37
    %v1426 = vand.u32 %v1414, 2147483648
    %v1427 = vor.u32 1.1754944e-38, %v1426
    %v1428 = vsel %vm1425, %v1427, %v1423
    %v1429 = vmul.f32 1.0, %v1428
    %v1430 = vxor.u32 %v1408, 2147483648
    %v1431 = vmul.f32 %v1430, 1.442695
    %v1432 = vpow.pop %v1431
    %v1433 = vadd.f32 %v1432, 1.0
    %v1434 = vrcp.pop %v1433
    %v1435 = vmul.f32 %v1433, %v1434
    %v1436 = vsub.f32 1.0, %v1435
    %v1437 = vmul.f32 %v1434, %v1436
    %v1438 = vadd.f32 %v1434, %v1437
    %vm1439 = vweird.f32 %v1433
    %vm1440 = vweird.f32 %v1434
    %vm1441 = vmor %vm1439, %vm1440
    %v1442 = vsel %vm1441, %v1434, %v1438
    %v1443 = vand.u32 2147483647, %v1433
    %vm1444 = vcmp.eq.f32.partialorder %v1443, 8.507059e+37
    %v1445 = vand.u32 %v1433, 2147483648
    %v1446 = vor.u32 1.1754944e-38, %v1445
    %v1447 = vsel %vm1444, %v1446, %v1442
    %v1448 = vmul.f32 1.0, %v1447
    %v1449 = vtanh.pop %v1409
    %v1450 = vxor.u32 %v1410, 2147483648
    %v1451 = vmul.f32 %v1450, 1.442695
    %v1452 = vpow.pop %v1451
    %v1453 = vadd.f32 %v1452, 1.0
    %v1454 = vrcp.pop %v1453
    %v1455 = vmul.f32 %v1453, %v1454
    %v1456 = vsub.f32 1.0, %v1455
    %v1457 = vmul.f32 %v1454, %v1456
    %v1458 = vadd.f32 %v1454, %v1457
    %vm1459 = vweird.f32 %v1453
    %vm1460 = vweird.f32 %v1454
    %vm1461 = vmor %vm1459, %vm1460
    %v1462 = vsel %vm1461, %v1454, %v1458
    %v1463 = vand.u32 2147483647, %v1453
    %vm1464 = vcmp.eq.f32.partialorder %v1463, 8.507059e+37
    %v1465 = vand.u32 %v1453, 2147483648
    %v1466 = vor.u32 1.1754944e-38, %v1465
    %v1467 = vsel %vm1464, %v1466, %v1462
    %v1468 = vmul.f32 1.0, %v1467
    %v1470 = vrot.slane %v1144, 6
    %v1472 = vmul.f32 %v1448, %v1470
    %v1473 = vmul.f32 %v1429, %v1449
    %v1474 = vadd.f32 %v1472, %v1473
    %v1475 = vtanh.pop %v1474
    %v1476 = vmul.f32 %v1468, %v1475
    %v1478 = vrot.slane %v1311, 4
    %1480 = vmatpush.msra.mxu0 %v675
    %1481 = vmatpush.msra.mxu0 %v671
    %1482 = vmatpush.msra.mxu0 %v667
    %1483 = vmatpush.msra.mxu0 %v663
    %1484 = vmatpush.msra.mxu0 %v659
    %1485 = vmatpush.msra.mxu0 %v655
    %1486 = vmatpush.msra.mxu0 %v651
    %1487 = vmatpush.msra.mxu0 %v647
    %1488 = vmatpush.msra.mxu0 %v643
    %1489 = vmatpush.msra.mxu0 %v639
    %1490 = vmatpush.msra.mxu0 %v635
    %1491 = vmatpush.msra.mxu0 %v631
    %1492 = vmatpush.msra.mxu0 %v627
    %1493 = vmatpush.msra.mxu0 %v623
    %1494 = vmatpush.msra.mxu0 %v619
    %1495 = vmatpush.msra.mxu0 %v615
    %1496 = vmatmul.f32.gmra.mxu0 %v1478
    %v1497 = vpop.f32.mrf.mxu0
    %v1498 = vadd.f32 0.0, %v1497
    %1499 = vdwg.mxu0
    %1500 = vmatpush.msra.mxu0 %v676
    %1501 = vmatpush.msra.mxu0 %v672
    %1502 = vmatpush.msra.mxu0 %v668
    %1503 = vmatpush.msra.mxu0 %v664
    %1504 = vmatpush.msra.mxu0 %v660
    %1505 = vmatpush.msra.mxu0 %v656
    %1506 = vmatpush.msra.mxu0 %v652
    %1507 = vmatpush.msra.mxu0 %v648
    %1508 = vmatpush.msra.mxu0 %v644
    %1509 = vmatpush.msra.mxu0 %v640
    %1510 = vmatpush.msra.mxu0 %v636
    %1511 = vmatpush.msra.mxu0 %v632
    %1512 = vmatpush.msra.mxu0 %v628
    %1513 = vmatpush.msra.mxu0 %v624
    %1514 = vmatpush.msra.mxu0 %v620
    %1515 = vmatpush.msra.mxu0 %v616
    %1516 = vmatmul.f32.gmra.mxu0 %v1478
    %v1517 = vpop.f32.mrf.mxu0
    %v1518 = vadd.f32 0.0, %v1517
    %1519 = vdwg.mxu0
    %1520 = vmatpush.msra.mxu0 %v677
    %1521 = vmatpush.msra.mxu0 %v673
    %1522 = vmatpush.msra.mxu0 %v669
    %1523 = vmatpush.msra.mxu0 %v665
    %1524 = vmatpush.msra.mxu0 %v661
    %1525 = vmatpush.msra.mxu0 %v657
    %1526 = vmatpush.msra.mxu0 %v653
    %1527 = vmatpush.msra.mxu0 %v649
    %1528 = vmatpush.msra.mxu0 %v645
    %1529 = vmatpush.msra.mxu0 %v641
    %1530 = vmatpush.msra.mxu0 %v637
    %1531 = vmatpush.msra.mxu0 %v633
    %1532 = vmatpush.msra.mxu0 %v629
    %1533 = vmatpush.msra.mxu0 %v625
    %1534 = vmatpush.msra.mxu0 %v621
    %1535 = vmatpush.msra.mxu0 %v617
    %1536 = vmatmul.f32.gmra.mxu0 %v1478
    %v1537 = vpop.f32.mrf.mxu0
    %v1538 = vadd.f32 0.0, %v1537
    %1539 = vdwg.mxu0
    %1540 = vmatpush.msra.mxu0 %v678
    %1541 = vmatpush.msra.mxu0 %v674
    %1542 = vmatpush.msra.mxu0 %v670
    %1543 = vmatpush.msra.mxu0 %v666
    %1544 = vmatpush.msra.mxu0 %v662
    %1545 = vmatpush.msra.mxu0 %v658
    %1546 = vmatpush.msra.mxu0 %v654
    %1547 = vmatpush.msra.mxu0 %v650
    %1548 = vmatpush.msra.mxu0 %v646
    %1549 = vmatpush.msra.mxu0 %v642
    %1550 = vmatpush.msra.mxu0 %v638
    %1551 = vmatpush.msra.mxu0 %v634
    %1552 = vmatpush.msra.mxu0 %v630
    %1553 = vmatpush.msra.mxu0 %v626
    %1554 = vmatpush.msra.mxu0 %v622
    %1555 = vmatpush.msra.mxu0 %v618
    %1556 = vmatmul.f32.gmra.mxu0 %v1478
    %v1557 = vpop.f32.mrf.mxu0
    %v1558 = vadd.f32 0.0, %v1557
    %1559 = vdwg.mxu0
    %v1564 = vrot.slane %v1498, 6
    %v1565 = vrot.slane %v1518, 6
    %v1566 = vrot.slane %v1538, 6
    %v1567 = vrot.slane %v1558, 6
    %v1572 = vadd.f32 %v480, %v1564
    %v1573 = vadd.f32 %v503, %v1565
    %v1574 = vadd.f32 %v526, %v1566
    %v1575 = vadd.f32 %v549, %v1567
    %v1576 = vxor.u32 %v1572, 2147483648
    %v1577 = vmul.f32 %v1576, 1.442695
    %v1578 = vpow.pop %v1577
    %v1579 = vadd.f32 %v1578, 1.0
    %v1580 = vrcp.pop %v1579
    %v1581 = vmul.f32 %v1579, %v1580
    %v1582 = vsub.f32 1.0, %v1581
    %v1583 = vmul.f32 %v1580, %v1582
    %v1584 = vadd.f32 %v1580, %v1583
    %vm1585 = vweird.f32 %v1579
    %vm1586 = vweird.f32 %v1580
    %vm1587 = vmor %vm1585, %vm1586
    %v1588 = vsel %vm1587, %v1580, %v1584
    %v1589 = vand.u32 2147483647, %v1579
    %vm1590 = vcmp.eq.f32.partialorder %v1589, 8.507059e+37
    %v1591 = vand.u32 %v1579, 2147483648
    %v1592 = vor.u32 1.1754944e-38, %v1591
    %v1593 = vsel %vm1590, %v1592, %v1588
    %v1594 = vmul.f32 1.0, %v1593
    %v1595 = vxor.u32 %v1573, 2147483648
    %v1596 = vmul.f32 %v1595, 1.442695
    %v1597 = vpow.pop %v1596
    %v1598 = vadd.f32 %v1597, 1.0
    %v1599 = vrcp.pop %v1598
    %v1600 = vmul.f32 %v1598, %v1599
    %v1601 = vsub.f32 1.0, %v1600
    %v1602 = vmul.f32 %v1599, %v1601
    %v1603 = vadd.f32 %v1599, %v1602
    %vm1604 = vweird.f32 %v1598
    %vm1605 = vweird.f32 %v1599
    %vm1606 = vmor %vm1604, %vm1605
    %v1607 = vsel %vm1606, %v1599, %v1603
    %v1608 = vand.u32 2147483647, %v1598
    %vm1609 = vcmp.eq.f32.partialorder %v1608, 8.507059e+37
    %v1610 = vand.u32 %v1598, 2147483648
    %v1611 = vor.u32 1.1754944e-38, %v1610
    %v1612 = vsel %vm1609, %v1611, %v1607
    %v1613 = vmul.f32 1.0, %v1612
    %v1614 = vtanh.pop %v1574
    %v1615 = vxor.u32 %v1575, 2147483648
    %v1616 = vmul.f32 %v1615, 1.442695
    %v1617 = vpow.pop %v1616
    %v1618 = vadd.f32 %v1617, 1.0
    %v1619 = vrcp.pop %v1618
    %v1620 = vmul.f32 %v1618, %v1619
    %v1621 = vsub.f32 1.0, %v1620
    %v1622 = vmul.f32 %v1619, %v1621
    %v1623 = vadd.f32 %v1619, %v1622
    %vm1624 = vweird.f32 %v1618
    %vm1625 = vweird.f32 %v1619
    %vm1626 = vmor %vm1624, %vm1625
    %v1627 = vsel %vm1626, %v1619, %v1623
    %v1628 = vand.u32 2147483647, %v1618
    %vm1629 = vcmp.eq.f32.partialorder %v1628, 8.507059e+37
    %v1630 = vand.u32 %v1618, 2147483648
    %v1631 = vor.u32 1.1754944e-38, %v1630
    %v1632 = vsel %vm1629, %v1631, %v1627
    %v1633 = vmul.f32 1.0, %v1632
    %v1635 = vrot.slane %v1309, 2
    %v1637 = vmul.f32 %v1613, %v1635
    %v1638 = vmul.f32 %v1594, %v1614
    %v1639 = vadd.f32 %v1637, %v1638
    %v1640 = vtanh.pop %v1639
    %v1641 = vmul.f32 %v1633, %v1640
    %v1643 = vrot.slane %v1476, 4
    %1645 = vmatpush.msra.mxu0 %v611
    %1646 = vmatpush.msra.mxu0 %v607
    %1647 = vmatpush.msra.mxu0 %v603
    %1648 = vmatpush.msra.mxu0 %v599
    %1649 = vmatpush.msra.mxu0 %v595
    %1650 = vmatpush.msra.mxu0 %v591
    %1651 = vmatpush.msra.mxu0 %v587
    %1652 = vmatpush.msra.mxu0 %v583
    %1653 = vmatpush.msra.mxu0 %v579
    %1654 = vmatpush.msra.mxu0 %v575
    %1655 = vmatpush.msra.mxu0 %v571
    %1656 = vmatpush.msra.mxu0 %v567
    %1657 = vmatpush.msra.mxu0 %v563
    %1658 = vmatpush.msra.mxu0 %v559
    %1659 = vmatpush.msra.mxu0 %v555
    %1660 = vmatpush.msra.mxu0 %v551
    %1661 = vmatmul.f32.gmra.mxu0 %v1643
    %v1662 = vpop.f32.mrf.mxu0
    %v1663 = vadd.f32 0.0, %v1662
    %1664 = vdwg.mxu0
    %1665 = vmatpush.msra.mxu0 %v612
    %1666 = vmatpush.msra.mxu0 %v608
    %1667 = vmatpush.msra.mxu0 %v604
    %1668 = vmatpush.msra.mxu0 %v600
    %1669 = vmatpush.msra.mxu0 %v596
    %1670 = vmatpush.msra.mxu0 %v592
    %1671 = vmatpush.msra.mxu0 %v588
    %1672 = vmatpush.msra.mxu0 %v584
    %1673 = vmatpush.msra.mxu0 %v580
    %1674 = vmatpush.msra.mxu0 %v576
    %1675 = vmatpush.msra.mxu0 %v572
    %1676 = vmatpush.msra.mxu0 %v568
    %1677 = vmatpush.msra.mxu0 %v564
    %1678 = vmatpush.msra.mxu0 %v560
    %1679 = vmatpush.msra.mxu0 %v556
    %1680 = vmatpush.msra.mxu0 %v552
    %1681 = vmatmul.f32.gmra.mxu0 %v1643
    %v1682 = vpop.f32.mrf.mxu0
    %v1683 = vadd.f32 0.0, %v1682
    %1684 = vdwg.mxu0
    %1685 = vmatpush.msra.mxu0 %v613
    %1686 = vmatpush.msra.mxu0 %v609
    %1687 = vmatpush.msra.mxu0 %v605
    %1688 = vmatpush.msra.mxu0 %v601
    %1689 = vmatpush.msra.mxu0 %v597
    %1690 = vmatpush.msra.mxu0 %v593
    %1691 = vmatpush.msra.mxu0 %v589
    %1692 = vmatpush.msra.mxu0 %v585
    %1693 = vmatpush.msra.mxu0 %v581
    %1694 = vmatpush.msra.mxu0 %v577
    %1695 = vmatpush.msra.mxu0 %v573
    %1696 = vmatpush.msra.mxu0 %v569
    %1697 = vmatpush.msra.mxu0 %v565
    %1698 = vmatpush.msra.mxu0 %v561
    %1699 = vmatpush.msra.mxu0 %v557
    %1700 = vmatpush.msra.mxu0 %v553
    %1701 = vmatmul.f32.gmra.mxu0 %v1643
    %v1702 = vpop.f32.mrf.mxu0
    %v1703 = vadd.f32 0.0, %v1702
    %1704 = vdwg.mxu0
    %1705 = vmatpush.msra.mxu0 %v614
    %1706 = vmatpush.msra.mxu0 %v610
    %1707 = vmatpush.msra.mxu0 %v606
    %1708 = vmatpush.msra.mxu0 %v602
    %1709 = vmatpush.msra.mxu0 %v598
    %1710 = vmatpush.msra.mxu0 %v594
    %1711 = vmatpush.msra.mxu0 %v590
    %1712 = vmatpush.msra.mxu0 %v586
    %1713 = vmatpush.msra.mxu0 %v582
    %1714 = vmatpush.msra.mxu0 %v578
    %1715 = vmatpush.msra.mxu0 %v574
    %1716 = vmatpush.msra.mxu0 %v570
    %1717 = vmatpush.msra.mxu0 %v566
    %1718 = vmatpush.msra.mxu0 %v562
    %1719 = vmatpush.msra.mxu0 %v558
    %1720 = vmatpush.msra.mxu0 %v554
    %1721 = vmatmul.f32.gmra.mxu0 %v1643
    %v1722 = vpop.f32.mrf.mxu0
    %v1723 = vadd.f32 0.0, %v1722
    %1724 = vdwg.mxu0
    %v1729 = vrot.slane %v1663, 2
    %v1730 = vrot.slane %v1683, 2
    %v1731 = vrot.slane %v1703, 2
    %v1732 = vrot.slane %v1723, 2
    %v1737 = vadd.f32 %v385, %v1729
    %v1738 = vadd.f32 %v408, %v1730
    %v1739 = vadd.f32 %v431, %v1731
    %v1740 = vadd.f32 %v454, %v1732
    %v1741 = vxor.u32 %v1737, 2147483648
    %v1742 = vmul.f32 %v1741, 1.442695
    %v1743 = vpow.pop %v1742
    %v1744 = vadd.f32 %v1743, 1.0
    %v1745 = vrcp.pop %v1744
    %v1746 = vmul.f32 %v1744, %v1745
    %v1747 = vsub.f32 1.0, %v1746
    %v1748 = vmul.f32 %v1745, %v1747
    %v1749 = vadd.f32 %v1745, %v1748
    %vm1750 = vweird.f32 %v1744
    %vm1751 = vweird.f32 %v1745
    %vm1752 = vmor %vm1750, %vm1751
    %v1753 = vsel %vm1752, %v1745, %v1749
    %v1754 = vand.u32 2147483647, %v1744
    %vm1755 = vcmp.eq.f32.partialorder %v1754, 8.507059e+37
    %v1756 = vand.u32 %v1744, 2147483648
    %v1757 = vor.u32 1.1754944e-38, %v1756
    %v1758 = vsel %vm1755, %v1757, %v1753
    %v1759 = vmul.f32 1.0, %v1758
    %v1760 = vxor.u32 %v1738, 2147483648
    %v1761 = vmul.f32 %v1760, 1.442695
    %v1762 = vpow.pop %v1761
    %v1763 = vadd.f32 %v1762, 1.0
    %v1764 = vrcp.pop %v1763
    %v1765 = vmul.f32 %v1763, %v1764
    %v1766 = vsub.f32 1.0, %v1765
    %v1767 = vmul.f32 %v1764, %v1766
    %v1768 = vadd.f32 %v1764, %v1767
    %vm1769 = vweird.f32 %v1763
    %vm1770 = vweird.f32 %v1764
    %vm1771 = vmor %vm1769, %vm1770
    %v1772 = vsel %vm1771, %v1764, %v1768
    %v1773 = vand.u32 2147483647, %v1763
    %vm1774 = vcmp.eq.f32.partialorder %v1773, 8.507059e+37
    %v1775 = vand.u32 %v1763, 2147483648
    %v1776 = vor.u32 1.1754944e-38, %v1775
    %v1777 = vsel %vm1774, %v1776, %v1772
    %v1778 = vmul.f32 1.0, %v1777
    %v1779 = vtanh.pop %v1739
    %v1780 = vxor.u32 %v1740, 2147483648
    %v1781 = vmul.f32 %v1780, 1.442695
    %v1782 = vpow.pop %v1781
    %v1783 = vadd.f32 %v1782, 1.0
    %v1784 = vrcp.pop %v1783
    %v1785 = vmul.f32 %v1783, %v1784
    %v1786 = vsub.f32 1.0, %v1785
    %v1787 = vmul.f32 %v1784, %v1786
    %v1788 = vadd.f32 %v1784, %v1787
    %vm1789 = vweird.f32 %v1783
    %vm1790 = vweird.f32 %v1784
    %vm1791 = vmor %vm1789, %vm1790
    %v1792 = vsel %vm1791, %v1784, %v1788
    %v1793 = vand.u32 2147483647, %v1783
    %vm1794 = vcmp.eq.f32.partialorder %v1793, 8.507059e+37
    %v1795 = vand.u32 %v1783, 2147483648
    %v1796 = vor.u32 1.1754944e-38, %v1795
    %v1797 = vsel %vm1794, %v1796, %v1792
    %v1798 = vmul.f32 1.0, %v1797
    %v1800 = vrot.slane %v1474, 6
    %v1802 = vmul.f32 %v1778, %v1800
    %v1803 = vmul.f32 %v1759, %v1779
    %v1804 = vadd.f32 %v1802, %v1803
    %v1805 = vtanh.pop %v1804
    %v1806 = vmul.f32 %v1798, %v1805
    %v1808 = vrot.slane %v1641, 2
    %1810 = vmatpush.msra.mxu0 %v675
    %1811 = vmatpush.msra.mxu0 %v671
    %1812 = vmatpush.msra.mxu0 %v667
    %1813 = vmatpush.msra.mxu0 %v663
    %1814 = vmatpush.msra.mxu0 %v659
    %1815 = vmatpush.msra.mxu0 %v655
    %1816 = vmatpush.msra.mxu0 %v651
    %1817 = vmatpush.msra.mxu0 %v647
    %1818 = vmatpush.msra.mxu0 %v643
    %1819 = vmatpush.msra.mxu0 %v639
    %1820 = vmatpush.msra.mxu0 %v635
    %1821 = vmatpush.msra.mxu0 %v631
    %1822 = vmatpush.msra.mxu0 %v627
    %1823 = vmatpush.msra.mxu0 %v623
    %1824 = vmatpush.msra.mxu0 %v619
    %1825 = vmatpush.msra.mxu0 %v615
    %1826 = vmatmul.f32.gmra.mxu0 %v1808
    %v1827 = vpop.f32.mrf.mxu0
    %v1828 = vadd.f32 0.0, %v1827
    %1829 = vdwg.mxu0
    %1830 = vmatpush.msra.mxu0 %v676
    %1831 = vmatpush.msra.mxu0 %v672
    %1832 = vmatpush.msra.mxu0 %v668
    %1833 = vmatpush.msra.mxu0 %v664
    %1834 = vmatpush.msra.mxu0 %v660
    %1835 = vmatpush.msra.mxu0 %v656
    %1836 = vmatpush.msra.mxu0 %v652
    %1837 = vmatpush.msra.mxu0 %v648
    %1838 = vmatpush.msra.mxu0 %v644
    %1839 = vmatpush.msra.mxu0 %v640
    %1840 = vmatpush.msra.mxu0 %v636
    %1841 = vmatpush.msra.mxu0 %v632
    %1842 = vmatpush.msra.mxu0 %v628
    %1843 = vmatpush.msra.mxu0 %v624
    %1844 = vmatpush.msra.mxu0 %v620
    %1845 = vmatpush.msra.mxu0 %v616
    %1846 = vmatmul.f32.gmra.mxu0 %v1808
    %v1847 = vpop.f32.mrf.mxu0
    %v1848 = vadd.f32 0.0, %v1847
    %1849 = vdwg.mxu0
    %1850 = vmatpush.msra.mxu0 %v677
    %1851 = vmatpush.msra.mxu0 %v673
    %1852 = vmatpush.msra.mxu0 %v669
    %1853 = vmatpush.msra.mxu0 %v665
    %1854 = vmatpush.msra.mxu0 %v661
    %1855 = vmatpush.msra.mxu0 %v657
    %1856 = vmatpush.msra.mxu0 %v653
    %1857 = vmatpush.msra.mxu0 %v649
    %1858 = vmatpush.msra.mxu0 %v645
    %1859 = vmatpush.msra.mxu0 %v641
    %1860 = vmatpush.msra.mxu0 %v637
    %1861 = vmatpush.msra.mxu0 %v633
    %1862 = vmatpush.msra.mxu0 %v629
    %1863 = vmatpush.msra.mxu0 %v625
    %1864 = vmatpush.msra.mxu0 %v621
    %1865 = vmatpush.msra.mxu0 %v617
    %1866 = vmatmul.f32.gmra.mxu0 %v1808
    %v1867 = vpop.f32.mrf.mxu0
    %v1868 = vadd.f32 0.0, %v1867
    %1869 = vdwg.mxu0
    %1870 = vmatpush.msra.mxu0 %v678
    %1871 = vmatpush.msra.mxu0 %v674
    %1872 = vmatpush.msra.mxu0 %v670
    %1873 = vmatpush.msra.mxu0 %v666
    %1874 = vmatpush.msra.mxu0 %v662
    %1875 = vmatpush.msra.mxu0 %v658
    %1876 = vmatpush.msra.mxu0 %v654
    %1877 = vmatpush.msra.mxu0 %v650
    %1878 = vmatpush.msra.mxu0 %v646
    %1879 = vmatpush.msra.mxu0 %v642
    %1880 = vmatpush.msra.mxu0 %v638
    %1881 = vmatpush.msra.mxu0 %v634
    %1882 = vmatpush.msra.mxu0 %v630
    %1883 = vmatpush.msra.mxu0 %v626
    %1884 = vmatpush.msra.mxu0 %v622
    %1885 = vmatpush.msra.mxu0 %v618
    %1886 = vmatmul.f32.gmra.mxu0 %v1808
    %v1887 = vpop.f32.mrf.mxu0
    %v1888 = vadd.f32 0.0, %v1887
    %1889 = vdwg.mxu0
    %v1890 = vadd.f32 %v480, %v1828
    %v1891 = vadd.f32 %v503, %v1848
    %v1892 = vadd.f32 %v526, %v1868
    %v1893 = vadd.f32 %v549, %v1888
    %v1894 = vxor.u32 %v1890, 2147483648
    %v1895 = vmul.f32 %v1894, 1.442695
    %v1896 = vpow.pop %v1895
    %v1897 = vadd.f32 %v1896, 1.0
    %v1898 = vrcp.pop %v1897
    %v1899 = vmul.f32 %v1897, %v1898
    %v1900 = vsub.f32 1.0, %v1899
    %v1901 = vmul.f32 %v1898, %v1900
    %v1902 = vadd.f32 %v1898, %v1901
    %vm1903 = vweird.f32 %v1897
    %vm1904 = vweird.f32 %v1898
    %vm1905 = vmor %vm1903, %vm1904
    %v1906 = vsel %vm1905, %v1898, %v1902
    %v1907 = vand.u32 2147483647, %v1897
    %vm1908 = vcmp.eq.f32.partialorder %v1907, 8.507059e+37
    %v1909 = vand.u32 %v1897, 2147483648
    %v1910 = vor.u32 1.1754944e-38, %v1909
    %v1911 = vsel %vm1908, %v1910, %v1906
    %v1912 = vmul.f32 1.0, %v1911
    %v1913 = vxor.u32 %v1891, 2147483648
    %v1914 = vmul.f32 %v1913, 1.442695
    %v1915 = vpow.pop %v1914
    %v1916 = vadd.f32 %v1915, 1.0
    %v1917 = vrcp.pop %v1916
    %v1918 = vmul.f32 %v1916, %v1917
    %v1919 = vsub.f32 1.0, %v1918
    %v1920 = vmul.f32 %v1917, %v1919
    %v1921 = vadd.f32 %v1917, %v1920
    %vm1922 = vweird.f32 %v1916
    %vm1923 = vweird.f32 %v1917
    %vm1924 = vmor %vm1922, %vm1923
    %v1925 = vsel %vm1924, %v1917, %v1921
    %v1926 = vand.u32 2147483647, %v1916
    %vm1927 = vcmp.eq.f32.partialorder %v1926, 8.507059e+37
    %v1928 = vand.u32 %v1916, 2147483648
    %v1929 = vor.u32 1.1754944e-38, %v1928
    %v1930 = vsel %vm1927, %v1929, %v1925
    %v1931 = vmul.f32 1.0, %v1930
    %v1932 = vtanh.pop %v1892
    %v1933 = vxor.u32 %v1893, 2147483648
    %v1934 = vmul.f32 %v1933, 1.442695
    %v1935 = vpow.pop %v1934
    %v1936 = vadd.f32 %v1935, 1.0
    %v1937 = vrcp.pop %v1936
    %v1938 = vmul.f32 %v1936, %v1937
    %v1939 = vsub.f32 1.0, %v1938
    %v1940 = vmul.f32 %v1937, %v1939
    %v1941 = vadd.f32 %v1937, %v1940
    %vm1942 = vweird.f32 %v1936
    %vm1943 = vweird.f32 %v1937
    %vm1944 = vmor %vm1942, %vm1943
    %v1945 = vsel %vm1944, %v1937, %v1941
    %v1946 = vand.u32 2147483647, %v1936
    %vm1947 = vcmp.eq.f32.partialorder %v1946, 8.507059e+37
    %v1948 = vand.u32 %v1936, 2147483648
    %v1949 = vor.u32 1.1754944e-38, %v1948
    %v1950 = vsel %vm1947, %v1949, %v1945
    %v1951 = vmul.f32 1.0, %v1950
    %v1953 = vrot.slane %v1639, 2
    %v1955 = vmul.f32 %v1931, %v1953
    %v1956 = vmul.f32 %v1912, %v1932
    %v1957 = vadd.f32 %v1955, %v1956
    %v1958 = vtanh.pop %v1957
    %v1959 = vmul.f32 %v1951, %v1958
    %v1961 = vrot.slane %v1806, 6
    %1963 = vmatpush.msra.mxu0 %v611
    %1964 = vmatpush.msra.mxu0 %v607
    %1965 = vmatpush.msra.mxu0 %v603
    %1966 = vmatpush.msra.mxu0 %v599
    %1967 = vmatpush.msra.mxu0 %v595
    %1968 = vmatpush.msra.mxu0 %v591
    %1969 = vmatpush.msra.mxu0 %v587
    %1970 = vmatpush.msra.mxu0 %v583
    %1971 = vmatpush.msra.mxu0 %v579
    %1972 = vmatpush.msra.mxu0 %v575
    %1973 = vmatpush.msra.mxu0 %v571
    %1974 = vmatpush.msra.mxu0 %v567
    %1975 = vmatpush.msra.mxu0 %v563
    %1976 = vmatpush.msra.mxu0 %v559
    %1977 = vmatpush.msra.mxu0 %v555
    %1978 = vmatpush.msra.mxu0 %v551
    %1979 = vmatmul.f32.gmra.mxu0 %v1961
    %v1980 = vpop.f32.mrf.mxu0
    %v1981 = vadd.f32 0.0, %v1980
    %1982 = vdwg.mxu0
    %1983 = vmatpush.msra.mxu0 %v612
    %1984 = vmatpush.msra.mxu0 %v608
    %1985 = vmatpush.msra.mxu0 %v604
    %1986 = vmatpush.msra.mxu0 %v600
    %1987 = vmatpush.msra.mxu0 %v596
    %1988 = vmatpush.msra.mxu0 %v592
    %1989 = vmatpush.msra.mxu0 %v588
    %1990 = vmatpush.msra.mxu0 %v584
    %1991 = vmatpush.msra.mxu0 %v580
    %1992 = vmatpush.msra.mxu0 %v576
    %1993 = vmatpush.msra.mxu0 %v572
    %1994 = vmatpush.msra.mxu0 %v568
    %1995 = vmatpush.msra.mxu0 %v564
    %1996 = vmatpush.msra.mxu0 %v560
    %1997 = vmatpush.msra.mxu0 %v556
    %1998 = vmatpush.msra.mxu0 %v552
    %1999 = vmatmul.f32.gmra.mxu0 %v1961
    %v2000 = vpop.f32.mrf.mxu0
    %v2001 = vadd.f32 0.0, %v2000
    %2002 = vdwg.mxu0
    %2003 = vmatpush.msra.mxu0 %v613
    %2004 = vmatpush.msra.mxu0 %v609
    %2005 = vmatpush.msra.mxu0 %v605
    %2006 = vmatpush.msra.mxu0 %v601
    %2007 = vmatpush.msra.mxu0 %v597
    %2008 = vmatpush.msra.mxu0 %v593
    %2009 = vmatpush.msra.mxu0 %v589
    %2010 = vmatpush.msra.mxu0 %v585
    %2011 = vmatpush.msra.mxu0 %v581
    %2012 = vmatpush.msra.mxu0 %v577
    %2013 = vmatpush.msra.mxu0 %v573
    %2014 = vmatpush.msra.mxu0 %v569
    %2015 = vmatpush.msra.mxu0 %v565
    %2016 = vmatpush.msra.mxu0 %v561
    %2017 = vmatpush.msra.mxu0 %v557
    %2018 = vmatpush.msra.mxu0 %v553
    %2019 = vmatmul.f32.gmra.mxu0 %v1961
    %v2020 = vpop.f32.mrf.mxu0
    %v2021 = vadd.f32 0.0, %v2020
    %2022 = vdwg.mxu0
    %2023 = vmatpush.msra.mxu0 %v614
    %2024 = vmatpush.msra.mxu0 %v610
    %2025 = vmatpush.msra.mxu0 %v606
    %2026 = vmatpush.msra.mxu0 %v602
    %2027 = vmatpush.msra.mxu0 %v598
    %2028 = vmatpush.msra.mxu0 %v594
    %2029 = vmatpush.msra.mxu0 %v590
    %2030 = vmatpush.msra.mxu0 %v586
    %2031 = vmatpush.msra.mxu0 %v582
    %2032 = vmatpush.msra.mxu0 %v578
    %2033 = vmatpush.msra.mxu0 %v574
    %2034 = vmatpush.msra.mxu0 %v570
    %2035 = vmatpush.msra.mxu0 %v566
    %2036 = vmatpush.msra.mxu0 %v562
    %2037 = vmatpush.msra.mxu0 %v558
    %2038 = vmatpush.msra.mxu0 %v554
    %2039 = vmatmul.f32.gmra.mxu0 %v1961
    %v2040 = vpop.f32.mrf.mxu0
    %v2041 = vadd.f32 0.0, %v2040
    %2042 = vdwg.mxu0
    %v2043 = vadd.f32 %v388, %v1981
    %v2044 = vadd.f32 %v411, %v2001
    %v2045 = vadd.f32 %v434, %v2021
    %v2046 = vadd.f32 %v457, %v2041
    %v2047 = vxor.u32 %v2043, 2147483648
    %v2048 = vmul.f32 %v2047, 1.442695
    %v2049 = vpow.pop %v2048
    %v2050 = vadd.f32 %v2049, 1.0
    %v2051 = vrcp.pop %v2050
    %v2052 = vmul.f32 %v2050, %v2051
    %v2053 = vsub.f32 1.0, %v2052
    %v2054 = vmul.f32 %v2051, %v2053
    %v2055 = vadd.f32 %v2051, %v2054
    %vm2056 = vweird.f32 %v2050
    %vm2057 = vweird.f32 %v2051
    %vm2058 = vmor %vm2056, %vm2057
    %v2059 = vsel %vm2058, %v2051, %v2055
    %v2060 = vand.u32 2147483647, %v2050
    %vm2061 = vcmp.eq.f32.partialorder %v2060, 8.507059e+37
    %v2062 = vand.u32 %v2050, 2147483648
    %v2063 = vor.u32 1.1754944e-38, %v2062
    %v2064 = vsel %vm2061, %v2063, %v2059
    %v2065 = vmul.f32 1.0, %v2064
    %v2066 = vxor.u32 %v2044, 2147483648
    %v2067 = vmul.f32 %v2066, 1.442695
    %v2068 = vpow.pop %v2067
    %v2069 = vadd.f32 %v2068, 1.0
    %v2070 = vrcp.pop %v2069
    %v2071 = vmul.f32 %v2069, %v2070
    %v2072 = vsub.f32 1.0, %v2071
    %v2073 = vmul.f32 %v2070, %v2072
    %v2074 = vadd.f32 %v2070, %v2073
    %vm2075 = vweird.f32 %v2069
    %vm2076 = vweird.f32 %v2070
    %vm2077 = vmor %vm2075, %vm2076
    %v2078 = vsel %vm2077, %v2070, %v2074
    %v2079 = vand.u32 2147483647, %v2069
    %vm2080 = vcmp.eq.f32.partialorder %v2079, 8.507059e+37
    %v2081 = vand.u32 %v2069, 2147483648
    %v2082 = vor.u32 1.1754944e-38, %v2081
    %v2083 = vsel %vm2080, %v2082, %v2078
    %v2084 = vmul.f32 1.0, %v2083
    %v2085 = vtanh.pop %v2045
    %v2086 = vxor.u32 %v2046, 2147483648
    %v2087 = vmul.f32 %v2086, 1.442695
    %v2088 = vpow.pop %v2087
    %v2089 = vadd.f32 %v2088, 1.0
    %v2090 = vrcp.pop %v2089
    %v2091 = vmul.f32 %v2089, %v2090
    %v2092 = vsub.f32 1.0, %v2091
    %v2093 = vmul.f32 %v2090, %v2092
    %v2094 = vadd.f32 %v2090, %v2093
    %vm2095 = vweird.f32 %v2089
    %vm2096 = vweird.f32 %v2090
    %vm2097 = vmor %vm2095, %vm2096
    %v2098 = vsel %vm2097, %v2090, %v2094
    %v2099 = vand.u32 2147483647, %v2089
    %vm2100 = vcmp.eq.f32.partialorder %v2099, 8.507059e+37
    %v2101 = vand.u32 %v2089, 2147483648
    %v2102 = vor.u32 1.1754944e-38, %v2101
    %v2103 = vsel %vm2100, %v2102, %v2098
    %v2104 = vmul.f32 1.0, %v2103
    %v2106 = vrot.slane %v1804, 6
    %v2108 = vmul.f32 %v2084, %v2106
    %v2109 = vmul.f32 %v2065, %v2085
    %v2110 = vadd.f32 %v2108, %v2109
    %v2111 = vtanh.pop %v2110
    %v2112 = vmul.f32 %v2104, %v2111
    %2113 = vmatpush.msra.mxu0 %v675
    %2114 = vmatpush.msra.mxu0 %v671
    %2115 = vmatpush.msra.mxu0 %v667
    %2116 = vmatpush.msra.mxu0 %v663
    %2117 = vmatpush.msra.mxu0 %v659
    %2118 = vmatpush.msra.mxu0 %v655
    %2119 = vmatpush.msra.mxu0 %v651
    %2120 = vmatpush.msra.mxu0 %v647
    %2121 = vmatpush.msra.mxu0 %v643
    %2122 = vmatpush.msra.mxu0 %v639
    %2123 = vmatpush.msra.mxu0 %v635
    %2124 = vmatpush.msra.mxu0 %v631
    %2125 = vmatpush.msra.mxu0 %v627
    %2126 = vmatpush.msra.mxu0 %v623
    %2127 = vmatpush.msra.mxu0 %v619
    %2128 = vmatpush.msra.mxu0 %v615
    %2129 = vmatmul.f32.gmra.mxu0 %v1959
    %v2130 = vpop.f32.mrf.mxu0
    %v2131 = vadd.f32 0.0, %v2130
    %2132 = vdwg.mxu0
    %2133 = vmatpush.msra.mxu0 %v676
    %2134 = vmatpush.msra.mxu0 %v672
    %2135 = vmatpush.msra.mxu0 %v668
    %2136 = vmatpush.msra.mxu0 %v664
    %2137 = vmatpush.msra.mxu0 %v660
    %2138 = vmatpush.msra.mxu0 %v656
    %2139 = vmatpush.msra.mxu0 %v652
    %2140 = vmatpush.msra.mxu0 %v648
    %2141 = vmatpush.msra.mxu0 %v644
    %2142 = vmatpush.msra.mxu0 %v640
    %2143 = vmatpush.msra.mxu0 %v636
    %2144 = vmatpush.msra.mxu0 %v632
    %2145 = vmatpush.msra.mxu0 %v628
    %2146 = vmatpush.msra.mxu0 %v624
    %2147 = vmatpush.msra.mxu0 %v620
    %2148 = vmatpush.msra.mxu0 %v616
    %2149 = vmatmul.f32.gmra.mxu0 %v1959
    %v2150 = vpop.f32.mrf.mxu0
    %v2151 = vadd.f32 0.0, %v2150
    %2152 = vdwg.mxu0
    %2153 = vmatpush.msra.mxu0 %v677
    %2154 = vmatpush.msra.mxu0 %v673
    %2155 = vmatpush.msra.mxu0 %v669
    %2156 = vmatpush.msra.mxu0 %v665
    %2157 = vmatpush.msra.mxu0 %v661
    %2158 = vmatpush.msra.mxu0 %v657
    %2159 = vmatpush.msra.mxu0 %v653
    %2160 = vmatpush.msra.mxu0 %v649
    %2161 = vmatpush.msra.mxu0 %v645
    %2162 = vmatpush.msra.mxu0 %v641
    %2163 = vmatpush.msra.mxu0 %v637
    %2164 = vmatpush.msra.mxu0 %v633
    %2165 = vmatpush.msra.mxu0 %v629
    %2166 = vmatpush.msra.mxu0 %v625
    %2167 = vmatpush.msra.mxu0 %v621
    %2168 = vmatpush.msra.mxu0 %v617
    %2169 = vmatmul.f32.gmra.mxu0 %v1959
    %v2170 = vpop.f32.mrf.mxu0
    %v2171 = vadd.f32 0.0, %v2170
    %2172 = vdwg.mxu0
    %2173 = vmatpush.msra.mxu0 %v678
    %2174 = vmatpush.msra.mxu0 %v674
    %2175 = vmatpush.msra.mxu0 %v670
    %2176 = vmatpush.msra.mxu0 %v666
    %2177 = vmatpush.msra.mxu0 %v662
    %2178 = vmatpush.msra.mxu0 %v658
    %2179 = vmatpush.msra.mxu0 %v654
    %2180 = vmatpush.msra.mxu0 %v650
    %2181 = vmatpush.msra.mxu0 %v646
    %2182 = vmatpush.msra.mxu0 %v642
    %2183 = vmatpush.msra.mxu0 %v638
    %2184 = vmatpush.msra.mxu0 %v634
    %2185 = vmatpush.msra.mxu0 %v630
    %2186 = vmatpush.msra.mxu0 %v626
    %2187 = vmatpush.msra.mxu0 %v622
    %2188 = vmatpush.msra.mxu0 %v618
    %2189 = vmatmul.f32.gmra.mxu0 %v1959
    %v2190 = vpop.f32.mrf.mxu0
    %v2191 = vadd.f32 0.0, %v2190
    %2192 = vdwg.mxu0
    %v2197 = vrot.slane %v2131, 2
    %v2198 = vrot.slane %v2151, 2
    %v2199 = vrot.slane %v2171, 2
    %v2200 = vrot.slane %v2191, 2
    %v2205 = vadd.f32 %v477, %v2197
    %v2206 = vadd.f32 %v500, %v2198
    %v2207 = vadd.f32 %v523, %v2199
    %v2208 = vadd.f32 %v546, %v2200
    %v2209 = vxor.u32 %v2205, 2147483648
    %v2210 = vmul.f32 %v2209, 1.442695
    %v2211 = vpow.pop %v2210
    %v2212 = vadd.f32 %v2211, 1.0
    %v2213 = vrcp.pop %v2212
    %v2214 = vmul.f32 %v2212, %v2213
    %v2215 = vsub.f32 1.0, %v2214
    %v2216 = vmul.f32 %v2213, %v2215
    %v2217 = vadd.f32 %v2213, %v2216
    %vm2218 = vweird.f32 %v2212
    %vm2219 = vweird.f32 %v2213
    %vm2220 = vmor %vm2218, %vm2219
    %v2221 = vsel %vm2220, %v2213, %v2217
    %v2222 = vand.u32 2147483647, %v2212
    %vm2223 = vcmp.eq.f32.partialorder %v2222, 8.507059e+37
    %v2224 = vand.u32 %v2212, 2147483648
    %v2225 = vor.u32 1.1754944e-38, %v2224
    %v2226 = vsel %vm2223, %v2225, %v2221
    %v2227 = vmul.f32 1.0, %v2226
    %v2228 = vxor.u32 %v2206, 2147483648
    %v2229 = vmul.f32 %v2228, 1.442695
    %v2230 = vpow.pop %v2229
    %v2231 = vadd.f32 %v2230, 1.0
    %v2232 = vrcp.pop %v2231
    %v2233 = vmul.f32 %v2231, %v2232
    %v2234 = vsub.f32 1.0, %v2233
    %v2235 = vmul.f32 %v2232, %v2234
    %v2236 = vadd.f32 %v2232, %v2235
    %vm2237 = vweird.f32 %v2231
    %vm2238 = vweird.f32 %v2232
    %vm2239 = vmor %vm2237, %vm2238
    %v2240 = vsel %vm2239, %v2232, %v2236
    %v2241 = vand.u32 2147483647, %v2231
    %vm2242 = vcmp.eq.f32.partialorder %v2241, 8.507059e+37
    %v2243 = vand.u32 %v2231, 2147483648
    %v2244 = vor.u32 1.1754944e-38, %v2243
    %v2245 = vsel %vm2242, %v2244, %v2240
    %v2246 = vmul.f32 1.0, %v2245
    %v2247 = vtanh.pop %v2207
    %v2248 = vxor.u32 %v2208, 2147483648
    %v2249 = vmul.f32 %v2248, 1.442695
    %v2250 = vpow.pop %v2249
    %v2251 = vadd.f32 %v2250, 1.0
    %v2252 = vrcp.pop %v2251
    %v2253 = vmul.f32 %v2251, %v2252
    %v2254 = vsub.f32 1.0, %v2253
    %v2255 = vmul.f32 %v2252, %v2254
    %v2256 = vadd.f32 %v2252, %v2255
    %vm2257 = vweird.f32 %v2251
    %vm2258 = vweird.f32 %v2252
    %vm2259 = vmor %vm2257, %vm2258
    %v2260 = vsel %vm2259, %v2252, %v2256
    %v2261 = vand.u32 2147483647, %v2251
    %vm2262 = vcmp.eq.f32.partialorder %v2261, 8.507059e+37
    %v2263 = vand.u32 %v2251, 2147483648
    %v2264 = vor.u32 1.1754944e-38, %v2263
    %v2265 = vsel %vm2262, %v2264, %v2260
    %v2266 = vmul.f32 1.0, %v2265
    %v2268 = vrot.slane %v1957, 2
    %v2270 = vmul.f32 %v2246, %v2268
    %v2271 = vmul.f32 %v2227, %v2247
    %v2272 = vadd.f32 %v2270, %v2271
    %v2273 = vtanh.pop %v2272
    %v2274 = vmul.f32 %v2266, %v2273
    %2275 = vmatpush.msra.mxu0 %v611
    %2276 = vmatpush.msra.mxu0 %v607
    %2277 = vmatpush.msra.mxu0 %v603
    %2278 = vmatpush.msra.mxu0 %v599
    %2279 = vmatpush.msra.mxu0 %v595
    %2280 = vmatpush.msra.mxu0 %v591
    %2281 = vmatpush.msra.mxu0 %v587
    %2282 = vmatpush.msra.mxu0 %v583
    %2283 = vmatpush.msra.mxu0 %v579
    %2284 = vmatpush.msra.mxu0 %v575
    %2285 = vmatpush.msra.mxu0 %v571
    %2286 = vmatpush.msra.mxu0 %v567
    %2287 = vmatpush.msra.mxu0 %v563
    %2288 = vmatpush.msra.mxu0 %v559
    %2289 = vmatpush.msra.mxu0 %v555
    %2290 = vmatpush.msra.mxu0 %v551
    %2291 = vmatmul.f32.gmra.mxu0 %v2112
    %v2292 = vpop.f32.mrf.mxu0
    %v2293 = vadd.f32 0.0, %v2292
    %2294 = vdwg.mxu0
    %2295 = vmatpush.msra.mxu0 %v612
    %2296 = vmatpush.msra.mxu0 %v608
    %2297 = vmatpush.msra.mxu0 %v604
    %2298 = vmatpush.msra.mxu0 %v600
    %2299 = vmatpush.msra.mxu0 %v596
    %2300 = vmatpush.msra.mxu0 %v592
    %2301 = vmatpush.msra.mxu0 %v588
    %2302 = vmatpush.msra.mxu0 %v584
    %2303 = vmatpush.msra.mxu0 %v580
    %2304 = vmatpush.msra.mxu0 %v576
    %2305 = vmatpush.msra.mxu0 %v572
    %2306 = vmatpush.msra.mxu0 %v568
    %2307 = vmatpush.msra.mxu0 %v564
    %2308 = vmatpush.msra.mxu0 %v560
    %2309 = vmatpush.msra.mxu0 %v556
    %2310 = vmatpush.msra.mxu0 %v552
    %2311 = vmatmul.f32.gmra.mxu0 %v2112
    %v2312 = vpop.f32.mrf.mxu0
    %v2313 = vadd.f32 0.0, %v2312
    %2314 = vdwg.mxu0
    %2315 = vmatpush.msra.mxu0 %v613
    %2316 = vmatpush.msra.mxu0 %v609
    %2317 = vmatpush.msra.mxu0 %v605
    %2318 = vmatpush.msra.mxu0 %v601
    %2319 = vmatpush.msra.mxu0 %v597
    %2320 = vmatpush.msra.mxu0 %v593
    %2321 = vmatpush.msra.mxu0 %v589
    %2322 = vmatpush.msra.mxu0 %v585
    %2323 = vmatpush.msra.mxu0 %v581
    %2324 = vmatpush.msra.mxu0 %v577
    %2325 = vmatpush.msra.mxu0 %v573
    %2326 = vmatpush.msra.mxu0 %v569
    %2327 = vmatpush.msra.mxu0 %v565
    %2328 = vmatpush.msra.mxu0 %v561
    %2329 = vmatpush.msra.mxu0 %v557
    %2330 = vmatpush.msra.mxu0 %v553
    %2331 = vmatmul.f32.gmra.mxu0 %v2112
    %v2332 = vpop.f32.mrf.mxu0
    %v2333 = vadd.f32 0.0, %v2332
    %2334 = vdwg.mxu0
    %2335 = vmatpush.msra.mxu0 %v614
    %2336 = vmatpush.msra.mxu0 %v610
    %2337 = vmatpush.msra.mxu0 %v606
    %2338 = vmatpush.msra.mxu0 %v602
    %2339 = vmatpush.msra.mxu0 %v598
    %2340 = vmatpush.msra.mxu0 %v594
    %2341 = vmatpush.msra.mxu0 %v590
    %2342 = vmatpush.msra.mxu0 %v586
    %2343 = vmatpush.msra.mxu0 %v582
    %2344 = vmatpush.msra.mxu0 %v578
    %2345 = vmatpush.msra.mxu0 %v574
    %2346 = vmatpush.msra.mxu0 %v570
    %2347 = vmatpush.msra.mxu0 %v566
    %2348 = vmatpush.msra.mxu0 %v562
    %2349 = vmatpush.msra.mxu0 %v558
    %2350 = vmatpush.msra.mxu0 %v554
    %2351 = vmatmul.f32.gmra.mxu0 %v2112
    %v2352 = vpop.f32.mrf.mxu0
    %v2353 = vadd.f32 0.0, %v2352
    %2354 = vdwg.mxu0
    %v2359 = vrot.slane %v2293, 6
    %v2360 = vrot.slane %v2313, 6
    %v2361 = vrot.slane %v2333, 6
    %v2362 = vrot.slane %v2353, 6
    %v2367 = vadd.f32 %v388, %v2359
    %v2368 = vadd.f32 %v411, %v2360
    %v2369 = vadd.f32 %v434, %v2361
    %v2370 = vadd.f32 %v457, %v2362
    %v2371 = vxor.u32 %v2367, 2147483648
    %v2372 = vmul.f32 %v2371, 1.442695
    %v2373 = vpow.pop %v2372
    %v2374 = vadd.f32 %v2373, 1.0
    %v2375 = vrcp.pop %v2374
    %v2376 = vmul.f32 %v2374, %v2375
    %v2377 = vsub.f32 1.0, %v2376
    %v2378 = vmul.f32 %v2375, %v2377
    %v2379 = vadd.f32 %v2375, %v2378
    %vm2380 = vweird.f32 %v2374
    %vm2381 = vweird.f32 %v2375
    %vm2382 = vmor %vm2380, %vm2381
    %v2383 = vsel %vm2382, %v2375, %v2379
    %v2384 = vand.u32 2147483647, %v2374
    %vm2385 = vcmp.eq.f32.partialorder %v2384, 8.507059e+37
    %v2386 = vand.u32 %v2374, 2147483648
    %v2387 = vor.u32 1.1754944e-38, %v2386
    %v2388 = vsel %vm2385, %v2387, %v2383
    %v2389 = vmul.f32 1.0, %v2388
    %v2390 = vxor.u32 %v2368, 2147483648
    %v2391 = vmul.f32 %v2390, 1.442695
    %v2392 = vpow.pop %v2391
    %v2393 = vadd.f32 %v2392, 1.0
    %v2394 = vrcp.pop %v2393
    %v2395 = vmul.f32 %v2393, %v2394
    %v2396 = vsub.f32 1.0, %v2395
    %v2397 = vmul.f32 %v2394, %v2396
    %v2398 = vadd.f32 %v2394, %v2397
    %vm2399 = vweird.f32 %v2393
    %vm2400 = vweird.f32 %v2394
    %vm2401 = vmor %vm2399, %vm2400
    %v2402 = vsel %vm2401, %v2394, %v2398
    %v2403 = vand.u32 2147483647, %v2393
    %vm2404 = vcmp.eq.f32.partialorder %v2403, 8.507059e+37
    %v2405 = vand.u32 %v2393, 2147483648
    %v2406 = vor.u32 1.1754944e-38, %v2405
    %v2407 = vsel %vm2404, %v2406, %v2402
    %v2408 = vmul.f32 1.0, %v2407
    %v2409 = vtanh.pop %v2369
    %v2410 = vxor.u32 %v2370, 2147483648
    %v2411 = vmul.f32 %v2410, 1.442695
    %v2412 = vpow.pop %v2411
    %v2413 = vadd.f32 %v2412, 1.0
    %v2414 = vrcp.pop %v2413
    %v2415 = vmul.f32 %v2413, %v2414
    %v2416 = vsub.f32 1.0, %v2415
    %v2417 = vmul.f32 %v2414, %v2416
    %v2418 = vadd.f32 %v2414, %v2417
    %vm2419 = vweird.f32 %v2413
    %vm2420 = vweird.f32 %v2414
    %vm2421 = vmor %vm2419, %vm2420
    %v2422 = vsel %vm2421, %v2414, %v2418
    %v2423 = vand.u32 2147483647, %v2413
    %vm2424 = vcmp.eq.f32.partialorder %v2423, 8.507059e+37
    %v2425 = vand.u32 %v2413, 2147483648
    %v2426 = vor.u32 1.1754944e-38, %v2425
    %v2427 = vsel %vm2424, %v2426, %v2422
    %v2428 = vmul.f32 1.0, %v2427
    %v2430 = vrot.slane %v2110, 6
    %v2432 = vmul.f32 %v2408, %v2430
    %v2433 = vmul.f32 %v2389, %v2409
    %v2434 = vadd.f32 %v2432, %v2433
    %v2435 = vtanh.pop %v2434
    %v2436 = vmul.f32 %v2428, %v2435
    %v2438 = vrot.slane %v2274, 6
    %2440 = vmatpush.msra.mxu0 %v675
    %2441 = vmatpush.msra.mxu0 %v671
    %2442 = vmatpush.msra.mxu0 %v667
    %2443 = vmatpush.msra.mxu0 %v663
    %2444 = vmatpush.msra.mxu0 %v659
    %2445 = vmatpush.msra.mxu0 %v655
    %2446 = vmatpush.msra.mxu0 %v651
    %2447 = vmatpush.msra.mxu0 %v647
    %2448 = vmatpush.msra.mxu0 %v643
    %2449 = vmatpush.msra.mxu0 %v639
    %2450 = vmatpush.msra.mxu0 %v635
    %2451 = vmatpush.msra.mxu0 %v631
    %2452 = vmatpush.msra.mxu0 %v627
    %2453 = vmatpush.msra.mxu0 %v623
    %2454 = vmatpush.msra.mxu0 %v619
    %2455 = vmatpush.msra.mxu0 %v615
    %2456 = vmatmul.f32.gmra.mxu0 %v2438
    %v2457 = vpop.f32.mrf.mxu0
    %v2458 = vadd.f32 0.0, %v2457
    %2459 = vdwg.mxu0
    %2460 = vmatpush.msra.mxu0 %v676
    %2461 = vmatpush.msra.mxu0 %v672
    %2462 = vmatpush.msra.mxu0 %v668
    %2463 = vmatpush.msra.mxu0 %v664
    %2464 = vmatpush.msra.mxu0 %v660
    %2465 = vmatpush.msra.mxu0 %v656
    %2466 = vmatpush.msra.mxu0 %v652
    %2467 = vmatpush.msra.mxu0 %v648
    %2468 = vmatpush.msra.mxu0 %v644
    %2469 = vmatpush.msra.mxu0 %v640
    %2470 = vmatpush.msra.mxu0 %v636
    %2471 = vmatpush.msra.mxu0 %v632
    %2472 = vmatpush.msra.mxu0 %v628
    %2473 = vmatpush.msra.mxu0 %v624
    %2474 = vmatpush.msra.mxu0 %v620
    %2475 = vmatpush.msra.mxu0 %v616
    %2476 = vmatmul.f32.gmra.mxu0 %v2438
    %v2477 = vpop.f32.mrf.mxu0
    %v2478 = vadd.f32 0.0, %v2477
    %2479 = vdwg.mxu0
    %2480 = vmatpush.msra.mxu0 %v677
    %2481 = vmatpush.msra.mxu0 %v673
    %2482 = vmatpush.msra.mxu0 %v669
    %2483 = vmatpush.msra.mxu0 %v665
    %2484 = vmatpush.msra.mxu0 %v661
    %2485 = vmatpush.msra.mxu0 %v657
    %2486 = vmatpush.msra.mxu0 %v653
    %2487 = vmatpush.msra.mxu0 %v649
    %2488 = vmatpush.msra.mxu0 %v645
    %2489 = vmatpush.msra.mxu0 %v641
    %2490 = vmatpush.msra.mxu0 %v637
    %2491 = vmatpush.msra.mxu0 %v633
    %2492 = vmatpush.msra.mxu0 %v629
    %2493 = vmatpush.msra.mxu0 %v625
    %2494 = vmatpush.msra.mxu0 %v621
    %2495 = vmatpush.msra.mxu0 %v617
    %2496 = vmatmul.f32.gmra.mxu0 %v2438
    %v2497 = vpop.f32.mrf.mxu0
    %v2498 = vadd.f32 0.0, %v2497
    %2499 = vdwg.mxu0
    %2500 = vmatpush.msra.mxu0 %v678
    %2501 = vmatpush.msra.mxu0 %v674
    %2502 = vmatpush.msra.mxu0 %v670
    %2503 = vmatpush.msra.mxu0 %v666
    %2504 = vmatpush.msra.mxu0 %v662
    %2505 = vmatpush.msra.mxu0 %v658
    %2506 = vmatpush.msra.mxu0 %v654
    %2507 = vmatpush.msra.mxu0 %v650
    %2508 = vmatpush.msra.mxu0 %v646
    %2509 = vmatpush.msra.mxu0 %v642
    %2510 = vmatpush.msra.mxu0 %v638
    %2511 = vmatpush.msra.mxu0 %v634
    %2512 = vmatpush.msra.mxu0 %v630
    %2513 = vmatpush.msra.mxu0 %v626
    %2514 = vmatpush.msra.mxu0 %v622
    %2515 = vmatpush.msra.mxu0 %v618
    %2516 = vmatmul.f32.gmra.mxu0 %v2438
    %v2517 = vpop.f32.mrf.mxu0
    %v2518 = vadd.f32 0.0, %v2517
    %2519 = vdwg.mxu0
    %v2524 = vrot.slane %v2458, 4
    %v2525 = vrot.slane %v2478, 4
    %v2526 = vrot.slane %v2498, 4
    %v2527 = vrot.slane %v2518, 4
    %v2532 = vadd.f32 %v477, %v2524
    %v2533 = vadd.f32 %v500, %v2525
    %v2534 = vadd.f32 %v523, %v2526
    %v2535 = vadd.f32 %v546, %v2527
    %v2536 = vxor.u32 %v2532, 2147483648
    %v2537 = vmul.f32 %v2536, 1.442695
    %v2538 = vpow.pop %v2537
    %v2539 = vadd.f32 %v2538, 1.0
    %v2540 = vrcp.pop %v2539
    %v2541 = vmul.f32 %v2539, %v2540
    %v2542 = vsub.f32 1.0, %v2541
    %v2543 = vmul.f32 %v2540, %v2542
    %v2544 = vadd.f32 %v2540, %v2543
    %vm2545 = vweird.f32 %v2539
    %vm2546 = vweird.f32 %v2540
    %vm2547 = vmor %vm2545, %vm2546
    %v2548 = vsel %vm2547, %v2540, %v2544
    %v2549 = vand.u32 2147483647, %v2539
    %vm2550 = vcmp.eq.f32.partialorder %v2549, 8.507059e+37
    %v2551 = vand.u32 %v2539, 2147483648
    %v2552 = vor.u32 1.1754944e-38, %v2551
    %v2553 = vsel %vm2550, %v2552, %v2548
    %v2554 = vmul.f32 1.0, %v2553
    %v2555 = vxor.u32 %v2533, 2147483648
    %v2556 = vmul.f32 %v2555, 1.442695
    %v2557 = vpow.pop %v2556
    %v2558 = vadd.f32 %v2557, 1.0
    %v2559 = vrcp.pop %v2558
    %v2560 = vmul.f32 %v2558, %v2559
    %v2561 = vsub.f32 1.0, %v2560
    %v2562 = vmul.f32 %v2559, %v2561
    %v2563 = vadd.f32 %v2559, %v2562
    %vm2564 = vweird.f32 %v2558
    %vm2565 = vweird.f32 %v2559
    %vm2566 = vmor %vm2564, %vm2565
    %v2567 = vsel %vm2566, %v2559, %v2563
    %v2568 = vand.u32 2147483647, %v2558
    %vm2569 = vcmp.eq.f32.partialorder %v2568, 8.507059e+37
    %v2570 = vand.u32 %v2558, 2147483648
    %v2571 = vor.u32 1.1754944e-38, %v2570
    %v2572 = vsel %vm2569, %v2571, %v2567
    %v2573 = vmul.f32 1.0, %v2572
    %v2574 = vtanh.pop %v2534
    %v2575 = vxor.u32 %v2535, 2147483648
    %v2576 = vmul.f32 %v2575, 1.442695
    %v2577 = vpow.pop %v2576
    %v2578 = vadd.f32 %v2577, 1.0
    %v2579 = vrcp.pop %v2578
    %v2580 = vmul.f32 %v2578, %v2579
    %v2581 = vsub.f32 1.0, %v2580
    %v2582 = vmul.f32 %v2579, %v2581
    %v2583 = vadd.f32 %v2579, %v2582
    %vm2584 = vweird.f32 %v2578
    %vm2585 = vweird.f32 %v2579
    %vm2586 = vmor %vm2584, %vm2585
    %v2587 = vsel %vm2586, %v2579, %v2583
    %v2588 = vand.u32 2147483647, %v2578
    %vm2589 = vcmp.eq.f32.partialorder %v2588, 8.507059e+37
    %v2590 = vand.u32 %v2578, 2147483648
    %v2591 = vor.u32 1.1754944e-38, %v2590
    %v2592 = vsel %vm2589, %v2591, %v2587
    %v2593 = vmul.f32 1.0, %v2592
    %v2595 = vrot.slane %v2272, 2
    %v2597 = vmul.f32 %v2573, %v2595
    %v2598 = vmul.f32 %v2554, %v2574
    %v2599 = vadd.f32 %v2597, %v2598
    %v2600 = vtanh.pop %v2599
    %v2601 = vmul.f32 %v2593, %v2600
    %v2603 = vrot.slane %v2436, 2
    %2605 = vmatpush.msra.mxu0 %v611
    %2606 = vmatpush.msra.mxu0 %v607
    %2607 = vmatpush.msra.mxu0 %v603
    %2608 = vmatpush.msra.mxu0 %v599
    %2609 = vmatpush.msra.mxu0 %v595
    %2610 = vmatpush.msra.mxu0 %v591
    %2611 = vmatpush.msra.mxu0 %v587
    %2612 = vmatpush.msra.mxu0 %v583
    %2613 = vmatpush.msra.mxu0 %v579
    %2614 = vmatpush.msra.mxu0 %v575
    %2615 = vmatpush.msra.mxu0 %v571
    %2616 = vmatpush.msra.mxu0 %v567
    %2617 = vmatpush.msra.mxu0 %v563
    %2618 = vmatpush.msra.mxu0 %v559
    %2619 = vmatpush.msra.mxu0 %v555
    %2620 = vmatpush.msra.mxu0 %v551
    %2621 = vmatmul.f32.gmra.mxu0 %v2603
    %v2622 = vpop.f32.mrf.mxu0
    %v2623 = vadd.f32 0.0, %v2622
    %2624 = vdwg.mxu0
    %2625 = vmatpush.msra.mxu0 %v612
    %2626 = vmatpush.msra.mxu0 %v608
    %2627 = vmatpush.msra.mxu0 %v604
    %2628 = vmatpush.msra.mxu0 %v600
    %2629 = vmatpush.msra.mxu0 %v596
    %2630 = vmatpush.msra.mxu0 %v592
    %2631 = vmatpush.msra.mxu0 %v588
    %2632 = vmatpush.msra.mxu0 %v584
    %2633 = vmatpush.msra.mxu0 %v580
    %2634 = vmatpush.msra.mxu0 %v576
    %2635 = vmatpush.msra.mxu0 %v572
    %2636 = vmatpush.msra.mxu0 %v568
    %2637 = vmatpush.msra.mxu0 %v564
    %2638 = vmatpush.msra.mxu0 %v560
    %2639 = vmatpush.msra.mxu0 %v556
    %2640 = vmatpush.msra.mxu0 %v552
    %2641 = vmatmul.f32.gmra.mxu0 %v2603
    %v2642 = vpop.f32.mrf.mxu0
    %v2643 = vadd.f32 0.0, %v2642
    %2644 = vdwg.mxu0
    %2645 = vmatpush.msra.mxu0 %v613
    %2646 = vmatpush.msra.mxu0 %v609
    %2647 = vmatpush.msra.mxu0 %v605
    %2648 = vmatpush.msra.mxu0 %v601
    %2649 = vmatpush.msra.mxu0 %v597
    %2650 = vmatpush.msra.mxu0 %v593
    %2651 = vmatpush.msra.mxu0 %v589
    %2652 = vmatpush.msra.mxu0 %v585
    %2653 = vmatpush.msra.mxu0 %v581
    %2654 = vmatpush.msra.mxu0 %v577
    %2655 = vmatpush.msra.mxu0 %v573
    %2656 = vmatpush.msra.mxu0 %v569
    %2657 = vmatpush.msra.mxu0 %v565
    %2658 = vmatpush.msra.mxu0 %v561
    %2659 = vmatpush.msra.mxu0 %v557
    %2660 = vmatpush.msra.mxu0 %v553
    %2661 = vmatmul.f32.gmra.mxu0 %v2603
    %v2662 = vpop.f32.mrf.mxu0
    %v2663 = vadd.f32 0.0, %v2662
    %2664 = vdwg.mxu0
    %2665 = vmatpush.msra.mxu0 %v614
    %2666 = vmatpush.msra.mxu0 %v610
    %2667 = vmatpush.msra.mxu0 %v606
    %2668 = vmatpush.msra.mxu0 %v602
    %2669 = vmatpush.msra.mxu0 %v598
    %2670 = vmatpush.msra.mxu0 %v594
    %2671 = vmatpush.msra.mxu0 %v590
    %2672 = vmatpush.msra.mxu0 %v586
    %2673 = vmatpush.msra.mxu0 %v582
    %2674 = vmatpush.msra.mxu0 %v578
    %2675 = vmatpush.msra.mxu0 %v574
    %2676 = vmatpush.msra.mxu0 %v570
    %2677 = vmatpush.msra.mxu0 %v566
    %2678 = vmatpush.msra.mxu0 %v562
    %2679 = vmatpush.msra.mxu0 %v558
    %2680 = vmatpush.msra.mxu0 %v554
    %2681 = vmatmul.f32.gmra.mxu0 %v2603
    %v2682 = vpop.f32.mrf.mxu0
    %v2683 = vadd.f32 0.0, %v2682
    %2684 = vdwg.mxu0
    %v2689 = vrot.slane %v2623, 4
    %v2690 = vrot.slane %v2643, 4
    %v2691 = vrot.slane %v2663, 4
    %v2692 = vrot.slane %v2683, 4
    %v2697 = vadd.f32 %v388, %v2689
    %v2698 = vadd.f32 %v411, %v2690
    %v2699 = vadd.f32 %v434, %v2691
    %v2700 = vadd.f32 %v457, %v2692
    %v2701 = vxor.u32 %v2697, 2147483648
    %v2702 = vmul.f32 %v2701, 1.442695
    %v2703 = vpow.pop %v2702
    %v2704 = vadd.f32 %v2703, 1.0
    %v2705 = vrcp.pop %v2704
    %v2706 = vmul.f32 %v2704, %v2705
    %v2707 = vsub.f32 1.0, %v2706
    %v2708 = vmul.f32 %v2705, %v2707
    %v2709 = vadd.f32 %v2705, %v2708
    %vm2710 = vweird.f32 %v2704
    %vm2711 = vweird.f32 %v2705
    %vm2712 = vmor %vm2710, %vm2711
    %v2713 = vsel %vm2712, %v2705, %v2709
    %v2714 = vand.u32 2147483647, %v2704
    %vm2715 = vcmp.eq.f32.partialorder %v2714, 8.507059e+37
    %v2716 = vand.u32 %v2704, 2147483648
    %v2717 = vor.u32 1.1754944e-38, %v2716
    %v2718 = vsel %vm2715, %v2717, %v2713
    %v2719 = vmul.f32 1.0, %v2718
    %v2720 = vxor.u32 %v2698, 2147483648
    %v2721 = vmul.f32 %v2720, 1.442695
    %v2722 = vpow.pop %v2721
    %v2723 = vadd.f32 %v2722, 1.0
    %v2724 = vrcp.pop %v2723
    %v2725 = vmul.f32 %v2723, %v2724
    %v2726 = vsub.f32 1.0, %v2725
    %v2727 = vmul.f32 %v2724, %v2726
    %v2728 = vadd.f32 %v2724, %v2727
    %vm2729 = vweird.f32 %v2723
    %vm2730 = vweird.f32 %v2724
    %vm2731 = vmor %vm2729, %vm2730
    %v2732 = vsel %vm2731, %v2724, %v2728
    %v2733 = vand.u32 2147483647, %v2723
    %vm2734 = vcmp.eq.f32.partialorder %v2733, 8.507059e+37
    %v2735 = vand.u32 %v2723, 2147483648
    %v2736 = vor.u32 1.1754944e-38, %v2735
    %v2737 = vsel %vm2734, %v2736, %v2732
    %v2738 = vmul.f32 1.0, %v2737
    %v2739 = vtanh.pop %v2699
    %v2740 = vxor.u32 %v2700, 2147483648
    %v2741 = vmul.f32 %v2740, 1.442695
    %v2742 = vpow.pop %v2741
    %v2743 = vadd.f32 %v2742, 1.0
    %v2744 = vrcp.pop %v2743
    %v2745 = vmul.f32 %v2743, %v2744
    %v2746 = vsub.f32 1.0, %v2745
    %v2747 = vmul.f32 %v2744, %v2746
    %v2748 = vadd.f32 %v2744, %v2747
    %vm2749 = vweird.f32 %v2743
    %vm2750 = vweird.f32 %v2744
    %vm2751 = vmor %vm2749, %vm2750
    %v2752 = vsel %vm2751, %v2744, %v2748
    %v2753 = vand.u32 2147483647, %v2743
    %vm2754 = vcmp.eq.f32.partialorder %v2753, 8.507059e+37
    %v2755 = vand.u32 %v2743, 2147483648
    %v2756 = vor.u32 1.1754944e-38, %v2755
    %v2757 = vsel %vm2754, %v2756, %v2752
    %v2758 = vmul.f32 1.0, %v2757
    %v2760 = vrot.slane %v2434, 6
    %v2762 = vmul.f32 %v2738, %v2760
    %v2763 = vmul.f32 %v2719, %v2739
    %v2764 = vadd.f32 %v2762, %v2763
    %v2765 = vtanh.pop %v2764
    %v2766 = vmul.f32 %v2758, %v2765
    %v2768 = vrot.slane %v2601, 4
    %2770 = vmatpush.msra.mxu0 %v675
    %2771 = vmatpush.msra.mxu0 %v671
    %2772 = vmatpush.msra.mxu0 %v667
    %2773 = vmatpush.msra.mxu0 %v663
    %2774 = vmatpush.msra.mxu0 %v659
    %2775 = vmatpush.msra.mxu0 %v655
    %2776 = vmatpush.msra.mxu0 %v651
    %2777 = vmatpush.msra.mxu0 %v647
    %2778 = vmatpush.msra.mxu0 %v643
    %2779 = vmatpush.msra.mxu0 %v639
    %2780 = vmatpush.msra.mxu0 %v635
    %2781 = vmatpush.msra.mxu0 %v631
    %2782 = vmatpush.msra.mxu0 %v627
    %2783 = vmatpush.msra.mxu0 %v623
    %2784 = vmatpush.msra.mxu0 %v619
    %2785 = vmatpush.msra.mxu0 %v615
    %2786 = vmatmul.f32.gmra.mxu0 %v2768
    %v2787 = vpop.f32.mrf.mxu0
    %v2788 = vadd.f32 0.0, %v2787
    %2789 = vdwg.mxu0
    %2790 = vmatpush.msra.mxu0 %v676
    %2791 = vmatpush.msra.mxu0 %v672
    %2792 = vmatpush.msra.mxu0 %v668
    %2793 = vmatpush.msra.mxu0 %v664
    %2794 = vmatpush.msra.mxu0 %v660
    %2795 = vmatpush.msra.mxu0 %v656
    %2796 = vmatpush.msra.mxu0 %v652
    %2797 = vmatpush.msra.mxu0 %v648
    %2798 = vmatpush.msra.mxu0 %v644
    %2799 = vmatpush.msra.mxu0 %v640
    %2800 = vmatpush.msra.mxu0 %v636
    %2801 = vmatpush.msra.mxu0 %v632
    %2802 = vmatpush.msra.mxu0 %v628
    %2803 = vmatpush.msra.mxu0 %v624
    %2804 = vmatpush.msra.mxu0 %v620
    %2805 = vmatpush.msra.mxu0 %v616
    %2806 = vmatmul.f32.gmra.mxu0 %v2768
    %v2807 = vpop.f32.mrf.mxu0
    %v2808 = vadd.f32 0.0, %v2807
    %2809 = vdwg.mxu0
    %2810 = vmatpush.msra.mxu0 %v677
    %2811 = vmatpush.msra.mxu0 %v673
    %2812 = vmatpush.msra.mxu0 %v669
    %2813 = vmatpush.msra.mxu0 %v665
    %2814 = vmatpush.msra.mxu0 %v661
    %2815 = vmatpush.msra.mxu0 %v657
    %2816 = vmatpush.msra.mxu0 %v653
    %2817 = vmatpush.msra.mxu0 %v649
    %2818 = vmatpush.msra.mxu0 %v645
    %2819 = vmatpush.msra.mxu0 %v641
    %2820 = vmatpush.msra.mxu0 %v637
    %2821 = vmatpush.msra.mxu0 %v633
    %2822 = vmatpush.msra.mxu0 %v629
    %2823 = vmatpush.msra.mxu0 %v625
    %2824 = vmatpush.msra.mxu0 %v621
    %2825 = vmatpush.msra.mxu0 %v617
    %2826 = vmatmul.f32.gmra.mxu0 %v2768
    %v2827 = vpop.f32.mrf.mxu0
    %v2828 = vadd.f32 0.0, %v2827
    %2829 = vdwg.mxu0
    %2830 = vmatpush.msra.mxu0 %v678
    %2831 = vmatpush.msra.mxu0 %v674
    %2832 = vmatpush.msra.mxu0 %v670
    %2833 = vmatpush.msra.mxu0 %v666
    %2834 = vmatpush.msra.mxu0 %v662
    %2835 = vmatpush.msra.mxu0 %v658
    %2836 = vmatpush.msra.mxu0 %v654
    %2837 = vmatpush.msra.mxu0 %v650
    %2838 = vmatpush.msra.mxu0 %v646
    %2839 = vmatpush.msra.mxu0 %v642
    %2840 = vmatpush.msra.mxu0 %v638
    %2841 = vmatpush.msra.mxu0 %v634
    %2842 = vmatpush.msra.mxu0 %v630
    %2843 = vmatpush.msra.mxu0 %v626
    %2844 = vmatpush.msra.mxu0 %v622
    %2845 = vmatpush.msra.mxu0 %v618
    %2846 = vmatmul.f32.gmra.mxu0 %v2768
    %v2847 = vpop.f32.mrf.mxu0
    %v2848 = vadd.f32 0.0, %v2847
    %2849 = vdwg.mxu0
    %v2854 = vrot.slane %v2788, 6
    %v2855 = vrot.slane %v2808, 6
    %v2856 = vrot.slane %v2828, 6
    %v2857 = vrot.slane %v2848, 6
    %v2862 = vadd.f32 %v477, %v2854
    %v2863 = vadd.f32 %v500, %v2855
    %v2864 = vadd.f32 %v523, %v2856
    %v2865 = vadd.f32 %v546, %v2857
    %v2866 = vxor.u32 %v2862, 2147483648
    %v2867 = vmul.f32 %v2866, 1.442695
    %v2868 = vpow.pop %v2867
    %v2869 = vadd.f32 %v2868, 1.0
    %v2870 = vrcp.pop %v2869
    %v2871 = vmul.f32 %v2869, %v2870
    %v2872 = vsub.f32 1.0, %v2871
    %v2873 = vmul.f32 %v2870, %v2872
    %v2874 = vadd.f32 %v2870, %v2873
    %vm2875 = vweird.f32 %v2869
    %vm2876 = vweird.f32 %v2870
    %vm2877 = vmor %vm2875, %vm2876
    %v2878 = vsel %vm2877, %v2870, %v2874
    %v2879 = vand.u32 2147483647, %v2869
    %vm2880 = vcmp.eq.f32.partialorder %v2879, 8.507059e+37
    %v2881 = vand.u32 %v2869, 2147483648
    %v2882 = vor.u32 1.1754944e-38, %v2881
    %v2883 = vsel %vm2880, %v2882, %v2878
    %v2884 = vmul.f32 1.0, %v2883
    %v2885 = vxor.u32 %v2863, 2147483648
    %v2886 = vmul.f32 %v2885, 1.442695
    %v2887 = vpow.pop %v2886
    %v2888 = vadd.f32 %v2887, 1.0
    %v2889 = vrcp.pop %v2888
    %v2890 = vmul.f32 %v2888, %v2889
    %v2891 = vsub.f32 1.0, %v2890
    %v2892 = vmul.f32 %v2889, %v2891
    %v2893 = vadd.f32 %v2889, %v2892
    %vm2894 = vweird.f32 %v2888
    %vm2895 = vweird.f32 %v2889
    %vm2896 = vmor %vm2894, %vm2895
    %v2897 = vsel %vm2896, %v2889, %v2893
    %v2898 = vand.u32 2147483647, %v2888
    %vm2899 = vcmp.eq.f32.partialorder %v2898, 8.507059e+37
    %v2900 = vand.u32 %v2888, 2147483648
    %v2901 = vor.u32 1.1754944e-38, %v2900
    %v2902 = vsel %vm2899, %v2901, %v2897
    %v2903 = vmul.f32 1.0, %v2902
    %v2904 = vtanh.pop %v2864
    %v2905 = vxor.u32 %v2865, 2147483648
    %v2906 = vmul.f32 %v2905, 1.442695
    %v2907 = vpow.pop %v2906
    %v2908 = vadd.f32 %v2907, 1.0
    %v2909 = vrcp.pop %v2908
    %v2910 = vmul.f32 %v2908, %v2909
    %v2911 = vsub.f32 1.0, %v2910
    %v2912 = vmul.f32 %v2909, %v2911
    %v2913 = vadd.f32 %v2909, %v2912
    %vm2914 = vweird.f32 %v2908
    %vm2915 = vweird.f32 %v2909
    %vm2916 = vmor %vm2914, %vm2915
    %v2917 = vsel %vm2916, %v2909, %v2913
    %v2918 = vand.u32 2147483647, %v2908
    %vm2919 = vcmp.eq.f32.partialorder %v2918, 8.507059e+37
    %v2920 = vand.u32 %v2908, 2147483648
    %v2921 = vor.u32 1.1754944e-38, %v2920
    %v2922 = vsel %vm2919, %v2921, %v2917
    %v2923 = vmul.f32 1.0, %v2922
    %v2925 = vrot.slane %v2599, 2
    %v2927 = vmul.f32 %v2903, %v2925
    %v2928 = vmul.f32 %v2884, %v2904
    %v2929 = vadd.f32 %v2927, %v2928
    %v2930 = vtanh.pop %v2929
    %v2931 = vmul.f32 %v2923, %v2930
    %v2933 = vrot.slane %v2766, 4
    %2935 = vmatpush.msra.mxu0 %v611
    %2936 = vmatpush.msra.mxu0 %v607
    %2937 = vmatpush.msra.mxu0 %v603
    %2938 = vmatpush.msra.mxu0 %v599
    %2939 = vmatpush.msra.mxu0 %v595
    %2940 = vmatpush.msra.mxu0 %v591
    %2941 = vmatpush.msra.mxu0 %v587
    %2942 = vmatpush.msra.mxu0 %v583
    %2943 = vmatpush.msra.mxu0 %v579
    %2944 = vmatpush.msra.mxu0 %v575
    %2945 = vmatpush.msra.mxu0 %v571
    %2946 = vmatpush.msra.mxu0 %v567
    %2947 = vmatpush.msra.mxu0 %v563
    %2948 = vmatpush.msra.mxu0 %v559
    %2949 = vmatpush.msra.mxu0 %v555
    %2950 = vmatpush.msra.mxu0 %v551
    %2951 = vmatmul.f32.gmra.mxu0 %v2933
    %v2952 = vpop.f32.mrf.mxu0
    %v2953 = vadd.f32 0.0, %v2952
    %2954 = vdwg.mxu0
    %2955 = vmatpush.msra.mxu0 %v612
    %2956 = vmatpush.msra.mxu0 %v608
    %2957 = vmatpush.msra.mxu0 %v604
    %2958 = vmatpush.msra.mxu0 %v600
    %2959 = vmatpush.msra.mxu0 %v596
    %2960 = vmatpush.msra.mxu0 %v592
    %2961 = vmatpush.msra.mxu0 %v588
    %2962 = vmatpush.msra.mxu0 %v584
    %2963 = vmatpush.msra.mxu0 %v580
    %2964 = vmatpush.msra.mxu0 %v576
    %2965 = vmatpush.msra.mxu0 %v572
    %2966 = vmatpush.msra.mxu0 %v568
    %2967 = vmatpush.msra.mxu0 %v564
    %2968 = vmatpush.msra.mxu0 %v560
    %2969 = vmatpush.msra.mxu0 %v556
    %2970 = vmatpush.msra.mxu0 %v552
    %2971 = vmatmul.f32.gmra.mxu0 %v2933
    %v2972 = vpop.f32.mrf.mxu0
    %v2973 = vadd.f32 0.0, %v2972
    %2974 = vdwg.mxu0
    %2975 = vmatpush.msra.mxu0 %v613
    %2976 = vmatpush.msra.mxu0 %v609
    %2977 = vmatpush.msra.mxu0 %v605
    %2978 = vmatpush.msra.mxu0 %v601
    %2979 = vmatpush.msra.mxu0 %v597
    %2980 = vmatpush.msra.mxu0 %v593
    %2981 = vmatpush.msra.mxu0 %v589
    %2982 = vmatpush.msra.mxu0 %v585
    %2983 = vmatpush.msra.mxu0 %v581
    %2984 = vmatpush.msra.mxu0 %v577
    %2985 = vmatpush.msra.mxu0 %v573
    %2986 = vmatpush.msra.mxu0 %v569
    %2987 = vmatpush.msra.mxu0 %v565
    %2988 = vmatpush.msra.mxu0 %v561
    %2989 = vmatpush.msra.mxu0 %v557
    %2990 = vmatpush.msra.mxu0 %v553
    %2991 = vmatmul.f32.gmra.mxu0 %v2933
    %v2992 = vpop.f32.mrf.mxu0
    %v2993 = vadd.f32 0.0, %v2992
    %2994 = vdwg.mxu0
    %2995 = vmatpush.msra.mxu0 %v614
    %2996 = vmatpush.msra.mxu0 %v610
    %2997 = vmatpush.msra.mxu0 %v606
    %2998 = vmatpush.msra.mxu0 %v602
    %2999 = vmatpush.msra.mxu0 %v598
    %3000 = vmatpush.msra.mxu0 %v594
    %3001 = vmatpush.msra.mxu0 %v590
    %3002 = vmatpush.msra.mxu0 %v586
    %3003 = vmatpush.msra.mxu0 %v582
    %3004 = vmatpush.msra.mxu0 %v578
    %3005 = vmatpush.msra.mxu0 %v574
    %3006 = vmatpush.msra.mxu0 %v570
    %3007 = vmatpush.msra.mxu0 %v566
    %3008 = vmatpush.msra.mxu0 %v562
    %3009 = vmatpush.msra.mxu0 %v558
    %3010 = vmatpush.msra.mxu0 %v554
    %3011 = vmatmul.f32.gmra.mxu0 %v2933
    %v3012 = vpop.f32.mrf.mxu0
    %v3013 = vadd.f32 0.0, %v3012
    %3014 = vdwg.mxu0
    %v3019 = vrot.slane %v2953, 2
    %v3020 = vrot.slane %v2973, 2
    %v3021 = vrot.slane %v2993, 2
    %v3022 = vrot.slane %v3013, 2
    %v3027 = vadd.f32 %v388, %v3019
    %v3028 = vadd.f32 %v411, %v3020
    %v3029 = vadd.f32 %v434, %v3021
    %v3030 = vadd.f32 %v457, %v3022
    %v3031 = vxor.u32 %v3027, 2147483648
    %v3032 = vmul.f32 %v3031, 1.442695
    %v3033 = vpow.pop %v3032
    %v3034 = vadd.f32 %v3033, 1.0
    %v3035 = vrcp.pop %v3034
    %v3036 = vmul.f32 %v3034, %v3035
    %v3037 = vsub.f32 1.0, %v3036
    %v3038 = vmul.f32 %v3035, %v3037
    %v3039 = vadd.f32 %v3035, %v3038
    %vm3040 = vweird.f32 %v3034
    %vm3041 = vweird.f32 %v3035
    %vm3042 = vmor %vm3040, %vm3041
    %v3043 = vsel %vm3042, %v3035, %v3039
    %v3044 = vand.u32 2147483647, %v3034
    %vm3045 = vcmp.eq.f32.partialorder %v3044, 8.507059e+37
    %v3046 = vand.u32 %v3034, 2147483648
    %v3047 = vor.u32 1.1754944e-38, %v3046
    %v3048 = vsel %vm3045, %v3047, %v3043
    %v3049 = vmul.f32 1.0, %v3048
    %v3050 = vxor.u32 %v3028, 2147483648
    %v3051 = vmul.f32 %v3050, 1.442695
    %v3052 = vpow.pop %v3051
    %v3053 = vadd.f32 %v3052, 1.0
    %v3054 = vrcp.pop %v3053
    %v3055 = vmul.f32 %v3053, %v3054
    %v3056 = vsub.f32 1.0, %v3055
    %v3057 = vmul.f32 %v3054, %v3056
    %v3058 = vadd.f32 %v3054, %v3057
    %vm3059 = vweird.f32 %v3053
    %vm3060 = vweird.f32 %v3054
    %vm3061 = vmor %vm3059, %vm3060
    %v3062 = vsel %vm3061, %v3054, %v3058
    %v3063 = vand.u32 2147483647, %v3053
    %vm3064 = vcmp.eq.f32.partialorder %v3063, 8.507059e+37
    %v3065 = vand.u32 %v3053, 2147483648
    %v3066 = vor.u32 1.1754944e-38, %v3065
    %v3067 = vsel %vm3064, %v3066, %v3062
    %v3068 = vmul.f32 1.0, %v3067
    %v3069 = vtanh.pop %v3029
    %v3070 = vxor.u32 %v3030, 2147483648
    %v3071 = vmul.f32 %v3070, 1.442695
    %v3072 = vpow.pop %v3071
    %v3073 = vadd.f32 %v3072, 1.0
    %v3074 = vrcp.pop %v3073
    %v3075 = vmul.f32 %v3073, %v3074
    %v3076 = vsub.f32 1.0, %v3075
    %v3077 = vmul.f32 %v3074, %v3076
    %v3078 = vadd.f32 %v3074, %v3077
    %vm3079 = vweird.f32 %v3073
    %vm3080 = vweird.f32 %v3074
    %vm3081 = vmor %vm3079, %vm3080
    %v3082 = vsel %vm3081, %v3074, %v3078
    %v3083 = vand.u32 2147483647, %v3073
    %vm3084 = vcmp.eq.f32.partialorder %v3083, 8.507059e+37
    %v3085 = vand.u32 %v3073, 2147483648
    %v3086 = vor.u32 1.1754944e-38, %v3085
    %v3087 = vsel %vm3084, %v3086, %v3082
    %v3088 = vmul.f32 1.0, %v3087
    %v3090 = vrot.slane %v2764, 6
    %v3092 = vmul.f32 %v3068, %v3090
    %v3093 = vmul.f32 %v3049, %v3069
    %v3094 = vadd.f32 %v3092, %v3093
    %v3095 = vtanh.pop %v3094
    %v3096 = vmul.f32 %v3088, %v3095
    %v3098 = vrot.slane %v2931, 2
    %3100 = vmatpush.msra.mxu0 %v675
    %3101 = vmatpush.msra.mxu0 %v671
    %3102 = vmatpush.msra.mxu0 %v667
    %3103 = vmatpush.msra.mxu0 %v663
    %3104 = vmatpush.msra.mxu0 %v659
    %3105 = vmatpush.msra.mxu0 %v655
    %3106 = vmatpush.msra.mxu0 %v651
    %3107 = vmatpush.msra.mxu0 %v647
    %3108 = vmatpush.msra.mxu0 %v643
    %3109 = vmatpush.msra.mxu0 %v639
    %3110 = vmatpush.msra.mxu0 %v635
    %3111 = vmatpush.msra.mxu0 %v631
    %3112 = vmatpush.msra.mxu0 %v627
    %3113 = vmatpush.msra.mxu0 %v623
    %3114 = vmatpush.msra.mxu0 %v619
    %3115 = vmatpush.msra.mxu0 %v615
    %3116 = vmatmul.f32.gmra.mxu0 %v3098
    %v3117 = vpop.f32.mrf.mxu0
    %v3118 = vadd.f32 0.0, %v3117
    %3119 = vdwg.mxu0
    %3120 = vmatpush.msra.mxu0 %v676
    %3121 = vmatpush.msra.mxu0 %v672
    %3122 = vmatpush.msra.mxu0 %v668
    %3123 = vmatpush.msra.mxu0 %v664
    %3124 = vmatpush.msra.mxu0 %v660
    %3125 = vmatpush.msra.mxu0 %v656
    %3126 = vmatpush.msra.mxu0 %v652
    %3127 = vmatpush.msra.mxu0 %v648
    %3128 = vmatpush.msra.mxu0 %v644
    %3129 = vmatpush.msra.mxu0 %v640
    %3130 = vmatpush.msra.mxu0 %v636
    %3131 = vmatpush.msra.mxu0 %v632
    %3132 = vmatpush.msra.mxu0 %v628
    %3133 = vmatpush.msra.mxu0 %v624
    %3134 = vmatpush.msra.mxu0 %v620
    %3135 = vmatpush.msra.mxu0 %v616
    %3136 = vmatmul.f32.gmra.mxu0 %v3098
    %v3137 = vpop.f32.mrf.mxu0
    %v3138 = vadd.f32 0.0, %v3137
    %3139 = vdwg.mxu0
    %3140 = vmatpush.msra.mxu0 %v677
    %3141 = vmatpush.msra.mxu0 %v673
    %3142 = vmatpush.msra.mxu0 %v669
    %3143 = vmatpush.msra.mxu0 %v665
    %3144 = vmatpush.msra.mxu0 %v661
    %3145 = vmatpush.msra.mxu0 %v657
    %3146 = vmatpush.msra.mxu0 %v653
    %3147 = vmatpush.msra.mxu0 %v649
    %3148 = vmatpush.msra.mxu0 %v645
    %3149 = vmatpush.msra.mxu0 %v641
    %3150 = vmatpush.msra.mxu0 %v637
    %3151 = vmatpush.msra.mxu0 %v633
    %3152 = vmatpush.msra.mxu0 %v629
    %3153 = vmatpush.msra.mxu0 %v625
    %3154 = vmatpush.msra.mxu0 %v621
    %3155 = vmatpush.msra.mxu0 %v617
    %3156 = vmatmul.f32.gmra.mxu0 %v3098
    %v3157 = vpop.f32.mrf.mxu0
    %v3158 = vadd.f32 0.0, %v3157
    %3159 = vdwg.mxu0
    %3160 = vmatpush.msra.mxu0 %v678
    %3161 = vmatpush.msra.mxu0 %v674
    %3162 = vmatpush.msra.mxu0 %v670
    %3163 = vmatpush.msra.mxu0 %v666
    %3164 = vmatpush.msra.mxu0 %v662
    %3165 = vmatpush.msra.mxu0 %v658
    %3166 = vmatpush.msra.mxu0 %v654
    %3167 = vmatpush.msra.mxu0 %v650
    %3168 = vmatpush.msra.mxu0 %v646
    %3169 = vmatpush.msra.mxu0 %v642
    %3170 = vmatpush.msra.mxu0 %v638
    %3171 = vmatpush.msra.mxu0 %v634
    %3172 = vmatpush.msra.mxu0 %v630
    %3173 = vmatpush.msra.mxu0 %v626
    %3174 = vmatpush.msra.mxu0 %v622
    %3175 = vmatpush.msra.mxu0 %v618
    %3176 = vmatmul.f32.gmra.mxu0 %v3098
    %v3177 = vpop.f32.mrf.mxu0
    %v3178 = vadd.f32 0.0, %v3177
    %3179 = vdwg.mxu0
    %v3180 = vadd.f32 %v477, %v3118
    %v3181 = vadd.f32 %v500, %v3138
    %v3182 = vadd.f32 %v523, %v3158
    %v3183 = vadd.f32 %v546, %v3178
    %v3184 = vxor.u32 %v3180, 2147483648
    %v3185 = vmul.f32 %v3184, 1.442695
    %v3186 = vpow.pop %v3185
    %v3187 = vadd.f32 %v3186, 1.0
    %v3188 = vrcp.pop %v3187
    %v3189 = vmul.f32 %v3187, %v3188
    %v3190 = vsub.f32 1.0, %v3189
    %v3191 = vmul.f32 %v3188, %v3190
    %v3192 = vadd.f32 %v3188, %v3191
    %vm3193 = vweird.f32 %v3187
    %vm3194 = vweird.f32 %v3188
    %vm3195 = vmor %vm3193, %vm3194
    %v3196 = vsel %vm3195, %v3188, %v3192
    %v3197 = vand.u32 2147483647, %v3187
    %vm3198 = vcmp.eq.f32.partialorder %v3197, 8.507059e+37
    %v3199 = vand.u32 %v3187, 2147483648
    %v3200 = vor.u32 1.1754944e-38, %v3199
    %v3201 = vsel %vm3198, %v3200, %v3196
    %v3202 = vmul.f32 1.0, %v3201
    %v3203 = vxor.u32 %v3181, 2147483648
    %v3204 = vmul.f32 %v3203, 1.442695
    %v3205 = vpow.pop %v3204
    %v3206 = vadd.f32 %v3205, 1.0
    %v3207 = vrcp.pop %v3206
    %v3208 = vmul.f32 %v3206, %v3207
    %v3209 = vsub.f32 1.0, %v3208
    %v3210 = vmul.f32 %v3207, %v3209
    %v3211 = vadd.f32 %v3207, %v3210
    %vm3212 = vweird.f32 %v3206
    %vm3213 = vweird.f32 %v3207
    %vm3214 = vmor %vm3212, %vm3213
    %v3215 = vsel %vm3214, %v3207, %v3211
    %v3216 = vand.u32 2147483647, %v3206
    %vm3217 = vcmp.eq.f32.partialorder %v3216, 8.507059e+37
    %v3218 = vand.u32 %v3206, 2147483648
    %v3219 = vor.u32 1.1754944e-38, %v3218
    %v3220 = vsel %vm3217, %v3219, %v3215
    %v3221 = vmul.f32 1.0, %v3220
    %v3222 = vtanh.pop %v3182
    %v3223 = vxor.u32 %v3183, 2147483648
    %v3224 = vmul.f32 %v3223, 1.442695
    %v3225 = vpow.pop %v3224
    %v3226 = vadd.f32 %v3225, 1.0
    %v3227 = vrcp.pop %v3226
    %v3228 = vmul.f32 %v3226, %v3227
    %v3229 = vsub.f32 1.0, %v3228
    %v3230 = vmul.f32 %v3227, %v3229
    %v3231 = vadd.f32 %v3227, %v3230
    %vm3232 = vweird.f32 %v3226
    %vm3233 = vweird.f32 %v3227
    %vm3234 = vmor %vm3232, %vm3233
    %v3235 = vsel %vm3234, %v3227, %v3231
    %v3236 = vand.u32 2147483647, %v3226
    %vm3237 = vcmp.eq.f32.partialorder %v3236, 8.507059e+37
    %v3238 = vand.u32 %v3226, 2147483648
    %v3239 = vor.u32 1.1754944e-38, %v3238
    %v3240 = vsel %vm3237, %v3239, %v3235
    %v3241 = vmul.f32 1.0, %v3240
    %v3243 = vrot.slane %v2929, 2
    %v3245 = vmul.f32 %v3221, %v3243
    %v3246 = vmul.f32 %v3202, %v3222
    %v3247 = vadd.f32 %v3245, %v3246
    %v3248 = vtanh.pop %v3247
    %v3249 = vmul.f32 %v3241, %v3248
    %vm3250 = vcmask 1041408
    %v3251 = vsel %vm3250, %v825, %v1146
    %vm3252 = vcmask 1043456
    %v3253 = vsel %vm3252, %v3251, %v1476
    %vm3254 = vcmask 1045504
    %v3255 = vsel %vm3254, %v3253, %v1806
    %v3256 = vsel %vm3250, %v2112, %v2436
    %v3257 = vsel %vm3252, %v3256, %v2766
    %v3258 = vsel %vm3254, %v3257, %v3096
    %v3259 = vrot.slane %v1311, 2
    %v3261 = vrot.slane %v1641, 6
    %v3264 = vrot.slane %v1959, 2
    %v3266 = vrot.slane %v2601, 2
    %v3268 = vrot.slane %v2931, 6
    %v3271 = vrot.slane %v3249, 2
    %v3273 = vsel %vm3250, %v1148, %v3259
    %v3274 = vsel %vm3252, %v3273, %v3261
    %v3275 = vsel %vm3254, %v3274, %v3264
    %v3276 = vsel %vm3250, %v2438, %v3266
    %v3277 = vsel %vm3252, %v3276, %v3268
    %v3278 = vsel %vm3254, %v3277, %v3271
    %v3279 = vld [vmem:[#allocation8] sm:$0xff]
    %v3280 = vld [vmem:[#allocation8 + $0x8] sm:$0xff]
    %v3281 = vld [vmem:[#allocation8 + $0x10] sm:$0xff]
    %v3282 = vld [vmem:[#allocation8 + $0x18] sm:$0xff]
    %v3283 = vld [vmem:[#allocation8 + $0x20] sm:$0xff]
    %v3284 = vld [vmem:[#allocation8 + $0x28] sm:$0xff]
    %v3285 = vld [vmem:[#allocation8 + $0x30] sm:$0xff]
    %v3286 = vld [vmem:[#allocation8 + $0x38] sm:$0xff]
    %v3287 = vld [vmem:[#allocation8 + $0x40] sm:$0xff]
    %v3288 = vld [vmem:[#allocation8 + $0x48] sm:$0xff]
    %v3289 = vld [vmem:[#allocation8 + $0x50] sm:$0xff]
    %v3290 = vld [vmem:[#allocation8 + $0x58] sm:$0xff]
    %v3291 = vld [vmem:[#allocation8 + $0x60] sm:$0xff]
    %v3292 = vld [vmem:[#allocation8 + $0x68] sm:$0xff]
    %v3293 = vld [vmem:[#allocation8 + $0x70] sm:$0xff]
    %v3294 = vld [vmem:[#allocation8 + $0x78] sm:$0xff]
    %v3295 = vld [vmem:[#allocation8 + $0x80] sm:$0xff]
    %v3296 = vld [vmem:[#allocation8 + $0x88] sm:$0xff]
    %v3297 = vld [vmem:[#allocation8 + $0x90] sm:$0xff]
    %v3298 = vld [vmem:[#allocation8 + $0x98] sm:$0xff]
    %v3299 = vld [vmem:[#allocation8 + $0xa0] sm:$0xff]
    %v3300 = vld [vmem:[#allocation8 + $0xa8] sm:$0xff]
    %v3301 = vld [vmem:[#allocation8 + $0xb0] sm:$0xff]
    %v3302 = vld [vmem:[#allocation8 + $0xb8] sm:$0xff]
    %v3303 = vld [vmem:[#allocation8 + $0xc0] sm:$0xff]
    %v3304 = vld [vmem:[#allocation8 + $0xc8] sm:$0xff]
    %v3305 = vld [vmem:[#allocation8 + $0xd0] sm:$0xff]
    %v3306 = vld [vmem:[#allocation8 + $0xd8] sm:$0xff]
    %v3307 = vld [vmem:[#allocation8 + $0xe0] sm:$0xff]
    %v3308 = vld [vmem:[#allocation8 + $0xe8] sm:$0xff]
    %v3309 = vld [vmem:[#allocation8 + $0xf0] sm:$0xff]
    %v3310 = vld [vmem:[#allocation8 + $0xf8] sm:$0xff]
    %v3311 = vld [vmem:[#allocation8 + $0x100] sm:$0xff]
    %v3312 = vld [vmem:[#allocation8 + $0x108] sm:$0xff]
    %v3313 = vld [vmem:[#allocation8 + $0x110] sm:$0xff]
    %v3314 = vld [vmem:[#allocation8 + $0x118] sm:$0xff]
    %v3315 = vld [vmem:[#allocation8 + $0x120] sm:$0xff]
    %v3316 = vld [vmem:[#allocation8 + $0x128] sm:$0xff]
    %v3317 = vld [vmem:[#allocation8 + $0x130] sm:$0xff]
    %v3318 = vld [vmem:[#allocation8 + $0x138] sm:$0xff]
    %v3319 = vld [vmem:[#allocation8 + $0x140] sm:$0xff]
    %v3320 = vld [vmem:[#allocation8 + $0x148] sm:$0xff]
    %v3321 = vld [vmem:[#allocation8 + $0x150] sm:$0xff]
    %v3322 = vld [vmem:[#allocation8 + $0x158] sm:$0xff]
    %v3323 = vld [vmem:[#allocation8 + $0x160] sm:$0xff]
    %v3324 = vld [vmem:[#allocation8 + $0x168] sm:$0xff]
    %v3325 = vld [vmem:[#allocation8 + $0x170] sm:$0xff]
    %v3326 = vld [vmem:[#allocation8 + $0x178] sm:$0xff]
    %v3327 = vld [vmem:[#allocation8 + $0x180] sm:$0xff]
    %v3328 = vld [vmem:[#allocation8 + $0x188] sm:$0xff]
    %v3329 = vld [vmem:[#allocation8 + $0x190] sm:$0xff]
    %v3330 = vld [vmem:[#allocation8 + $0x198] sm:$0xff]
    %v3331 = vld [vmem:[#allocation8 + $0x1a0] sm:$0xff]
    %v3332 = vld [vmem:[#allocation8 + $0x1a8] sm:$0xff]
    %v3333 = vld [vmem:[#allocation8 + $0x1b0] sm:$0xff]
    %v3334 = vld [vmem:[#allocation8 + $0x1b8] sm:$0xff]
    %v3335 = vld [vmem:[#allocation8 + $0x1c0] sm:$0xff]
    %v3336 = vld [vmem:[#allocation8 + $0x1c8] sm:$0xff]
    %v3337 = vld [vmem:[#allocation8 + $0x1d0] sm:$0xff]
    %v3338 = vld [vmem:[#allocation8 + $0x1d8] sm:$0xff]
    %v3339 = vld [vmem:[#allocation8 + $0x1e0] sm:$0xff]
    %v3340 = vld [vmem:[#allocation8 + $0x1e8] sm:$0xff]
    %v3341 = vld [vmem:[#allocation8 + $0x1f0] sm:$0xff]
    %v3342 = vld [vmem:[#allocation8 + $0x1f8] sm:$0xff]
    %v3343 = vld [vmem:[%s6] sm:$0xf]
    %v3345 = vperm.slane %v3343, 0
    %v3346 = vperm.slane %v3343, 1
    %v3347 = vperm.slane %v3343, 2
    %v3348 = vperm.slane %v3343, 3
    %3353 = vmatpush.msra.mxu0 %v3339
    %3354 = vmatpush.msra.mxu0 %v3335
    %3355 = vmatpush.msra.mxu0 %v3331
    %3356 = vmatpush.msra.mxu0 %v3327
    %3357 = vmatpush.msra.mxu0 %v3323
    %3358 = vmatpush.msra.mxu0 %v3319
    %3359 = vmatpush.msra.mxu0 %v3315
    %3360 = vmatpush.msra.mxu0 %v3311
    %3361 = vmatpush.msra.mxu0 %v3307
    %3362 = vmatpush.msra.mxu0 %v3303
    %3363 = vmatpush.msra.mxu0 %v3299
    %3364 = vmatpush.msra.mxu0 %v3295
    %3365 = vmatpush.msra.mxu0 %v3291
    %3366 = vmatpush.msra.mxu0 %v3287
    %3367 = vmatpush.msra.mxu0 %v3283
    %3368 = vmatpush.msra.mxu0 %v3279
    %3369 = vmatmul.f32.gmra.mxu0 %v3255
    %v3370 = vpop.f32.mrf.mxu0
    %v3371 = vadd.f32 %v3345, %v3370
    %3372 = vmatmul.f32.gmra.mxu0 %v3258
    %v3373 = vpop.f32.mrf.mxu0
    %v3374 = vadd.f32 %v3345, %v3373
    %3375 = vdwg.mxu0
    %3376 = vmatpush.msra.mxu0 %v3340
    %3377 = vmatpush.msra.mxu0 %v3336
    %3378 = vmatpush.msra.mxu0 %v3332
    %3379 = vmatpush.msra.mxu0 %v3328
    %3380 = vmatpush.msra.mxu0 %v3324
    %3381 = vmatpush.msra.mxu0 %v3320
    %3382 = vmatpush.msra.mxu0 %v3316
    %3383 = vmatpush.msra.mxu0 %v3312
    %3384 = vmatpush.msra.mxu0 %v3308
    %3385 = vmatpush.msra.mxu0 %v3304
    %3386 = vmatpush.msra.mxu0 %v3300
    %3387 = vmatpush.msra.mxu0 %v3296
    %3388 = vmatpush.msra.mxu0 %v3292
    %3389 = vmatpush.msra.mxu0 %v3288
    %3390 = vmatpush.msra.mxu0 %v3284
    %3391 = vmatpush.msra.mxu0 %v3280
    %3392 = vmatmul.f32.gmra.mxu0 %v3255
    %v3393 = vpop.f32.mrf.mxu0
    %v3394 = vadd.f32 %v3346, %v3393
    %3395 = vmatmul.f32.gmra.mxu0 %v3258
    %v3396 = vpop.f32.mrf.mxu0
    %v3397 = vadd.f32 %v3346, %v3396
    %3398 = vdwg.mxu0
    %3399 = vmatpush.msra.mxu0 %v3341
    %3400 = vmatpush.msra.mxu0 %v3337
    %3401 = vmatpush.msra.mxu0 %v3333
    %3402 = vmatpush.msra.mxu0 %v3329
    %3403 = vmatpush.msra.mxu0 %v3325
    %3404 = vmatpush.msra.mxu0 %v3321
    %3405 = vmatpush.msra.mxu0 %v3317
    %3406 = vmatpush.msra.mxu0 %v3313
    %3407 = vmatpush.msra.mxu0 %v3309
    %3408 = vmatpush.msra.mxu0 %v3305
    %3409 = vmatpush.msra.mxu0 %v3301
    %3410 = vmatpush.msra.mxu0 %v3297
    %3411 = vmatpush.msra.mxu0 %v3293
    %3412 = vmatpush.msra.mxu0 %v3289
    %3413 = vmatpush.msra.mxu0 %v3285
    %3414 = vmatpush.msra.mxu0 %v3281
    %3415 = vmatmul.f32.gmra.mxu0 %v3255
    %v3416 = vpop.f32.mrf.mxu0
    %v3417 = vadd.f32 %v3347, %v3416
    %3418 = vmatmul.f32.gmra.mxu0 %v3258
    %v3419 = vpop.f32.mrf.mxu0
    %v3420 = vadd.f32 %v3347, %v3419
    %3421 = vdwg.mxu0
    %3422 = vmatpush.msra.mxu0 %v3342
    %3423 = vmatpush.msra.mxu0 %v3338
    %3424 = vmatpush.msra.mxu0 %v3334
    %3425 = vmatpush.msra.mxu0 %v3330
    %3426 = vmatpush.msra.mxu0 %v3326
    %3427 = vmatpush.msra.mxu0 %v3322
    %3428 = vmatpush.msra.mxu0 %v3318
    %3429 = vmatpush.msra.mxu0 %v3314
    %3430 = vmatpush.msra.mxu0 %v3310
    %3431 = vmatpush.msra.mxu0 %v3306
    %3432 = vmatpush.msra.mxu0 %v3302
    %3433 = vmatpush.msra.mxu0 %v3298
    %3434 = vmatpush.msra.mxu0 %v3294
    %3435 = vmatpush.msra.mxu0 %v3290
    %3436 = vmatpush.msra.mxu0 %v3286
    %3437 = vmatpush.msra.mxu0 %v3282
    %3438 = vmatmul.f32.gmra.mxu0 %v3255
    %v3439 = vpop.f32.mrf.mxu0
    %v3440 = vadd.f32 %v3348, %v3439
    %3441 = vmatmul.f32.gmra.mxu0 %v3258
    %v3442 = vpop.f32.mrf.mxu0
    %v3443 = vadd.f32 %v3348, %v3442
    %3444 = vdwg.mxu0
    %v3445 = vld [vmem:[#allocation10] sm:$0xff]
    %v3446 = vld [vmem:[#allocation10 + $0x8] sm:$0xff]
    %v3447 = vld [vmem:[#allocation10 + $0x10] sm:$0xff]
    %v3448 = vld [vmem:[#allocation10 + $0x18] sm:$0xff]
    %v3449 = vld [vmem:[#allocation10 + $0x20] sm:$0xff]
    %v3450 = vld [vmem:[#allocation10 + $0x28] sm:$0xff]
    %v3451 = vld [vmem:[#allocation10 + $0x30] sm:$0xff]
    %v3452 = vld [vmem:[#allocation10 + $0x38] sm:$0xff]
    %v3453 = vld [vmem:[#allocation10 + $0x40] sm:$0xff]
    %v3454 = vld [vmem:[#allocation10 + $0x48] sm:$0xff]
    %v3455 = vld [vmem:[#allocation10 + $0x50] sm:$0xff]
    %v3456 = vld [vmem:[#allocation10 + $0x58] sm:$0xff]
    %v3457 = vld [vmem:[#allocation10 + $0x60] sm:$0xff]
    %v3458 = vld [vmem:[#allocation10 + $0x68] sm:$0xff]
    %v3459 = vld [vmem:[#allocation10 + $0x70] sm:$0xff]
    %v3460 = vld [vmem:[#allocation10 + $0x78] sm:$0xff]
    %v3461 = vld [vmem:[#allocation10 + $0x80] sm:$0xff]
    %v3462 = vld [vmem:[#allocation10 + $0x88] sm:$0xff]
    %v3463 = vld [vmem:[#allocation10 + $0x90] sm:$0xff]
    %v3464 = vld [vmem:[#allocation10 + $0x98] sm:$0xff]
    %v3465 = vld [vmem:[#allocation10 + $0xa0] sm:$0xff]
    %v3466 = vld [vmem:[#allocation10 + $0xa8] sm:$0xff]
    %v3467 = vld [vmem:[#allocation10 + $0xb0] sm:$0xff]
    %v3468 = vld [vmem:[#allocation10 + $0xb8] sm:$0xff]
    %v3469 = vld [vmem:[#allocation10 + $0xc0] sm:$0xff]
    %v3470 = vld [vmem:[#allocation10 + $0xc8] sm:$0xff]
    %v3471 = vld [vmem:[#allocation10 + $0xd0] sm:$0xff]
    %v3472 = vld [vmem:[#allocation10 + $0xd8] sm:$0xff]
    %v3473 = vld [vmem:[#allocation10 + $0xe0] sm:$0xff]
    %v3474 = vld [vmem:[#allocation10 + $0xe8] sm:$0xff]
    %v3475 = vld [vmem:[#allocation10 + $0xf0] sm:$0xff]
    %v3476 = vld [vmem:[#allocation10 + $0xf8] sm:$0xff]
    %v3477 = vld [vmem:[#allocation10 + $0x100] sm:$0xff]
    %v3478 = vld [vmem:[#allocation10 + $0x108] sm:$0xff]
    %v3479 = vld [vmem:[#allocation10 + $0x110] sm:$0xff]
    %v3480 = vld [vmem:[#allocation10 + $0x118] sm:$0xff]
    %v3481 = vld [vmem:[#allocation10 + $0x120] sm:$0xff]
    %v3482 = vld [vmem:[#allocation10 + $0x128] sm:$0xff]
    %v3483 = vld [vmem:[#allocation10 + $0x130] sm:$0xff]
    %v3484 = vld [vmem:[#allocation10 + $0x138] sm:$0xff]
    %v3485 = vld [vmem:[#allocation10 + $0x140] sm:$0xff]
    %v3486 = vld [vmem:[#allocation10 + $0x148] sm:$0xff]
    %v3487 = vld [vmem:[#allocation10 + $0x150] sm:$0xff]
    %v3488 = vld [vmem:[#allocation10 + $0x158] sm:$0xff]
    %v3489 = vld [vmem:[#allocation10 + $0x160] sm:$0xff]
    %v3490 = vld [vmem:[#allocation10 + $0x168] sm:$0xff]
    %v3491 = vld [vmem:[#allocation10 + $0x170] sm:$0xff]
    %v3492 = vld [vmem:[#allocation10 + $0x178] sm:$0xff]
    %v3493 = vld [vmem:[#allocation10 + $0x180] sm:$0xff]
    %v3494 = vld [vmem:[#allocation10 + $0x188] sm:$0xff]
    %v3495 = vld [vmem:[#allocation10 + $0x190] sm:$0xff]
    %v3496 = vld [vmem:[#allocation10 + $0x198] sm:$0xff]
    %v3497 = vld [vmem:[#allocation10 + $0x1a0] sm:$0xff]
    %v3498 = vld [vmem:[#allocation10 + $0x1a8] sm:$0xff]
    %v3499 = vld [vmem:[#allocation10 + $0x1b0] sm:$0xff]
    %v3500 = vld [vmem:[#allocation10 + $0x1b8] sm:$0xff]
    %v3501 = vld [vmem:[#allocation10 + $0x1c0] sm:$0xff]
    %v3502 = vld [vmem:[#allocation10 + $0x1c8] sm:$0xff]
    %v3503 = vld [vmem:[#allocation10 + $0x1d0] sm:$0xff]
    %v3504 = vld [vmem:[#allocation10 + $0x1d8] sm:$0xff]
    %v3505 = vld [vmem:[#allocation10 + $0x1e0] sm:$0xff]
    %v3506 = vld [vmem:[#allocation10 + $0x1e8] sm:$0xff]
    %v3507 = vld [vmem:[#allocation10 + $0x1f0] sm:$0xff]
    %v3508 = vld [vmem:[#allocation10 + $0x1f8] sm:$0xff]
    %v3509 = vld [vmem:[%s8] sm:$0xf]
    %v3511 = vperm.slane %v3509, 0
    %v3512 = vperm.slane %v3509, 1
    %v3513 = vperm.slane %v3509, 2
    %v3514 = vperm.slane %v3509, 3
    %3519 = vmatpush.msra.mxu0 %v3505
    %3520 = vmatpush.msra.mxu0 %v3501
    %3521 = vmatpush.msra.mxu0 %v3497
    %3522 = vmatpush.msra.mxu0 %v3493
    %3523 = vmatpush.msra.mxu0 %v3489
    %3524 = vmatpush.msra.mxu0 %v3485
    %3525 = vmatpush.msra.mxu0 %v3481
    %3526 = vmatpush.msra.mxu0 %v3477
    %3527 = vmatpush.msra.mxu0 %v3473
    %3528 = vmatpush.msra.mxu0 %v3469
    %3529 = vmatpush.msra.mxu0 %v3465
    %3530 = vmatpush.msra.mxu0 %v3461
    %3531 = vmatpush.msra.mxu0 %v3457
    %3532 = vmatpush.msra.mxu0 %v3453
    %3533 = vmatpush.msra.mxu0 %v3449
    %3534 = vmatpush.msra.mxu0 %v3445
    %3535 = vmatmul.f32.gmra.mxu0 %v3275
    %v3536 = vpop.f32.mrf.mxu0
    %v3537 = vadd.f32 %v3511, %v3536
    %3538 = vmatmul.f32.gmra.mxu0 %v3278
    %v3539 = vpop.f32.mrf.mxu0
    %v3540 = vadd.f32 %v3511, %v3539
    %3541 = vdwg.mxu0
    %3542 = vmatpush.msra.mxu0 %v3506
    %3543 = vmatpush.msra.mxu0 %v3502
    %3544 = vmatpush.msra.mxu0 %v3498
    %3545 = vmatpush.msra.mxu0 %v3494
    %3546 = vmatpush.msra.mxu0 %v3490
    %3547 = vmatpush.msra.mxu0 %v3486
    %3548 = vmatpush.msra.mxu0 %v3482
    %3549 = vmatpush.msra.mxu0 %v3478
    %3550 = vmatpush.msra.mxu0 %v3474
    %3551 = vmatpush.msra.mxu0 %v3470
    %3552 = vmatpush.msra.mxu0 %v3466
    %3553 = vmatpush.msra.mxu0 %v3462
    %3554 = vmatpush.msra.mxu0 %v3458
    %3555 = vmatpush.msra.mxu0 %v3454
    %3556 = vmatpush.msra.mxu0 %v3450
    %3557 = vmatpush.msra.mxu0 %v3446
    %3558 = vmatmul.f32.gmra.mxu0 %v3275
    %v3559 = vpop.f32.mrf.mxu0
    %v3560 = vadd.f32 %v3512, %v3559
    %3561 = vmatmul.f32.gmra.mxu0 %v3278
    %v3562 = vpop.f32.mrf.mxu0
    %v3563 = vadd.f32 %v3512, %v3562
    %3564 = vdwg.mxu0
    %3565 = vmatpush.msra.mxu0 %v3507
    %3566 = vmatpush.msra.mxu0 %v3503
    %3567 = vmatpush.msra.mxu0 %v3499
    %3568 = vmatpush.msra.mxu0 %v3495
    %3569 = vmatpush.msra.mxu0 %v3491
    %3570 = vmatpush.msra.mxu0 %v3487
    %3571 = vmatpush.msra.mxu0 %v3483
    %3572 = vmatpush.msra.mxu0 %v3479
    %3573 = vmatpush.msra.mxu0 %v3475
    %3574 = vmatpush.msra.mxu0 %v3471
    %3575 = vmatpush.msra.mxu0 %v3467
    %3576 = vmatpush.msra.mxu0 %v3463
    %3577 = vmatpush.msra.mxu0 %v3459
    %3578 = vmatpush.msra.mxu0 %v3455
    %3579 = vmatpush.msra.mxu0 %v3451
    %3580 = vmatpush.msra.mxu0 %v3447
    %3581 = vmatmul.f32.gmra.mxu0 %v3275
    %v3582 = vpop.f32.mrf.mxu0
    %v3583 = vadd.f32 %v3513, %v3582
    %3584 = vmatmul.f32.gmra.mxu0 %v3278
    %v3585 = vpop.f32.mrf.mxu0
    %v3586 = vadd.f32 %v3513, %v3585
    %3587 = vdwg.mxu0
    %3588 = vmatpush.msra.mxu0 %v3508
    %3589 = vmatpush.msra.mxu0 %v3504
    %3590 = vmatpush.msra.mxu0 %v3500
    %3591 = vmatpush.msra.mxu0 %v3496
    %3592 = vmatpush.msra.mxu0 %v3492
    %3593 = vmatpush.msra.mxu0 %v3488
    %3594 = vmatpush.msra.mxu0 %v3484
    %3595 = vmatpush.msra.mxu0 %v3480
    %3596 = vmatpush.msra.mxu0 %v3476
    %3597 = vmatpush.msra.mxu0 %v3472
    %3598 = vmatpush.msra.mxu0 %v3468
    %3599 = vmatpush.msra.mxu0 %v3464
    %3600 = vmatpush.msra.mxu0 %v3460
    %3601 = vmatpush.msra.mxu0 %v3456
    %3602 = vmatpush.msra.mxu0 %v3452
    %3603 = vmatpush.msra.mxu0 %v3448
    %3604 = vmatmul.f32.gmra.mxu0 %v3275
    %v3605 = vpop.f32.mrf.mxu0
    %v3606 = vadd.f32 %v3514, %v3605
    %3607 = vmatmul.f32.gmra.mxu0 %v3278
    %v3608 = vpop.f32.mrf.mxu0
    %v3609 = vadd.f32 %v3514, %v3608
    %3610 = vdwg.mxu0
    %v3611 = vld [vmem:[#allocation11] sm:$0xff]
    %v3612 = vld [vmem:[#allocation11 + $0x8] sm:$0xff]
    %v3613 = vld [vmem:[#allocation11 + $0x10] sm:$0xff]
    %v3614 = vld [vmem:[#allocation11 + $0x18] sm:$0xff]
    %v3615 = vld [vmem:[#allocation11 + $0x20] sm:$0xff]
    %v3616 = vld [vmem:[#allocation11 + $0x28] sm:$0xff]
    %v3617 = vld [vmem:[#allocation11 + $0x30] sm:$0xff]
    %v3618 = vld [vmem:[#allocation11 + $0x38] sm:$0xff]
    %v3619 = vld [vmem:[#allocation11 + $0x40] sm:$0xff]
    %v3620 = vld [vmem:[#allocation11 + $0x48] sm:$0xff]
    %v3621 = vld [vmem:[#allocation11 + $0x50] sm:$0xff]
    %v3622 = vld [vmem:[#allocation11 + $0x58] sm:$0xff]
    %v3623 = vld [vmem:[#allocation11 + $0x60] sm:$0xff]
    %v3624 = vld [vmem:[#allocation11 + $0x68] sm:$0xff]
    %v3625 = vld [vmem:[#allocation11 + $0x70] sm:$0xff]
    %v3626 = vld [vmem:[#allocation11 + $0x78] sm:$0xff]
    %v3627 = vld [vmem:[#allocation11 + $0x80] sm:$0xff]
    %v3628 = vld [vmem:[#allocation11 + $0x88] sm:$0xff]
    %v3629 = vld [vmem:[#allocation11 + $0x90] sm:$0xff]
    %v3630 = vld [vmem:[#allocation11 + $0x98] sm:$0xff]
    %v3631 = vld [vmem:[#allocation11 + $0xa0] sm:$0xff]
    %v3632 = vld [vmem:[#allocation11 + $0xa8] sm:$0xff]
    %v3633 = vld [vmem:[#allocation11 + $0xb0] sm:$0xff]
    %v3634 = vld [vmem:[#allocation11 + $0xb8] sm:$0xff]
    %v3635 = vld [vmem:[#allocation11 + $0xc0] sm:$0xff]
    %v3636 = vld [vmem:[#allocation11 + $0xc8] sm:$0xff]
    %v3637 = vld [vmem:[#allocation11 + $0xd0] sm:$0xff]
    %v3638 = vld [vmem:[#allocation11 + $0xd8] sm:$0xff]
    %v3639 = vld [vmem:[#allocation11 + $0xe0] sm:$0xff]
    %v3640 = vld [vmem:[#allocation11 + $0xe8] sm:$0xff]
    %v3641 = vld [vmem:[#allocation11 + $0xf0] sm:$0xff]
    %v3642 = vld [vmem:[#allocation11 + $0xf8] sm:$0xff]
    %v3643 = vld [vmem:[#allocation11 + $0x100] sm:$0xff]
    %v3644 = vld [vmem:[#allocation11 + $0x108] sm:$0xff]
    %v3645 = vld [vmem:[#allocation11 + $0x110] sm:$0xff]
    %v3646 = vld [vmem:[#allocation11 + $0x118] sm:$0xff]
    %v3647 = vld [vmem:[#allocation11 + $0x120] sm:$0xff]
    %v3648 = vld [vmem:[#allocation11 + $0x128] sm:$0xff]
    %v3649 = vld [vmem:[#allocation11 + $0x130] sm:$0xff]
    %v3650 = vld [vmem:[#allocation11 + $0x138] sm:$0xff]
    %v3651 = vld [vmem:[#allocation11 + $0x140] sm:$0xff]
    %v3652 = vld [vmem:[#allocation11 + $0x148] sm:$0xff]
    %v3653 = vld [vmem:[#allocation11 + $0x150] sm:$0xff]
    %v3654 = vld [vmem:[#allocation11 + $0x158] sm:$0xff]
    %v3655 = vld [vmem:[#allocation11 + $0x160] sm:$0xff]
    %v3656 = vld [vmem:[#allocation11 + $0x168] sm:$0xff]
    %v3657 = vld [vmem:[#allocation11 + $0x170] sm:$0xff]
    %v3658 = vld [vmem:[#allocation11 + $0x178] sm:$0xff]
    %v3659 = vld [vmem:[#allocation11 + $0x180] sm:$0xff]
    %v3660 = vld [vmem:[#allocation11 + $0x188] sm:$0xff]
    %v3661 = vld [vmem:[#allocation11 + $0x190] sm:$0xff]
    %v3662 = vld [vmem:[#allocation11 + $0x198] sm:$0xff]
    %v3663 = vld [vmem:[#allocation11 + $0x1a0] sm:$0xff]
    %v3664 = vld [vmem:[#allocation11 + $0x1a8] sm:$0xff]
    %v3665 = vld [vmem:[#allocation11 + $0x1b0] sm:$0xff]
    %v3666 = vld [vmem:[#allocation11 + $0x1b8] sm:$0xff]
    %v3667 = vld [vmem:[#allocation11 + $0x1c0] sm:$0xff]
    %v3668 = vld [vmem:[#allocation11 + $0x1c8] sm:$0xff]
    %v3669 = vld [vmem:[#allocation11 + $0x1d0] sm:$0xff]
    %v3670 = vld [vmem:[#allocation11 + $0x1d8] sm:$0xff]
    %v3671 = vld [vmem:[#allocation11 + $0x1e0] sm:$0xff]
    %v3672 = vld [vmem:[#allocation11 + $0x1e8] sm:$0xff]
    %v3673 = vld [vmem:[#allocation11 + $0x1f0] sm:$0xff]
    %v3674 = vld [vmem:[#allocation11 + $0x1f8] sm:$0xff]
    %v3675 = vld [vmem:[#allocation13] sm:$0xff]
    %v3676 = vld [vmem:[#allocation13 + $0x8] sm:$0xff]
    %v3677 = vld [vmem:[#allocation13 + $0x10] sm:$0xff]
    %v3678 = vld [vmem:[#allocation13 + $0x18] sm:$0xff]
    %v3679 = vld [vmem:[#allocation13 + $0x20] sm:$0xff]
    %v3680 = vld [vmem:[#allocation13 + $0x28] sm:$0xff]
    %v3681 = vld [vmem:[#allocation13 + $0x30] sm:$0xff]
    %v3682 = vld [vmem:[#allocation13 + $0x38] sm:$0xff]
    %v3683 = vld [vmem:[#allocation13 + $0x40] sm:$0xff]
    %v3684 = vld [vmem:[#allocation13 + $0x48] sm:$0xff]
    %v3685 = vld [vmem:[#allocation13 + $0x50] sm:$0xff]
    %v3686 = vld [vmem:[#allocation13 + $0x58] sm:$0xff]
    %v3687 = vld [vmem:[#allocation13 + $0x60] sm:$0xff]
    %v3688 = vld [vmem:[#allocation13 + $0x68] sm:$0xff]
    %v3689 = vld [vmem:[#allocation13 + $0x70] sm:$0xff]
    %v3690 = vld [vmem:[#allocation13 + $0x78] sm:$0xff]
    %v3691 = vld [vmem:[#allocation13 + $0x80] sm:$0xff]
    %v3692 = vld [vmem:[#allocation13 + $0x88] sm:$0xff]
    %v3693 = vld [vmem:[#allocation13 + $0x90] sm:$0xff]
    %v3694 = vld [vmem:[#allocation13 + $0x98] sm:$0xff]
    %v3695 = vld [vmem:[#allocation13 + $0xa0] sm:$0xff]
    %v3696 = vld [vmem:[#allocation13 + $0xa8] sm:$0xff]
    %v3697 = vld [vmem:[#allocation13 + $0xb0] sm:$0xff]
    %v3698 = vld [vmem:[#allocation13 + $0xb8] sm:$0xff]
    %v3699 = vld [vmem:[#allocation13 + $0xc0] sm:$0xff]
    %v3700 = vld [vmem:[#allocation13 + $0xc8] sm:$0xff]
    %v3701 = vld [vmem:[#allocation13 + $0xd0] sm:$0xff]
    %v3702 = vld [vmem:[#allocation13 + $0xd8] sm:$0xff]
    %v3703 = vld [vmem:[#allocation13 + $0xe0] sm:$0xff]
    %v3704 = vld [vmem:[#allocation13 + $0xe8] sm:$0xff]
    %v3705 = vld [vmem:[#allocation13 + $0xf0] sm:$0xff]
    %v3706 = vld [vmem:[#allocation13 + $0xf8] sm:$0xff]
    %v3707 = vld [vmem:[#allocation13 + $0x100] sm:$0xff]
    %v3708 = vld [vmem:[#allocation13 + $0x108] sm:$0xff]
    %v3709 = vld [vmem:[#allocation13 + $0x110] sm:$0xff]
    %v3710 = vld [vmem:[#allocation13 + $0x118] sm:$0xff]
    %v3711 = vld [vmem:[#allocation13 + $0x120] sm:$0xff]
    %v3712 = vld [vmem:[#allocation13 + $0x128] sm:$0xff]
    %v3713 = vld [vmem:[#allocation13 + $0x130] sm:$0xff]
    %v3714 = vld [vmem:[#allocation13 + $0x138] sm:$0xff]
    %v3715 = vld [vmem:[#allocation13 + $0x140] sm:$0xff]
    %v3716 = vld [vmem:[#allocation13 + $0x148] sm:$0xff]
    %v3717 = vld [vmem:[#allocation13 + $0x150] sm:$0xff]
    %v3718 = vld [vmem:[#allocation13 + $0x158] sm:$0xff]
    %v3719 = vld [vmem:[#allocation13 + $0x160] sm:$0xff]
    %v3720 = vld [vmem:[#allocation13 + $0x168] sm:$0xff]
    %v3721 = vld [vmem:[#allocation13 + $0x170] sm:$0xff]
    %v3722 = vld [vmem:[#allocation13 + $0x178] sm:$0xff]
    %v3723 = vld [vmem:[#allocation13 + $0x180] sm:$0xff]
    %v3724 = vld [vmem:[#allocation13 + $0x188] sm:$0xff]
    %v3725 = vld [vmem:[#allocation13 + $0x190] sm:$0xff]
    %v3726 = vld [vmem:[#allocation13 + $0x198] sm:$0xff]
    %v3727 = vld [vmem:[#allocation13 + $0x1a0] sm:$0xff]
    %v3728 = vld [vmem:[#allocation13 + $0x1a8] sm:$0xff]
    %v3729 = vld [vmem:[#allocation13 + $0x1b0] sm:$0xff]
    %v3730 = vld [vmem:[#allocation13 + $0x1b8] sm:$0xff]
    %v3731 = vld [vmem:[#allocation13 + $0x1c0] sm:$0xff]
    %v3732 = vld [vmem:[#allocation13 + $0x1c8] sm:$0xff]
    %v3733 = vld [vmem:[#allocation13 + $0x1d0] sm:$0xff]
    %v3734 = vld [vmem:[#allocation13 + $0x1d8] sm:$0xff]
    %v3735 = vld [vmem:[#allocation13 + $0x1e0] sm:$0xff]
    %v3736 = vld [vmem:[#allocation13 + $0x1e8] sm:$0xff]
    %v3737 = vld [vmem:[#allocation13 + $0x1f0] sm:$0xff]
    %v3738 = vld [vmem:[#allocation13 + $0x1f8] sm:$0xff]
    %3739 = vmatpush.msra.mxu0 %v3671
    %3740 = vmatpush.msra.mxu0 %v3667
    %3741 = vmatpush.msra.mxu0 %v3663
    %3742 = vmatpush.msra.mxu0 %v3659
    %3743 = vmatpush.msra.mxu0 %v3655
    %3744 = vmatpush.msra.mxu0 %v3651
    %3745 = vmatpush.msra.mxu0 %v3647
    %3746 = vmatpush.msra.mxu0 %v3643
    %3747 = vmatpush.msra.mxu0 %v3639
    %3748 = vmatpush.msra.mxu0 %v3635
    %3749 = vmatpush.msra.mxu0 %v3631
    %3750 = vmatpush.msra.mxu0 %v3627
    %3751 = vmatpush.msra.mxu0 %v3623
    %3752 = vmatpush.msra.mxu0 %v3619
    %3753 = vmatpush.msra.mxu0 %v3615
    %3754 = vmatpush.msra.mxu0 %v3611
    %3755 = vmatmul.f32.gmra.mxu0 0.0
    %v3756 = vpop.f32.mrf.mxu0
    %v3757 = vadd.f32 0.0, %v3756
    %3758 = vdwg.mxu0
    %3759 = vmatpush.msra.mxu0 %v3672
    %3760 = vmatpush.msra.mxu0 %v3668
    %3761 = vmatpush.msra.mxu0 %v3664
    %3762 = vmatpush.msra.mxu0 %v3660
    %3763 = vmatpush.msra.mxu0 %v3656
    %3764 = vmatpush.msra.mxu0 %v3652
    %3765 = vmatpush.msra.mxu0 %v3648
    %3766 = vmatpush.msra.mxu0 %v3644
    %3767 = vmatpush.msra.mxu0 %v3640
    %3768 = vmatpush.msra.mxu0 %v3636
    %3769 = vmatpush.msra.mxu0 %v3632
    %3770 = vmatpush.msra.mxu0 %v3628
    %3771 = vmatpush.msra.mxu0 %v3624
    %3772 = vmatpush.msra.mxu0 %v3620
    %3773 = vmatpush.msra.mxu0 %v3616
    %3774 = vmatpush.msra.mxu0 %v3612
    %3775 = vmatmul.f32.gmra.mxu0 0.0
    %v3776 = vpop.f32.mrf.mxu0
    %v3777 = vadd.f32 0.0, %v3776
    %3778 = vdwg.mxu0
    %3779 = vmatpush.msra.mxu0 %v3673
    %3780 = vmatpush.msra.mxu0 %v3669
    %3781 = vmatpush.msra.mxu0 %v3665
    %3782 = vmatpush.msra.mxu0 %v3661
    %3783 = vmatpush.msra.mxu0 %v3657
    %3784 = vmatpush.msra.mxu0 %v3653
    %3785 = vmatpush.msra.mxu0 %v3649
    %3786 = vmatpush.msra.mxu0 %v3645
    %3787 = vmatpush.msra.mxu0 %v3641
    %3788 = vmatpush.msra.mxu0 %v3637
    %3789 = vmatpush.msra.mxu0 %v3633
    %3790 = vmatpush.msra.mxu0 %v3629
    %3791 = vmatpush.msra.mxu0 %v3625
    %3792 = vmatpush.msra.mxu0 %v3621
    %3793 = vmatpush.msra.mxu0 %v3617
    %3794 = vmatpush.msra.mxu0 %v3613
    %3795 = vmatmul.f32.gmra.mxu0 0.0
    %v3796 = vpop.f32.mrf.mxu0
    %v3797 = vadd.f32 0.0, %v3796
    %3798 = vdwg.mxu0
    %3799 = vmatpush.msra.mxu0 %v3674
    %3800 = vmatpush.msra.mxu0 %v3670
    %3801 = vmatpush.msra.mxu0 %v3666
    %3802 = vmatpush.msra.mxu0 %v3662
    %3803 = vmatpush.msra.mxu0 %v3658
    %3804 = vmatpush.msra.mxu0 %v3654
    %3805 = vmatpush.msra.mxu0 %v3650
    %3806 = vmatpush.msra.mxu0 %v3646
    %3807 = vmatpush.msra.mxu0 %v3642
    %3808 = vmatpush.msra.mxu0 %v3638
    %3809 = vmatpush.msra.mxu0 %v3634
    %3810 = vmatpush.msra.mxu0 %v3630
    %3811 = vmatpush.msra.mxu0 %v3626
    %3812 = vmatpush.msra.mxu0 %v3622
    %3813 = vmatpush.msra.mxu0 %v3618
    %3814 = vmatpush.msra.mxu0 %v3614
    %3815 = vmatmul.f32.gmra.mxu0 0.0
    %v3816 = vpop.f32.mrf.mxu0
    %v3817 = vadd.f32 0.0, %v3816
    %3818 = vdwg.mxu0
    %v3819 = vadd.f32 %v3371, %v3757
    %v3820 = vadd.f32 %v3394, %v3777
    %v3821 = vadd.f32 %v3417, %v3797
    %v3822 = vadd.f32 %v3440, %v3817
    %v3823 = vxor.u32 %v3819, 2147483648
    %v3824 = vmul.f32 %v3823, 1.442695
    %v3825 = vpow.pop %v3824
    %v3826 = vadd.f32 %v3825, 1.0
    %v3827 = vrcp.pop %v3826
    %v3828 = vmul.f32 %v3826, %v3827
    %v3829 = vsub.f32 1.0, %v3828
    %v3830 = vmul.f32 %v3827, %v3829
    %v3831 = vadd.f32 %v3827, %v3830
    %vm3832 = vweird.f32 %v3826
    %vm3833 = vweird.f32 %v3827
    %vm3834 = vmor %vm3832, %vm3833
    %v3835 = vsel %vm3834, %v3827, %v3831
    %v3836 = vand.u32 2147483647, %v3826
    %vm3837 = vcmp.eq.f32.partialorder %v3836, 8.507059e+37
    %v3838 = vand.u32 %v3826, 2147483648
    %v3839 = vor.u32 1.1754944e-38, %v3838
    %v3840 = vsel %vm3837, %v3839, %v3835
    %v3841 = vmul.f32 1.0, %v3840
    %v3842 = vxor.u32 %v3820, 2147483648
    %v3843 = vmul.f32 %v3842, 1.442695
    %v3844 = vpow.pop %v3843
    %v3845 = vadd.f32 %v3844, 1.0
    %v3846 = vrcp.pop %v3845
    %v3847 = vmul.f32 %v3845, %v3846
    %v3848 = vsub.f32 1.0, %v3847
    %v3849 = vmul.f32 %v3846, %v3848
    %v3850 = vadd.f32 %v3846, %v3849
    %vm3851 = vweird.f32 %v3845
    %vm3852 = vweird.f32 %v3846
    %vm3853 = vmor %vm3851, %vm3852
    %v3854 = vsel %vm3853, %v3846, %v3850
    %v3855 = vand.u32 2147483647, %v3845
    %vm3856 = vcmp.eq.f32.partialorder %v3855, 8.507059e+37
    %v3857 = vand.u32 %v3845, 2147483648
    %v3858 = vor.u32 1.1754944e-38, %v3857
    %v3859 = vsel %vm3856, %v3858, %v3854
    %v3860 = vmul.f32 1.0, %v3859
    %v3861 = vtanh.pop %v3821
    %v3862 = vxor.u32 %v3822, 2147483648
    %v3863 = vmul.f32 %v3862, 1.442695
    %v3864 = vpow.pop %v3863
    %v3865 = vadd.f32 %v3864, 1.0
    %v3866 = vrcp.pop %v3865
    %v3867 = vmul.f32 %v3865, %v3866
    %v3868 = vsub.f32 1.0, %v3867
    %v3869 = vmul.f32 %v3866, %v3868
    %v3870 = vadd.f32 %v3866, %v3869
    %vm3871 = vweird.f32 %v3865
    %vm3872 = vweird.f32 %v3866
    %vm3873 = vmor %vm3871, %vm3872
    %v3874 = vsel %vm3873, %v3866, %v3870
    %v3875 = vand.u32 2147483647, %v3865
    %vm3876 = vcmp.eq.f32.partialorder %v3875, 8.507059e+37
    %v3877 = vand.u32 %v3865, 2147483648
    %v3878 = vor.u32 1.1754944e-38, %v3877
    %v3879 = vsel %vm3876, %v3878, %v3874
    %v3880 = vmul.f32 1.0, %v3879
    %v3881 = vmul.f32 %v3860, 0.0
    %v3882 = vmul.f32 %v3841, %v3861
    %v3883 = vadd.f32 %v3881, %v3882
    %v3884 = vtanh.pop %v3883
    %v3885 = vmul.f32 %v3880, %v3884
    %3886 = vmatpush.msra.mxu0 %v3735
    %3887 = vmatpush.msra.mxu0 %v3731
    %3888 = vmatpush.msra.mxu0 %v3727
    %3889 = vmatpush.msra.mxu0 %v3723
    %3890 = vmatpush.msra.mxu0 %v3719
    %3891 = vmatpush.msra.mxu0 %v3715
    %3892 = vmatpush.msra.mxu0 %v3711
    %3893 = vmatpush.msra.mxu0 %v3707
    %3894 = vmatpush.msra.mxu0 %v3703
    %3895 = vmatpush.msra.mxu0 %v3699
    %3896 = vmatpush.msra.mxu0 %v3695
    %3897 = vmatpush.msra.mxu0 %v3691
    %3898 = vmatpush.msra.mxu0 %v3687
    %3899 = vmatpush.msra.mxu0 %v3683
    %3900 = vmatpush.msra.mxu0 %v3679
    %3901 = vmatpush.msra.mxu0 %v3675
    %3902 = vmatmul.f32.gmra.mxu0 0.0
    %v3903 = vpop.f32.mrf.mxu0
    %v3904 = vadd.f32 0.0, %v3903
    %3905 = vdwg.mxu0
    %3906 = vmatpush.msra.mxu0 %v3736
    %3907 = vmatpush.msra.mxu0 %v3732
    %3908 = vmatpush.msra.mxu0 %v3728
    %3909 = vmatpush.msra.mxu0 %v3724
    %3910 = vmatpush.msra.mxu0 %v3720
    %3911 = vmatpush.msra.mxu0 %v3716
    %3912 = vmatpush.msra.mxu0 %v3712
    %3913 = vmatpush.msra.mxu0 %v3708
    %3914 = vmatpush.msra.mxu0 %v3704
    %3915 = vmatpush.msra.mxu0 %v3700
    %3916 = vmatpush.msra.mxu0 %v3696
    %3917 = vmatpush.msra.mxu0 %v3692
    %3918 = vmatpush.msra.mxu0 %v3688
    %3919 = vmatpush.msra.mxu0 %v3684
    %3920 = vmatpush.msra.mxu0 %v3680
    %3921 = vmatpush.msra.mxu0 %v3676
    %3922 = vmatmul.f32.gmra.mxu0 0.0
    %v3923 = vpop.f32.mrf.mxu0
    %v3924 = vadd.f32 0.0, %v3923
    %3925 = vdwg.mxu0
    %3926 = vmatpush.msra.mxu0 %v3737
    %3927 = vmatpush.msra.mxu0 %v3733
    %3928 = vmatpush.msra.mxu0 %v3729
    %3929 = vmatpush.msra.mxu0 %v3725
    %3930 = vmatpush.msra.mxu0 %v3721
    %3931 = vmatpush.msra.mxu0 %v3717
    %3932 = vmatpush.msra.mxu0 %v3713
    %3933 = vmatpush.msra.mxu0 %v3709
    %3934 = vmatpush.msra.mxu0 %v3705
    %3935 = vmatpush.msra.mxu0 %v3701
    %3936 = vmatpush.msra.mxu0 %v3697
    %3937 = vmatpush.msra.mxu0 %v3693
    %3938 = vmatpush.msra.mxu0 %v3689
    %3939 = vmatpush.msra.mxu0 %v3685
    %3940 = vmatpush.msra.mxu0 %v3681
    %3941 = vmatpush.msra.mxu0 %v3677
    %3942 = vmatmul.f32.gmra.mxu0 0.0
    %v3943 = vpop.f32.mrf.mxu0
    %v3944 = vadd.f32 0.0, %v3943
    %3945 = vdwg.mxu0
    %3946 = vmatpush.msra.mxu0 %v3738
    %3947 = vmatpush.msra.mxu0 %v3734
    %3948 = vmatpush.msra.mxu0 %v3730
    %3949 = vmatpush.msra.mxu0 %v3726
    %3950 = vmatpush.msra.mxu0 %v3722
    %3951 = vmatpush.msra.mxu0 %v3718
    %3952 = vmatpush.msra.mxu0 %v3714
    %3953 = vmatpush.msra.mxu0 %v3710
    %3954 = vmatpush.msra.mxu0 %v3706
    %3955 = vmatpush.msra.mxu0 %v3702
    %3956 = vmatpush.msra.mxu0 %v3698
    %3957 = vmatpush.msra.mxu0 %v3694
    %3958 = vmatpush.msra.mxu0 %v3690
    %3959 = vmatpush.msra.mxu0 %v3686
    %3960 = vmatpush.msra.mxu0 %v3682
    %3961 = vmatpush.msra.mxu0 %v3678
    %3962 = vmatmul.f32.gmra.mxu0 0.0
    %v3963 = vpop.f32.mrf.mxu0
    %v3964 = vadd.f32 0.0, %v3963
    %3965 = vdwg.mxu0
    %v3966 = vadd.f32 %v3537, %v3904
    %v3967 = vadd.f32 %v3560, %v3924
    %v3968 = vadd.f32 %v3583, %v3944
    %v3969 = vadd.f32 %v3606, %v3964
    %v3970 = vxor.u32 %v3966, 2147483648
    %v3971 = vmul.f32 %v3970, 1.442695
    %v3972 = vpow.pop %v3971
    %v3973 = vadd.f32 %v3972, 1.0
    %v3974 = vrcp.pop %v3973
    %v3975 = vmul.f32 %v3973, %v3974
    %v3976 = vsub.f32 1.0, %v3975
    %v3977 = vmul.f32 %v3974, %v3976
    %v3978 = vadd.f32 %v3974, %v3977
    %vm3979 = vweird.f32 %v3973
    %vm3980 = vweird.f32 %v3974
    %vm3981 = vmor %vm3979, %vm3980
    %v3982 = vsel %vm3981, %v3974, %v3978
    %v3983 = vand.u32 2147483647, %v3973
    %vm3984 = vcmp.eq.f32.partialorder %v3983, 8.507059e+37
    %v3985 = vand.u32 %v3973, 2147483648
    %v3986 = vor.u32 1.1754944e-38, %v3985
    %v3987 = vsel %vm3984, %v3986, %v3982
    %v3988 = vmul.f32 1.0, %v3987
    %v3989 = vxor.u32 %v3967, 2147483648
    %v3990 = vmul.f32 %v3989, 1.442695
    %v3991 = vpow.pop %v3990
    %v3992 = vadd.f32 %v3991, 1.0
    %v3993 = vrcp.pop %v3992
    %v3994 = vmul.f32 %v3992, %v3993
    %v3995 = vsub.f32 1.0, %v3994
    %v3996 = vmul.f32 %v3993, %v3995
    %v3997 = vadd.f32 %v3993, %v3996
    %vm3998 = vweird.f32 %v3992
    %vm3999 = vweird.f32 %v3993
    %vm4000 = vmor %vm3998, %vm3999
    %v4001 = vsel %vm4000, %v3993, %v3997
    %v4002 = vand.u32 2147483647, %v3992
    %vm4003 = vcmp.eq.f32.partialorder %v4002, 8.507059e+37
    %v4004 = vand.u32 %v3992, 2147483648
    %v4005 = vor.u32 1.1754944e-38, %v4004
    %v4006 = vsel %vm4003, %v4005, %v4001
    %v4007 = vmul.f32 1.0, %v4006
    %v4008 = vtanh.pop %v3968
    %v4009 = vxor.u32 %v3969, 2147483648
    %v4010 = vmul.f32 %v4009, 1.442695
    %v4011 = vpow.pop %v4010
    %v4012 = vadd.f32 %v4011, 1.0
    %v4013 = vrcp.pop %v4012
    %v4014 = vmul.f32 %v4012, %v4013
    %v4015 = vsub.f32 1.0, %v4014
    %v4016 = vmul.f32 %v4013, %v4015
    %v4017 = vadd.f32 %v4013, %v4016
    %vm4018 = vweird.f32 %v4012
    %vm4019 = vweird.f32 %v4013
    %vm4020 = vmor %vm4018, %vm4019
    %v4021 = vsel %vm4020, %v4013, %v4017
    %v4022 = vand.u32 2147483647, %v4012
    %vm4023 = vcmp.eq.f32.partialorder %v4022, 8.507059e+37
    %v4024 = vand.u32 %v4012, 2147483648
    %v4025 = vor.u32 1.1754944e-38, %v4024
    %v4026 = vsel %vm4023, %v4025, %v4021
    %v4027 = vmul.f32 1.0, %v4026
    %v4028 = vmul.f32 %v4007, 0.0
    %v4029 = vmul.f32 %v3988, %v4008
    %v4030 = vadd.f32 %v4028, %v4029
    %v4031 = vtanh.pop %v4030
    %v4032 = vmul.f32 %v4027, %v4031
    %v4033 = vadd.f32 %v3885, 0.0
    %v4034 = vadd.f32 %v4033, %v4032
    %v4035 = vadd.f32 %v4034, %v219
    %4036 = vmatpush.msra.mxu0 %v3671
    %4037 = vmatpush.msra.mxu0 %v3667
    %4038 = vmatpush.msra.mxu0 %v3663
    %4039 = vmatpush.msra.mxu0 %v3659
    %4040 = vmatpush.msra.mxu0 %v3655
    %4041 = vmatpush.msra.mxu0 %v3651
    %4042 = vmatpush.msra.mxu0 %v3647
    %4043 = vmatpush.msra.mxu0 %v3643
    %4044 = vmatpush.msra.mxu0 %v3639
    %4045 = vmatpush.msra.mxu0 %v3635
    %4046 = vmatpush.msra.mxu0 %v3631
    %4047 = vmatpush.msra.mxu0 %v3627
    %4048 = vmatpush.msra.mxu0 %v3623
    %4049 = vmatpush.msra.mxu0 %v3619
    %4050 = vmatpush.msra.mxu0 %v3615
    %4051 = vmatpush.msra.mxu0 %v3611
    %4052 = vmatmul.f32.gmra.mxu0 %v3885
    %v4053 = vpop.f32.mrf.mxu0
    %v4054 = vadd.f32 0.0, %v4053
    %4055 = vdwg.mxu0
    %4056 = vmatpush.msra.mxu0 %v3672
    %4057 = vmatpush.msra.mxu0 %v3668
    %4058 = vmatpush.msra.mxu0 %v3664
    %4059 = vmatpush.msra.mxu0 %v3660
    %4060 = vmatpush.msra.mxu0 %v3656
    %4061 = vmatpush.msra.mxu0 %v3652
    %4062 = vmatpush.msra.mxu0 %v3648
    %4063 = vmatpush.msra.mxu0 %v3644
    %4064 = vmatpush.msra.mxu0 %v3640
    %4065 = vmatpush.msra.mxu0 %v3636
    %4066 = vmatpush.msra.mxu0 %v3632
    %4067 = vmatpush.msra.mxu0 %v3628
    %4068 = vmatpush.msra.mxu0 %v3624
    %4069 = vmatpush.msra.mxu0 %v3620
    %4070 = vmatpush.msra.mxu0 %v3616
    %4071 = vmatpush.msra.mxu0 %v3612
    %4072 = vmatmul.f32.gmra.mxu0 %v3885
    %v4073 = vpop.f32.mrf.mxu0
    %v4074 = vadd.f32 0.0, %v4073
    %4075 = vdwg.mxu0
    %4076 = vmatpush.msra.mxu0 %v3673
    %4077 = vmatpush.msra.mxu0 %v3669
    %4078 = vmatpush.msra.mxu0 %v3665
    %4079 = vmatpush.msra.mxu0 %v3661
    %4080 = vmatpush.msra.mxu0 %v3657
    %4081 = vmatpush.msra.mxu0 %v3653
    %4082 = vmatpush.msra.mxu0 %v3649
    %4083 = vmatpush.msra.mxu0 %v3645
    %4084 = vmatpush.msra.mxu0 %v3641
    %4085 = vmatpush.msra.mxu0 %v3637
    %4086 = vmatpush.msra.mxu0 %v3633
    %4087 = vmatpush.msra.mxu0 %v3629
    %4088 = vmatpush.msra.mxu0 %v3625
    %4089 = vmatpush.msra.mxu0 %v3621
    %4090 = vmatpush.msra.mxu0 %v3617
    %4091 = vmatpush.msra.mxu0 %v3613
    %4092 = vmatmul.f32.gmra.mxu0 %v3885
    %v4093 = vpop.f32.mrf.mxu0
    %v4094 = vadd.f32 0.0, %v4093
    %4095 = vdwg.mxu0
    %4096 = vmatpush.msra.mxu0 %v3674
    %4097 = vmatpush.msra.mxu0 %v3670
    %4098 = vmatpush.msra.mxu0 %v3666
    %4099 = vmatpush.msra.mxu0 %v3662
    %4100 = vmatpush.msra.mxu0 %v3658
    %4101 = vmatpush.msra.mxu0 %v3654
    %4102 = vmatpush.msra.mxu0 %v3650
    %4103 = vmatpush.msra.mxu0 %v3646
    %4104 = vmatpush.msra.mxu0 %v3642
    %4105 = vmatpush.msra.mxu0 %v3638
    %4106 = vmatpush.msra.mxu0 %v3634
    %4107 = vmatpush.msra.mxu0 %v3630
    %4108 = vmatpush.msra.mxu0 %v3626
    %4109 = vmatpush.msra.mxu0 %v3622
    %4110 = vmatpush.msra.mxu0 %v3618
    %4111 = vmatpush.msra.mxu0 %v3614
    %4112 = vmatmul.f32.gmra.mxu0 %v3885
    %v4113 = vpop.f32.mrf.mxu0
    %v4114 = vadd.f32 0.0, %v4113
    %4115 = vdwg.mxu0
    %v4120 = vrot.slane %v4054, 6
    %v4121 = vrot.slane %v4074, 6
    %v4122 = vrot.slane %v4094, 6
    %v4123 = vrot.slane %v4114, 6
    %v4128 = vadd.f32 %v3371, %v4120
    %v4129 = vadd.f32 %v3394, %v4121
    %v4130 = vadd.f32 %v3417, %v4122
    %v4131 = vadd.f32 %v3440, %v4123
    %v4132 = vxor.u32 %v4128, 2147483648
    %v4133 = vmul.f32 %v4132, 1.442695
    %v4134 = vpow.pop %v4133
    %v4135 = vadd.f32 %v4134, 1.0
    %v4136 = vrcp.pop %v4135
    %v4137 = vmul.f32 %v4135, %v4136
    %v4138 = vsub.f32 1.0, %v4137
    %v4139 = vmul.f32 %v4136, %v4138
    %v4140 = vadd.f32 %v4136, %v4139
    %vm4141 = vweird.f32 %v4135
    %vm4142 = vweird.f32 %v4136
    %vm4143 = vmor %vm4141, %vm4142
    %v4144 = vsel %vm4143, %v4136, %v4140
    %v4145 = vand.u32 2147483647, %v4135
    %vm4146 = vcmp.eq.f32.partialorder %v4145, 8.507059e+37
    %v4147 = vand.u32 %v4135, 2147483648
    %v4148 = vor.u32 1.1754944e-38, %v4147
    %v4149 = vsel %vm4146, %v4148, %v4144
    %v4150 = vmul.f32 1.0, %v4149
    %v4151 = vxor.u32 %v4129, 2147483648
    %v4152 = vmul.f32 %v4151, 1.442695
    %v4153 = vpow.pop %v4152
    %v4154 = vadd.f32 %v4153, 1.0
    %v4155 = vrcp.pop %v4154
    %v4156 = vmul.f32 %v4154, %v4155
    %v4157 = vsub.f32 1.0, %v4156
    %v4158 = vmul.f32 %v4155, %v4157
    %v4159 = vadd.f32 %v4155, %v4158
    %vm4160 = vweird.f32 %v4154
    %vm4161 = vweird.f32 %v4155
    %vm4162 = vmor %vm4160, %vm4161
    %v4163 = vsel %vm4162, %v4155, %v4159
    %v4164 = vand.u32 2147483647, %v4154
    %vm4165 = vcmp.eq.f32.partialorder %v4164, 8.507059e+37
    %v4166 = vand.u32 %v4154, 2147483648
    %v4167 = vor.u32 1.1754944e-38, %v4166
    %v4168 = vsel %vm4165, %v4167, %v4163
    %v4169 = vmul.f32 1.0, %v4168
    %v4170 = vtanh.pop %v4130
    %v4171 = vxor.u32 %v4131, 2147483648
    %v4172 = vmul.f32 %v4171, 1.442695
    %v4173 = vpow.pop %v4172
    %v4174 = vadd.f32 %v4173, 1.0
    %v4175 = vrcp.pop %v4174
    %v4176 = vmul.f32 %v4174, %v4175
    %v4177 = vsub.f32 1.0, %v4176
    %v4178 = vmul.f32 %v4175, %v4177
    %v4179 = vadd.f32 %v4175, %v4178
    %vm4180 = vweird.f32 %v4174
    %vm4181 = vweird.f32 %v4175
    %vm4182 = vmor %vm4180, %vm4181
    %v4183 = vsel %vm4182, %v4175, %v4179
    %v4184 = vand.u32 2147483647, %v4174
    %vm4185 = vcmp.eq.f32.partialorder %v4184, 8.507059e+37
    %v4186 = vand.u32 %v4174, 2147483648
    %v4187 = vor.u32 1.1754944e-38, %v4186
    %v4188 = vsel %vm4185, %v4187, %v4183
    %v4189 = vmul.f32 1.0, %v4188
    %v4191 = vrot.slane %v3883, 6
    %v4193 = vmul.f32 %v4169, %v4191
    %v4194 = vmul.f32 %v4150, %v4170
    %v4195 = vadd.f32 %v4193, %v4194
    %v4196 = vtanh.pop %v4195
    %v4197 = vmul.f32 %v4189, %v4196
    %4198 = vmatpush.msra.mxu0 %v3735
    %4199 = vmatpush.msra.mxu0 %v3731
    %4200 = vmatpush.msra.mxu0 %v3727
    %4201 = vmatpush.msra.mxu0 %v3723
    %4202 = vmatpush.msra.mxu0 %v3719
    %4203 = vmatpush.msra.mxu0 %v3715
    %4204 = vmatpush.msra.mxu0 %v3711
    %4205 = vmatpush.msra.mxu0 %v3707
    %4206 = vmatpush.msra.mxu0 %v3703
    %4207 = vmatpush.msra.mxu0 %v3699
    %4208 = vmatpush.msra.mxu0 %v3695
    %4209 = vmatpush.msra.mxu0 %v3691
    %4210 = vmatpush.msra.mxu0 %v3687
    %4211 = vmatpush.msra.mxu0 %v3683
    %4212 = vmatpush.msra.mxu0 %v3679
    %4213 = vmatpush.msra.mxu0 %v3675
    %4214 = vmatmul.f32.gmra.mxu0 %v4032
    %v4215 = vpop.f32.mrf.mxu0
    %v4216 = vadd.f32 0.0, %v4215
    %4217 = vdwg.mxu0
    %4218 = vmatpush.msra.mxu0 %v3736
    %4219 = vmatpush.msra.mxu0 %v3732
    %4220 = vmatpush.msra.mxu0 %v3728
    %4221 = vmatpush.msra.mxu0 %v3724
    %4222 = vmatpush.msra.mxu0 %v3720
    %4223 = vmatpush.msra.mxu0 %v3716
    %4224 = vmatpush.msra.mxu0 %v3712
    %4225 = vmatpush.msra.mxu0 %v3708
    %4226 = vmatpush.msra.mxu0 %v3704
    %4227 = vmatpush.msra.mxu0 %v3700
    %4228 = vmatpush.msra.mxu0 %v3696
    %4229 = vmatpush.msra.mxu0 %v3692
    %4230 = vmatpush.msra.mxu0 %v3688
    %4231 = vmatpush.msra.mxu0 %v3684
    %4232 = vmatpush.msra.mxu0 %v3680
    %4233 = vmatpush.msra.mxu0 %v3676
    %4234 = vmatmul.f32.gmra.mxu0 %v4032
    %v4235 = vpop.f32.mrf.mxu0
    %v4236 = vadd.f32 0.0, %v4235
    %4237 = vdwg.mxu0
    %4238 = vmatpush.msra.mxu0 %v3737
    %4239 = vmatpush.msra.mxu0 %v3733
    %4240 = vmatpush.msra.mxu0 %v3729
    %4241 = vmatpush.msra.mxu0 %v3725
    %4242 = vmatpush.msra.mxu0 %v3721
    %4243 = vmatpush.msra.mxu0 %v3717
    %4244 = vmatpush.msra.mxu0 %v3713
    %4245 = vmatpush.msra.mxu0 %v3709
    %4246 = vmatpush.msra.mxu0 %v3705
    %4247 = vmatpush.msra.mxu0 %v3701
    %4248 = vmatpush.msra.mxu0 %v3697
    %4249 = vmatpush.msra.mxu0 %v3693
    %4250 = vmatpush.msra.mxu0 %v3689
    %4251 = vmatpush.msra.mxu0 %v3685
    %4252 = vmatpush.msra.mxu0 %v3681
    %4253 = vmatpush.msra.mxu0 %v3677
    %4254 = vmatmul.f32.gmra.mxu0 %v4032
    %v4255 = vpop.f32.mrf.mxu0
    %v4256 = vadd.f32 0.0, %v4255
    %4257 = vdwg.mxu0
    %4258 = vmatpush.msra.mxu0 %v3738
    %4259 = vmatpush.msra.mxu0 %v3734
    %4260 = vmatpush.msra.mxu0 %v3730
    %4261 = vmatpush.msra.mxu0 %v3726
    %4262 = vmatpush.msra.mxu0 %v3722
    %4263 = vmatpush.msra.mxu0 %v3718
    %4264 = vmatpush.msra.mxu0 %v3714
    %4265 = vmatpush.msra.mxu0 %v3710
    %4266 = vmatpush.msra.mxu0 %v3706
    %4267 = vmatpush.msra.mxu0 %v3702
    %4268 = vmatpush.msra.mxu0 %v3698
    %4269 = vmatpush.msra.mxu0 %v3694
    %4270 = vmatpush.msra.mxu0 %v3690
    %4271 = vmatpush.msra.mxu0 %v3686
    %4272 = vmatpush.msra.mxu0 %v3682
    %4273 = vmatpush.msra.mxu0 %v3678
    %4274 = vmatmul.f32.gmra.mxu0 %v4032
    %v4275 = vpop.f32.mrf.mxu0
    %v4276 = vadd.f32 0.0, %v4275
    %4277 = vdwg.mxu0
    %v4282 = vrot.slane %v4216, 6
    %v4283 = vrot.slane %v4236, 6
    %v4284 = vrot.slane %v4256, 6
    %v4285 = vrot.slane %v4276, 6
    %v4290 = vadd.f32 %v3537, %v4282
    %v4291 = vadd.f32 %v3560, %v4283
    %v4292 = vadd.f32 %v3583, %v4284
    %v4293 = vadd.f32 %v3606, %v4285
    %v4294 = vxor.u32 %v4290, 2147483648
    %v4295 = vmul.f32 %v4294, 1.442695
    %v4296 = vpow.pop %v4295
    %v4297 = vadd.f32 %v4296, 1.0
    %v4298 = vrcp.pop %v4297
    %v4299 = vmul.f32 %v4297, %v4298
    %v4300 = vsub.f32 1.0, %v4299
    %v4301 = vmul.f32 %v4298, %v4300
    %v4302 = vadd.f32 %v4298, %v4301
    %vm4303 = vweird.f32 %v4297
    %vm4304 = vweird.f32 %v4298
    %vm4305 = vmor %vm4303, %vm4304
    %v4306 = vsel %vm4305, %v4298, %v4302
    %v4307 = vand.u32 2147483647, %v4297
    %vm4308 = vcmp.eq.f32.partialorder %v4307, 8.507059e+37
    %v4309 = vand.u32 %v4297, 2147483648
    %v4310 = vor.u32 1.1754944e-38, %v4309
    %v4311 = vsel %vm4308, %v4310, %v4306
    %v4312 = vmul.f32 1.0, %v4311
    %v4313 = vxor.u32 %v4291, 2147483648
    %v4314 = vmul.f32 %v4313, 1.442695
    %v4315 = vpow.pop %v4314
    %v4316 = vadd.f32 %v4315, 1.0
    %v4317 = vrcp.pop %v4316
    %v4318 = vmul.f32 %v4316, %v4317
    %v4319 = vsub.f32 1.0, %v4318
    %v4320 = vmul.f32 %v4317, %v4319
    %v4321 = vadd.f32 %v4317, %v4320
    %vm4322 = vweird.f32 %v4316
    %vm4323 = vweird.f32 %v4317
    %vm4324 = vmor %vm4322, %vm4323
    %v4325 = vsel %vm4324, %v4317, %v4321
    %v4326 = vand.u32 2147483647, %v4316
    %vm4327 = vcmp.eq.f32.partialorder %v4326, 8.507059e+37
    %v4328 = vand.u32 %v4316, 2147483648
    %v4329 = vor.u32 1.1754944e-38, %v4328
    %v4330 = vsel %vm4327, %v4329, %v4325
    %v4331 = vmul.f32 1.0, %v4330
    %v4332 = vtanh.pop %v4292
    %v4333 = vxor.u32 %v4293, 2147483648
    %v4334 = vmul.f32 %v4333, 1.442695
    %v4335 = vpow.pop %v4334
    %v4336 = vadd.f32 %v4335, 1.0
    %v4337 = vrcp.pop %v4336
    %v4338 = vmul.f32 %v4336, %v4337
    %v4339 = vsub.f32 1.0, %v4338
    %v4340 = vmul.f32 %v4337, %v4339
    %v4341 = vadd.f32 %v4337, %v4340
    %vm4342 = vweird.f32 %v4336
    %vm4343 = vweird.f32 %v4337
    %vm4344 = vmor %vm4342, %vm4343
    %v4345 = vsel %vm4344, %v4337, %v4341
    %v4346 = vand.u32 2147483647, %v4336
    %vm4347 = vcmp.eq.f32.partialorder %v4346, 8.507059e+37
    %v4348 = vand.u32 %v4336, 2147483648
    %v4349 = vor.u32 1.1754944e-38, %v4348
    %v4350 = vsel %vm4347, %v4349, %v4345
    %v4351 = vmul.f32 1.0, %v4350
    %v4353 = vrot.slane %v4030, 6
    %v4355 = vmul.f32 %v4331, %v4353
    %v4356 = vmul.f32 %v4312, %v4332
    %v4357 = vadd.f32 %v4355, %v4356
    %v4358 = vtanh.pop %v4357
    %v4359 = vmul.f32 %v4351, %v4358
    %v4361 = vrot.slane %v4197, 2
    %v4363 = vadd.f32 %v4035, %v4361
    %v4365 = vrot.slane %v4359, 2
    %v4367 = vadd.f32 %v4363, %v4365
    %v4369 = vrot.slane %v219, 2
    %v4371 = vadd.f32 %v4367, %v4369
    %4372 = vmatpush.msra.mxu0 %v3671
    %4373 = vmatpush.msra.mxu0 %v3667
    %4374 = vmatpush.msra.mxu0 %v3663
    %4375 = vmatpush.msra.mxu0 %v3659
    %4376 = vmatpush.msra.mxu0 %v3655
    %4377 = vmatpush.msra.mxu0 %v3651
    %4378 = vmatpush.msra.mxu0 %v3647
    %4379 = vmatpush.msra.mxu0 %v3643
    %4380 = vmatpush.msra.mxu0 %v3639
    %4381 = vmatpush.msra.mxu0 %v3635
    %4382 = vmatpush.msra.mxu0 %v3631
    %4383 = vmatpush.msra.mxu0 %v3627
    %4384 = vmatpush.msra.mxu0 %v3623
    %4385 = vmatpush.msra.mxu0 %v3619
    %4386 = vmatpush.msra.mxu0 %v3615
    %4387 = vmatpush.msra.mxu0 %v3611
    %4388 = vmatmul.f32.gmra.mxu0 %v4361
    %v4389 = vpop.f32.mrf.mxu0
    %v4390 = vadd.f32 0.0, %v4389
    %4391 = vdwg.mxu0
    %4392 = vmatpush.msra.mxu0 %v3672
    %4393 = vmatpush.msra.mxu0 %v3668
    %4394 = vmatpush.msra.mxu0 %v3664
    %4395 = vmatpush.msra.mxu0 %v3660
    %4396 = vmatpush.msra.mxu0 %v3656
    %4397 = vmatpush.msra.mxu0 %v3652
    %4398 = vmatpush.msra.mxu0 %v3648
    %4399 = vmatpush.msra.mxu0 %v3644
    %4400 = vmatpush.msra.mxu0 %v3640
    %4401 = vmatpush.msra.mxu0 %v3636
    %4402 = vmatpush.msra.mxu0 %v3632
    %4403 = vmatpush.msra.mxu0 %v3628
    %4404 = vmatpush.msra.mxu0 %v3624
    %4405 = vmatpush.msra.mxu0 %v3620
    %4406 = vmatpush.msra.mxu0 %v3616
    %4407 = vmatpush.msra.mxu0 %v3612
    %4408 = vmatmul.f32.gmra.mxu0 %v4361
    %v4409 = vpop.f32.mrf.mxu0
    %v4410 = vadd.f32 0.0, %v4409
    %4411 = vdwg.mxu0
    %4412 = vmatpush.msra.mxu0 %v3673
    %4413 = vmatpush.msra.mxu0 %v3669
    %4414 = vmatpush.msra.mxu0 %v3665
    %4415 = vmatpush.msra.mxu0 %v3661
    %4416 = vmatpush.msra.mxu0 %v3657
    %4417 = vmatpush.msra.mxu0 %v3653
    %4418 = vmatpush.msra.mxu0 %v3649
    %4419 = vmatpush.msra.mxu0 %v3645
    %4420 = vmatpush.msra.mxu0 %v3641
    %4421 = vmatpush.msra.mxu0 %v3637
    %4422 = vmatpush.msra.mxu0 %v3633
    %4423 = vmatpush.msra.mxu0 %v3629
    %4424 = vmatpush.msra.mxu0 %v3625
    %4425 = vmatpush.msra.mxu0 %v3621
    %4426 = vmatpush.msra.mxu0 %v3617
    %4427 = vmatpush.msra.mxu0 %v3613
    %4428 = vmatmul.f32.gmra.mxu0 %v4361
    %v4429 = vpop.f32.mrf.mxu0
    %v4430 = vadd.f32 0.0, %v4429
    %4431 = vdwg.mxu0
    %4432 = vmatpush.msra.mxu0 %v3674
    %4433 = vmatpush.msra.mxu0 %v3670
    %4434 = vmatpush.msra.mxu0 %v3666
    %4435 = vmatpush.msra.mxu0 %v3662
    %4436 = vmatpush.msra.mxu0 %v3658
    %4437 = vmatpush.msra.mxu0 %v3654
    %4438 = vmatpush.msra.mxu0 %v3650
    %4439 = vmatpush.msra.mxu0 %v3646
    %4440 = vmatpush.msra.mxu0 %v3642
    %4441 = vmatpush.msra.mxu0 %v3638
    %4442 = vmatpush.msra.mxu0 %v3634
    %4443 = vmatpush.msra.mxu0 %v3630
    %4444 = vmatpush.msra.mxu0 %v3626
    %4445 = vmatpush.msra.mxu0 %v3622
    %4446 = vmatpush.msra.mxu0 %v3618
    %4447 = vmatpush.msra.mxu0 %v3614
    %4448 = vmatmul.f32.gmra.mxu0 %v4361
    %v4449 = vpop.f32.mrf.mxu0
    %v4450 = vadd.f32 0.0, %v4449
    %4451 = vdwg.mxu0
    %v4456 = vrot.slane %v4390, 4
    %v4457 = vrot.slane %v4410, 4
    %v4458 = vrot.slane %v4430, 4
    %v4459 = vrot.slane %v4450, 4
    %v4464 = vadd.f32 %v3371, %v4456
    %v4465 = vadd.f32 %v3394, %v4457
    %v4466 = vadd.f32 %v3417, %v4458
    %v4467 = vadd.f32 %v3440, %v4459
    %v4468 = vxor.u32 %v4464, 2147483648
    %v4469 = vmul.f32 %v4468, 1.442695
    %v4470 = vpow.pop %v4469
    %v4471 = vadd.f32 %v4470, 1.0
    %v4472 = vrcp.pop %v4471
    %v4473 = vmul.f32 %v4471, %v4472
    %v4474 = vsub.f32 1.0, %v4473
    %v4475 = vmul.f32 %v4472, %v4474
    %v4476 = vadd.f32 %v4472, %v4475
    %vm4477 = vweird.f32 %v4471
    %vm4478 = vweird.f32 %v4472
    %vm4479 = vmor %vm4477, %vm4478
    %v4480 = vsel %vm4479, %v4472, %v4476
    %v4481 = vand.u32 2147483647, %v4471
    %vm4482 = vcmp.eq.f32.partialorder %v4481, 8.507059e+37
    %v4483 = vand.u32 %v4471, 2147483648
    %v4484 = vor.u32 1.1754944e-38, %v4483
    %v4485 = vsel %vm4482, %v4484, %v4480
    %v4486 = vmul.f32 1.0, %v4485
    %v4487 = vxor.u32 %v4465, 2147483648
    %v4488 = vmul.f32 %v4487, 1.442695
    %v4489 = vpow.pop %v4488
    %v4490 = vadd.f32 %v4489, 1.0
    %v4491 = vrcp.pop %v4490
    %v4492 = vmul.f32 %v4490, %v4491
    %v4493 = vsub.f32 1.0, %v4492
    %v4494 = vmul.f32 %v4491, %v4493
    %v4495 = vadd.f32 %v4491, %v4494
    %vm4496 = vweird.f32 %v4490
    %vm4497 = vweird.f32 %v4491
    %vm4498 = vmor %vm4496, %vm4497
    %v4499 = vsel %vm4498, %v4491, %v4495
    %v4500 = vand.u32 2147483647, %v4490
    %vm4501 = vcmp.eq.f32.partialorder %v4500, 8.507059e+37
    %v4502 = vand.u32 %v4490, 2147483648
    %v4503 = vor.u32 1.1754944e-38, %v4502
    %v4504 = vsel %vm4501, %v4503, %v4499
    %v4505 = vmul.f32 1.0, %v4504
    %v4506 = vtanh.pop %v4466
    %v4507 = vxor.u32 %v4467, 2147483648
    %v4508 = vmul.f32 %v4507, 1.442695
    %v4509 = vpow.pop %v4508
    %v4510 = vadd.f32 %v4509, 1.0
    %v4511 = vrcp.pop %v4510
    %v4512 = vmul.f32 %v4510, %v4511
    %v4513 = vsub.f32 1.0, %v4512
    %v4514 = vmul.f32 %v4511, %v4513
    %v4515 = vadd.f32 %v4511, %v4514
    %vm4516 = vweird.f32 %v4510
    %vm4517 = vweird.f32 %v4511
    %vm4518 = vmor %vm4516, %vm4517
    %v4519 = vsel %vm4518, %v4511, %v4515
    %v4520 = vand.u32 2147483647, %v4510
    %vm4521 = vcmp.eq.f32.partialorder %v4520, 8.507059e+37
    %v4522 = vand.u32 %v4510, 2147483648
    %v4523 = vor.u32 1.1754944e-38, %v4522
    %v4524 = vsel %vm4521, %v4523, %v4519
    %v4525 = vmul.f32 1.0, %v4524
    %v4527 = vrot.slane %v4195, 6
    %v4529 = vmul.f32 %v4505, %v4527
    %v4530 = vmul.f32 %v4486, %v4506
    %v4531 = vadd.f32 %v4529, %v4530
    %v4532 = vtanh.pop %v4531
    %v4533 = vmul.f32 %v4525, %v4532
    %4534 = vmatpush.msra.mxu0 %v3735
    %4535 = vmatpush.msra.mxu0 %v3731
    %4536 = vmatpush.msra.mxu0 %v3727
    %4537 = vmatpush.msra.mxu0 %v3723
    %4538 = vmatpush.msra.mxu0 %v3719
    %4539 = vmatpush.msra.mxu0 %v3715
    %4540 = vmatpush.msra.mxu0 %v3711
    %4541 = vmatpush.msra.mxu0 %v3707
    %4542 = vmatpush.msra.mxu0 %v3703
    %4543 = vmatpush.msra.mxu0 %v3699
    %4544 = vmatpush.msra.mxu0 %v3695
    %4545 = vmatpush.msra.mxu0 %v3691
    %4546 = vmatpush.msra.mxu0 %v3687
    %4547 = vmatpush.msra.mxu0 %v3683
    %4548 = vmatpush.msra.mxu0 %v3679
    %4549 = vmatpush.msra.mxu0 %v3675
    %4550 = vmatmul.f32.gmra.mxu0 %v4365
    %v4551 = vpop.f32.mrf.mxu0
    %v4552 = vadd.f32 0.0, %v4551
    %4553 = vdwg.mxu0
    %4554 = vmatpush.msra.mxu0 %v3736
    %4555 = vmatpush.msra.mxu0 %v3732
    %4556 = vmatpush.msra.mxu0 %v3728
    %4557 = vmatpush.msra.mxu0 %v3724
    %4558 = vmatpush.msra.mxu0 %v3720
    %4559 = vmatpush.msra.mxu0 %v3716
    %4560 = vmatpush.msra.mxu0 %v3712
    %4561 = vmatpush.msra.mxu0 %v3708
    %4562 = vmatpush.msra.mxu0 %v3704
    %4563 = vmatpush.msra.mxu0 %v3700
    %4564 = vmatpush.msra.mxu0 %v3696
    %4565 = vmatpush.msra.mxu0 %v3692
    %4566 = vmatpush.msra.mxu0 %v3688
    %4567 = vmatpush.msra.mxu0 %v3684
    %4568 = vmatpush.msra.mxu0 %v3680
    %4569 = vmatpush.msra.mxu0 %v3676
    %4570 = vmatmul.f32.gmra.mxu0 %v4365
    %v4571 = vpop.f32.mrf.mxu0
    %v4572 = vadd.f32 0.0, %v4571
    %4573 = vdwg.mxu0
    %4574 = vmatpush.msra.mxu0 %v3737
    %4575 = vmatpush.msra.mxu0 %v3733
    %4576 = vmatpush.msra.mxu0 %v3729
    %4577 = vmatpush.msra.mxu0 %v3725
    %4578 = vmatpush.msra.mxu0 %v3721
    %4579 = vmatpush.msra.mxu0 %v3717
    %4580 = vmatpush.msra.mxu0 %v3713
    %4581 = vmatpush.msra.mxu0 %v3709
    %4582 = vmatpush.msra.mxu0 %v3705
    %4583 = vmatpush.msra.mxu0 %v3701
    %4584 = vmatpush.msra.mxu0 %v3697
    %4585 = vmatpush.msra.mxu0 %v3693
    %4586 = vmatpush.msra.mxu0 %v3689
    %4587 = vmatpush.msra.mxu0 %v3685
    %4588 = vmatpush.msra.mxu0 %v3681
    %4589 = vmatpush.msra.mxu0 %v3677
    %4590 = vmatmul.f32.gmra.mxu0 %v4365
    %v4591 = vpop.f32.mrf.mxu0
    %v4592 = vadd.f32 0.0, %v4591
    %4593 = vdwg.mxu0
    %4594 = vmatpush.msra.mxu0 %v3738
    %4595 = vmatpush.msra.mxu0 %v3734
    %4596 = vmatpush.msra.mxu0 %v3730
    %4597 = vmatpush.msra.mxu0 %v3726
    %4598 = vmatpush.msra.mxu0 %v3722
    %4599 = vmatpush.msra.mxu0 %v3718
    %4600 = vmatpush.msra.mxu0 %v3714
    %4601 = vmatpush.msra.mxu0 %v3710
    %4602 = vmatpush.msra.mxu0 %v3706
    %4603 = vmatpush.msra.mxu0 %v3702
    %4604 = vmatpush.msra.mxu0 %v3698
    %4605 = vmatpush.msra.mxu0 %v3694
    %4606 = vmatpush.msra.mxu0 %v3690
    %4607 = vmatpush.msra.mxu0 %v3686
    %4608 = vmatpush.msra.mxu0 %v3682
    %4609 = vmatpush.msra.mxu0 %v3678
    %4610 = vmatmul.f32.gmra.mxu0 %v4365
    %v4611 = vpop.f32.mrf.mxu0
    %v4612 = vadd.f32 0.0, %v4611
    %4613 = vdwg.mxu0
    %v4618 = vrot.slane %v4552, 4
    %v4619 = vrot.slane %v4572, 4
    %v4620 = vrot.slane %v4592, 4
    %v4621 = vrot.slane %v4612, 4
    %v4626 = vadd.f32 %v3537, %v4618
    %v4627 = vadd.f32 %v3560, %v4619
    %v4628 = vadd.f32 %v3583, %v4620
    %v4629 = vadd.f32 %v3606, %v4621
    %v4630 = vxor.u32 %v4626, 2147483648
    %v4631 = vmul.f32 %v4630, 1.442695
    %v4632 = vpow.pop %v4631
    %v4633 = vadd.f32 %v4632, 1.0
    %v4634 = vrcp.pop %v4633
    %v4635 = vmul.f32 %v4633, %v4634
    %v4636 = vsub.f32 1.0, %v4635
    %v4637 = vmul.f32 %v4634, %v4636
    %v4638 = vadd.f32 %v4634, %v4637
    %vm4639 = vweird.f32 %v4633
    %vm4640 = vweird.f32 %v4634
    %vm4641 = vmor %vm4639, %vm4640
    %v4642 = vsel %vm4641, %v4634, %v4638
    %v4643 = vand.u32 2147483647, %v4633
    %vm4644 = vcmp.eq.f32.partialorder %v4643, 8.507059e+37
    %v4645 = vand.u32 %v4633, 2147483648
    %v4646 = vor.u32 1.1754944e-38, %v4645
    %v4647 = vsel %vm4644, %v4646, %v4642
    %v4648 = vmul.f32 1.0, %v4647
    %v4649 = vxor.u32 %v4627, 2147483648
    %v4650 = vmul.f32 %v4649, 1.442695
    %v4651 = vpow.pop %v4650
    %v4652 = vadd.f32 %v4651, 1.0
    %v4653 = vrcp.pop %v4652
    %v4654 = vmul.f32 %v4652, %v4653
    %v4655 = vsub.f32 1.0, %v4654
    %v4656 = vmul.f32 %v4653, %v4655
    %v4657 = vadd.f32 %v4653, %v4656
    %vm4658 = vweird.f32 %v4652
    %vm4659 = vweird.f32 %v4653
    %vm4660 = vmor %vm4658, %vm4659
    %v4661 = vsel %vm4660, %v4653, %v4657
    %v4662 = vand.u32 2147483647, %v4652
    %vm4663 = vcmp.eq.f32.partialorder %v4662, 8.507059e+37
    %v4664 = vand.u32 %v4652, 2147483648
    %v4665 = vor.u32 1.1754944e-38, %v4664
    %v4666 = vsel %vm4663, %v4665, %v4661
    %v4667 = vmul.f32 1.0, %v4666
    %v4668 = vtanh.pop %v4628
    %v4669 = vxor.u32 %v4629, 2147483648
    %v4670 = vmul.f32 %v4669, 1.442695
    %v4671 = vpow.pop %v4670
    %v4672 = vadd.f32 %v4671, 1.0
    %v4673 = vrcp.pop %v4672
    %v4674 = vmul.f32 %v4672, %v4673
    %v4675 = vsub.f32 1.0, %v4674
    %v4676 = vmul.f32 %v4673, %v4675
    %v4677 = vadd.f32 %v4673, %v4676
    %vm4678 = vweird.f32 %v4672
    %vm4679 = vweird.f32 %v4673
    %vm4680 = vmor %vm4678, %vm4679
    %v4681 = vsel %vm4680, %v4673, %v4677
    %v4682 = vand.u32 2147483647, %v4672
    %vm4683 = vcmp.eq.f32.partialorder %v4682, 8.507059e+37
    %v4684 = vand.u32 %v4672, 2147483648
    %v4685 = vor.u32 1.1754944e-38, %v4684
    %v4686 = vsel %vm4683, %v4685, %v4681
    %v4687 = vmul.f32 1.0, %v4686
    %v4689 = vrot.slane %v4357, 6
    %v4691 = vmul.f32 %v4667, %v4689
    %v4692 = vmul.f32 %v4648, %v4668
    %v4693 = vadd.f32 %v4691, %v4692
    %v4694 = vtanh.pop %v4693
    %v4695 = vmul.f32 %v4687, %v4694
    %v4697 = vrot.slane %v4533, 4
    %v4699 = vadd.f32 %v4371, %v4697
    %v4701 = vrot.slane %v4695, 4
    %v4703 = vadd.f32 %v4699, %v4701
    %v4704 = vrot.slane %v219, 4
    %v4706 = vadd.f32 %v4703, %v4704
    %4707 = vmatpush.msra.mxu0 %v3671
    %4708 = vmatpush.msra.mxu0 %v3667
    %4709 = vmatpush.msra.mxu0 %v3663
    %4710 = vmatpush.msra.mxu0 %v3659
    %4711 = vmatpush.msra.mxu0 %v3655
    %4712 = vmatpush.msra.mxu0 %v3651
    %4713 = vmatpush.msra.mxu0 %v3647
    %4714 = vmatpush.msra.mxu0 %v3643
    %4715 = vmatpush.msra.mxu0 %v3639
    %4716 = vmatpush.msra.mxu0 %v3635
    %4717 = vmatpush.msra.mxu0 %v3631
    %4718 = vmatpush.msra.mxu0 %v3627
    %4719 = vmatpush.msra.mxu0 %v3623
    %4720 = vmatpush.msra.mxu0 %v3619
    %4721 = vmatpush.msra.mxu0 %v3615
    %4722 = vmatpush.msra.mxu0 %v3611
    %4723 = vmatmul.f32.gmra.mxu0 %v4697
    %v4724 = vpop.f32.mrf.mxu0
    %v4725 = vadd.f32 0.0, %v4724
    %4726 = vdwg.mxu0
    %4727 = vmatpush.msra.mxu0 %v3672
    %4728 = vmatpush.msra.mxu0 %v3668
    %4729 = vmatpush.msra.mxu0 %v3664
    %4730 = vmatpush.msra.mxu0 %v3660
    %4731 = vmatpush.msra.mxu0 %v3656
    %4732 = vmatpush.msra.mxu0 %v3652
    %4733 = vmatpush.msra.mxu0 %v3648
    %4734 = vmatpush.msra.mxu0 %v3644
    %4735 = vmatpush.msra.mxu0 %v3640
    %4736 = vmatpush.msra.mxu0 %v3636
    %4737 = vmatpush.msra.mxu0 %v3632
    %4738 = vmatpush.msra.mxu0 %v3628
    %4739 = vmatpush.msra.mxu0 %v3624
    %4740 = vmatpush.msra.mxu0 %v3620
    %4741 = vmatpush.msra.mxu0 %v3616
    %4742 = vmatpush.msra.mxu0 %v3612
    %4743 = vmatmul.f32.gmra.mxu0 %v4697
    %v4744 = vpop.f32.mrf.mxu0
    %v4745 = vadd.f32 0.0, %v4744
    %4746 = vdwg.mxu0
    %4747 = vmatpush.msra.mxu0 %v3673
    %4748 = vmatpush.msra.mxu0 %v3669
    %4749 = vmatpush.msra.mxu0 %v3665
    %4750 = vmatpush.msra.mxu0 %v3661
    %4751 = vmatpush.msra.mxu0 %v3657
    %4752 = vmatpush.msra.mxu0 %v3653
    %4753 = vmatpush.msra.mxu0 %v3649
    %4754 = vmatpush.msra.mxu0 %v3645
    %4755 = vmatpush.msra.mxu0 %v3641
    %4756 = vmatpush.msra.mxu0 %v3637
    %4757 = vmatpush.msra.mxu0 %v3633
    %4758 = vmatpush.msra.mxu0 %v3629
    %4759 = vmatpush.msra.mxu0 %v3625
    %4760 = vmatpush.msra.mxu0 %v3621
    %4761 = vmatpush.msra.mxu0 %v3617
    %4762 = vmatpush.msra.mxu0 %v3613
    %4763 = vmatmul.f32.gmra.mxu0 %v4697
    %v4764 = vpop.f32.mrf.mxu0
    %v4765 = vadd.f32 0.0, %v4764
    %4766 = vdwg.mxu0
    %4767 = vmatpush.msra.mxu0 %v3674
    %4768 = vmatpush.msra.mxu0 %v3670
    %4769 = vmatpush.msra.mxu0 %v3666
    %4770 = vmatpush.msra.mxu0 %v3662
    %4771 = vmatpush.msra.mxu0 %v3658
    %4772 = vmatpush.msra.mxu0 %v3654
    %4773 = vmatpush.msra.mxu0 %v3650
    %4774 = vmatpush.msra.mxu0 %v3646
    %4775 = vmatpush.msra.mxu0 %v3642
    %4776 = vmatpush.msra.mxu0 %v3638
    %4777 = vmatpush.msra.mxu0 %v3634
    %4778 = vmatpush.msra.mxu0 %v3630
    %4779 = vmatpush.msra.mxu0 %v3626
    %4780 = vmatpush.msra.mxu0 %v3622
    %4781 = vmatpush.msra.mxu0 %v3618
    %4782 = vmatpush.msra.mxu0 %v3614
    %4783 = vmatmul.f32.gmra.mxu0 %v4697
    %v4784 = vpop.f32.mrf.mxu0
    %v4785 = vadd.f32 0.0, %v4784
    %4786 = vdwg.mxu0
    %v4791 = vrot.slane %v4725, 2
    %v4792 = vrot.slane %v4745, 2
    %v4793 = vrot.slane %v4765, 2
    %v4794 = vrot.slane %v4785, 2
    %v4799 = vadd.f32 %v3371, %v4791
    %v4800 = vadd.f32 %v3394, %v4792
    %v4801 = vadd.f32 %v3417, %v4793
    %v4802 = vadd.f32 %v3440, %v4794
    %v4803 = vxor.u32 %v4799, 2147483648
    %v4804 = vmul.f32 %v4803, 1.442695
    %v4805 = vpow.pop %v4804
    %v4806 = vadd.f32 %v4805, 1.0
    %v4807 = vrcp.pop %v4806
    %v4808 = vmul.f32 %v4806, %v4807
    %v4809 = vsub.f32 1.0, %v4808
    %v4810 = vmul.f32 %v4807, %v4809
    %v4811 = vadd.f32 %v4807, %v4810
    %vm4812 = vweird.f32 %v4806
    %vm4813 = vweird.f32 %v4807
    %vm4814 = vmor %vm4812, %vm4813
    %v4815 = vsel %vm4814, %v4807, %v4811
    %v4816 = vand.u32 2147483647, %v4806
    %vm4817 = vcmp.eq.f32.partialorder %v4816, 8.507059e+37
    %v4818 = vand.u32 %v4806, 2147483648
    %v4819 = vor.u32 1.1754944e-38, %v4818
    %v4820 = vsel %vm4817, %v4819, %v4815
    %v4821 = vmul.f32 1.0, %v4820
    %v4822 = vxor.u32 %v4800, 2147483648
    %v4823 = vmul.f32 %v4822, 1.442695
    %v4824 = vpow.pop %v4823
    %v4825 = vadd.f32 %v4824, 1.0
    %v4826 = vrcp.pop %v4825
    %v4827 = vmul.f32 %v4825, %v4826
    %v4828 = vsub.f32 1.0, %v4827
    %v4829 = vmul.f32 %v4826, %v4828
    %v4830 = vadd.f32 %v4826, %v4829
    %vm4831 = vweird.f32 %v4825
    %vm4832 = vweird.f32 %v4826
    %vm4833 = vmor %vm4831, %vm4832
    %v4834 = vsel %vm4833, %v4826, %v4830
    %v4835 = vand.u32 2147483647, %v4825
    %vm4836 = vcmp.eq.f32.partialorder %v4835, 8.507059e+37
    %v4837 = vand.u32 %v4825, 2147483648
    %v4838 = vor.u32 1.1754944e-38, %v4837
    %v4839 = vsel %vm4836, %v4838, %v4834
    %v4840 = vmul.f32 1.0, %v4839
    %v4841 = vtanh.pop %v4801
    %v4842 = vxor.u32 %v4802, 2147483648
    %v4843 = vmul.f32 %v4842, 1.442695
    %v4844 = vpow.pop %v4843
    %v4845 = vadd.f32 %v4844, 1.0
    %v4846 = vrcp.pop %v4845
    %v4847 = vmul.f32 %v4845, %v4846
    %v4848 = vsub.f32 1.0, %v4847
    %v4849 = vmul.f32 %v4846, %v4848
    %v4850 = vadd.f32 %v4846, %v4849
    %vm4851 = vweird.f32 %v4845
    %vm4852 = vweird.f32 %v4846
    %vm4853 = vmor %vm4851, %vm4852
    %v4854 = vsel %vm4853, %v4846, %v4850
    %v4855 = vand.u32 2147483647, %v4845
    %vm4856 = vcmp.eq.f32.partialorder %v4855, 8.507059e+37
    %v4857 = vand.u32 %v4845, 2147483648
    %v4858 = vor.u32 1.1754944e-38, %v4857
    %v4859 = vsel %vm4856, %v4858, %v4854
    %v4860 = vmul.f32 1.0, %v4859
    %v4862 = vrot.slane %v4531, 6
    %v4864 = vmul.f32 %v4840, %v4862
    %v4865 = vmul.f32 %v4821, %v4841
    %v4866 = vadd.f32 %v4864, %v4865
    %v4867 = vtanh.pop %v4866
    %v4868 = vmul.f32 %v4860, %v4867
    %4869 = vmatpush.msra.mxu0 %v3735
    %4870 = vmatpush.msra.mxu0 %v3731
    %4871 = vmatpush.msra.mxu0 %v3727
    %4872 = vmatpush.msra.mxu0 %v3723
    %4873 = vmatpush.msra.mxu0 %v3719
    %4874 = vmatpush.msra.mxu0 %v3715
    %4875 = vmatpush.msra.mxu0 %v3711
    %4876 = vmatpush.msra.mxu0 %v3707
    %4877 = vmatpush.msra.mxu0 %v3703
    %4878 = vmatpush.msra.mxu0 %v3699
    %4879 = vmatpush.msra.mxu0 %v3695
    %4880 = vmatpush.msra.mxu0 %v3691
    %4881 = vmatpush.msra.mxu0 %v3687
    %4882 = vmatpush.msra.mxu0 %v3683
    %4883 = vmatpush.msra.mxu0 %v3679
    %4884 = vmatpush.msra.mxu0 %v3675
    %4885 = vmatmul.f32.gmra.mxu0 %v4701
    %v4886 = vpop.f32.mrf.mxu0
    %v4887 = vadd.f32 0.0, %v4886
    %4888 = vdwg.mxu0
    %4889 = vmatpush.msra.mxu0 %v3736
    %4890 = vmatpush.msra.mxu0 %v3732
    %4891 = vmatpush.msra.mxu0 %v3728
    %4892 = vmatpush.msra.mxu0 %v3724
    %4893 = vmatpush.msra.mxu0 %v3720
    %4894 = vmatpush.msra.mxu0 %v3716
    %4895 = vmatpush.msra.mxu0 %v3712
    %4896 = vmatpush.msra.mxu0 %v3708
    %4897 = vmatpush.msra.mxu0 %v3704
    %4898 = vmatpush.msra.mxu0 %v3700
    %4899 = vmatpush.msra.mxu0 %v3696
    %4900 = vmatpush.msra.mxu0 %v3692
    %4901 = vmatpush.msra.mxu0 %v3688
    %4902 = vmatpush.msra.mxu0 %v3684
    %4903 = vmatpush.msra.mxu0 %v3680
    %4904 = vmatpush.msra.mxu0 %v3676
    %4905 = vmatmul.f32.gmra.mxu0 %v4701
    %v4906 = vpop.f32.mrf.mxu0
    %v4907 = vadd.f32 0.0, %v4906
    %4908 = vdwg.mxu0
    %4909 = vmatpush.msra.mxu0 %v3737
    %4910 = vmatpush.msra.mxu0 %v3733
    %4911 = vmatpush.msra.mxu0 %v3729
    %4912 = vmatpush.msra.mxu0 %v3725
    %4913 = vmatpush.msra.mxu0 %v3721
    %4914 = vmatpush.msra.mxu0 %v3717
    %4915 = vmatpush.msra.mxu0 %v3713
    %4916 = vmatpush.msra.mxu0 %v3709
    %4917 = vmatpush.msra.mxu0 %v3705
    %4918 = vmatpush.msra.mxu0 %v3701
    %4919 = vmatpush.msra.mxu0 %v3697
    %4920 = vmatpush.msra.mxu0 %v3693
    %4921 = vmatpush.msra.mxu0 %v3689
    %4922 = vmatpush.msra.mxu0 %v3685
    %4923 = vmatpush.msra.mxu0 %v3681
    %4924 = vmatpush.msra.mxu0 %v3677
    %4925 = vmatmul.f32.gmra.mxu0 %v4701
    %v4926 = vpop.f32.mrf.mxu0
    %v4927 = vadd.f32 0.0, %v4926
    %4928 = vdwg.mxu0
    %4929 = vmatpush.msra.mxu0 %v3738
    %4930 = vmatpush.msra.mxu0 %v3734
    %4931 = vmatpush.msra.mxu0 %v3730
    %4932 = vmatpush.msra.mxu0 %v3726
    %4933 = vmatpush.msra.mxu0 %v3722
    %4934 = vmatpush.msra.mxu0 %v3718
    %4935 = vmatpush.msra.mxu0 %v3714
    %4936 = vmatpush.msra.mxu0 %v3710
    %4937 = vmatpush.msra.mxu0 %v3706
    %4938 = vmatpush.msra.mxu0 %v3702
    %4939 = vmatpush.msra.mxu0 %v3698
    %4940 = vmatpush.msra.mxu0 %v3694
    %4941 = vmatpush.msra.mxu0 %v3690
    %4942 = vmatpush.msra.mxu0 %v3686
    %4943 = vmatpush.msra.mxu0 %v3682
    %4944 = vmatpush.msra.mxu0 %v3678
    %4945 = vmatmul.f32.gmra.mxu0 %v4701
    %v4946 = vpop.f32.mrf.mxu0
    %v4947 = vadd.f32 0.0, %v4946
    %4948 = vdwg.mxu0
    %v4953 = vrot.slane %v4887, 2
    %v4954 = vrot.slane %v4907, 2
    %v4955 = vrot.slane %v4927, 2
    %v4956 = vrot.slane %v4947, 2
    %v4961 = vadd.f32 %v3537, %v4953
    %v4962 = vadd.f32 %v3560, %v4954
    %v4963 = vadd.f32 %v3583, %v4955
    %v4964 = vadd.f32 %v3606, %v4956
    %v4965 = vxor.u32 %v4961, 2147483648
    %v4966 = vmul.f32 %v4965, 1.442695
    %v4967 = vpow.pop %v4966
    %v4968 = vadd.f32 %v4967, 1.0
    %v4969 = vrcp.pop %v4968
    %v4970 = vmul.f32 %v4968, %v4969
    %v4971 = vsub.f32 1.0, %v4970
    %v4972 = vmul.f32 %v4969, %v4971
    %v4973 = vadd.f32 %v4969, %v4972
    %vm4974 = vweird.f32 %v4968
    %vm4975 = vweird.f32 %v4969
    %vm4976 = vmor %vm4974, %vm4975
    %v4977 = vsel %vm4976, %v4969, %v4973
    %v4978 = vand.u32 2147483647, %v4968
    %vm4979 = vcmp.eq.f32.partialorder %v4978, 8.507059e+37
    %v4980 = vand.u32 %v4968, 2147483648
    %v4981 = vor.u32 1.1754944e-38, %v4980
    %v4982 = vsel %vm4979, %v4981, %v4977
    %v4983 = vmul.f32 1.0, %v4982
    %v4984 = vxor.u32 %v4962, 2147483648
    %v4985 = vmul.f32 %v4984, 1.442695
    %v4986 = vpow.pop %v4985
    %v4987 = vadd.f32 %v4986, 1.0
    %v4988 = vrcp.pop %v4987
    %v4989 = vmul.f32 %v4987, %v4988
    %v4990 = vsub.f32 1.0, %v4989
    %v4991 = vmul.f32 %v4988, %v4990
    %v4992 = vadd.f32 %v4988, %v4991
    %vm4993 = vweird.f32 %v4987
    %vm4994 = vweird.f32 %v4988
    %vm4995 = vmor %vm4993, %vm4994
    %v4996 = vsel %vm4995, %v4988, %v4992
    %v4997 = vand.u32 2147483647, %v4987
    %vm4998 = vcmp.eq.f32.partialorder %v4997, 8.507059e+37
    %v4999 = vand.u32 %v4987, 2147483648
    %v5000 = vor.u32 1.1754944e-38, %v4999
    %v5001 = vsel %vm4998, %v5000, %v4996
    %v5002 = vmul.f32 1.0, %v5001
    %v5003 = vtanh.pop %v4963
    %v5004 = vxor.u32 %v4964, 2147483648
    %v5005 = vmul.f32 %v5004, 1.442695
    %v5006 = vpow.pop %v5005
    %v5007 = vadd.f32 %v5006, 1.0
    %v5008 = vrcp.pop %v5007
    %v5009 = vmul.f32 %v5007, %v5008
    %v5010 = vsub.f32 1.0, %v5009
    %v5011 = vmul.f32 %v5008, %v5010
    %v5012 = vadd.f32 %v5008, %v5011
    %vm5013 = vweird.f32 %v5007
    %vm5014 = vweird.f32 %v5008
    %vm5015 = vmor %vm5013, %vm5014
    %v5016 = vsel %vm5015, %v5008, %v5012
    %v5017 = vand.u32 2147483647, %v5007
    %vm5018 = vcmp.eq.f32.partialorder %v5017, 8.507059e+37
    %v5019 = vand.u32 %v5007, 2147483648
    %v5020 = vor.u32 1.1754944e-38, %v5019
    %v5021 = vsel %vm5018, %v5020, %v5016
    %v5022 = vmul.f32 1.0, %v5021
    %v5024 = vrot.slane %v4693, 6
    %v5026 = vmul.f32 %v5002, %v5024
    %v5027 = vmul.f32 %v4983, %v5003
    %v5028 = vadd.f32 %v5026, %v5027
    %v5029 = vtanh.pop %v5028
    %v5030 = vmul.f32 %v5022, %v5029
    %v5032 = vrot.slane %v4868, 6
    %v5034 = vadd.f32 %v4706, %v5032
    %v5036 = vrot.slane %v5030, 6
    %v5038 = vadd.f32 %v5034, %v5036
    %v5039 = vrot.slane %v219, 6
    %v5041 = vadd.f32 %v5038, %v5039
    %5042 = vmatpush.msra.mxu0 %v3671
    %5043 = vmatpush.msra.mxu0 %v3667
    %5044 = vmatpush.msra.mxu0 %v3663
    %5045 = vmatpush.msra.mxu0 %v3659
    %5046 = vmatpush.msra.mxu0 %v3655
    %5047 = vmatpush.msra.mxu0 %v3651
    %5048 = vmatpush.msra.mxu0 %v3647
    %5049 = vmatpush.msra.mxu0 %v3643
    %5050 = vmatpush.msra.mxu0 %v3639
    %5051 = vmatpush.msra.mxu0 %v3635
    %5052 = vmatpush.msra.mxu0 %v3631
    %5053 = vmatpush.msra.mxu0 %v3627
    %5054 = vmatpush.msra.mxu0 %v3623
    %5055 = vmatpush.msra.mxu0 %v3619
    %5056 = vmatpush.msra.mxu0 %v3615
    %5057 = vmatpush.msra.mxu0 %v3611
    %5058 = vmatmul.f32.gmra.mxu0 %v5032
    %v5059 = vpop.f32.mrf.mxu0
    %v5060 = vadd.f32 0.0, %v5059
    %5061 = vdwg.mxu0
    %5062 = vmatpush.msra.mxu0 %v3672
    %5063 = vmatpush.msra.mxu0 %v3668
    %5064 = vmatpush.msra.mxu0 %v3664
    %5065 = vmatpush.msra.mxu0 %v3660
    %5066 = vmatpush.msra.mxu0 %v3656
    %5067 = vmatpush.msra.mxu0 %v3652
    %5068 = vmatpush.msra.mxu0 %v3648
    %5069 = vmatpush.msra.mxu0 %v3644
    %5070 = vmatpush.msra.mxu0 %v3640
    %5071 = vmatpush.msra.mxu0 %v3636
    %5072 = vmatpush.msra.mxu0 %v3632
    %5073 = vmatpush.msra.mxu0 %v3628
    %5074 = vmatpush.msra.mxu0 %v3624
    %5075 = vmatpush.msra.mxu0 %v3620
    %5076 = vmatpush.msra.mxu0 %v3616
    %5077 = vmatpush.msra.mxu0 %v3612
    %5078 = vmatmul.f32.gmra.mxu0 %v5032
    %v5079 = vpop.f32.mrf.mxu0
    %v5080 = vadd.f32 0.0, %v5079
    %5081 = vdwg.mxu0
    %5082 = vmatpush.msra.mxu0 %v3673
    %5083 = vmatpush.msra.mxu0 %v3669
    %5084 = vmatpush.msra.mxu0 %v3665
    %5085 = vmatpush.msra.mxu0 %v3661
    %5086 = vmatpush.msra.mxu0 %v3657
    %5087 = vmatpush.msra.mxu0 %v3653
    %5088 = vmatpush.msra.mxu0 %v3649
    %5089 = vmatpush.msra.mxu0 %v3645
    %5090 = vmatpush.msra.mxu0 %v3641
    %5091 = vmatpush.msra.mxu0 %v3637
    %5092 = vmatpush.msra.mxu0 %v3633
    %5093 = vmatpush.msra.mxu0 %v3629
    %5094 = vmatpush.msra.mxu0 %v3625
    %5095 = vmatpush.msra.mxu0 %v3621
    %5096 = vmatpush.msra.mxu0 %v3617
    %5097 = vmatpush.msra.mxu0 %v3613
    %5098 = vmatmul.f32.gmra.mxu0 %v5032
    %v5099 = vpop.f32.mrf.mxu0
    %v5100 = vadd.f32 0.0, %v5099
    %5101 = vdwg.mxu0
    %5102 = vmatpush.msra.mxu0 %v3674
    %5103 = vmatpush.msra.mxu0 %v3670
    %5104 = vmatpush.msra.mxu0 %v3666
    %5105 = vmatpush.msra.mxu0 %v3662
    %5106 = vmatpush.msra.mxu0 %v3658
    %5107 = vmatpush.msra.mxu0 %v3654
    %5108 = vmatpush.msra.mxu0 %v3650
    %5109 = vmatpush.msra.mxu0 %v3646
    %5110 = vmatpush.msra.mxu0 %v3642
    %5111 = vmatpush.msra.mxu0 %v3638
    %5112 = vmatpush.msra.mxu0 %v3634
    %5113 = vmatpush.msra.mxu0 %v3630
    %5114 = vmatpush.msra.mxu0 %v3626
    %5115 = vmatpush.msra.mxu0 %v3622
    %5116 = vmatpush.msra.mxu0 %v3618
    %5117 = vmatpush.msra.mxu0 %v3614
    %5118 = vmatmul.f32.gmra.mxu0 %v5032
    %v5119 = vpop.f32.mrf.mxu0
    %v5120 = vadd.f32 0.0, %v5119
    %5121 = vdwg.mxu0
    %v5122 = vadd.f32 %v3374, %v5060
    %v5123 = vadd.f32 %v3397, %v5080
    %v5124 = vadd.f32 %v3420, %v5100
    %v5125 = vadd.f32 %v3443, %v5120
    %v5126 = vxor.u32 %v5122, 2147483648
    %v5127 = vmul.f32 %v5126, 1.442695
    %v5128 = vpow.pop %v5127
    %v5129 = vadd.f32 %v5128, 1.0
    %v5130 = vrcp.pop %v5129
    %v5131 = vmul.f32 %v5129, %v5130
    %v5132 = vsub.f32 1.0, %v5131
    %v5133 = vmul.f32 %v5130, %v5132
    %v5134 = vadd.f32 %v5130, %v5133
    %vm5135 = vweird.f32 %v5129
    %vm5136 = vweird.f32 %v5130
    %vm5137 = vmor %vm5135, %vm5136
    %v5138 = vsel %vm5137, %v5130, %v5134
    %v5139 = vand.u32 2147483647, %v5129
    %vm5140 = vcmp.eq.f32.partialorder %v5139, 8.507059e+37
    %v5141 = vand.u32 %v5129, 2147483648
    %v5142 = vor.u32 1.1754944e-38, %v5141
    %v5143 = vsel %vm5140, %v5142, %v5138
    %v5144 = vmul.f32 1.0, %v5143
    %v5145 = vxor.u32 %v5123, 2147483648
    %v5146 = vmul.f32 %v5145, 1.442695
    %v5147 = vpow.pop %v5146
    %v5148 = vadd.f32 %v5147, 1.0
    %v5149 = vrcp.pop %v5148
    %v5150 = vmul.f32 %v5148, %v5149
    %v5151 = vsub.f32 1.0, %v5150
    %v5152 = vmul.f32 %v5149, %v5151
    %v5153 = vadd.f32 %v5149, %v5152
    %vm5154 = vweird.f32 %v5148
    %vm5155 = vweird.f32 %v5149
    %vm5156 = vmor %vm5154, %vm5155
    %v5157 = vsel %vm5156, %v5149, %v5153
    %v5158 = vand.u32 2147483647, %v5148
    %vm5159 = vcmp.eq.f32.partialorder %v5158, 8.507059e+37
    %v5160 = vand.u32 %v5148, 2147483648
    %v5161 = vor.u32 1.1754944e-38, %v5160
    %v5162 = vsel %vm5159, %v5161, %v5157
    %v5163 = vmul.f32 1.0, %v5162
    %v5164 = vtanh.pop %v5124
    %v5165 = vxor.u32 %v5125, 2147483648
    %v5166 = vmul.f32 %v5165, 1.442695
    %v5167 = vpow.pop %v5166
    %v5168 = vadd.f32 %v5167, 1.0
    %v5169 = vrcp.pop %v5168
    %v5170 = vmul.f32 %v5168, %v5169
    %v5171 = vsub.f32 1.0, %v5170
    %v5172 = vmul.f32 %v5169, %v5171
    %v5173 = vadd.f32 %v5169, %v5172
    %vm5174 = vweird.f32 %v5168
    %vm5175 = vweird.f32 %v5169
    %vm5176 = vmor %vm5174, %vm5175
    %v5177 = vsel %vm5176, %v5169, %v5173
    %v5178 = vand.u32 2147483647, %v5168
    %vm5179 = vcmp.eq.f32.partialorder %v5178, 8.507059e+37
    %v5180 = vand.u32 %v5168, 2147483648
    %v5181 = vor.u32 1.1754944e-38, %v5180
    %v5182 = vsel %vm5179, %v5181, %v5177
    %v5183 = vmul.f32 1.0, %v5182
    %v5185 = vrot.slane %v4866, 6
    %v5187 = vmul.f32 %v5163, %v5185
    %v5188 = vmul.f32 %v5144, %v5164
    %v5189 = vadd.f32 %v5187, %v5188
    %v5190 = vtanh.pop %v5189
    %v5191 = vmul.f32 %v5183, %v5190
    %5192 = vmatpush.msra.mxu0 %v3735
    %5193 = vmatpush.msra.mxu0 %v3731
    %5194 = vmatpush.msra.mxu0 %v3727
    %5195 = vmatpush.msra.mxu0 %v3723
    %5196 = vmatpush.msra.mxu0 %v3719
    %5197 = vmatpush.msra.mxu0 %v3715
    %5198 = vmatpush.msra.mxu0 %v3711
    %5199 = vmatpush.msra.mxu0 %v3707
    %5200 = vmatpush.msra.mxu0 %v3703
    %5201 = vmatpush.msra.mxu0 %v3699
    %5202 = vmatpush.msra.mxu0 %v3695
    %5203 = vmatpush.msra.mxu0 %v3691
    %5204 = vmatpush.msra.mxu0 %v3687
    %5205 = vmatpush.msra.mxu0 %v3683
    %5206 = vmatpush.msra.mxu0 %v3679
    %5207 = vmatpush.msra.mxu0 %v3675
    %5208 = vmatmul.f32.gmra.mxu0 %v5036
    %v5209 = vpop.f32.mrf.mxu0
    %v5210 = vadd.f32 0.0, %v5209
    %5211 = vdwg.mxu0
    %5212 = vmatpush.msra.mxu0 %v3736
    %5213 = vmatpush.msra.mxu0 %v3732
    %5214 = vmatpush.msra.mxu0 %v3728
    %5215 = vmatpush.msra.mxu0 %v3724
    %5216 = vmatpush.msra.mxu0 %v3720
    %5217 = vmatpush.msra.mxu0 %v3716
    %5218 = vmatpush.msra.mxu0 %v3712
    %5219 = vmatpush.msra.mxu0 %v3708
    %5220 = vmatpush.msra.mxu0 %v3704
    %5221 = vmatpush.msra.mxu0 %v3700
    %5222 = vmatpush.msra.mxu0 %v3696
    %5223 = vmatpush.msra.mxu0 %v3692
    %5224 = vmatpush.msra.mxu0 %v3688
    %5225 = vmatpush.msra.mxu0 %v3684
    %5226 = vmatpush.msra.mxu0 %v3680
    %5227 = vmatpush.msra.mxu0 %v3676
    %5228 = vmatmul.f32.gmra.mxu0 %v5036
    %v5229 = vpop.f32.mrf.mxu0
    %v5230 = vadd.f32 0.0, %v5229
    %5231 = vdwg.mxu0
    %5232 = vmatpush.msra.mxu0 %v3737
    %5233 = vmatpush.msra.mxu0 %v3733
    %5234 = vmatpush.msra.mxu0 %v3729
    %5235 = vmatpush.msra.mxu0 %v3725
    %5236 = vmatpush.msra.mxu0 %v3721
    %5237 = vmatpush.msra.mxu0 %v3717
    %5238 = vmatpush.msra.mxu0 %v3713
    %5239 = vmatpush.msra.mxu0 %v3709
    %5240 = vmatpush.msra.mxu0 %v3705
    %5241 = vmatpush.msra.mxu0 %v3701
    %5242 = vmatpush.msra.mxu0 %v3697
    %5243 = vmatpush.msra.mxu0 %v3693
    %5244 = vmatpush.msra.mxu0 %v3689
    %5245 = vmatpush.msra.mxu0 %v3685
    %5246 = vmatpush.msra.mxu0 %v3681
    %5247 = vmatpush.msra.mxu0 %v3677
    %5248 = vmatmul.f32.gmra.mxu0 %v5036
    %v5249 = vpop.f32.mrf.mxu0
    %v5250 = vadd.f32 0.0, %v5249
    %5251 = vdwg.mxu0
    %5252 = vmatpush.msra.mxu0 %v3738
    %5253 = vmatpush.msra.mxu0 %v3734
    %5254 = vmatpush.msra.mxu0 %v3730
    %5255 = vmatpush.msra.mxu0 %v3726
    %5256 = vmatpush.msra.mxu0 %v3722
    %5257 = vmatpush.msra.mxu0 %v3718
    %5258 = vmatpush.msra.mxu0 %v3714
    %5259 = vmatpush.msra.mxu0 %v3710
    %5260 = vmatpush.msra.mxu0 %v3706
    %5261 = vmatpush.msra.mxu0 %v3702
    %5262 = vmatpush.msra.mxu0 %v3698
    %5263 = vmatpush.msra.mxu0 %v3694
    %5264 = vmatpush.msra.mxu0 %v3690
    %5265 = vmatpush.msra.mxu0 %v3686
    %5266 = vmatpush.msra.mxu0 %v3682
    %5267 = vmatpush.msra.mxu0 %v3678
    %5268 = vmatmul.f32.gmra.mxu0 %v5036
    %v5269 = vpop.f32.mrf.mxu0
    %v5270 = vadd.f32 0.0, %v5269
    %5271 = vdwg.mxu0
    %v5272 = vadd.f32 %v3540, %v5210
    %v5273 = vadd.f32 %v3563, %v5230
    %v5274 = vadd.f32 %v3586, %v5250
    %v5275 = vadd.f32 %v3609, %v5270
    %v5276 = vxor.u32 %v5272, 2147483648
    %v5277 = vmul.f32 %v5276, 1.442695
    %v5278 = vpow.pop %v5277
    %v5279 = vadd.f32 %v5278, 1.0
    %v5280 = vrcp.pop %v5279
    %v5281 = vmul.f32 %v5279, %v5280
    %v5282 = vsub.f32 1.0, %v5281
    %v5283 = vmul.f32 %v5280, %v5282
    %v5284 = vadd.f32 %v5280, %v5283
    %vm5285 = vweird.f32 %v5279
    %vm5286 = vweird.f32 %v5280
    %vm5287 = vmor %vm5285, %vm5286
    %v5288 = vsel %vm5287, %v5280, %v5284
    %v5289 = vand.u32 2147483647, %v5279
    %vm5290 = vcmp.eq.f32.partialorder %v5289, 8.507059e+37
    %v5291 = vand.u32 %v5279, 2147483648
    %v5292 = vor.u32 1.1754944e-38, %v5291
    %v5293 = vsel %vm5290, %v5292, %v5288
    %v5294 = vmul.f32 1.0, %v5293
    %v5295 = vxor.u32 %v5273, 2147483648
    %v5296 = vmul.f32 %v5295, 1.442695
    %v5297 = vpow.pop %v5296
    %v5298 = vadd.f32 %v5297, 1.0
    %v5299 = vrcp.pop %v5298
    %v5300 = vmul.f32 %v5298, %v5299
    %v5301 = vsub.f32 1.0, %v5300
    %v5302 = vmul.f32 %v5299, %v5301
    %v5303 = vadd.f32 %v5299, %v5302
    %vm5304 = vweird.f32 %v5298
    %vm5305 = vweird.f32 %v5299
    %vm5306 = vmor %vm5304, %vm5305
    %v5307 = vsel %vm5306, %v5299, %v5303
    %v5308 = vand.u32 2147483647, %v5298
    %vm5309 = vcmp.eq.f32.partialorder %v5308, 8.507059e+37
    %v5310 = vand.u32 %v5298, 2147483648
    %v5311 = vor.u32 1.1754944e-38, %v5310
    %v5312 = vsel %vm5309, %v5311, %v5307
    %v5313 = vmul.f32 1.0, %v5312
    %v5314 = vtanh.pop %v5274
    %v5315 = vxor.u32 %v5275, 2147483648
    %v5316 = vmul.f32 %v5315, 1.442695
    %v5317 = vpow.pop %v5316
    %v5318 = vadd.f32 %v5317, 1.0
    %v5319 = vrcp.pop %v5318
    %v5320 = vmul.f32 %v5318, %v5319
    %v5321 = vsub.f32 1.0, %v5320
    %v5322 = vmul.f32 %v5319, %v5321
    %v5323 = vadd.f32 %v5319, %v5322
    %vm5324 = vweird.f32 %v5318
    %vm5325 = vweird.f32 %v5319
    %vm5326 = vmor %vm5324, %vm5325
    %v5327 = vsel %vm5326, %v5319, %v5323
    %v5328 = vand.u32 2147483647, %v5318
    %vm5329 = vcmp.eq.f32.partialorder %v5328, 8.507059e+37
    %v5330 = vand.u32 %v5318, 2147483648
    %v5331 = vor.u32 1.1754944e-38, %v5330
    %v5332 = vsel %vm5329, %v5331, %v5327
    %v5333 = vmul.f32 1.0, %v5332
    %v5335 = vrot.slane %v5028, 6
    %v5337 = vmul.f32 %v5313, %v5335
    %v5338 = vmul.f32 %v5294, %v5314
    %v5339 = vadd.f32 %v5337, %v5338
    %v5340 = vtanh.pop %v5339
    %v5341 = vmul.f32 %v5333, %v5340
    %v5342 = vadd.f32 %v5041, %v5191
    %v5343 = vadd.f32 %v5342, %v5341
    %v5344 = vadd.f32 %v5343, %v220
    %5345 = vmatpush.msra.mxu0 %v3671
    %5346 = vmatpush.msra.mxu0 %v3667
    %5347 = vmatpush.msra.mxu0 %v3663
    %5348 = vmatpush.msra.mxu0 %v3659
    %5349 = vmatpush.msra.mxu0 %v3655
    %5350 = vmatpush.msra.mxu0 %v3651
    %5351 = vmatpush.msra.mxu0 %v3647
    %5352 = vmatpush.msra.mxu0 %v3643
    %5353 = vmatpush.msra.mxu0 %v3639
    %5354 = vmatpush.msra.mxu0 %v3635
    %5355 = vmatpush.msra.mxu0 %v3631
    %5356 = vmatpush.msra.mxu0 %v3627
    %5357 = vmatpush.msra.mxu0 %v3623
    %5358 = vmatpush.msra.mxu0 %v3619
    %5359 = vmatpush.msra.mxu0 %v3615
    %5360 = vmatpush.msra.mxu0 %v3611
    %5361 = vmatmul.f32.gmra.mxu0 %v5191
    %v5362 = vpop.f32.mrf.mxu0
    %v5363 = vadd.f32 0.0, %v5362
    %5364 = vdwg.mxu0
    %5365 = vmatpush.msra.mxu0 %v3672
    %5366 = vmatpush.msra.mxu0 %v3668
    %5367 = vmatpush.msra.mxu0 %v3664
    %5368 = vmatpush.msra.mxu0 %v3660
    %5369 = vmatpush.msra.mxu0 %v3656
    %5370 = vmatpush.msra.mxu0 %v3652
    %5371 = vmatpush.msra.mxu0 %v3648
    %5372 = vmatpush.msra.mxu0 %v3644
    %5373 = vmatpush.msra.mxu0 %v3640
    %5374 = vmatpush.msra.mxu0 %v3636
    %5375 = vmatpush.msra.mxu0 %v3632
    %5376 = vmatpush.msra.mxu0 %v3628
    %5377 = vmatpush.msra.mxu0 %v3624
    %5378 = vmatpush.msra.mxu0 %v3620
    %5379 = vmatpush.msra.mxu0 %v3616
    %5380 = vmatpush.msra.mxu0 %v3612
    %5381 = vmatmul.f32.gmra.mxu0 %v5191
    %v5382 = vpop.f32.mrf.mxu0
    %v5383 = vadd.f32 0.0, %v5382
    %5384 = vdwg.mxu0
    %5385 = vmatpush.msra.mxu0 %v3673
    %5386 = vmatpush.msra.mxu0 %v3669
    %5387 = vmatpush.msra.mxu0 %v3665
    %5388 = vmatpush.msra.mxu0 %v3661
    %5389 = vmatpush.msra.mxu0 %v3657
    %5390 = vmatpush.msra.mxu0 %v3653
    %5391 = vmatpush.msra.mxu0 %v3649
    %5392 = vmatpush.msra.mxu0 %v3645
    %5393 = vmatpush.msra.mxu0 %v3641
    %5394 = vmatpush.msra.mxu0 %v3637
    %5395 = vmatpush.msra.mxu0 %v3633
    %5396 = vmatpush.msra.mxu0 %v3629
    %5397 = vmatpush.msra.mxu0 %v3625
    %5398 = vmatpush.msra.mxu0 %v3621
    %5399 = vmatpush.msra.mxu0 %v3617
    %5400 = vmatpush.msra.mxu0 %v3613
    %5401 = vmatmul.f32.gmra.mxu0 %v5191
    %v5402 = vpop.f32.mrf.mxu0
    %v5403 = vadd.f32 0.0, %v5402
    %5404 = vdwg.mxu0
    %5405 = vmatpush.msra.mxu0 %v3674
    %5406 = vmatpush.msra.mxu0 %v3670
    %5407 = vmatpush.msra.mxu0 %v3666
    %5408 = vmatpush.msra.mxu0 %v3662
    %5409 = vmatpush.msra.mxu0 %v3658
    %5410 = vmatpush.msra.mxu0 %v3654
    %5411 = vmatpush.msra.mxu0 %v3650
    %5412 = vmatpush.msra.mxu0 %v3646
    %5413 = vmatpush.msra.mxu0 %v3642
    %5414 = vmatpush.msra.mxu0 %v3638
    %5415 = vmatpush.msra.mxu0 %v3634
    %5416 = vmatpush.msra.mxu0 %v3630
    %5417 = vmatpush.msra.mxu0 %v3626
    %5418 = vmatpush.msra.mxu0 %v3622
    %5419 = vmatpush.msra.mxu0 %v3618
    %5420 = vmatpush.msra.mxu0 %v3614
    %5421 = vmatmul.f32.gmra.mxu0 %v5191
    %v5422 = vpop.f32.mrf.mxu0
    %v5423 = vadd.f32 0.0, %v5422
    %5424 = vdwg.mxu0
    %v5429 = vrot.slane %v5363, 6
    %v5430 = vrot.slane %v5383, 6
    %v5431 = vrot.slane %v5403, 6
    %v5432 = vrot.slane %v5423, 6
    %v5437 = vadd.f32 %v3374, %v5429
    %v5438 = vadd.f32 %v3397, %v5430
    %v5439 = vadd.f32 %v3420, %v5431
    %v5440 = vadd.f32 %v3443, %v5432
    %v5441 = vxor.u32 %v5437, 2147483648
    %v5442 = vmul.f32 %v5441, 1.442695
    %v5443 = vpow.pop %v5442
    %v5444 = vadd.f32 %v5443, 1.0
    %v5445 = vrcp.pop %v5444
    %v5446 = vmul.f32 %v5444, %v5445
    %v5447 = vsub.f32 1.0, %v5446
    %v5448 = vmul.f32 %v5445, %v5447
    %v5449 = vadd.f32 %v5445, %v5448
    %vm5450 = vweird.f32 %v5444
    %vm5451 = vweird.f32 %v5445
    %vm5452 = vmor %vm5450, %vm5451
    %v5453 = vsel %vm5452, %v5445, %v5449
    %v5454 = vand.u32 2147483647, %v5444
    %vm5455 = vcmp.eq.f32.partialorder %v5454, 8.507059e+37
    %v5456 = vand.u32 %v5444, 2147483648
    %v5457 = vor.u32 1.1754944e-38, %v5456
    %v5458 = vsel %vm5455, %v5457, %v5453
    %v5459 = vmul.f32 1.0, %v5458
    %v5460 = vxor.u32 %v5438, 2147483648
    %v5461 = vmul.f32 %v5460, 1.442695
    %v5462 = vpow.pop %v5461
    %v5463 = vadd.f32 %v5462, 1.0
    %v5464 = vrcp.pop %v5463
    %v5465 = vmul.f32 %v5463, %v5464
    %v5466 = vsub.f32 1.0, %v5465
    %v5467 = vmul.f32 %v5464, %v5466
    %v5468 = vadd.f32 %v5464, %v5467
    %vm5469 = vweird.f32 %v5463
    %vm5470 = vweird.f32 %v5464
    %vm5471 = vmor %vm5469, %vm5470
    %v5472 = vsel %vm5471, %v5464, %v5468
    %v5473 = vand.u32 2147483647, %v5463
    %vm5474 = vcmp.eq.f32.partialorder %v5473, 8.507059e+37
    %v5475 = vand.u32 %v5463, 2147483648
    %v5476 = vor.u32 1.1754944e-38, %v5475
    %v5477 = vsel %vm5474, %v5476, %v5472
    %v5478 = vmul.f32 1.0, %v5477
    %v5479 = vtanh.pop %v5439
    %v5480 = vxor.u32 %v5440, 2147483648
    %v5481 = vmul.f32 %v5480, 1.442695
    %v5482 = vpow.pop %v5481
    %v5483 = vadd.f32 %v5482, 1.0
    %v5484 = vrcp.pop %v5483
    %v5485 = vmul.f32 %v5483, %v5484
    %v5486 = vsub.f32 1.0, %v5485
    %v5487 = vmul.f32 %v5484, %v5486
    %v5488 = vadd.f32 %v5484, %v5487
    %vm5489 = vweird.f32 %v5483
    %vm5490 = vweird.f32 %v5484
    %vm5491 = vmor %vm5489, %vm5490
    %v5492 = vsel %vm5491, %v5484, %v5488
    %v5493 = vand.u32 2147483647, %v5483
    %vm5494 = vcmp.eq.f32.partialorder %v5493, 8.507059e+37
    %v5495 = vand.u32 %v5483, 2147483648
    %v5496 = vor.u32 1.1754944e-38, %v5495
    %v5497 = vsel %vm5494, %v5496, %v5492
    %v5498 = vmul.f32 1.0, %v5497
    %v5500 = vrot.slane %v5189, 6
    %v5502 = vmul.f32 %v5478, %v5500
    %v5503 = vmul.f32 %v5459, %v5479
    %v5504 = vadd.f32 %v5502, %v5503
    %v5505 = vtanh.pop %v5504
    %v5506 = vmul.f32 %v5498, %v5505
    %5507 = vmatpush.msra.mxu0 %v3735
    %5508 = vmatpush.msra.mxu0 %v3731
    %5509 = vmatpush.msra.mxu0 %v3727
    %5510 = vmatpush.msra.mxu0 %v3723
    %5511 = vmatpush.msra.mxu0 %v3719
    %5512 = vmatpush.msra.mxu0 %v3715
    %5513 = vmatpush.msra.mxu0 %v3711
    %5514 = vmatpush.msra.mxu0 %v3707
    %5515 = vmatpush.msra.mxu0 %v3703
    %5516 = vmatpush.msra.mxu0 %v3699
    %5517 = vmatpush.msra.mxu0 %v3695
    %5518 = vmatpush.msra.mxu0 %v3691
    %5519 = vmatpush.msra.mxu0 %v3687
    %5520 = vmatpush.msra.mxu0 %v3683
    %5521 = vmatpush.msra.mxu0 %v3679
    %5522 = vmatpush.msra.mxu0 %v3675
    %5523 = vmatmul.f32.gmra.mxu0 %v5341
    %v5524 = vpop.f32.mrf.mxu0
    %v5525 = vadd.f32 0.0, %v5524
    %5526 = vdwg.mxu0
    %5527 = vmatpush.msra.mxu0 %v3736
    %5528 = vmatpush.msra.mxu0 %v3732
    %5529 = vmatpush.msra.mxu0 %v3728
    %5530 = vmatpush.msra.mxu0 %v3724
    %5531 = vmatpush.msra.mxu0 %v3720
    %5532 = vmatpush.msra.mxu0 %v3716
    %5533 = vmatpush.msra.mxu0 %v3712
    %5534 = vmatpush.msra.mxu0 %v3708
    %5535 = vmatpush.msra.mxu0 %v3704
    %5536 = vmatpush.msra.mxu0 %v3700
    %5537 = vmatpush.msra.mxu0 %v3696
    %5538 = vmatpush.msra.mxu0 %v3692
    %5539 = vmatpush.msra.mxu0 %v3688
    %5540 = vmatpush.msra.mxu0 %v3684
    %5541 = vmatpush.msra.mxu0 %v3680
    %5542 = vmatpush.msra.mxu0 %v3676
    %5543 = vmatmul.f32.gmra.mxu0 %v5341
    %v5544 = vpop.f32.mrf.mxu0
    %v5545 = vadd.f32 0.0, %v5544
    %5546 = vdwg.mxu0
    %5547 = vmatpush.msra.mxu0 %v3737
    %5548 = vmatpush.msra.mxu0 %v3733
    %5549 = vmatpush.msra.mxu0 %v3729
    %5550 = vmatpush.msra.mxu0 %v3725
    %5551 = vmatpush.msra.mxu0 %v3721
    %5552 = vmatpush.msra.mxu0 %v3717
    %5553 = vmatpush.msra.mxu0 %v3713
    %5554 = vmatpush.msra.mxu0 %v3709
    %5555 = vmatpush.msra.mxu0 %v3705
    %5556 = vmatpush.msra.mxu0 %v3701
    %5557 = vmatpush.msra.mxu0 %v3697
    %5558 = vmatpush.msra.mxu0 %v3693
    %5559 = vmatpush.msra.mxu0 %v3689
    %5560 = vmatpush.msra.mxu0 %v3685
    %5561 = vmatpush.msra.mxu0 %v3681
    %5562 = vmatpush.msra.mxu0 %v3677
    %5563 = vmatmul.f32.gmra.mxu0 %v5341
    %v5564 = vpop.f32.mrf.mxu0
    %v5565 = vadd.f32 0.0, %v5564
    %5566 = vdwg.mxu0
    %5567 = vmatpush.msra.mxu0 %v3738
    %5568 = vmatpush.msra.mxu0 %v3734
    %5569 = vmatpush.msra.mxu0 %v3730
    %5570 = vmatpush.msra.mxu0 %v3726
    %5571 = vmatpush.msra.mxu0 %v3722
    %5572 = vmatpush.msra.mxu0 %v3718
    %5573 = vmatpush.msra.mxu0 %v3714
    %5574 = vmatpush.msra.mxu0 %v3710
    %5575 = vmatpush.msra.mxu0 %v3706
    %5576 = vmatpush.msra.mxu0 %v3702
    %5577 = vmatpush.msra.mxu0 %v3698
    %5578 = vmatpush.msra.mxu0 %v3694
    %5579 = vmatpush.msra.mxu0 %v3690
    %5580 = vmatpush.msra.mxu0 %v3686
    %5581 = vmatpush.msra.mxu0 %v3682
    %5582 = vmatpush.msra.mxu0 %v3678
    %5583 = vmatmul.f32.gmra.mxu0 %v5341
    %v5584 = vpop.f32.mrf.mxu0
    %v5585 = vadd.f32 0.0, %v5584
    %5586 = vdwg.mxu0
    %v5591 = vrot.slane %v5525, 6
    %v5592 = vrot.slane %v5545, 6
    %v5593 = vrot.slane %v5565, 6
    %v5594 = vrot.slane %v5585, 6
    %v5599 = vadd.f32 %v3540, %v5591
    %v5600 = vadd.f32 %v3563, %v5592
    %v5601 = vadd.f32 %v3586, %v5593
    %v5602 = vadd.f32 %v3609, %v5594
    %v5603 = vxor.u32 %v5599, 2147483648
    %v5604 = vmul.f32 %v5603, 1.442695
    %v5605 = vpow.pop %v5604
    %v5606 = vadd.f32 %v5605, 1.0
    %v5607 = vrcp.pop %v5606
    %v5608 = vmul.f32 %v5606, %v5607
    %v5609 = vsub.f32 1.0, %v5608
    %v5610 = vmul.f32 %v5607, %v5609
    %v5611 = vadd.f32 %v5607, %v5610
    %vm5612 = vweird.f32 %v5606
    %vm5613 = vweird.f32 %v5607
    %vm5614 = vmor %vm5612, %vm5613
    %v5615 = vsel %vm5614, %v5607, %v5611
    %v5616 = vand.u32 2147483647, %v5606
    %vm5617 = vcmp.eq.f32.partialorder %v5616, 8.507059e+37
    %v5618 = vand.u32 %v5606, 2147483648
    %v5619 = vor.u32 1.1754944e-38, %v5618
    %v5620 = vsel %vm5617, %v5619, %v5615
    %v5621 = vmul.f32 1.0, %v5620
    %v5622 = vxor.u32 %v5600, 2147483648
    %v5623 = vmul.f32 %v5622, 1.442695
    %v5624 = vpow.pop %v5623
    %v5625 = vadd.f32 %v5624, 1.0
    %v5626 = vrcp.pop %v5625
    %v5627 = vmul.f32 %v5625, %v5626
    %v5628 = vsub.f32 1.0, %v5627
    %v5629 = vmul.f32 %v5626, %v5628
    %v5630 = vadd.f32 %v5626, %v5629
    %vm5631 = vweird.f32 %v5625
    %vm5632 = vweird.f32 %v5626
    %vm5633 = vmor %vm5631, %vm5632
    %v5634 = vsel %vm5633, %v5626, %v5630
    %v5635 = vand.u32 2147483647, %v5625
    %vm5636 = vcmp.eq.f32.partialorder %v5635, 8.507059e+37
    %v5637 = vand.u32 %v5625, 2147483648
    %v5638 = vor.u32 1.1754944e-38, %v5637
    %v5639 = vsel %vm5636, %v5638, %v5634
    %v5640 = vmul.f32 1.0, %v5639
    %v5641 = vtanh.pop %v5601
    %v5642 = vxor.u32 %v5602, 2147483648
    %v5643 = vmul.f32 %v5642, 1.442695
    %v5644 = vpow.pop %v5643
    %v5645 = vadd.f32 %v5644, 1.0
    %v5646 = vrcp.pop %v5645
    %v5647 = vmul.f32 %v5645, %v5646
    %v5648 = vsub.f32 1.0, %v5647
    %v5649 = vmul.f32 %v5646, %v5648
    %v5650 = vadd.f32 %v5646, %v5649
    %vm5651 = vweird.f32 %v5645
    %vm5652 = vweird.f32 %v5646
    %vm5653 = vmor %vm5651, %vm5652
    %v5654 = vsel %vm5653, %v5646, %v5650
    %v5655 = vand.u32 2147483647, %v5645
    %vm5656 = vcmp.eq.f32.partialorder %v5655, 8.507059e+37
    %v5657 = vand.u32 %v5645, 2147483648
    %v5658 = vor.u32 1.1754944e-38, %v5657
    %v5659 = vsel %vm5656, %v5658, %v5654
    %v5660 = vmul.f32 1.0, %v5659
    %v5662 = vrot.slane %v5339, 6
    %v5664 = vmul.f32 %v5640, %v5662
    %v5665 = vmul.f32 %v5621, %v5641
    %v5666 = vadd.f32 %v5664, %v5665
    %v5667 = vtanh.pop %v5666
    %v5668 = vmul.f32 %v5660, %v5667
    %v5670 = vrot.slane %v5506, 2
    %v5672 = vadd.f32 %v5344, %v5670
    %v5674 = vrot.slane %v5668, 2
    %v5676 = vadd.f32 %v5672, %v5674
    %v5678 = vrot.slane %v220, 2
    %v5680 = vadd.f32 %v5676, %v5678
    %5681 = vmatpush.msra.mxu0 %v3671
    %5682 = vmatpush.msra.mxu0 %v3667
    %5683 = vmatpush.msra.mxu0 %v3663
    %5684 = vmatpush.msra.mxu0 %v3659
    %5685 = vmatpush.msra.mxu0 %v3655
    %5686 = vmatpush.msra.mxu0 %v3651
    %5687 = vmatpush.msra.mxu0 %v3647
    %5688 = vmatpush.msra.mxu0 %v3643
    %5689 = vmatpush.msra.mxu0 %v3639
    %5690 = vmatpush.msra.mxu0 %v3635
    %5691 = vmatpush.msra.mxu0 %v3631
    %5692 = vmatpush.msra.mxu0 %v3627
    %5693 = vmatpush.msra.mxu0 %v3623
    %5694 = vmatpush.msra.mxu0 %v3619
    %5695 = vmatpush.msra.mxu0 %v3615
    %5696 = vmatpush.msra.mxu0 %v3611
    %5697 = vmatmul.f32.gmra.mxu0 %v5670
    %v5698 = vpop.f32.mrf.mxu0
    %v5699 = vadd.f32 0.0, %v5698
    %5700 = vdwg.mxu0
    %5701 = vmatpush.msra.mxu0 %v3672
    %5702 = vmatpush.msra.mxu0 %v3668
    %5703 = vmatpush.msra.mxu0 %v3664
    %5704 = vmatpush.msra.mxu0 %v3660
    %5705 = vmatpush.msra.mxu0 %v3656
    %5706 = vmatpush.msra.mxu0 %v3652
    %5707 = vmatpush.msra.mxu0 %v3648
    %5708 = vmatpush.msra.mxu0 %v3644
    %5709 = vmatpush.msra.mxu0 %v3640
    %5710 = vmatpush.msra.mxu0 %v3636
    %5711 = vmatpush.msra.mxu0 %v3632
    %5712 = vmatpush.msra.mxu0 %v3628
    %5713 = vmatpush.msra.mxu0 %v3624
    %5714 = vmatpush.msra.mxu0 %v3620
    %5715 = vmatpush.msra.mxu0 %v3616
    %5716 = vmatpush.msra.mxu0 %v3612
    %5717 = vmatmul.f32.gmra.mxu0 %v5670
    %v5718 = vpop.f32.mrf.mxu0
    %v5719 = vadd.f32 0.0, %v5718
    %5720 = vdwg.mxu0
    %5721 = vmatpush.msra.mxu0 %v3673
    %5722 = vmatpush.msra.mxu0 %v3669
    %5723 = vmatpush.msra.mxu0 %v3665
    %5724 = vmatpush.msra.mxu0 %v3661
    %5725 = vmatpush.msra.mxu0 %v3657
    %5726 = vmatpush.msra.mxu0 %v3653
    %5727 = vmatpush.msra.mxu0 %v3649
    %5728 = vmatpush.msra.mxu0 %v3645
    %5729 = vmatpush.msra.mxu0 %v3641
    %5730 = vmatpush.msra.mxu0 %v3637
    %5731 = vmatpush.msra.mxu0 %v3633
    %5732 = vmatpush.msra.mxu0 %v3629
    %5733 = vmatpush.msra.mxu0 %v3625
    %5734 = vmatpush.msra.mxu0 %v3621
    %5735 = vmatpush.msra.mxu0 %v3617
    %5736 = vmatpush.msra.mxu0 %v3613
    %5737 = vmatmul.f32.gmra.mxu0 %v5670
    %v5738 = vpop.f32.mrf.mxu0
    %v5739 = vadd.f32 0.0, %v5738
    %5740 = vdwg.mxu0
    %5741 = vmatpush.msra.mxu0 %v3674
    %5742 = vmatpush.msra.mxu0 %v3670
    %5743 = vmatpush.msra.mxu0 %v3666
    %5744 = vmatpush.msra.mxu0 %v3662
    %5745 = vmatpush.msra.mxu0 %v3658
    %5746 = vmatpush.msra.mxu0 %v3654
    %5747 = vmatpush.msra.mxu0 %v3650
    %5748 = vmatpush.msra.mxu0 %v3646
    %5749 = vmatpush.msra.mxu0 %v3642
    %5750 = vmatpush.msra.mxu0 %v3638
    %5751 = vmatpush.msra.mxu0 %v3634
    %5752 = vmatpush.msra.mxu0 %v3630
    %5753 = vmatpush.msra.mxu0 %v3626
    %5754 = vmatpush.msra.mxu0 %v3622
    %5755 = vmatpush.msra.mxu0 %v3618
    %5756 = vmatpush.msra.mxu0 %v3614
    %5757 = vmatmul.f32.gmra.mxu0 %v5670
    %v5758 = vpop.f32.mrf.mxu0
    %v5759 = vadd.f32 0.0, %v5758
    %5760 = vdwg.mxu0
    %v5765 = vrot.slane %v5699, 4
    %v5766 = vrot.slane %v5719, 4
    %v5767 = vrot.slane %v5739, 4
    %v5768 = vrot.slane %v5759, 4
    %v5773 = vadd.f32 %v3374, %v5765
    %v5774 = vadd.f32 %v3397, %v5766
    %v5775 = vadd.f32 %v3420, %v5767
    %v5776 = vadd.f32 %v3443, %v5768
    %v5777 = vxor.u32 %v5773, 2147483648
    %v5778 = vmul.f32 %v5777, 1.442695
    %v5779 = vpow.pop %v5778
    %v5780 = vadd.f32 %v5779, 1.0
    %v5781 = vrcp.pop %v5780
    %v5782 = vmul.f32 %v5780, %v5781
    %v5783 = vsub.f32 1.0, %v5782
    %v5784 = vmul.f32 %v5781, %v5783
    %v5785 = vadd.f32 %v5781, %v5784
    %vm5786 = vweird.f32 %v5780
    %vm5787 = vweird.f32 %v5781
    %vm5788 = vmor %vm5786, %vm5787
    %v5789 = vsel %vm5788, %v5781, %v5785
    %v5790 = vand.u32 2147483647, %v5780
    %vm5791 = vcmp.eq.f32.partialorder %v5790, 8.507059e+37
    %v5792 = vand.u32 %v5780, 2147483648
    %v5793 = vor.u32 1.1754944e-38, %v5792
    %v5794 = vsel %vm5791, %v5793, %v5789
    %v5795 = vmul.f32 1.0, %v5794
    %v5796 = vxor.u32 %v5774, 2147483648
    %v5797 = vmul.f32 %v5796, 1.442695
    %v5798 = vpow.pop %v5797
    %v5799 = vadd.f32 %v5798, 1.0
    %v5800 = vrcp.pop %v5799
    %v5801 = vmul.f32 %v5799, %v5800
    %v5802 = vsub.f32 1.0, %v5801
    %v5803 = vmul.f32 %v5800, %v5802
    %v5804 = vadd.f32 %v5800, %v5803
    %vm5805 = vweird.f32 %v5799
    %vm5806 = vweird.f32 %v5800
    %vm5807 = vmor %vm5805, %vm5806
    %v5808 = vsel %vm5807, %v5800, %v5804
    %v5809 = vand.u32 2147483647, %v5799
    %vm5810 = vcmp.eq.f32.partialorder %v5809, 8.507059e+37
    %v5811 = vand.u32 %v5799, 2147483648
    %v5812 = vor.u32 1.1754944e-38, %v5811
    %v5813 = vsel %vm5810, %v5812, %v5808
    %v5814 = vmul.f32 1.0, %v5813
    %v5815 = vtanh.pop %v5775
    %v5816 = vxor.u32 %v5776, 2147483648
    %v5817 = vmul.f32 %v5816, 1.442695
    %v5818 = vpow.pop %v5817
    %v5819 = vadd.f32 %v5818, 1.0
    %v5820 = vrcp.pop %v5819
    %v5821 = vmul.f32 %v5819, %v5820
    %v5822 = vsub.f32 1.0, %v5821
    %v5823 = vmul.f32 %v5820, %v5822
    %v5824 = vadd.f32 %v5820, %v5823
    %vm5825 = vweird.f32 %v5819
    %vm5826 = vweird.f32 %v5820
    %vm5827 = vmor %vm5825, %vm5826
    %v5828 = vsel %vm5827, %v5820, %v5824
    %v5829 = vand.u32 2147483647, %v5819
    %vm5830 = vcmp.eq.f32.partialorder %v5829, 8.507059e+37
    %v5831 = vand.u32 %v5819, 2147483648
    %v5832 = vor.u32 1.1754944e-38, %v5831
    %v5833 = vsel %vm5830, %v5832, %v5828
    %v5834 = vmul.f32 1.0, %v5833
    %v5836 = vrot.slane %v5504, 6
    %v5838 = vmul.f32 %v5814, %v5836
    %v5839 = vmul.f32 %v5795, %v5815
    %v5840 = vadd.f32 %v5838, %v5839
    %v5841 = vtanh.pop %v5840
    %v5842 = vmul.f32 %v5834, %v5841
    %5843 = vmatpush.msra.mxu0 %v3735
    %5844 = vmatpush.msra.mxu0 %v3731
    %5845 = vmatpush.msra.mxu0 %v3727
    %5846 = vmatpush.msra.mxu0 %v3723
    %5847 = vmatpush.msra.mxu0 %v3719
    %5848 = vmatpush.msra.mxu0 %v3715
    %5849 = vmatpush.msra.mxu0 %v3711
    %5850 = vmatpush.msra.mxu0 %v3707
    %5851 = vmatpush.msra.mxu0 %v3703
    %5852 = vmatpush.msra.mxu0 %v3699
    %5853 = vmatpush.msra.mxu0 %v3695
    %5854 = vmatpush.msra.mxu0 %v3691
    %5855 = vmatpush.msra.mxu0 %v3687
    %5856 = vmatpush.msra.mxu0 %v3683
    %5857 = vmatpush.msra.mxu0 %v3679
    %5858 = vmatpush.msra.mxu0 %v3675
    %5859 = vmatmul.f32.gmra.mxu0 %v5674
    %v5860 = vpop.f32.mrf.mxu0
    %v5861 = vadd.f32 0.0, %v5860
    %5862 = vdwg.mxu0
    %5863 = vmatpush.msra.mxu0 %v3736
    %5864 = vmatpush.msra.mxu0 %v3732
    %5865 = vmatpush.msra.mxu0 %v3728
    %5866 = vmatpush.msra.mxu0 %v3724
    %5867 = vmatpush.msra.mxu0 %v3720
    %5868 = vmatpush.msra.mxu0 %v3716
    %5869 = vmatpush.msra.mxu0 %v3712
    %5870 = vmatpush.msra.mxu0 %v3708
    %5871 = vmatpush.msra.mxu0 %v3704
    %5872 = vmatpush.msra.mxu0 %v3700
    %5873 = vmatpush.msra.mxu0 %v3696
    %5874 = vmatpush.msra.mxu0 %v3692
    %5875 = vmatpush.msra.mxu0 %v3688
    %5876 = vmatpush.msra.mxu0 %v3684
    %5877 = vmatpush.msra.mxu0 %v3680
    %5878 = vmatpush.msra.mxu0 %v3676
    %5879 = vmatmul.f32.gmra.mxu0 %v5674
    %v5880 = vpop.f32.mrf.mxu0
    %v5881 = vadd.f32 0.0, %v5880
    %5882 = vdwg.mxu0
    %5883 = vmatpush.msra.mxu0 %v3737
    %5884 = vmatpush.msra.mxu0 %v3733
    %5885 = vmatpush.msra.mxu0 %v3729
    %5886 = vmatpush.msra.mxu0 %v3725
    %5887 = vmatpush.msra.mxu0 %v3721
    %5888 = vmatpush.msra.mxu0 %v3717
    %5889 = vmatpush.msra.mxu0 %v3713
    %5890 = vmatpush.msra.mxu0 %v3709
    %5891 = vmatpush.msra.mxu0 %v3705
    %5892 = vmatpush.msra.mxu0 %v3701
    %5893 = vmatpush.msra.mxu0 %v3697
    %5894 = vmatpush.msra.mxu0 %v3693
    %5895 = vmatpush.msra.mxu0 %v3689
    %5896 = vmatpush.msra.mxu0 %v3685
    %5897 = vmatpush.msra.mxu0 %v3681
    %5898 = vmatpush.msra.mxu0 %v3677
    %5899 = vmatmul.f32.gmra.mxu0 %v5674
    %v5900 = vpop.f32.mrf.mxu0
    %v5901 = vadd.f32 0.0, %v5900
    %5902 = vdwg.mxu0
    %5903 = vmatpush.msra.mxu0 %v3738
    %5904 = vmatpush.msra.mxu0 %v3734
    %5905 = vmatpush.msra.mxu0 %v3730
    %5906 = vmatpush.msra.mxu0 %v3726
    %5907 = vmatpush.msra.mxu0 %v3722
    %5908 = vmatpush.msra.mxu0 %v3718
    %5909 = vmatpush.msra.mxu0 %v3714
    %5910 = vmatpush.msra.mxu0 %v3710
    %5911 = vmatpush.msra.mxu0 %v3706
    %5912 = vmatpush.msra.mxu0 %v3702
    %5913 = vmatpush.msra.mxu0 %v3698
    %5914 = vmatpush.msra.mxu0 %v3694
    %5915 = vmatpush.msra.mxu0 %v3690
    %5916 = vmatpush.msra.mxu0 %v3686
    %5917 = vmatpush.msra.mxu0 %v3682
    %5918 = vmatpush.msra.mxu0 %v3678
    %5919 = vmatmul.f32.gmra.mxu0 %v5674
    %v5920 = vpop.f32.mrf.mxu0
    %v5921 = vadd.f32 0.0, %v5920
    %5922 = vdwg.mxu0
    %v5927 = vrot.slane %v5861, 4
    %v5928 = vrot.slane %v5881, 4
    %v5929 = vrot.slane %v5901, 4
    %v5930 = vrot.slane %v5921, 4
    %v5935 = vadd.f32 %v3540, %v5927
    %v5936 = vadd.f32 %v3563, %v5928
    %v5937 = vadd.f32 %v3586, %v5929
    %v5938 = vadd.f32 %v3609, %v5930
    %v5939 = vxor.u32 %v5935, 2147483648
    %v5940 = vmul.f32 %v5939, 1.442695
    %v5941 = vpow.pop %v5940
    %v5942 = vadd.f32 %v5941, 1.0
    %v5943 = vrcp.pop %v5942
    %v5944 = vmul.f32 %v5942, %v5943
    %v5945 = vsub.f32 1.0, %v5944
    %v5946 = vmul.f32 %v5943, %v5945
    %v5947 = vadd.f32 %v5943, %v5946
    %vm5948 = vweird.f32 %v5942
    %vm5949 = vweird.f32 %v5943
    %vm5950 = vmor %vm5948, %vm5949
    %v5951 = vsel %vm5950, %v5943, %v5947
    %v5952 = vand.u32 2147483647, %v5942
    %vm5953 = vcmp.eq.f32.partialorder %v5952, 8.507059e+37
    %v5954 = vand.u32 %v5942, 2147483648
    %v5955 = vor.u32 1.1754944e-38, %v5954
    %v5956 = vsel %vm5953, %v5955, %v5951
    %v5957 = vmul.f32 1.0, %v5956
    %v5958 = vxor.u32 %v5936, 2147483648
    %v5959 = vmul.f32 %v5958, 1.442695
    %v5960 = vpow.pop %v5959
    %v5961 = vadd.f32 %v5960, 1.0
    %v5962 = vrcp.pop %v5961
    %v5963 = vmul.f32 %v5961, %v5962
    %v5964 = vsub.f32 1.0, %v5963
    %v5965 = vmul.f32 %v5962, %v5964
    %v5966 = vadd.f32 %v5962, %v5965
    %vm5967 = vweird.f32 %v5961
    %vm5968 = vweird.f32 %v5962
    %vm5969 = vmor %vm5967, %vm5968
    %v5970 = vsel %vm5969, %v5962, %v5966
    %v5971 = vand.u32 2147483647, %v5961
    %vm5972 = vcmp.eq.f32.partialorder %v5971, 8.507059e+37
    %v5973 = vand.u32 %v5961, 2147483648
    %v5974 = vor.u32 1.1754944e-38, %v5973
    %v5975 = vsel %vm5972, %v5974, %v5970
    %v5976 = vmul.f32 1.0, %v5975
    %v5977 = vtanh.pop %v5937
    %v5978 = vxor.u32 %v5938, 2147483648
    %v5979 = vmul.f32 %v5978, 1.442695
    %v5980 = vpow.pop %v5979
    %v5981 = vadd.f32 %v5980, 1.0
    %v5982 = vrcp.pop %v5981
    %v5983 = vmul.f32 %v5981, %v5982
    %v5984 = vsub.f32 1.0, %v5983
    %v5985 = vmul.f32 %v5982, %v5984
    %v5986 = vadd.f32 %v5982, %v5985
    %vm5987 = vweird.f32 %v5981
    %vm5988 = vweird.f32 %v5982
    %vm5989 = vmor %vm5987, %vm5988
    %v5990 = vsel %vm5989, %v5982, %v5986
    %v5991 = vand.u32 2147483647, %v5981
    %vm5992 = vcmp.eq.f32.partialorder %v5991, 8.507059e+37
    %v5993 = vand.u32 %v5981, 2147483648
    %v5994 = vor.u32 1.1754944e-38, %v5993
    %v5995 = vsel %vm5992, %v5994, %v5990
    %v5996 = vmul.f32 1.0, %v5995
    %v5998 = vrot.slane %v5666, 6
    %v6000 = vmul.f32 %v5976, %v5998
    %v6001 = vmul.f32 %v5957, %v5977
    %v6002 = vadd.f32 %v6000, %v6001
    %v6003 = vtanh.pop %v6002
    %v6004 = vmul.f32 %v5996, %v6003
    %v6006 = vrot.slane %v5842, 4
    %v6008 = vadd.f32 %v5680, %v6006
    %v6010 = vrot.slane %v6004, 4
    %v6012 = vadd.f32 %v6008, %v6010
    %v6013 = vrot.slane %v220, 4
    %v6015 = vadd.f32 %v6012, %v6013
    %6016 = vmatpush.msra.mxu0 %v3671
    %6017 = vmatpush.msra.mxu0 %v3667
    %6018 = vmatpush.msra.mxu0 %v3663
    %6019 = vmatpush.msra.mxu0 %v3659
    %6020 = vmatpush.msra.mxu0 %v3655
    %6021 = vmatpush.msra.mxu0 %v3651
    %6022 = vmatpush.msra.mxu0 %v3647
    %6023 = vmatpush.msra.mxu0 %v3643
    %6024 = vmatpush.msra.mxu0 %v3639
    %6025 = vmatpush.msra.mxu0 %v3635
    %6026 = vmatpush.msra.mxu0 %v3631
    %6027 = vmatpush.msra.mxu0 %v3627
    %6028 = vmatpush.msra.mxu0 %v3623
    %6029 = vmatpush.msra.mxu0 %v3619
    %6030 = vmatpush.msra.mxu0 %v3615
    %6031 = vmatpush.msra.mxu0 %v3611
    %6032 = vmatmul.f32.gmra.mxu0 %v6006
    %v6033 = vpop.f32.mrf.mxu0
    %v6034 = vadd.f32 0.0, %v6033
    %6035 = vdwg.mxu0
    %6036 = vmatpush.msra.mxu0 %v3672
    %6037 = vmatpush.msra.mxu0 %v3668
    %6038 = vmatpush.msra.mxu0 %v3664
    %6039 = vmatpush.msra.mxu0 %v3660
    %6040 = vmatpush.msra.mxu0 %v3656
    %6041 = vmatpush.msra.mxu0 %v3652
    %6042 = vmatpush.msra.mxu0 %v3648
    %6043 = vmatpush.msra.mxu0 %v3644
    %6044 = vmatpush.msra.mxu0 %v3640
    %6045 = vmatpush.msra.mxu0 %v3636
    %6046 = vmatpush.msra.mxu0 %v3632
    %6047 = vmatpush.msra.mxu0 %v3628
    %6048 = vmatpush.msra.mxu0 %v3624
    %6049 = vmatpush.msra.mxu0 %v3620
    %6050 = vmatpush.msra.mxu0 %v3616
    %6051 = vmatpush.msra.mxu0 %v3612
    %6052 = vmatmul.f32.gmra.mxu0 %v6006
    %v6053 = vpop.f32.mrf.mxu0
    %v6054 = vadd.f32 0.0, %v6053
    %6055 = vdwg.mxu0
    %6056 = vmatpush.msra.mxu0 %v3673
    %6057 = vmatpush.msra.mxu0 %v3669
    %6058 = vmatpush.msra.mxu0 %v3665
    %6059 = vmatpush.msra.mxu0 %v3661
    %6060 = vmatpush.msra.mxu0 %v3657
    %6061 = vmatpush.msra.mxu0 %v3653
    %6062 = vmatpush.msra.mxu0 %v3649
    %6063 = vmatpush.msra.mxu0 %v3645
    %6064 = vmatpush.msra.mxu0 %v3641
    %6065 = vmatpush.msra.mxu0 %v3637
    %6066 = vmatpush.msra.mxu0 %v3633
    %6067 = vmatpush.msra.mxu0 %v3629
    %6068 = vmatpush.msra.mxu0 %v3625
    %6069 = vmatpush.msra.mxu0 %v3621
    %6070 = vmatpush.msra.mxu0 %v3617
    %6071 = vmatpush.msra.mxu0 %v3613
    %6072 = vmatmul.f32.gmra.mxu0 %v6006
    %v6073 = vpop.f32.mrf.mxu0
    %v6074 = vadd.f32 0.0, %v6073
    %6075 = vdwg.mxu0
    %6076 = vmatpush.msra.mxu0 %v3674
    %6077 = vmatpush.msra.mxu0 %v3670
    %6078 = vmatpush.msra.mxu0 %v3666
    %6079 = vmatpush.msra.mxu0 %v3662
    %6080 = vmatpush.msra.mxu0 %v3658
    %6081 = vmatpush.msra.mxu0 %v3654
    %6082 = vmatpush.msra.mxu0 %v3650
    %6083 = vmatpush.msra.mxu0 %v3646
    %6084 = vmatpush.msra.mxu0 %v3642
    %6085 = vmatpush.msra.mxu0 %v3638
    %6086 = vmatpush.msra.mxu0 %v3634
    %6087 = vmatpush.msra.mxu0 %v3630
    %6088 = vmatpush.msra.mxu0 %v3626
    %6089 = vmatpush.msra.mxu0 %v3622
    %6090 = vmatpush.msra.mxu0 %v3618
    %6091 = vmatpush.msra.mxu0 %v3614
    %6092 = vmatmul.f32.gmra.mxu0 %v6006
    %v6093 = vpop.f32.mrf.mxu0
    %v6094 = vadd.f32 0.0, %v6093
    %6095 = vdwg.mxu0
    %v6100 = vrot.slane %v6034, 2
    %v6101 = vrot.slane %v6054, 2
    %v6102 = vrot.slane %v6074, 2
    %v6103 = vrot.slane %v6094, 2
    %v6108 = vadd.f32 %v3374, %v6100
    %v6109 = vadd.f32 %v3397, %v6101
    %v6110 = vadd.f32 %v3420, %v6102
    %v6111 = vadd.f32 %v3443, %v6103
    %v6112 = vxor.u32 %v6108, 2147483648
    %v6113 = vmul.f32 %v6112, 1.442695
    %v6114 = vpow.pop %v6113
    %v6115 = vadd.f32 %v6114, 1.0
    %v6116 = vrcp.pop %v6115
    %v6117 = vmul.f32 %v6115, %v6116
    %v6118 = vsub.f32 1.0, %v6117
    %v6119 = vmul.f32 %v6116, %v6118
    %v6120 = vadd.f32 %v6116, %v6119
    %vm6121 = vweird.f32 %v6115
    %vm6122 = vweird.f32 %v6116
    %vm6123 = vmor %vm6121, %vm6122
    %v6124 = vsel %vm6123, %v6116, %v6120
    %v6125 = vand.u32 2147483647, %v6115
    %vm6126 = vcmp.eq.f32.partialorder %v6125, 8.507059e+37
    %v6127 = vand.u32 %v6115, 2147483648
    %v6128 = vor.u32 1.1754944e-38, %v6127
    %v6129 = vsel %vm6126, %v6128, %v6124
    %v6130 = vmul.f32 1.0, %v6129
    %v6131 = vxor.u32 %v6109, 2147483648
    %v6132 = vmul.f32 %v6131, 1.442695
    %v6133 = vpow.pop %v6132
    %v6134 = vadd.f32 %v6133, 1.0
    %v6135 = vrcp.pop %v6134
    %v6136 = vmul.f32 %v6134, %v6135
    %v6137 = vsub.f32 1.0, %v6136
    %v6138 = vmul.f32 %v6135, %v6137
    %v6139 = vadd.f32 %v6135, %v6138
    %vm6140 = vweird.f32 %v6134
    %vm6141 = vweird.f32 %v6135
    %vm6142 = vmor %vm6140, %vm6141
    %v6143 = vsel %vm6142, %v6135, %v6139
    %v6144 = vand.u32 2147483647, %v6134
    %vm6145 = vcmp.eq.f32.partialorder %v6144, 8.507059e+37
    %v6146 = vand.u32 %v6134, 2147483648
    %v6147 = vor.u32 1.1754944e-38, %v6146
    %v6148 = vsel %vm6145, %v6147, %v6143
    %v6149 = vmul.f32 1.0, %v6148
    %v6150 = vtanh.pop %v6110
    %v6151 = vxor.u32 %v6111, 2147483648
    %v6152 = vmul.f32 %v6151, 1.442695
    %v6153 = vpow.pop %v6152
    %v6154 = vadd.f32 %v6153, 1.0
    %v6155 = vrcp.pop %v6154
    %v6156 = vmul.f32 %v6154, %v6155
    %v6157 = vsub.f32 1.0, %v6156
    %v6158 = vmul.f32 %v6155, %v6157
    %v6159 = vadd.f32 %v6155, %v6158
    %vm6160 = vweird.f32 %v6154
    %vm6161 = vweird.f32 %v6155
    %vm6162 = vmor %vm6160, %vm6161
    %v6163 = vsel %vm6162, %v6155, %v6159
    %v6164 = vand.u32 2147483647, %v6154
    %vm6165 = vcmp.eq.f32.partialorder %v6164, 8.507059e+37
    %v6166 = vand.u32 %v6154, 2147483648
    %v6167 = vor.u32 1.1754944e-38, %v6166
    %v6168 = vsel %vm6165, %v6167, %v6163
    %v6169 = vmul.f32 1.0, %v6168
    %v6171 = vrot.slane %v5840, 6
    %v6173 = vmul.f32 %v6149, %v6171
    %v6174 = vmul.f32 %v6130, %v6150
    %v6175 = vadd.f32 %v6173, %v6174
    %v6176 = vtanh.pop %v6175
    %v6177 = vmul.f32 %v6169, %v6176
    %6178 = vmatpush.msra.mxu0 %v3735
    %6179 = vmatpush.msra.mxu0 %v3731
    %6180 = vmatpush.msra.mxu0 %v3727
    %6181 = vmatpush.msra.mxu0 %v3723
    %6182 = vmatpush.msra.mxu0 %v3719
    %6183 = vmatpush.msra.mxu0 %v3715
    %6184 = vmatpush.msra.mxu0 %v3711
    %6185 = vmatpush.msra.mxu0 %v3707
    %6186 = vmatpush.msra.mxu0 %v3703
    %6187 = vmatpush.msra.mxu0 %v3699
    %6188 = vmatpush.msra.mxu0 %v3695
    %6189 = vmatpush.msra.mxu0 %v3691
    %6190 = vmatpush.msra.mxu0 %v3687
    %6191 = vmatpush.msra.mxu0 %v3683
    %6192 = vmatpush.msra.mxu0 %v3679
    %6193 = vmatpush.msra.mxu0 %v3675
    %6194 = vmatmul.f32.gmra.mxu0 %v6010
    %v6195 = vpop.f32.mrf.mxu0
    %v6196 = vadd.f32 0.0, %v6195
    %6197 = vdwg.mxu0
    %6198 = vmatpush.msra.mxu0 %v3736
    %6199 = vmatpush.msra.mxu0 %v3732
    %6200 = vmatpush.msra.mxu0 %v3728
    %6201 = vmatpush.msra.mxu0 %v3724
    %6202 = vmatpush.msra.mxu0 %v3720
    %6203 = vmatpush.msra.mxu0 %v3716
    %6204 = vmatpush.msra.mxu0 %v3712
    %6205 = vmatpush.msra.mxu0 %v3708
    %6206 = vmatpush.msra.mxu0 %v3704
    %6207 = vmatpush.msra.mxu0 %v3700
    %6208 = vmatpush.msra.mxu0 %v3696
    %6209 = vmatpush.msra.mxu0 %v3692
    %6210 = vmatpush.msra.mxu0 %v3688
    %6211 = vmatpush.msra.mxu0 %v3684
    %6212 = vmatpush.msra.mxu0 %v3680
    %6213 = vmatpush.msra.mxu0 %v3676
    %6214 = vmatmul.f32.gmra.mxu0 %v6010
    %v6215 = vpop.f32.mrf.mxu0
    %v6216 = vadd.f32 0.0, %v6215
    %6217 = vdwg.mxu0
    %6218 = vmatpush.msra.mxu0 %v3737
    %6219 = vmatpush.msra.mxu0 %v3733
    %6220 = vmatpush.msra.mxu0 %v3729
    %6221 = vmatpush.msra.mxu0 %v3725
    %6222 = vmatpush.msra.mxu0 %v3721
    %6223 = vmatpush.msra.mxu0 %v3717
    %6224 = vmatpush.msra.mxu0 %v3713
    %6225 = vmatpush.msra.mxu0 %v3709
    %6226 = vmatpush.msra.mxu0 %v3705
    %6227 = vmatpush.msra.mxu0 %v3701
    %6228 = vmatpush.msra.mxu0 %v3697
    %6229 = vmatpush.msra.mxu0 %v3693
    %6230 = vmatpush.msra.mxu0 %v3689
    %6231 = vmatpush.msra.mxu0 %v3685
    %6232 = vmatpush.msra.mxu0 %v3681
    %6233 = vmatpush.msra.mxu0 %v3677
    %6234 = vmatmul.f32.gmra.mxu0 %v6010
    %v6235 = vpop.f32.mrf.mxu0
    %v6236 = vadd.f32 0.0, %v6235
    %6237 = vdwg.mxu0
    %6238 = vmatpush.msra.mxu0 %v3738
    %6239 = vmatpush.msra.mxu0 %v3734
    %6240 = vmatpush.msra.mxu0 %v3730
    %6241 = vmatpush.msra.mxu0 %v3726
    %6242 = vmatpush.msra.mxu0 %v3722
    %6243 = vmatpush.msra.mxu0 %v3718
    %6244 = vmatpush.msra.mxu0 %v3714
    %6245 = vmatpush.msra.mxu0 %v3710
    %6246 = vmatpush.msra.mxu0 %v3706
    %6247 = vmatpush.msra.mxu0 %v3702
    %6248 = vmatpush.msra.mxu0 %v3698
    %6249 = vmatpush.msra.mxu0 %v3694
    %6250 = vmatpush.msra.mxu0 %v3690
    %6251 = vmatpush.msra.mxu0 %v3686
    %6252 = vmatpush.msra.mxu0 %v3682
    %6253 = vmatpush.msra.mxu0 %v3678
    %6254 = vmatmul.f32.gmra.mxu0 %v6010
    %v6255 = vpop.f32.mrf.mxu0
    %v6256 = vadd.f32 0.0, %v6255
    %6257 = vdwg.mxu0
    %v6262 = vrot.slane %v6196, 2
    %v6263 = vrot.slane %v6216, 2
    %v6264 = vrot.slane %v6236, 2
    %v6265 = vrot.slane %v6256, 2
    %v6270 = vadd.f32 %v3540, %v6262
    %v6271 = vadd.f32 %v3563, %v6263
    %v6272 = vadd.f32 %v3586, %v6264
    %v6273 = vadd.f32 %v3609, %v6265
    %v6274 = vxor.u32 %v6270, 2147483648
    %v6275 = vmul.f32 %v6274, 1.442695
    %v6276 = vpow.pop %v6275
    %v6277 = vadd.f32 %v6276, 1.0
    %v6278 = vrcp.pop %v6277
    %v6279 = vmul.f32 %v6277, %v6278
    %v6280 = vsub.f32 1.0, %v6279
    %v6281 = vmul.f32 %v6278, %v6280
    %v6282 = vadd.f32 %v6278, %v6281
    %vm6283 = vweird.f32 %v6277
    %vm6284 = vweird.f32 %v6278
    %vm6285 = vmor %vm6283, %vm6284
    %v6286 = vsel %vm6285, %v6278, %v6282
    %v6287 = vand.u32 2147483647, %v6277
    %vm6288 = vcmp.eq.f32.partialorder %v6287, 8.507059e+37
    %v6289 = vand.u32 %v6277, 2147483648
    %v6290 = vor.u32 1.1754944e-38, %v6289
    %v6291 = vsel %vm6288, %v6290, %v6286
    %v6292 = vmul.f32 1.0, %v6291
    %v6293 = vxor.u32 %v6271, 2147483648
    %v6294 = vmul.f32 %v6293, 1.442695
    %v6295 = vpow.pop %v6294
    %v6296 = vadd.f32 %v6295, 1.0
    %v6297 = vrcp.pop %v6296
    %v6298 = vmul.f32 %v6296, %v6297
    %v6299 = vsub.f32 1.0, %v6298
    %v6300 = vmul.f32 %v6297, %v6299
    %v6301 = vadd.f32 %v6297, %v6300
    %vm6302 = vweird.f32 %v6296
    %vm6303 = vweird.f32 %v6297
    %vm6304 = vmor %vm6302, %vm6303
    %v6305 = vsel %vm6304, %v6297, %v6301
    %v6306 = vand.u32 2147483647, %v6296
    %vm6307 = vcmp.eq.f32.partialorder %v6306, 8.507059e+37
    %v6308 = vand.u32 %v6296, 2147483648
    %v6309 = vor.u32 1.1754944e-38, %v6308
    %v6310 = vsel %vm6307, %v6309, %v6305
    %v6311 = vmul.f32 1.0, %v6310
    %v6312 = vtanh.pop %v6272
    %v6313 = vxor.u32 %v6273, 2147483648
    %v6314 = vmul.f32 %v6313, 1.442695
    %v6315 = vpow.pop %v6314
    %v6316 = vadd.f32 %v6315, 1.0
    %v6317 = vrcp.pop %v6316
    %v6318 = vmul.f32 %v6316, %v6317
    %v6319 = vsub.f32 1.0, %v6318
    %v6320 = vmul.f32 %v6317, %v6319
    %v6321 = vadd.f32 %v6317, %v6320
    %vm6322 = vweird.f32 %v6316
    %vm6323 = vweird.f32 %v6317
    %vm6324 = vmor %vm6322, %vm6323
    %v6325 = vsel %vm6324, %v6317, %v6321
    %v6326 = vand.u32 2147483647, %v6316
    %vm6327 = vcmp.eq.f32.partialorder %v6326, 8.507059e+37
    %v6328 = vand.u32 %v6316, 2147483648
    %v6329 = vor.u32 1.1754944e-38, %v6328
    %v6330 = vsel %vm6327, %v6329, %v6325
    %v6331 = vmul.f32 1.0, %v6330
    %v6333 = vrot.slane %v6002, 6
    %v6335 = vmul.f32 %v6311, %v6333
    %v6336 = vmul.f32 %v6292, %v6312
    %v6337 = vadd.f32 %v6335, %v6336
    %v6338 = vtanh.pop %v6337
    %v6339 = vmul.f32 %v6331, %v6338
    %v6341 = vrot.slane %v6177, 6
    %v6343 = vadd.f32 %v6015, %v6341
    %v6345 = vrot.slane %v6339, 6
    %v6347 = vadd.f32 %v6343, %v6345
    %v6348 = vrot.slane %v220, 6
    %v6350 = vadd.f32 %v6347, %v6348
    %v6351 = vld [vmem:[#allocation14] sm:$0xff]
    %v6352 = vld [vmem:[#allocation14 + $0x8] sm:$0xff]
    %v6353 = vld [vmem:[#allocation14 + $0x10] sm:$0xff]
    %v6354 = vld [vmem:[#allocation14 + $0x18] sm:$0xff]
    %v6355 = vld [vmem:[#allocation14 + $0x20] sm:$0xff]
    %v6356 = vld [vmem:[#allocation14 + $0x28] sm:$0xff]
    %v6357 = vld [vmem:[#allocation14 + $0x30] sm:$0xff]
    %v6358 = vld [vmem:[#allocation14 + $0x38] sm:$0xff]
    %v6359 = vld [vmem:[#allocation14 + $0x40] sm:$0xff]
    %v6360 = vld [vmem:[#allocation14 + $0x48] sm:$0xff]
    %v6361 = vld [vmem:[#allocation14 + $0x50] sm:$0xff]
    %v6362 = vld [vmem:[#allocation14 + $0x58] sm:$0xff]
    %v6363 = vld [vmem:[#allocation14 + $0x60] sm:$0xff]
    %v6364 = vld [vmem:[#allocation14 + $0x68] sm:$0xff]
    %v6365 = vld [vmem:[#allocation14 + $0x70] sm:$0xff]
    %v6366 = vld [vmem:[#allocation14 + $0x78] sm:$0xff]
    %v6367 = vld [vmem:[#allocation14 + $0x80] sm:$0xff]
    %v6368 = vld [vmem:[#allocation14 + $0x88] sm:$0xff]
    %v6369 = vld [vmem:[#allocation14 + $0x90] sm:$0xff]
    %v6370 = vld [vmem:[#allocation14 + $0x98] sm:$0xff]
    %v6371 = vld [vmem:[#allocation14 + $0xa0] sm:$0xff]
    %v6372 = vld [vmem:[#allocation14 + $0xa8] sm:$0xff]
    %v6373 = vld [vmem:[#allocation14 + $0xb0] sm:$0xff]
    %v6374 = vld [vmem:[#allocation14 + $0xb8] sm:$0xff]
    %v6375 = vld [vmem:[#allocation14 + $0xc0] sm:$0xff]
    %v6376 = vld [vmem:[#allocation14 + $0xc8] sm:$0xff]
    %v6377 = vld [vmem:[#allocation14 + $0xd0] sm:$0xff]
    %v6378 = vld [vmem:[#allocation14 + $0xd8] sm:$0xff]
    %v6379 = vld [vmem:[#allocation14 + $0xe0] sm:$0xff]
    %v6380 = vld [vmem:[#allocation14 + $0xe8] sm:$0xff]
    %v6381 = vld [vmem:[#allocation14 + $0xf0] sm:$0xff]
    %v6382 = vld [vmem:[#allocation14 + $0xf8] sm:$0xff]
    %v6383 = vld [vmem:[#allocation14 + $0x100] sm:$0xff]
    %v6384 = vld [vmem:[#allocation14 + $0x108] sm:$0xff]
    %v6385 = vld [vmem:[#allocation14 + $0x110] sm:$0xff]
    %v6386 = vld [vmem:[#allocation14 + $0x118] sm:$0xff]
    %v6387 = vld [vmem:[#allocation14 + $0x120] sm:$0xff]
    %v6388 = vld [vmem:[#allocation14 + $0x128] sm:$0xff]
    %v6389 = vld [vmem:[#allocation14 + $0x130] sm:$0xff]
    %v6390 = vld [vmem:[#allocation14 + $0x138] sm:$0xff]
    %v6391 = vld [vmem:[#allocation14 + $0x140] sm:$0xff]
    %v6392 = vld [vmem:[#allocation14 + $0x148] sm:$0xff]
    %v6393 = vld [vmem:[#allocation14 + $0x150] sm:$0xff]
    %v6394 = vld [vmem:[#allocation14 + $0x158] sm:$0xff]
    %v6395 = vld [vmem:[#allocation14 + $0x160] sm:$0xff]
    %v6396 = vld [vmem:[#allocation14 + $0x168] sm:$0xff]
    %v6397 = vld [vmem:[#allocation14 + $0x170] sm:$0xff]
    %v6398 = vld [vmem:[#allocation14 + $0x178] sm:$0xff]
    %v6399 = vld [vmem:[#allocation14 + $0x180] sm:$0xff]
    %v6400 = vld [vmem:[#allocation14 + $0x188] sm:$0xff]
    %v6401 = vld [vmem:[#allocation14 + $0x190] sm:$0xff]
    %v6402 = vld [vmem:[#allocation14 + $0x198] sm:$0xff]
    %v6403 = vld [vmem:[#allocation14 + $0x1a0] sm:$0xff]
    %v6404 = vld [vmem:[#allocation14 + $0x1a8] sm:$0xff]
    %v6405 = vld [vmem:[#allocation14 + $0x1b0] sm:$0xff]
    %v6406 = vld [vmem:[#allocation14 + $0x1b8] sm:$0xff]
    %v6407 = vld [vmem:[#allocation14 + $0x1c0] sm:$0xff]
    %v6408 = vld [vmem:[#allocation14 + $0x1c8] sm:$0xff]
    %v6409 = vld [vmem:[#allocation14 + $0x1d0] sm:$0xff]
    %v6410 = vld [vmem:[#allocation14 + $0x1d8] sm:$0xff]
    %v6411 = vld [vmem:[#allocation14 + $0x1e0] sm:$0xff]
    %v6412 = vld [vmem:[#allocation14 + $0x1e8] sm:$0xff]
    %v6413 = vld [vmem:[#allocation14 + $0x1f0] sm:$0xff]
    %v6414 = vld [vmem:[#allocation14 + $0x1f8] sm:$0xff]
    %v6415 = vld [vmem:[%s12] sm:$0xf]
    %v6417 = vperm.slane %v6415, 0
    %v6418 = vperm.slane %v6415, 1
    %v6419 = vperm.slane %v6415, 2
    %v6420 = vperm.slane %v6415, 3
    %v6425 = vld [vmem:[#allocation16] sm:$0xff]
    %v6426 = vld [vmem:[#allocation16 + $0x8] sm:$0xff]
    %v6427 = vld [vmem:[#allocation16 + $0x10] sm:$0xff]
    %v6428 = vld [vmem:[#allocation16 + $0x18] sm:$0xff]
    %v6429 = vld [vmem:[#allocation16 + $0x20] sm:$0xff]
    %v6430 = vld [vmem:[#allocation16 + $0x28] sm:$0xff]
    %v6431 = vld [vmem:[#allocation16 + $0x30] sm:$0xff]
    %v6432 = vld [vmem:[#allocation16 + $0x38] sm:$0xff]
    %v6433 = vld [vmem:[#allocation16 + $0x40] sm:$0xff]
    %v6434 = vld [vmem:[#allocation16 + $0x48] sm:$0xff]
    %v6435 = vld [vmem:[#allocation16 + $0x50] sm:$0xff]
    %v6436 = vld [vmem:[#allocation16 + $0x58] sm:$0xff]
    %v6437 = vld [vmem:[#allocation16 + $0x60] sm:$0xff]
    %v6438 = vld [vmem:[#allocation16 + $0x68] sm:$0xff]
    %v6439 = vld [vmem:[#allocation16 + $0x70] sm:$0xff]
    %v6440 = vld [vmem:[#allocation16 + $0x78] sm:$0xff]
    %v6441 = vld [vmem:[#allocation16 + $0x80] sm:$0xff]
    %v6442 = vld [vmem:[#allocation16 + $0x88] sm:$0xff]
    %v6443 = vld [vmem:[#allocation16 + $0x90] sm:$0xff]
    %v6444 = vld [vmem:[#allocation16 + $0x98] sm:$0xff]
    %v6445 = vld [vmem:[#allocation16 + $0xa0] sm:$0xff]
    %v6446 = vld [vmem:[#allocation16 + $0xa8] sm:$0xff]
    %v6447 = vld [vmem:[#allocation16 + $0xb0] sm:$0xff]
    %v6448 = vld [vmem:[#allocation16 + $0xb8] sm:$0xff]
    %v6449 = vld [vmem:[#allocation16 + $0xc0] sm:$0xff]
    %v6450 = vld [vmem:[#allocation16 + $0xc8] sm:$0xff]
    %v6451 = vld [vmem:[#allocation16 + $0xd0] sm:$0xff]
    %v6452 = vld [vmem:[#allocation16 + $0xd8] sm:$0xff]
    %v6453 = vld [vmem:[#allocation16 + $0xe0] sm:$0xff]
    %v6454 = vld [vmem:[#allocation16 + $0xe8] sm:$0xff]
    %v6455 = vld [vmem:[#allocation16 + $0xf0] sm:$0xff]
    %v6456 = vld [vmem:[#allocation16 + $0xf8] sm:$0xff]
    %v6457 = vld [vmem:[#allocation16 + $0x100] sm:$0xff]
    %v6458 = vld [vmem:[#allocation16 + $0x108] sm:$0xff]
    %v6459 = vld [vmem:[#allocation16 + $0x110] sm:$0xff]
    %v6460 = vld [vmem:[#allocation16 + $0x118] sm:$0xff]
    %v6461 = vld [vmem:[#allocation16 + $0x120] sm:$0xff]
    %v6462 = vld [vmem:[#allocation16 + $0x128] sm:$0xff]
    %v6463 = vld [vmem:[#allocation16 + $0x130] sm:$0xff]
    %v6464 = vld [vmem:[#allocation16 + $0x138] sm:$0xff]
    %v6465 = vld [vmem:[#allocation16 + $0x140] sm:$0xff]
    %v6466 = vld [vmem:[#allocation16 + $0x148] sm:$0xff]
    %v6467 = vld [vmem:[#allocation16 + $0x150] sm:$0xff]
    %v6468 = vld [vmem:[#allocation16 + $0x158] sm:$0xff]
    %v6469 = vld [vmem:[#allocation16 + $0x160] sm:$0xff]
    %v6470 = vld [vmem:[#allocation16 + $0x168] sm:$0xff]
    %v6471 = vld [vmem:[#allocation16 + $0x170] sm:$0xff]
    %v6472 = vld [vmem:[#allocation16 + $0x178] sm:$0xff]
    %v6473 = vld [vmem:[#allocation16 + $0x180] sm:$0xff]
    %v6474 = vld [vmem:[#allocation16 + $0x188] sm:$0xff]
    %v6475 = vld [vmem:[#allocation16 + $0x190] sm:$0xff]
    %v6476 = vld [vmem:[#allocation16 + $0x198] sm:$0xff]
    %v6477 = vld [vmem:[#allocation16 + $0x1a0] sm:$0xff]
    %v6478 = vld [vmem:[#allocation16 + $0x1a8] sm:$0xff]
    %v6479 = vld [vmem:[#allocation16 + $0x1b0] sm:$0xff]
    %v6480 = vld [vmem:[#allocation16 + $0x1b8] sm:$0xff]
    %v6481 = vld [vmem:[#allocation16 + $0x1c0] sm:$0xff]
    %v6482 = vld [vmem:[#allocation16 + $0x1c8] sm:$0xff]
    %v6483 = vld [vmem:[#allocation16 + $0x1d0] sm:$0xff]
    %v6484 = vld [vmem:[#allocation16 + $0x1d8] sm:$0xff]
    %v6485 = vld [vmem:[#allocation16 + $0x1e0] sm:$0xff]
    %v6486 = vld [vmem:[#allocation16 + $0x1e8] sm:$0xff]
    %v6487 = vld [vmem:[#allocation16 + $0x1f0] sm:$0xff]
    %v6488 = vld [vmem:[#allocation16 + $0x1f8] sm:$0xff]
    %v6489 = vld [vmem:[#allocation17] sm:$0xff]
    %v6490 = vld [vmem:[#allocation17 + $0x8] sm:$0xff]
    %v6491 = vld [vmem:[#allocation17 + $0x10] sm:$0xff]
    %v6492 = vld [vmem:[#allocation17 + $0x18] sm:$0xff]
    %v6493 = vld [vmem:[#allocation17 + $0x20] sm:$0xff]
    %v6494 = vld [vmem:[#allocation17 + $0x28] sm:$0xff]
    %v6495 = vld [vmem:[#allocation17 + $0x30] sm:$0xff]
    %v6496 = vld [vmem:[#allocation17 + $0x38] sm:$0xff]
    %v6497 = vld [vmem:[#allocation17 + $0x40] sm:$0xff]
    %v6498 = vld [vmem:[#allocation17 + $0x48] sm:$0xff]
    %v6499 = vld [vmem:[#allocation17 + $0x50] sm:$0xff]
    %v6500 = vld [vmem:[#allocation17 + $0x58] sm:$0xff]
    %v6501 = vld [vmem:[#allocation17 + $0x60] sm:$0xff]
    %v6502 = vld [vmem:[#allocation17 + $0x68] sm:$0xff]
    %v6503 = vld [vmem:[#allocation17 + $0x70] sm:$0xff]
    %v6504 = vld [vmem:[#allocation17 + $0x78] sm:$0xff]
    %v6505 = vld [vmem:[#allocation17 + $0x80] sm:$0xff]
    %v6506 = vld [vmem:[#allocation17 + $0x88] sm:$0xff]
    %v6507 = vld [vmem:[#allocation17 + $0x90] sm:$0xff]
    %v6508 = vld [vmem:[#allocation17 + $0x98] sm:$0xff]
    %v6509 = vld [vmem:[#allocation17 + $0xa0] sm:$0xff]
    %v6510 = vld [vmem:[#allocation17 + $0xa8] sm:$0xff]
    %v6511 = vld [vmem:[#allocation17 + $0xb0] sm:$0xff]
    %v6512 = vld [vmem:[#allocation17 + $0xb8] sm:$0xff]
    %v6513 = vld [vmem:[#allocation17 + $0xc0] sm:$0xff]
    %v6514 = vld [vmem:[#allocation17 + $0xc8] sm:$0xff]
    %v6515 = vld [vmem:[#allocation17 + $0xd0] sm:$0xff]
    %v6516 = vld [vmem:[#allocation17 + $0xd8] sm:$0xff]
    %v6517 = vld [vmem:[#allocation17 + $0xe0] sm:$0xff]
    %v6518 = vld [vmem:[#allocation17 + $0xe8] sm:$0xff]
    %v6519 = vld [vmem:[#allocation17 + $0xf0] sm:$0xff]
    %v6520 = vld [vmem:[#allocation17 + $0xf8] sm:$0xff]
    %v6521 = vld [vmem:[#allocation17 + $0x100] sm:$0xff]
    %v6522 = vld [vmem:[#allocation17 + $0x108] sm:$0xff]
    %v6523 = vld [vmem:[#allocation17 + $0x110] sm:$0xff]
    %v6524 = vld [vmem:[#allocation17 + $0x118] sm:$0xff]
    %v6525 = vld [vmem:[#allocation17 + $0x120] sm:$0xff]
    %v6526 = vld [vmem:[#allocation17 + $0x128] sm:$0xff]
    %v6527 = vld [vmem:[#allocation17 + $0x130] sm:$0xff]
    %v6528 = vld [vmem:[#allocation17 + $0x138] sm:$0xff]
    %v6529 = vld [vmem:[#allocation17 + $0x140] sm:$0xff]
    %v6530 = vld [vmem:[#allocation17 + $0x148] sm:$0xff]
    %v6531 = vld [vmem:[#allocation17 + $0x150] sm:$0xff]
    %v6532 = vld [vmem:[#allocation17 + $0x158] sm:$0xff]
    %v6533 = vld [vmem:[#allocation17 + $0x160] sm:$0xff]
    %v6534 = vld [vmem:[#allocation17 + $0x168] sm:$0xff]
    %v6535 = vld [vmem:[#allocation17 + $0x170] sm:$0xff]
    %v6536 = vld [vmem:[#allocation17 + $0x178] sm:$0xff]
    %v6537 = vld [vmem:[#allocation17 + $0x180] sm:$0xff]
    %v6538 = vld [vmem:[#allocation17 + $0x188] sm:$0xff]
    %v6539 = vld [vmem:[#allocation17 + $0x190] sm:$0xff]
    %v6540 = vld [vmem:[#allocation17 + $0x198] sm:$0xff]
    %v6541 = vld [vmem:[#allocation17 + $0x1a0] sm:$0xff]
    %v6542 = vld [vmem:[#allocation17 + $0x1a8] sm:$0xff]
    %v6543 = vld [vmem:[#allocation17 + $0x1b0] sm:$0xff]
    %v6544 = vld [vmem:[#allocation17 + $0x1b8] sm:$0xff]
    %v6545 = vld [vmem:[#allocation17 + $0x1c0] sm:$0xff]
    %v6546 = vld [vmem:[#allocation17 + $0x1c8] sm:$0xff]
    %v6547 = vld [vmem:[#allocation17 + $0x1d0] sm:$0xff]
    %v6548 = vld [vmem:[#allocation17 + $0x1d8] sm:$0xff]
    %v6549 = vld [vmem:[#allocation17 + $0x1e0] sm:$0xff]
    %v6550 = vld [vmem:[#allocation17 + $0x1e8] sm:$0xff]
    %v6551 = vld [vmem:[#allocation17 + $0x1f0] sm:$0xff]
    %v6552 = vld [vmem:[#allocation17 + $0x1f8] sm:$0xff]
    %v6553 = vld [vmem:[%s15] sm:$0xf]
    %v6555 = vperm.slane %v6553, 0
    %v6556 = vperm.slane %v6553, 1
    %v6557 = vperm.slane %v6553, 2
    %v6558 = vperm.slane %v6553, 3
    %6563 = vmatpush.msra.mxu0 %v6549
    %6564 = vmatpush.msra.mxu0 %v6545
    %6565 = vmatpush.msra.mxu0 %v6541
    %6566 = vmatpush.msra.mxu0 %v6537
    %6567 = vmatpush.msra.mxu0 %v6533
    %6568 = vmatpush.msra.mxu0 %v6529
    %6569 = vmatpush.msra.mxu0 %v6525
    %6570 = vmatpush.msra.mxu0 %v6521
    %6571 = vmatpush.msra.mxu0 %v6517
    %6572 = vmatpush.msra.mxu0 %v6513
    %6573 = vmatpush.msra.mxu0 %v6509
    %6574 = vmatpush.msra.mxu0 %v6505
    %6575 = vmatpush.msra.mxu0 %v6501
    %6576 = vmatpush.msra.mxu0 %v6497
    %6577 = vmatpush.msra.mxu0 %v6493
    %6578 = vmatpush.msra.mxu0 %v6489
    %6579 = vmatmul.f32.gmra.mxu0 %v6345
    %v6580 = vpop.f32.mrf.mxu0
    %v6581 = vadd.f32 %v6555, %v6580
    %6582 = vdwg.mxu0
    %6583 = vmatpush.msra.mxu0 %v6550
    %6584 = vmatpush.msra.mxu0 %v6546
    %6585 = vmatpush.msra.mxu0 %v6542
    %6586 = vmatpush.msra.mxu0 %v6538
    %6587 = vmatpush.msra.mxu0 %v6534
    %6588 = vmatpush.msra.mxu0 %v6530
    %6589 = vmatpush.msra.mxu0 %v6526
    %6590 = vmatpush.msra.mxu0 %v6522
    %6591 = vmatpush.msra.mxu0 %v6518
    %6592 = vmatpush.msra.mxu0 %v6514
    %6593 = vmatpush.msra.mxu0 %v6510
    %6594 = vmatpush.msra.mxu0 %v6506
    %6595 = vmatpush.msra.mxu0 %v6502
    %6596 = vmatpush.msra.mxu0 %v6498
    %6597 = vmatpush.msra.mxu0 %v6494
    %6598 = vmatpush.msra.mxu0 %v6490
    %6599 = vmatmul.f32.gmra.mxu0 %v6345
    %v6600 = vpop.f32.mrf.mxu0
    %v6601 = vadd.f32 %v6556, %v6600
    %6602 = vdwg.mxu0
    %6603 = vmatpush.msra.mxu0 %v6551
    %6604 = vmatpush.msra.mxu0 %v6547
    %6605 = vmatpush.msra.mxu0 %v6543
    %6606 = vmatpush.msra.mxu0 %v6539
    %6607 = vmatpush.msra.mxu0 %v6535
    %6608 = vmatpush.msra.mxu0 %v6531
    %6609 = vmatpush.msra.mxu0 %v6527
    %6610 = vmatpush.msra.mxu0 %v6523
    %6611 = vmatpush.msra.mxu0 %v6519
    %6612 = vmatpush.msra.mxu0 %v6515
    %6613 = vmatpush.msra.mxu0 %v6511
    %6614 = vmatpush.msra.mxu0 %v6507
    %6615 = vmatpush.msra.mxu0 %v6503
    %6616 = vmatpush.msra.mxu0 %v6499
    %6617 = vmatpush.msra.mxu0 %v6495
    %6618 = vmatpush.msra.mxu0 %v6491
    %6619 = vmatmul.f32.gmra.mxu0 %v6345
    %v6620 = vpop.f32.mrf.mxu0
    %v6621 = vadd.f32 %v6557, %v6620
    %6622 = vdwg.mxu0
    %6623 = vmatpush.msra.mxu0 %v6552
    %6624 = vmatpush.msra.mxu0 %v6548
    %6625 = vmatpush.msra.mxu0 %v6544
    %6626 = vmatpush.msra.mxu0 %v6540
    %6627 = vmatpush.msra.mxu0 %v6536
    %6628 = vmatpush.msra.mxu0 %v6532
    %6629 = vmatpush.msra.mxu0 %v6528
    %6630 = vmatpush.msra.mxu0 %v6524
    %6631 = vmatpush.msra.mxu0 %v6520
    %6632 = vmatpush.msra.mxu0 %v6516
    %6633 = vmatpush.msra.mxu0 %v6512
    %6634 = vmatpush.msra.mxu0 %v6508
    %6635 = vmatpush.msra.mxu0 %v6504
    %6636 = vmatpush.msra.mxu0 %v6500
    %6637 = vmatpush.msra.mxu0 %v6496
    %6638 = vmatpush.msra.mxu0 %v6492
    %6639 = vmatmul.f32.gmra.mxu0 %v6345
    %v6640 = vpop.f32.mrf.mxu0
    %v6641 = vadd.f32 %v6558, %v6640
    %6642 = vdwg.mxu0
    %6643 = vmatpush.msra.mxu0 %v6411
    %6644 = vmatpush.msra.mxu0 %v6407
    %6645 = vmatpush.msra.mxu0 %v6403
    %6646 = vmatpush.msra.mxu0 %v6399
    %6647 = vmatpush.msra.mxu0 %v6395
    %6648 = vmatpush.msra.mxu0 %v6391
    %6649 = vmatpush.msra.mxu0 %v6387
    %6650 = vmatpush.msra.mxu0 %v6383
    %6651 = vmatpush.msra.mxu0 %v6379
    %6652 = vmatpush.msra.mxu0 %v6375
    %6653 = vmatpush.msra.mxu0 %v6371
    %6654 = vmatpush.msra.mxu0 %v6367
    %6655 = vmatpush.msra.mxu0 %v6363
    %6656 = vmatpush.msra.mxu0 %v6359
    %6657 = vmatpush.msra.mxu0 %v6355
    %6658 = vmatpush.msra.mxu0 %v6351
    %6659 = vmatmul.f32.gmra.mxu0 %v6341
    %v6660 = vpop.f32.mrf.mxu0
    %v6661 = vadd.f32 %v6417, %v6660
    %6662 = vdwg.mxu0
    %6663 = vmatpush.msra.mxu0 %v6412
    %6664 = vmatpush.msra.mxu0 %v6408
    %6665 = vmatpush.msra.mxu0 %v6404
    %6666 = vmatpush.msra.mxu0 %v6400
    %6667 = vmatpush.msra.mxu0 %v6396
    %6668 = vmatpush.msra.mxu0 %v6392
    %6669 = vmatpush.msra.mxu0 %v6388
    %6670 = vmatpush.msra.mxu0 %v6384
    %6671 = vmatpush.msra.mxu0 %v6380
    %6672 = vmatpush.msra.mxu0 %v6376
    %6673 = vmatpush.msra.mxu0 %v6372
    %6674 = vmatpush.msra.mxu0 %v6368
    %6675 = vmatpush.msra.mxu0 %v6364
    %6676 = vmatpush.msra.mxu0 %v6360
    %6677 = vmatpush.msra.mxu0 %v6356
    %6678 = vmatpush.msra.mxu0 %v6352
    %6679 = vmatmul.f32.gmra.mxu0 %v6341
    %v6680 = vpop.f32.mrf.mxu0
    %v6681 = vadd.f32 %v6418, %v6680
    %6682 = vdwg.mxu0
    %6683 = vmatpush.msra.mxu0 %v6413
    %6684 = vmatpush.msra.mxu0 %v6409
    %6685 = vmatpush.msra.mxu0 %v6405
    %6686 = vmatpush.msra.mxu0 %v6401
    %6687 = vmatpush.msra.mxu0 %v6397
    %6688 = vmatpush.msra.mxu0 %v6393
    %6689 = vmatpush.msra.mxu0 %v6389
    %6690 = vmatpush.msra.mxu0 %v6385
    %6691 = vmatpush.msra.mxu0 %v6381
    %6692 = vmatpush.msra.mxu0 %v6377
    %6693 = vmatpush.msra.mxu0 %v6373
    %6694 = vmatpush.msra.mxu0 %v6369
    %6695 = vmatpush.msra.mxu0 %v6365
    %6696 = vmatpush.msra.mxu0 %v6361
    %6697 = vmatpush.msra.mxu0 %v6357
    %6698 = vmatpush.msra.mxu0 %v6353
    %6699 = vmatmul.f32.gmra.mxu0 %v6341
    %v6700 = vpop.f32.mrf.mxu0
    %v6701 = vadd.f32 %v6419, %v6700
    %6702 = vdwg.mxu0
    %6703 = vmatpush.msra.mxu0 %v6414
    %6704 = vmatpush.msra.mxu0 %v6410
    %6705 = vmatpush.msra.mxu0 %v6406
    %6706 = vmatpush.msra.mxu0 %v6402
    %6707 = vmatpush.msra.mxu0 %v6398
    %6708 = vmatpush.msra.mxu0 %v6394
    %6709 = vmatpush.msra.mxu0 %v6390
    %6710 = vmatpush.msra.mxu0 %v6386
    %6711 = vmatpush.msra.mxu0 %v6382
    %6712 = vmatpush.msra.mxu0 %v6378
    %6713 = vmatpush.msra.mxu0 %v6374
    %6714 = vmatpush.msra.mxu0 %v6370
    %6715 = vmatpush.msra.mxu0 %v6366
    %6716 = vmatpush.msra.mxu0 %v6362
    %6717 = vmatpush.msra.mxu0 %v6358
    %6718 = vmatpush.msra.mxu0 %v6354
    %6719 = vmatmul.f32.gmra.mxu0 %v6341
    %v6720 = vpop.f32.mrf.mxu0
    %v6721 = vadd.f32 %v6420, %v6720
    %6722 = vdwg.mxu0
    %v6723 = vxor.u32 %v6661, 2147483648
    %v6724 = vmul.f32 %v6723, 1.442695
    %v6725 = vpow.pop %v6724
    %v6726 = vadd.f32 %v6725, 1.0
    %v6727 = vrcp.pop %v6726
    %v6728 = vmul.f32 %v6726, %v6727
    %v6729 = vsub.f32 1.0, %v6728
    %v6730 = vmul.f32 %v6727, %v6729
    %v6731 = vadd.f32 %v6727, %v6730
    %vm6732 = vweird.f32 %v6726
    %vm6733 = vweird.f32 %v6727
    %vm6734 = vmor %vm6732, %vm6733
    %v6735 = vsel %vm6734, %v6727, %v6731
    %v6736 = vand.u32 2147483647, %v6726
    %vm6737 = vcmp.eq.f32.partialorder %v6736, 8.507059e+37
    %v6738 = vand.u32 %v6726, 2147483648
    %v6739 = vor.u32 1.1754944e-38, %v6738
    %v6740 = vsel %vm6737, %v6739, %v6735
    %v6741 = vmul.f32 1.0, %v6740
    %v6742 = vxor.u32 %v6681, 2147483648
    %v6743 = vmul.f32 %v6742, 1.442695
    %v6744 = vpow.pop %v6743
    %v6745 = vadd.f32 %v6744, 1.0
    %v6746 = vrcp.pop %v6745
    %v6747 = vmul.f32 %v6745, %v6746
    %v6748 = vsub.f32 1.0, %v6747
    %v6749 = vmul.f32 %v6746, %v6748
    %v6750 = vadd.f32 %v6746, %v6749
    %vm6751 = vweird.f32 %v6745
    %vm6752 = vweird.f32 %v6746
    %vm6753 = vmor %vm6751, %vm6752
    %v6754 = vsel %vm6753, %v6746, %v6750
    %v6755 = vand.u32 2147483647, %v6745
    %vm6756 = vcmp.eq.f32.partialorder %v6755, 8.507059e+37
    %v6757 = vand.u32 %v6745, 2147483648
    %v6758 = vor.u32 1.1754944e-38, %v6757
    %v6759 = vsel %vm6756, %v6758, %v6754
    %v6760 = vmul.f32 1.0, %v6759
    %v6761 = vtanh.pop %v6701
    %v6762 = vxor.u32 %v6721, 2147483648
    %v6763 = vmul.f32 %v6762, 1.442695
    %v6764 = vpow.pop %v6763
    %v6765 = vadd.f32 %v6764, 1.0
    %v6766 = vrcp.pop %v6765
    %v6767 = vmul.f32 %v6765, %v6766
    %v6768 = vsub.f32 1.0, %v6767
    %v6769 = vmul.f32 %v6766, %v6768
    %v6770 = vadd.f32 %v6766, %v6769
    %vm6771 = vweird.f32 %v6765
    %vm6772 = vweird.f32 %v6766
    %vm6773 = vmor %vm6771, %vm6772
    %v6774 = vsel %vm6773, %v6766, %v6770
    %v6775 = vand.u32 2147483647, %v6765
    %vm6776 = vcmp.eq.f32.partialorder %v6775, 8.507059e+37
    %v6777 = vand.u32 %v6765, 2147483648
    %v6778 = vor.u32 1.1754944e-38, %v6777
    %v6779 = vsel %vm6776, %v6778, %v6774
    %v6780 = vmul.f32 1.0, %v6779
    %v6782 = vrot.slane %v6175, 6
    %v6784 = vmul.f32 %v6760, %v6782
    %v6785 = vmul.f32 %v6741, %v6761
    %v6786 = vadd.f32 %v6784, %v6785
    %v6787 = vtanh.pop %v6786
    %v6788 = vmul.f32 %v6780, %v6787
    %6789 = vmatpush.msra.mxu0 %v6485
    %6790 = vmatpush.msra.mxu0 %v6481
    %6791 = vmatpush.msra.mxu0 %v6477
    %6792 = vmatpush.msra.mxu0 %v6473
    %6793 = vmatpush.msra.mxu0 %v6469
    %6794 = vmatpush.msra.mxu0 %v6465
    %6795 = vmatpush.msra.mxu0 %v6461
    %6796 = vmatpush.msra.mxu0 %v6457
    %6797 = vmatpush.msra.mxu0 %v6453
    %6798 = vmatpush.msra.mxu0 %v6449
    %6799 = vmatpush.msra.mxu0 %v6445
    %6800 = vmatpush.msra.mxu0 %v6441
    %6801 = vmatpush.msra.mxu0 %v6437
    %6802 = vmatpush.msra.mxu0 %v6433
    %6803 = vmatpush.msra.mxu0 %v6429
    %6804 = vmatpush.msra.mxu0 %v6425
    %6805 = vmatmul.f32.gmra.mxu0 %v6345
    %v6806 = vpop.f32.mrf.mxu0
    %v6807 = vadd.f32 %v6581, %v6806
    %6808 = vdwg.mxu0
    %6809 = vmatpush.msra.mxu0 %v6486
    %6810 = vmatpush.msra.mxu0 %v6482
    %6811 = vmatpush.msra.mxu0 %v6478
    %6812 = vmatpush.msra.mxu0 %v6474
    %6813 = vmatpush.msra.mxu0 %v6470
    %6814 = vmatpush.msra.mxu0 %v6466
    %6815 = vmatpush.msra.mxu0 %v6462
    %6816 = vmatpush.msra.mxu0 %v6458
    %6817 = vmatpush.msra.mxu0 %v6454
    %6818 = vmatpush.msra.mxu0 %v6450
    %6819 = vmatpush.msra.mxu0 %v6446
    %6820 = vmatpush.msra.mxu0 %v6442
    %6821 = vmatpush.msra.mxu0 %v6438
    %6822 = vmatpush.msra.mxu0 %v6434
    %6823 = vmatpush.msra.mxu0 %v6430
    %6824 = vmatpush.msra.mxu0 %v6426
    %6825 = vmatmul.f32.gmra.mxu0 %v6345
    %v6826 = vpop.f32.mrf.mxu0
    %v6827 = vadd.f32 %v6601, %v6826
    %6828 = vdwg.mxu0
    %6829 = vmatpush.msra.mxu0 %v6487
    %6830 = vmatpush.msra.mxu0 %v6483
    %6831 = vmatpush.msra.mxu0 %v6479
    %6832 = vmatpush.msra.mxu0 %v6475
    %6833 = vmatpush.msra.mxu0 %v6471
    %6834 = vmatpush.msra.mxu0 %v6467
    %6835 = vmatpush.msra.mxu0 %v6463
    %6836 = vmatpush.msra.mxu0 %v6459
    %6837 = vmatpush.msra.mxu0 %v6455
    %6838 = vmatpush.msra.mxu0 %v6451
    %6839 = vmatpush.msra.mxu0 %v6447
    %6840 = vmatpush.msra.mxu0 %v6443
    %6841 = vmatpush.msra.mxu0 %v6439
    %6842 = vmatpush.msra.mxu0 %v6435
    %6843 = vmatpush.msra.mxu0 %v6431
    %6844 = vmatpush.msra.mxu0 %v6427
    %6845 = vmatmul.f32.gmra.mxu0 %v6345
    %v6846 = vpop.f32.mrf.mxu0
    %v6847 = vadd.f32 %v6621, %v6846
    %6848 = vdwg.mxu0
    %6849 = vmatpush.msra.mxu0 %v6488
    %6850 = vmatpush.msra.mxu0 %v6484
    %6851 = vmatpush.msra.mxu0 %v6480
    %6852 = vmatpush.msra.mxu0 %v6476
    %6853 = vmatpush.msra.mxu0 %v6472
    %6854 = vmatpush.msra.mxu0 %v6468
    %6855 = vmatpush.msra.mxu0 %v6464
    %6856 = vmatpush.msra.mxu0 %v6460
    %6857 = vmatpush.msra.mxu0 %v6456
    %6858 = vmatpush.msra.mxu0 %v6452
    %6859 = vmatpush.msra.mxu0 %v6448
    %6860 = vmatpush.msra.mxu0 %v6444
    %6861 = vmatpush.msra.mxu0 %v6440
    %6862 = vmatpush.msra.mxu0 %v6436
    %6863 = vmatpush.msra.mxu0 %v6432
    %6864 = vmatpush.msra.mxu0 %v6428
    %6865 = vmatmul.f32.gmra.mxu0 %v6345
    %v6866 = vpop.f32.mrf.mxu0
    %v6867 = vadd.f32 %v6641, %v6866
    %6868 = vdwg.mxu0
    %v6869 = vxor.u32 %v6807, 2147483648
    %v6870 = vmul.f32 %v6869, 1.442695
    %v6871 = vpow.pop %v6870
    %v6872 = vadd.f32 %v6871, 1.0
    %v6873 = vrcp.pop %v6872
    %v6874 = vmul.f32 %v6872, %v6873
    %v6875 = vsub.f32 1.0, %v6874
    %v6876 = vmul.f32 %v6873, %v6875
    %v6877 = vadd.f32 %v6873, %v6876
    %vm6878 = vweird.f32 %v6872
    %vm6879 = vweird.f32 %v6873
    %vm6880 = vmor %vm6878, %vm6879
    %v6881 = vsel %vm6880, %v6873, %v6877
    %v6882 = vand.u32 2147483647, %v6872
    %vm6883 = vcmp.eq.f32.partialorder %v6882, 8.507059e+37
    %v6884 = vand.u32 %v6872, 2147483648
    %v6885 = vor.u32 1.1754944e-38, %v6884
    %v6886 = vsel %vm6883, %v6885, %v6881
    %v6887 = vmul.f32 1.0, %v6886
    %v6888 = vxor.u32 %v6827, 2147483648
    %v6889 = vmul.f32 %v6888, 1.442695
    %v6890 = vpow.pop %v6889
    %v6891 = vadd.f32 %v6890, 1.0
    %v6892 = vrcp.pop %v6891
    %v6893 = vmul.f32 %v6891, %v6892
    %v6894 = vsub.f32 1.0, %v6893
    %v6895 = vmul.f32 %v6892, %v6894
    %v6896 = vadd.f32 %v6892, %v6895
    %vm6897 = vweird.f32 %v6891
    %vm6898 = vweird.f32 %v6892
    %vm6899 = vmor %vm6897, %vm6898
    %v6900 = vsel %vm6899, %v6892, %v6896
    %v6901 = vand.u32 2147483647, %v6891
    %vm6902 = vcmp.eq.f32.partialorder %v6901, 8.507059e+37
    %v6903 = vand.u32 %v6891, 2147483648
    %v6904 = vor.u32 1.1754944e-38, %v6903
    %v6905 = vsel %vm6902, %v6904, %v6900
    %v6906 = vmul.f32 1.0, %v6905
    %v6907 = vtanh.pop %v6847
    %v6908 = vxor.u32 %v6867, 2147483648
    %v6909 = vmul.f32 %v6908, 1.442695
    %v6910 = vpow.pop %v6909
    %v6911 = vadd.f32 %v6910, 1.0
    %v6912 = vrcp.pop %v6911
    %v6913 = vmul.f32 %v6911, %v6912
    %v6914 = vsub.f32 1.0, %v6913
    %v6915 = vmul.f32 %v6912, %v6914
    %v6916 = vadd.f32 %v6912, %v6915
    %vm6917 = vweird.f32 %v6911
    %vm6918 = vweird.f32 %v6912
    %vm6919 = vmor %vm6917, %vm6918
    %v6920 = vsel %vm6919, %v6912, %v6916
    %v6921 = vand.u32 2147483647, %v6911
    %vm6922 = vcmp.eq.f32.partialorder %v6921, 8.507059e+37
    %v6923 = vand.u32 %v6911, 2147483648
    %v6924 = vor.u32 1.1754944e-38, %v6923
    %v6925 = vsel %vm6922, %v6924, %v6920
    %v6926 = vmul.f32 1.0, %v6925
    %v6928 = vrot.slane %v6337, 6
    %v6930 = vmul.f32 %v6906, %v6928
    %v6931 = vmul.f32 %v6887, %v6907
    %v6932 = vadd.f32 %v6930, %v6931
    %v6933 = vtanh.pop %v6932
    %v6934 = vmul.f32 %v6926, %v6933
    %v6935 = vsub.f32 %v219, %v6788
    %v6936 = vmul.f32 %v6935, %v6935
    %v6937 = vadd.f32 %v6936, 0.0
    %v6939 = vrot.slane %v6934, 2
    %v6941 = vsub.f32 %v220, %v6939
    %v6942 = vmul.f32 %v6941, %v6941
    %v6943 = vadd.f32 %v6942, 0.0
    %6944 = vmatpush.msra.mxu0 %v6411
    %6945 = vmatpush.msra.mxu0 %v6407
    %6946 = vmatpush.msra.mxu0 %v6403
    %6947 = vmatpush.msra.mxu0 %v6399
    %6948 = vmatpush.msra.mxu0 %v6395
    %6949 = vmatpush.msra.mxu0 %v6391
    %6950 = vmatpush.msra.mxu0 %v6387
    %6951 = vmatpush.msra.mxu0 %v6383
    %6952 = vmatpush.msra.mxu0 %v6379
    %6953 = vmatpush.msra.mxu0 %v6375
    %6954 = vmatpush.msra.mxu0 %v6371
    %6955 = vmatpush.msra.mxu0 %v6367
    %6956 = vmatpush.msra.mxu0 %v6363
    %6957 = vmatpush.msra.mxu0 %v6359
    %6958 = vmatpush.msra.mxu0 %v6355
    %6959 = vmatpush.msra.mxu0 %v6351
    %6960 = vmatmul.f32.gmra.mxu0 %v6788
    %v6961 = vpop.f32.mrf.mxu0
    %v6962 = vadd.f32 %v6417, %v6961
    %6963 = vdwg.mxu0
    %6964 = vmatpush.msra.mxu0 %v6412
    %6965 = vmatpush.msra.mxu0 %v6408
    %6966 = vmatpush.msra.mxu0 %v6404
    %6967 = vmatpush.msra.mxu0 %v6400
    %6968 = vmatpush.msra.mxu0 %v6396
    %6969 = vmatpush.msra.mxu0 %v6392
    %6970 = vmatpush.msra.mxu0 %v6388
    %6971 = vmatpush.msra.mxu0 %v6384
    %6972 = vmatpush.msra.mxu0 %v6380
    %6973 = vmatpush.msra.mxu0 %v6376
    %6974 = vmatpush.msra.mxu0 %v6372
    %6975 = vmatpush.msra.mxu0 %v6368
    %6976 = vmatpush.msra.mxu0 %v6364
    %6977 = vmatpush.msra.mxu0 %v6360
    %6978 = vmatpush.msra.mxu0 %v6356
    %6979 = vmatpush.msra.mxu0 %v6352
    %6980 = vmatmul.f32.gmra.mxu0 %v6788
    %v6981 = vpop.f32.mrf.mxu0
    %v6982 = vadd.f32 %v6418, %v6981
    %6983 = vdwg.mxu0
    %6984 = vmatpush.msra.mxu0 %v6413
    %6985 = vmatpush.msra.mxu0 %v6409
    %6986 = vmatpush.msra.mxu0 %v6405
    %6987 = vmatpush.msra.mxu0 %v6401
    %6988 = vmatpush.msra.mxu0 %v6397
    %6989 = vmatpush.msra.mxu0 %v6393
    %6990 = vmatpush.msra.mxu0 %v6389
    %6991 = vmatpush.msra.mxu0 %v6385
    %6992 = vmatpush.msra.mxu0 %v6381
    %6993 = vmatpush.msra.mxu0 %v6377
    %6994 = vmatpush.msra.mxu0 %v6373
    %6995 = vmatpush.msra.mxu0 %v6369
    %6996 = vmatpush.msra.mxu0 %v6365
    %6997 = vmatpush.msra.mxu0 %v6361
    %6998 = vmatpush.msra.mxu0 %v6357
    %6999 = vmatpush.msra.mxu0 %v6353
    %7000 = vmatmul.f32.gmra.mxu0 %v6788
    %v7001 = vpop.f32.mrf.mxu0
    %v7002 = vadd.f32 %v6419, %v7001
    %7003 = vdwg.mxu0
    %7004 = vmatpush.msra.mxu0 %v6414
    %7005 = vmatpush.msra.mxu0 %v6410
    %7006 = vmatpush.msra.mxu0 %v6406
    %7007 = vmatpush.msra.mxu0 %v6402
    %7008 = vmatpush.msra.mxu0 %v6398
    %7009 = vmatpush.msra.mxu0 %v6394
    %7010 = vmatpush.msra.mxu0 %v6390
    %7011 = vmatpush.msra.mxu0 %v6386
    %7012 = vmatpush.msra.mxu0 %v6382
    %7013 = vmatpush.msra.mxu0 %v6378
    %7014 = vmatpush.msra.mxu0 %v6374
    %7015 = vmatpush.msra.mxu0 %v6370
    %7016 = vmatpush.msra.mxu0 %v6366
    %7017 = vmatpush.msra.mxu0 %v6362
    %7018 = vmatpush.msra.mxu0 %v6358
    %7019 = vmatpush.msra.mxu0 %v6354
    %7020 = vmatmul.f32.gmra.mxu0 %v6788
    %v7021 = vpop.f32.mrf.mxu0
    %v7022 = vadd.f32 %v6420, %v7021
    %7023 = vdwg.mxu0
    %v7024 = vxor.u32 %v6962, 2147483648
    %v7025 = vmul.f32 %v7024, 1.442695
    %v7026 = vpow.pop %v7025
    %v7027 = vadd.f32 %v7026, 1.0
    %v7028 = vrcp.pop %v7027
    %v7029 = vmul.f32 %v7027, %v7028
    %v7030 = vsub.f32 1.0, %v7029
    %v7031 = vmul.f32 %v7028, %v7030
    %v7032 = vadd.f32 %v7028, %v7031
    %vm7033 = vweird.f32 %v7027
    %vm7034 = vweird.f32 %v7028
    %vm7035 = vmor %vm7033, %vm7034
    %v7036 = vsel %vm7035, %v7028, %v7032
    %v7037 = vand.u32 2147483647, %v7027
    %vm7038 = vcmp.eq.f32.partialorder %v7037, 8.507059e+37
    %v7039 = vand.u32 %v7027, 2147483648
    %v7040 = vor.u32 1.1754944e-38, %v7039
    %v7041 = vsel %vm7038, %v7040, %v7036
    %v7042 = vmul.f32 1.0, %v7041
    %v7043 = vxor.u32 %v6982, 2147483648
    %v7044 = vmul.f32 %v7043, 1.442695
    %v7045 = vpow.pop %v7044
    %v7046 = vadd.f32 %v7045, 1.0
    %v7047 = vrcp.pop %v7046
    %v7048 = vmul.f32 %v7046, %v7047
    %v7049 = vsub.f32 1.0, %v7048
    %v7050 = vmul.f32 %v7047, %v7049
    %v7051 = vadd.f32 %v7047, %v7050
    %vm7052 = vweird.f32 %v7046
    %vm7053 = vweird.f32 %v7047
    %vm7054 = vmor %vm7052, %vm7053
    %v7055 = vsel %vm7054, %v7047, %v7051
    %v7056 = vand.u32 2147483647, %v7046
    %vm7057 = vcmp.eq.f32.partialorder %v7056, 8.507059e+37
    %v7058 = vand.u32 %v7046, 2147483648
    %v7059 = vor.u32 1.1754944e-38, %v7058
    %v7060 = vsel %vm7057, %v7059, %v7055
    %v7061 = vmul.f32 1.0, %v7060
    %v7062 = vtanh.pop %v7002
    %v7063 = vxor.u32 %v7022, 2147483648
    %v7064 = vmul.f32 %v7063, 1.442695
    %v7065 = vpow.pop %v7064
    %v7066 = vadd.f32 %v7065, 1.0
    %v7067 = vrcp.pop %v7066
    %v7068 = vmul.f32 %v7066, %v7067
    %v7069 = vsub.f32 1.0, %v7068
    %v7070 = vmul.f32 %v7067, %v7069
    %v7071 = vadd.f32 %v7067, %v7070
    %vm7072 = vweird.f32 %v7066
    %vm7073 = vweird.f32 %v7067
    %vm7074 = vmor %vm7072, %vm7073
    %v7075 = vsel %vm7074, %v7067, %v7071
    %v7076 = vand.u32 2147483647, %v7066
    %vm7077 = vcmp.eq.f32.partialorder %v7076, 8.507059e+37
    %v7078 = vand.u32 %v7066, 2147483648
    %v7079 = vor.u32 1.1754944e-38, %v7078
    %v7080 = vsel %vm7077, %v7079, %v7075
    %v7081 = vmul.f32 1.0, %v7080
    %v7082 = vmul.f32 %v7061, %v6786
    %v7083 = vmul.f32 %v7042, %v7062
    %v7084 = vadd.f32 %v7082, %v7083
    %v7085 = vtanh.pop %v7084
    %v7086 = vmul.f32 %v7081, %v7085
    %7087 = vmatpush.msra.mxu0 %v6485
    %7088 = vmatpush.msra.mxu0 %v6481
    %7089 = vmatpush.msra.mxu0 %v6477
    %7090 = vmatpush.msra.mxu0 %v6473
    %7091 = vmatpush.msra.mxu0 %v6469
    %7092 = vmatpush.msra.mxu0 %v6465
    %7093 = vmatpush.msra.mxu0 %v6461
    %7094 = vmatpush.msra.mxu0 %v6457
    %7095 = vmatpush.msra.mxu0 %v6453
    %7096 = vmatpush.msra.mxu0 %v6449
    %7097 = vmatpush.msra.mxu0 %v6445
    %7098 = vmatpush.msra.mxu0 %v6441
    %7099 = vmatpush.msra.mxu0 %v6437
    %7100 = vmatpush.msra.mxu0 %v6433
    %7101 = vmatpush.msra.mxu0 %v6429
    %7102 = vmatpush.msra.mxu0 %v6425
    %7103 = vmatmul.f32.gmra.mxu0 %v6934
    %v7104 = vpop.f32.mrf.mxu0
    %v7105 = vadd.f32 %v6581, %v7104
    %7106 = vdwg.mxu0
    %7107 = vmatpush.msra.mxu0 %v6486
    %7108 = vmatpush.msra.mxu0 %v6482
    %7109 = vmatpush.msra.mxu0 %v6478
    %7110 = vmatpush.msra.mxu0 %v6474
    %7111 = vmatpush.msra.mxu0 %v6470
    %7112 = vmatpush.msra.mxu0 %v6466
    %7113 = vmatpush.msra.mxu0 %v6462
    %7114 = vmatpush.msra.mxu0 %v6458
    %7115 = vmatpush.msra.mxu0 %v6454
    %7116 = vmatpush.msra.mxu0 %v6450
    %7117 = vmatpush.msra.mxu0 %v6446
    %7118 = vmatpush.msra.mxu0 %v6442
    %7119 = vmatpush.msra.mxu0 %v6438
    %7120 = vmatpush.msra.mxu0 %v6434
    %7121 = vmatpush.msra.mxu0 %v6430
    %7122 = vmatpush.msra.mxu0 %v6426
    %7123 = vmatmul.f32.gmra.mxu0 %v6934
    %v7124 = vpop.f32.mrf.mxu0
    %v7125 = vadd.f32 %v6601, %v7124
    %7126 = vdwg.mxu0
    %7127 = vmatpush.msra.mxu0 %v6487
    %7128 = vmatpush.msra.mxu0 %v6483
    %7129 = vmatpush.msra.mxu0 %v6479
    %7130 = vmatpush.msra.mxu0 %v6475
    %7131 = vmatpush.msra.mxu0 %v6471
    %7132 = vmatpush.msra.mxu0 %v6467
    %7133 = vmatpush.msra.mxu0 %v6463
    %7134 = vmatpush.msra.mxu0 %v6459
    %7135 = vmatpush.msra.mxu0 %v6455
    %7136 = vmatpush.msra.mxu0 %v6451
    %7137 = vmatpush.msra.mxu0 %v6447
    %7138 = vmatpush.msra.mxu0 %v6443
    %7139 = vmatpush.msra.mxu0 %v6439
    %7140 = vmatpush.msra.mxu0 %v6435
    %7141 = vmatpush.msra.mxu0 %v6431
    %7142 = vmatpush.msra.mxu0 %v6427
    %7143 = vmatmul.f32.gmra.mxu0 %v6934
    %v7144 = vpop.f32.mrf.mxu0
    %v7145 = vadd.f32 %v6621, %v7144
    %7146 = vdwg.mxu0
    %7147 = vmatpush.msra.mxu0 %v6488
    %7148 = vmatpush.msra.mxu0 %v6484
    %7149 = vmatpush.msra.mxu0 %v6480
    %7150 = vmatpush.msra.mxu0 %v6476
    %7151 = vmatpush.msra.mxu0 %v6472
    %7152 = vmatpush.msra.mxu0 %v6468
    %7153 = vmatpush.msra.mxu0 %v6464
    %7154 = vmatpush.msra.mxu0 %v6460
    %7155 = vmatpush.msra.mxu0 %v6456
    %7156 = vmatpush.msra.mxu0 %v6452
    %7157 = vmatpush.msra.mxu0 %v6448
    %7158 = vmatpush.msra.mxu0 %v6444
    %7159 = vmatpush.msra.mxu0 %v6440
    %7160 = vmatpush.msra.mxu0 %v6436
    %7161 = vmatpush.msra.mxu0 %v6432
    %7162 = vmatpush.msra.mxu0 %v6428
    %7163 = vmatmul.f32.gmra.mxu0 %v6934
    %v7164 = vpop.f32.mrf.mxu0
    %v7165 = vadd.f32 %v6641, %v7164
    %7166 = vdwg.mxu0
    %v7167 = vxor.u32 %v7105, 2147483648
    %v7168 = vmul.f32 %v7167, 1.442695
    %v7169 = vpow.pop %v7168
    %v7170 = vadd.f32 %v7169, 1.0
    %v7171 = vrcp.pop %v7170
    %v7172 = vmul.f32 %v7170, %v7171
    %v7173 = vsub.f32 1.0, %v7172
    %v7174 = vmul.f32 %v7171, %v7173
    %v7175 = vadd.f32 %v7171, %v7174
    %vm7176 = vweird.f32 %v7170
    %vm7177 = vweird.f32 %v7171
    %vm7178 = vmor %vm7176, %vm7177
    %v7179 = vsel %vm7178, %v7171, %v7175
    %v7180 = vand.u32 2147483647, %v7170
    %vm7181 = vcmp.eq.f32.partialorder %v7180, 8.507059e+37
    %v7182 = vand.u32 %v7170, 2147483648
    %v7183 = vor.u32 1.1754944e-38, %v7182
    %v7184 = vsel %vm7181, %v7183, %v7179
    %v7185 = vmul.f32 1.0, %v7184
    %v7186 = vxor.u32 %v7125, 2147483648
    %v7187 = vmul.f32 %v7186, 1.442695
    %v7188 = vpow.pop %v7187
    %v7189 = vadd.f32 %v7188, 1.0
    %v7190 = vrcp.pop %v7189
    %v7191 = vmul.f32 %v7189, %v7190
    %v7192 = vsub.f32 1.0, %v7191
    %v7193 = vmul.f32 %v7190, %v7192
    %v7194 = vadd.f32 %v7190, %v7193
    %vm7195 = vweird.f32 %v7189
    %vm7196 = vweird.f32 %v7190
    %vm7197 = vmor %vm7195, %vm7196
    %v7198 = vsel %vm7197, %v7190, %v7194
    %v7199 = vand.u32 2147483647, %v7189
    %vm7200 = vcmp.eq.f32.partialorder %v7199, 8.507059e+37
    %v7201 = vand.u32 %v7189, 2147483648
    %v7202 = vor.u32 1.1754944e-38, %v7201
    %v7203 = vsel %vm7200, %v7202, %v7198
    %v7204 = vmul.f32 1.0, %v7203
    %v7205 = vtanh.pop %v7145
    %v7206 = vxor.u32 %v7165, 2147483648
    %v7207 = vmul.f32 %v7206, 1.442695
    %v7208 = vpow.pop %v7207
    %v7209 = vadd.f32 %v7208, 1.0
    %v7210 = vrcp.pop %v7209
    %v7211 = vmul.f32 %v7209, %v7210
    %v7212 = vsub.f32 1.0, %v7211
    %v7213 = vmul.f32 %v7210, %v7212
    %v7214 = vadd.f32 %v7210, %v7213
    %vm7215 = vweird.f32 %v7209
    %vm7216 = vweird.f32 %v7210
    %vm7217 = vmor %vm7215, %vm7216
    %v7218 = vsel %vm7217, %v7210, %v7214
    %v7219 = vand.u32 2147483647, %v7209
    %vm7220 = vcmp.eq.f32.partialorder %v7219, 8.507059e+37
    %v7221 = vand.u32 %v7209, 2147483648
    %v7222 = vor.u32 1.1754944e-38, %v7221
    %v7223 = vsel %vm7220, %v7222, %v7218
    %v7224 = vmul.f32 1.0, %v7223
    %v7225 = vmul.f32 %v7204, %v6928
    %v7226 = vmul.f32 %v7185, %v7205
    %v7227 = vadd.f32 %v7225, %v7226
    %v7228 = vtanh.pop %v7227
    %v7229 = vmul.f32 %v7224, %v7228
    %v7231 = vrot.slane %v7086, 6
    %v7233 = vsub.f32 %v219, %v7231
    %v7234 = vmul.f32 %v7233, %v7233
    %v7236 = vrot.slane %v7234, 2
    %v7238 = vadd.f32 %v6937, %v7236
    %v7240 = vrot.slane %v7229, 4
    %v7242 = vsub.f32 %v220, %v7240
    %v7243 = vmul.f32 %v7242, %v7242
    %v7245 = vrot.slane %v7243, 6
    %v7247 = vadd.f32 %v6943, %v7245
    %7248 = vmatpush.msra.mxu0 %v6411
    %7249 = vmatpush.msra.mxu0 %v6407
    %7250 = vmatpush.msra.mxu0 %v6403
    %7251 = vmatpush.msra.mxu0 %v6399
    %7252 = vmatpush.msra.mxu0 %v6395
    %7253 = vmatpush.msra.mxu0 %v6391
    %7254 = vmatpush.msra.mxu0 %v6387
    %7255 = vmatpush.msra.mxu0 %v6383
    %7256 = vmatpush.msra.mxu0 %v6379
    %7257 = vmatpush.msra.mxu0 %v6375
    %7258 = vmatpush.msra.mxu0 %v6371
    %7259 = vmatpush.msra.mxu0 %v6367
    %7260 = vmatpush.msra.mxu0 %v6363
    %7261 = vmatpush.msra.mxu0 %v6359
    %7262 = vmatpush.msra.mxu0 %v6355
    %7263 = vmatpush.msra.mxu0 %v6351
    %7264 = vmatmul.f32.gmra.mxu0 %v7086
    %v7265 = vpop.f32.mrf.mxu0
    %v7266 = vadd.f32 %v6417, %v7265
    %7267 = vdwg.mxu0
    %7268 = vmatpush.msra.mxu0 %v6412
    %7269 = vmatpush.msra.mxu0 %v6408
    %7270 = vmatpush.msra.mxu0 %v6404
    %7271 = vmatpush.msra.mxu0 %v6400
    %7272 = vmatpush.msra.mxu0 %v6396
    %7273 = vmatpush.msra.mxu0 %v6392
    %7274 = vmatpush.msra.mxu0 %v6388
    %7275 = vmatpush.msra.mxu0 %v6384
    %7276 = vmatpush.msra.mxu0 %v6380
    %7277 = vmatpush.msra.mxu0 %v6376
    %7278 = vmatpush.msra.mxu0 %v6372
    %7279 = vmatpush.msra.mxu0 %v6368
    %7280 = vmatpush.msra.mxu0 %v6364
    %7281 = vmatpush.msra.mxu0 %v6360
    %7282 = vmatpush.msra.mxu0 %v6356
    %7283 = vmatpush.msra.mxu0 %v6352
    %7284 = vmatmul.f32.gmra.mxu0 %v7086
    %v7285 = vpop.f32.mrf.mxu0
    %v7286 = vadd.f32 %v6418, %v7285
    %7287 = vdwg.mxu0
    %7288 = vmatpush.msra.mxu0 %v6413
    %7289 = vmatpush.msra.mxu0 %v6409
    %7290 = vmatpush.msra.mxu0 %v6405
    %7291 = vmatpush.msra.mxu0 %v6401
    %7292 = vmatpush.msra.mxu0 %v6397
    %7293 = vmatpush.msra.mxu0 %v6393
    %7294 = vmatpush.msra.mxu0 %v6389
    %7295 = vmatpush.msra.mxu0 %v6385
    %7296 = vmatpush.msra.mxu0 %v6381
    %7297 = vmatpush.msra.mxu0 %v6377
    %7298 = vmatpush.msra.mxu0 %v6373
    %7299 = vmatpush.msra.mxu0 %v6369
    %7300 = vmatpush.msra.mxu0 %v6365
    %7301 = vmatpush.msra.mxu0 %v6361
    %7302 = vmatpush.msra.mxu0 %v6357
    %7303 = vmatpush.msra.mxu0 %v6353
    %7304 = vmatmul.f32.gmra.mxu0 %v7086
    %v7305 = vpop.f32.mrf.mxu0
    %v7306 = vadd.f32 %v6419, %v7305
    %7307 = vdwg.mxu0
    %7308 = vmatpush.msra.mxu0 %v6414
    %7309 = vmatpush.msra.mxu0 %v6410
    %7310 = vmatpush.msra.mxu0 %v6406
    %7311 = vmatpush.msra.mxu0 %v6402
    %7312 = vmatpush.msra.mxu0 %v6398
    %7313 = vmatpush.msra.mxu0 %v6394
    %7314 = vmatpush.msra.mxu0 %v6390
    %7315 = vmatpush.msra.mxu0 %v6386
    %7316 = vmatpush.msra.mxu0 %v6382
    %7317 = vmatpush.msra.mxu0 %v6378
    %7318 = vmatpush.msra.mxu0 %v6374
    %7319 = vmatpush.msra.mxu0 %v6370
    %7320 = vmatpush.msra.mxu0 %v6366
    %7321 = vmatpush.msra.mxu0 %v6362
    %7322 = vmatpush.msra.mxu0 %v6358
    %7323 = vmatpush.msra.mxu0 %v6354
    %7324 = vmatmul.f32.gmra.mxu0 %v7086
    %v7325 = vpop.f32.mrf.mxu0
    %v7326 = vadd.f32 %v6420, %v7325
    %7327 = vdwg.mxu0
    %v7328 = vxor.u32 %v7266, 2147483648
    %v7329 = vmul.f32 %v7328, 1.442695
    %v7330 = vpow.pop %v7329
    %v7331 = vadd.f32 %v7330, 1.0
    %v7332 = vrcp.pop %v7331
    %v7333 = vmul.f32 %v7331, %v7332
    %v7334 = vsub.f32 1.0, %v7333
    %v7335 = vmul.f32 %v7332, %v7334
    %v7336 = vadd.f32 %v7332, %v7335
    %vm7337 = vweird.f32 %v7331
    %vm7338 = vweird.f32 %v7332
    %vm7339 = vmor %vm7337, %vm7338
    %v7340 = vsel %vm7339, %v7332, %v7336
    %v7341 = vand.u32 2147483647, %v7331
    %vm7342 = vcmp.eq.f32.partialorder %v7341, 8.507059e+37
    %v7343 = vand.u32 %v7331, 2147483648
    %v7344 = vor.u32 1.1754944e-38, %v7343
    %v7345 = vsel %vm7342, %v7344, %v7340
    %v7346 = vmul.f32 1.0, %v7345
    %v7347 = vxor.u32 %v7286, 2147483648
    %v7348 = vmul.f32 %v7347, 1.442695
    %v7349 = vpow.pop %v7348
    %v7350 = vadd.f32 %v7349, 1.0
    %v7351 = vrcp.pop %v7350
    %v7352 = vmul.f32 %v7350, %v7351
    %v7353 = vsub.f32 1.0, %v7352
    %v7354 = vmul.f32 %v7351, %v7353
    %v7355 = vadd.f32 %v7351, %v7354
    %vm7356 = vweird.f32 %v7350
    %vm7357 = vweird.f32 %v7351
    %vm7358 = vmor %vm7356, %vm7357
    %v7359 = vsel %vm7358, %v7351, %v7355
    %v7360 = vand.u32 2147483647, %v7350
    %vm7361 = vcmp.eq.f32.partialorder %v7360, 8.507059e+37
    %v7362 = vand.u32 %v7350, 2147483648
    %v7363 = vor.u32 1.1754944e-38, %v7362
    %v7364 = vsel %vm7361, %v7363, %v7359
    %v7365 = vmul.f32 1.0, %v7364
    %v7366 = vtanh.pop %v7306
    %v7367 = vxor.u32 %v7326, 2147483648
    %v7368 = vmul.f32 %v7367, 1.442695
    %v7369 = vpow.pop %v7368
    %v7370 = vadd.f32 %v7369, 1.0
    %v7371 = vrcp.pop %v7370
    %v7372 = vmul.f32 %v7370, %v7371
    %v7373 = vsub.f32 1.0, %v7372
    %v7374 = vmul.f32 %v7371, %v7373
    %v7375 = vadd.f32 %v7371, %v7374
    %vm7376 = vweird.f32 %v7370
    %vm7377 = vweird.f32 %v7371
    %vm7378 = vmor %vm7376, %vm7377
    %v7379 = vsel %vm7378, %v7371, %v7375
    %v7380 = vand.u32 2147483647, %v7370
    %vm7381 = vcmp.eq.f32.partialorder %v7380, 8.507059e+37
    %v7382 = vand.u32 %v7370, 2147483648
    %v7383 = vor.u32 1.1754944e-38, %v7382
    %v7384 = vsel %vm7381, %v7383, %v7379
    %v7385 = vmul.f32 1.0, %v7384
    %v7386 = vmul.f32 %v7365, %v7084
    %v7387 = vmul.f32 %v7346, %v7366
    %v7388 = vadd.f32 %v7386, %v7387
    %v7389 = vtanh.pop %v7388
    %v7390 = vmul.f32 %v7385, %v7389
    %7391 = vmatpush.msra.mxu0 %v6485
    %7392 = vmatpush.msra.mxu0 %v6481
    %7393 = vmatpush.msra.mxu0 %v6477
    %7394 = vmatpush.msra.mxu0 %v6473
    %7395 = vmatpush.msra.mxu0 %v6469
    %7396 = vmatpush.msra.mxu0 %v6465
    %7397 = vmatpush.msra.mxu0 %v6461
    %7398 = vmatpush.msra.mxu0 %v6457
    %7399 = vmatpush.msra.mxu0 %v6453
    %7400 = vmatpush.msra.mxu0 %v6449
    %7401 = vmatpush.msra.mxu0 %v6445
    %7402 = vmatpush.msra.mxu0 %v6441
    %7403 = vmatpush.msra.mxu0 %v6437
    %7404 = vmatpush.msra.mxu0 %v6433
    %7405 = vmatpush.msra.mxu0 %v6429
    %7406 = vmatpush.msra.mxu0 %v6425
    %7407 = vmatmul.f32.gmra.mxu0 %v7229
    %v7408 = vpop.f32.mrf.mxu0
    %v7409 = vadd.f32 %v6581, %v7408
    %7410 = vdwg.mxu0
    %7411 = vmatpush.msra.mxu0 %v6486
    %7412 = vmatpush.msra.mxu0 %v6482
    %7413 = vmatpush.msra.mxu0 %v6478
    %7414 = vmatpush.msra.mxu0 %v6474
    %7415 = vmatpush.msra.mxu0 %v6470
    %7416 = vmatpush.msra.mxu0 %v6466
    %7417 = vmatpush.msra.mxu0 %v6462
    %7418 = vmatpush.msra.mxu0 %v6458
    %7419 = vmatpush.msra.mxu0 %v6454
    %7420 = vmatpush.msra.mxu0 %v6450
    %7421 = vmatpush.msra.mxu0 %v6446
    %7422 = vmatpush.msra.mxu0 %v6442
    %7423 = vmatpush.msra.mxu0 %v6438
    %7424 = vmatpush.msra.mxu0 %v6434
    %7425 = vmatpush.msra.mxu0 %v6430
    %7426 = vmatpush.msra.mxu0 %v6426
    %7427 = vmatmul.f32.gmra.mxu0 %v7229
    %v7428 = vpop.f32.mrf.mxu0
    %v7429 = vadd.f32 %v6601, %v7428
    %7430 = vdwg.mxu0
    %7431 = vmatpush.msra.mxu0 %v6487
    %7432 = vmatpush.msra.mxu0 %v6483
    %7433 = vmatpush.msra.mxu0 %v6479
    %7434 = vmatpush.msra.mxu0 %v6475
    %7435 = vmatpush.msra.mxu0 %v6471
    %7436 = vmatpush.msra.mxu0 %v6467
    %7437 = vmatpush.msra.mxu0 %v6463
    %7438 = vmatpush.msra.mxu0 %v6459
    %7439 = vmatpush.msra.mxu0 %v6455
    %7440 = vmatpush.msra.mxu0 %v6451
    %7441 = vmatpush.msra.mxu0 %v6447
    %7442 = vmatpush.msra.mxu0 %v6443
    %7443 = vmatpush.msra.mxu0 %v6439
    %7444 = vmatpush.msra.mxu0 %v6435
    %7445 = vmatpush.msra.mxu0 %v6431
    %7446 = vmatpush.msra.mxu0 %v6427
    %7447 = vmatmul.f32.gmra.mxu0 %v7229
    %v7448 = vpop.f32.mrf.mxu0
    %v7449 = vadd.f32 %v6621, %v7448
    %7450 = vdwg.mxu0
    %7451 = vmatpush.msra.mxu0 %v6488
    %7452 = vmatpush.msra.mxu0 %v6484
    %7453 = vmatpush.msra.mxu0 %v6480
    %7454 = vmatpush.msra.mxu0 %v6476
    %7455 = vmatpush.msra.mxu0 %v6472
    %7456 = vmatpush.msra.mxu0 %v6468
    %7457 = vmatpush.msra.mxu0 %v6464
    %7458 = vmatpush.msra.mxu0 %v6460
    %7459 = vmatpush.msra.mxu0 %v6456
    %7460 = vmatpush.msra.mxu0 %v6452
    %7461 = vmatpush.msra.mxu0 %v6448
    %7462 = vmatpush.msra.mxu0 %v6444
    %7463 = vmatpush.msra.mxu0 %v6440
    %7464 = vmatpush.msra.mxu0 %v6436
    %7465 = vmatpush.msra.mxu0 %v6432
    %7466 = vmatpush.msra.mxu0 %v6428
    %7467 = vmatmul.f32.gmra.mxu0 %v7229
    %v7468 = vpop.f32.mrf.mxu0
    %v7469 = vadd.f32 %v6641, %v7468
    %7470 = vdwg.mxu0
    %v7471 = vxor.u32 %v7409, 2147483648
    %v7472 = vmul.f32 %v7471, 1.442695
    %v7473 = vpow.pop %v7472
    %v7474 = vadd.f32 %v7473, 1.0
    %v7475 = vrcp.pop %v7474
    %v7476 = vmul.f32 %v7474, %v7475
    %v7477 = vsub.f32 1.0, %v7476
    %v7478 = vmul.f32 %v7475, %v7477
    %v7479 = vadd.f32 %v7475, %v7478
    %vm7480 = vweird.f32 %v7474
    %vm7481 = vweird.f32 %v7475
    %vm7482 = vmor %vm7480, %vm7481
    %v7483 = vsel %vm7482, %v7475, %v7479
    %v7484 = vand.u32 2147483647, %v7474
    %vm7485 = vcmp.eq.f32.partialorder %v7484, 8.507059e+37
    %v7486 = vand.u32 %v7474, 2147483648
    %v7487 = vor.u32 1.1754944e-38, %v7486
    %v7488 = vsel %vm7485, %v7487, %v7483
    %v7489 = vmul.f32 1.0, %v7488
    %v7490 = vxor.u32 %v7429, 2147483648
    %v7491 = vmul.f32 %v7490, 1.442695
    %v7492 = vpow.pop %v7491
    %v7493 = vadd.f32 %v7492, 1.0
    %v7494 = vrcp.pop %v7493
    %v7495 = vmul.f32 %v7493, %v7494
    %v7496 = vsub.f32 1.0, %v7495
    %v7497 = vmul.f32 %v7494, %v7496
    %v7498 = vadd.f32 %v7494, %v7497
    %vm7499 = vweird.f32 %v7493
    %vm7500 = vweird.f32 %v7494
    %vm7501 = vmor %vm7499, %vm7500
    %v7502 = vsel %vm7501, %v7494, %v7498
    %v7503 = vand.u32 2147483647, %v7493
    %vm7504 = vcmp.eq.f32.partialorder %v7503, 8.507059e+37
    %v7505 = vand.u32 %v7493, 2147483648
    %v7506 = vor.u32 1.1754944e-38, %v7505
    %v7507 = vsel %vm7504, %v7506, %v7502
    %v7508 = vmul.f32 1.0, %v7507
    %v7509 = vtanh.pop %v7449
    %v7510 = vxor.u32 %v7469, 2147483648
    %v7511 = vmul.f32 %v7510, 1.442695
    %v7512 = vpow.pop %v7511
    %v7513 = vadd.f32 %v7512, 1.0
    %v7514 = vrcp.pop %v7513
    %v7515 = vmul.f32 %v7513, %v7514
    %v7516 = vsub.f32 1.0, %v7515
    %v7517 = vmul.f32 %v7514, %v7516
    %v7518 = vadd.f32 %v7514, %v7517
    %vm7519 = vweird.f32 %v7513
    %vm7520 = vweird.f32 %v7514
    %vm7521 = vmor %vm7519, %vm7520
    %v7522 = vsel %vm7521, %v7514, %v7518
    %v7523 = vand.u32 2147483647, %v7513
    %vm7524 = vcmp.eq.f32.partialorder %v7523, 8.507059e+37
    %v7525 = vand.u32 %v7513, 2147483648
    %v7526 = vor.u32 1.1754944e-38, %v7525
    %v7527 = vsel %vm7524, %v7526, %v7522
    %v7528 = vmul.f32 1.0, %v7527
    %v7529 = vmul.f32 %v7508, %v6928
    %v7530 = vmul.f32 %v7489, %v7509
    %v7531 = vadd.f32 %v7529, %v7530
    %v7532 = vtanh.pop %v7531
    %v7533 = vmul.f32 %v7528, %v7532
    %v7535 = vrot.slane %v7390, 4
    %v7537 = vsub.f32 %v219, %v7535
    %v7538 = vmul.f32 %v7537, %v7537
    %v7540 = vrot.slane %v7538, 4
    %v7542 = vadd.f32 %v7238, %v7540
    %v7544 = vrot.slane %v7533, 6
    %v7546 = vsub.f32 %v220, %v7544
    %v7547 = vmul.f32 %v7546, %v7546
    %v7549 = vrot.slane %v7547, 4
    %v7551 = vadd.f32 %v7247, %v7549
    %7552 = vmatpush.msra.mxu0 %v6411
    %7553 = vmatpush.msra.mxu0 %v6407
    %7554 = vmatpush.msra.mxu0 %v6403
    %7555 = vmatpush.msra.mxu0 %v6399
    %7556 = vmatpush.msra.mxu0 %v6395
    %7557 = vmatpush.msra.mxu0 %v6391
    %7558 = vmatpush.msra.mxu0 %v6387
    %7559 = vmatpush.msra.mxu0 %v6383
    %7560 = vmatpush.msra.mxu0 %v6379
    %7561 = vmatpush.msra.mxu0 %v6375
    %7562 = vmatpush.msra.mxu0 %v6371
    %7563 = vmatpush.msra.mxu0 %v6367
    %7564 = vmatpush.msra.mxu0 %v6363
    %7565 = vmatpush.msra.mxu0 %v6359
    %7566 = vmatpush.msra.mxu0 %v6355
    %7567 = vmatpush.msra.mxu0 %v6351
    %7568 = vmatmul.f32.gmra.mxu0 %v7390
    %v7569 = vpop.f32.mrf.mxu0
    %v7570 = vadd.f32 %v6417, %v7569
    %7571 = vdwg.mxu0
    %7572 = vmatpush.msra.mxu0 %v6412
    %7573 = vmatpush.msra.mxu0 %v6408
    %7574 = vmatpush.msra.mxu0 %v6404
    %7575 = vmatpush.msra.mxu0 %v6400
    %7576 = vmatpush.msra.mxu0 %v6396
    %7577 = vmatpush.msra.mxu0 %v6392
    %7578 = vmatpush.msra.mxu0 %v6388
    %7579 = vmatpush.msra.mxu0 %v6384
    %7580 = vmatpush.msra.mxu0 %v6380
    %7581 = vmatpush.msra.mxu0 %v6376
    %7582 = vmatpush.msra.mxu0 %v6372
    %7583 = vmatpush.msra.mxu0 %v6368
    %7584 = vmatpush.msra.mxu0 %v6364
    %7585 = vmatpush.msra.mxu0 %v6360
    %7586 = vmatpush.msra.mxu0 %v6356
    %7587 = vmatpush.msra.mxu0 %v6352
    %7588 = vmatmul.f32.gmra.mxu0 %v7390
    %v7589 = vpop.f32.mrf.mxu0
    %v7590 = vadd.f32 %v6418, %v7589
    %7591 = vdwg.mxu0
    %7592 = vmatpush.msra.mxu0 %v6413
    %7593 = vmatpush.msra.mxu0 %v6409
    %7594 = vmatpush.msra.mxu0 %v6405
    %7595 = vmatpush.msra.mxu0 %v6401
    %7596 = vmatpush.msra.mxu0 %v6397
    %7597 = vmatpush.msra.mxu0 %v6393
    %7598 = vmatpush.msra.mxu0 %v6389
    %7599 = vmatpush.msra.mxu0 %v6385
    %7600 = vmatpush.msra.mxu0 %v6381
    %7601 = vmatpush.msra.mxu0 %v6377
    %7602 = vmatpush.msra.mxu0 %v6373
    %7603 = vmatpush.msra.mxu0 %v6369
    %7604 = vmatpush.msra.mxu0 %v6365
    %7605 = vmatpush.msra.mxu0 %v6361
    %7606 = vmatpush.msra.mxu0 %v6357
    %7607 = vmatpush.msra.mxu0 %v6353
    %7608 = vmatmul.f32.gmra.mxu0 %v7390
    %v7609 = vpop.f32.mrf.mxu0
    %v7610 = vadd.f32 %v6419, %v7609
    %7611 = vdwg.mxu0
    %7612 = vmatpush.msra.mxu0 %v6414
    %7613 = vmatpush.msra.mxu0 %v6410
    %7614 = vmatpush.msra.mxu0 %v6406
    %7615 = vmatpush.msra.mxu0 %v6402
    %7616 = vmatpush.msra.mxu0 %v6398
    %7617 = vmatpush.msra.mxu0 %v6394
    %7618 = vmatpush.msra.mxu0 %v6390
    %7619 = vmatpush.msra.mxu0 %v6386
    %7620 = vmatpush.msra.mxu0 %v6382
    %7621 = vmatpush.msra.mxu0 %v6378
    %7622 = vmatpush.msra.mxu0 %v6374
    %7623 = vmatpush.msra.mxu0 %v6370
    %7624 = vmatpush.msra.mxu0 %v6366
    %7625 = vmatpush.msra.mxu0 %v6362
    %7626 = vmatpush.msra.mxu0 %v6358
    %7627 = vmatpush.msra.mxu0 %v6354
    %7628 = vmatmul.f32.gmra.mxu0 %v7390
    %v7629 = vpop.f32.mrf.mxu0
    %v7630 = vadd.f32 %v6420, %v7629
    %7631 = vdwg.mxu0
    %v7632 = vxor.u32 %v7570, 2147483648
    %v7633 = vmul.f32 %v7632, 1.442695
    %v7634 = vpow.pop %v7633
    %v7635 = vadd.f32 %v7634, 1.0
    %v7636 = vrcp.pop %v7635
    %v7637 = vmul.f32 %v7635, %v7636
    %v7638 = vsub.f32 1.0, %v7637
    %v7639 = vmul.f32 %v7636, %v7638
    %v7640 = vadd.f32 %v7636, %v7639
    %vm7641 = vweird.f32 %v7635
    %vm7642 = vweird.f32 %v7636
    %vm7643 = vmor %vm7641, %vm7642
    %v7644 = vsel %vm7643, %v7636, %v7640
    %v7645 = vand.u32 2147483647, %v7635
    %vm7646 = vcmp.eq.f32.partialorder %v7645, 8.507059e+37
    %v7647 = vand.u32 %v7635, 2147483648
    %v7648 = vor.u32 1.1754944e-38, %v7647
    %v7649 = vsel %vm7646, %v7648, %v7644
    %v7650 = vmul.f32 1.0, %v7649
    %v7651 = vxor.u32 %v7590, 2147483648
    %v7652 = vmul.f32 %v7651, 1.442695
    %v7653 = vpow.pop %v7652
    %v7654 = vadd.f32 %v7653, 1.0
    %v7655 = vrcp.pop %v7654
    %v7656 = vmul.f32 %v7654, %v7655
    %v7657 = vsub.f32 1.0, %v7656
    %v7658 = vmul.f32 %v7655, %v7657
    %v7659 = vadd.f32 %v7655, %v7658
    %vm7660 = vweird.f32 %v7654
    %vm7661 = vweird.f32 %v7655
    %vm7662 = vmor %vm7660, %vm7661
    %v7663 = vsel %vm7662, %v7655, %v7659
    %v7664 = vand.u32 2147483647, %v7654
    %vm7665 = vcmp.eq.f32.partialorder %v7664, 8.507059e+37
    %v7666 = vand.u32 %v7654, 2147483648
    %v7667 = vor.u32 1.1754944e-38, %v7666
    %v7668 = vsel %vm7665, %v7667, %v7663
    %v7669 = vmul.f32 1.0, %v7668
    %v7670 = vtanh.pop %v7610
    %v7671 = vxor.u32 %v7630, 2147483648
    %v7672 = vmul.f32 %v7671, 1.442695
    %v7673 = vpow.pop %v7672
    %v7674 = vadd.f32 %v7673, 1.0
    %v7675 = vrcp.pop %v7674
    %v7676 = vmul.f32 %v7674, %v7675
    %v7677 = vsub.f32 1.0, %v7676
    %v7678 = vmul.f32 %v7675, %v7677
    %v7679 = vadd.f32 %v7675, %v7678
    %vm7680 = vweird.f32 %v7674
    %vm7681 = vweird.f32 %v7675
    %vm7682 = vmor %vm7680, %vm7681
    %v7683 = vsel %vm7682, %v7675, %v7679
    %v7684 = vand.u32 2147483647, %v7674
    %vm7685 = vcmp.eq.f32.partialorder %v7684, 8.507059e+37
    %v7686 = vand.u32 %v7674, 2147483648
    %v7687 = vor.u32 1.1754944e-38, %v7686
    %v7688 = vsel %vm7685, %v7687, %v7683
    %v7689 = vmul.f32 1.0, %v7688
    %v7690 = vmul.f32 %v7669, %v7388
    %v7691 = vmul.f32 %v7650, %v7670
    %v7692 = vadd.f32 %v7690, %v7691
    %v7693 = vtanh.pop %v7692
    %v7694 = vmul.f32 %v7689, %v7693
    %7695 = vmatpush.msra.mxu0 %v6485
    %7696 = vmatpush.msra.mxu0 %v6481
    %7697 = vmatpush.msra.mxu0 %v6477
    %7698 = vmatpush.msra.mxu0 %v6473
    %7699 = vmatpush.msra.mxu0 %v6469
    %7700 = vmatpush.msra.mxu0 %v6465
    %7701 = vmatpush.msra.mxu0 %v6461
    %7702 = vmatpush.msra.mxu0 %v6457
    %7703 = vmatpush.msra.mxu0 %v6453
    %7704 = vmatpush.msra.mxu0 %v6449
    %7705 = vmatpush.msra.mxu0 %v6445
    %7706 = vmatpush.msra.mxu0 %v6441
    %7707 = vmatpush.msra.mxu0 %v6437
    %7708 = vmatpush.msra.mxu0 %v6433
    %7709 = vmatpush.msra.mxu0 %v6429
    %7710 = vmatpush.msra.mxu0 %v6425
    %7711 = vmatmul.f32.gmra.mxu0 %v7533
    %v7712 = vpop.f32.mrf.mxu0
    %v7713 = vadd.f32 %v6581, %v7712
    %7714 = vdwg.mxu0
    %7715 = vmatpush.msra.mxu0 %v6486
    %7716 = vmatpush.msra.mxu0 %v6482
    %7717 = vmatpush.msra.mxu0 %v6478
    %7718 = vmatpush.msra.mxu0 %v6474
    %7719 = vmatpush.msra.mxu0 %v6470
    %7720 = vmatpush.msra.mxu0 %v6466
    %7721 = vmatpush.msra.mxu0 %v6462
    %7722 = vmatpush.msra.mxu0 %v6458
    %7723 = vmatpush.msra.mxu0 %v6454
    %7724 = vmatpush.msra.mxu0 %v6450
    %7725 = vmatpush.msra.mxu0 %v6446
    %7726 = vmatpush.msra.mxu0 %v6442
    %7727 = vmatpush.msra.mxu0 %v6438
    %7728 = vmatpush.msra.mxu0 %v6434
    %7729 = vmatpush.msra.mxu0 %v6430
    %7730 = vmatpush.msra.mxu0 %v6426
    %7731 = vmatmul.f32.gmra.mxu0 %v7533
    %v7732 = vpop.f32.mrf.mxu0
    %v7733 = vadd.f32 %v6601, %v7732
    %7734 = vdwg.mxu0
    %7735 = vmatpush.msra.mxu0 %v6487
    %7736 = vmatpush.msra.mxu0 %v6483
    %7737 = vmatpush.msra.mxu0 %v6479
    %7738 = vmatpush.msra.mxu0 %v6475
    %7739 = vmatpush.msra.mxu0 %v6471
    %7740 = vmatpush.msra.mxu0 %v6467
    %7741 = vmatpush.msra.mxu0 %v6463
    %7742 = vmatpush.msra.mxu0 %v6459
    %7743 = vmatpush.msra.mxu0 %v6455
    %7744 = vmatpush.msra.mxu0 %v6451
    %7745 = vmatpush.msra.mxu0 %v6447
    %7746 = vmatpush.msra.mxu0 %v6443
    %7747 = vmatpush.msra.mxu0 %v6439
    %7748 = vmatpush.msra.mxu0 %v6435
    %7749 = vmatpush.msra.mxu0 %v6431
    %7750 = vmatpush.msra.mxu0 %v6427
    %7751 = vmatmul.f32.gmra.mxu0 %v7533
    %v7752 = vpop.f32.mrf.mxu0
    %v7753 = vadd.f32 %v6621, %v7752
    %7754 = vdwg.mxu0
    %7755 = vmatpush.msra.mxu0 %v6488
    %7756 = vmatpush.msra.mxu0 %v6484
    %7757 = vmatpush.msra.mxu0 %v6480
    %7758 = vmatpush.msra.mxu0 %v6476
    %7759 = vmatpush.msra.mxu0 %v6472
    %7760 = vmatpush.msra.mxu0 %v6468
    %7761 = vmatpush.msra.mxu0 %v6464
    %7762 = vmatpush.msra.mxu0 %v6460
    %7763 = vmatpush.msra.mxu0 %v6456
    %7764 = vmatpush.msra.mxu0 %v6452
    %7765 = vmatpush.msra.mxu0 %v6448
    %7766 = vmatpush.msra.mxu0 %v6444
    %7767 = vmatpush.msra.mxu0 %v6440
    %7768 = vmatpush.msra.mxu0 %v6436
    %7769 = vmatpush.msra.mxu0 %v6432
    %7770 = vmatpush.msra.mxu0 %v6428
    %7771 = vmatmul.f32.gmra.mxu0 %v7533
    %v7772 = vpop.f32.mrf.mxu0
    %v7773 = vadd.f32 %v6641, %v7772
    %7774 = vdwg.mxu0
    %v7775 = vxor.u32 %v7713, 2147483648
    %v7776 = vmul.f32 %v7775, 1.442695
    %v7777 = vpow.pop %v7776
    %v7778 = vadd.f32 %v7777, 1.0
    %v7779 = vrcp.pop %v7778
    %v7780 = vmul.f32 %v7778, %v7779
    %v7781 = vsub.f32 1.0, %v7780
    %v7782 = vmul.f32 %v7779, %v7781
    %v7783 = vadd.f32 %v7779, %v7782
    %vm7784 = vweird.f32 %v7778
    %vm7785 = vweird.f32 %v7779
    %vm7786 = vmor %vm7784, %vm7785
    %v7787 = vsel %vm7786, %v7779, %v7783
    %v7788 = vand.u32 2147483647, %v7778
    %vm7789 = vcmp.eq.f32.partialorder %v7788, 8.507059e+37
    %v7790 = vand.u32 %v7778, 2147483648
    %v7791 = vor.u32 1.1754944e-38, %v7790
    %v7792 = vsel %vm7789, %v7791, %v7787
    %v7793 = vmul.f32 1.0, %v7792
    %v7794 = vxor.u32 %v7733, 2147483648
    %v7795 = vmul.f32 %v7794, 1.442695
    %v7796 = vpow.pop %v7795
    %v7797 = vadd.f32 %v7796, 1.0
    %v7798 = vrcp.pop %v7797
    %v7799 = vmul.f32 %v7797, %v7798
    %v7800 = vsub.f32 1.0, %v7799
    %v7801 = vmul.f32 %v7798, %v7800
    %v7802 = vadd.f32 %v7798, %v7801
    %vm7803 = vweird.f32 %v7797
    %vm7804 = vweird.f32 %v7798
    %vm7805 = vmor %vm7803, %vm7804
    %v7806 = vsel %vm7805, %v7798, %v7802
    %v7807 = vand.u32 2147483647, %v7797
    %vm7808 = vcmp.eq.f32.partialorder %v7807, 8.507059e+37
    %v7809 = vand.u32 %v7797, 2147483648
    %v7810 = vor.u32 1.1754944e-38, %v7809
    %v7811 = vsel %vm7808, %v7810, %v7806
    %v7812 = vmul.f32 1.0, %v7811
    %v7813 = vtanh.pop %v7753
    %v7814 = vxor.u32 %v7773, 2147483648
    %v7815 = vmul.f32 %v7814, 1.442695
    %v7816 = vpow.pop %v7815
    %v7817 = vadd.f32 %v7816, 1.0
    %v7818 = vrcp.pop %v7817
    %v7819 = vmul.f32 %v7817, %v7818
    %v7820 = vsub.f32 1.0, %v7819
    %v7821 = vmul.f32 %v7818, %v7820
    %v7822 = vadd.f32 %v7818, %v7821
    %vm7823 = vweird.f32 %v7817
    %vm7824 = vweird.f32 %v7818
    %vm7825 = vmor %vm7823, %vm7824
    %v7826 = vsel %vm7825, %v7818, %v7822
    %v7827 = vand.u32 2147483647, %v7817
    %vm7828 = vcmp.eq.f32.partialorder %v7827, 8.507059e+37
    %v7829 = vand.u32 %v7817, 2147483648
    %v7830 = vor.u32 1.1754944e-38, %v7829
    %v7831 = vsel %vm7828, %v7830, %v7826
    %v7832 = vmul.f32 1.0, %v7831
    %v7833 = vmul.f32 %v7812, %v6928
    %v7834 = vmul.f32 %v7793, %v7813
    %v7835 = vadd.f32 %v7833, %v7834
    %v7836 = vtanh.pop %v7835
    %v7837 = vmul.f32 %v7832, %v7836
    %v7839 = vrot.slane %v7694, 2
    %v7841 = vsub.f32 %v219, %v7839
    %v7842 = vmul.f32 %v7841, %v7841
    %v7844 = vrot.slane %v7842, 6
    %v7846 = vadd.f32 %v7542, %v7844
    %v7847 = vsub.f32 %v220, %v7837
    %v7848 = vmul.f32 %v7847, %v7847
    %v7850 = vrot.slane %v7848, 2
    %v7852 = vadd.f32 %v7551, %v7850
    %7853 = vmatpush.msra.mxu0 %v6411
    %7854 = vmatpush.msra.mxu0 %v6407
    %7855 = vmatpush.msra.mxu0 %v6403
    %7856 = vmatpush.msra.mxu0 %v6399
    %7857 = vmatpush.msra.mxu0 %v6395
    %7858 = vmatpush.msra.mxu0 %v6391
    %7859 = vmatpush.msra.mxu0 %v6387
    %7860 = vmatpush.msra.mxu0 %v6383
    %7861 = vmatpush.msra.mxu0 %v6379
    %7862 = vmatpush.msra.mxu0 %v6375
    %7863 = vmatpush.msra.mxu0 %v6371
    %7864 = vmatpush.msra.mxu0 %v6367
    %7865 = vmatpush.msra.mxu0 %v6363
    %7866 = vmatpush.msra.mxu0 %v6359
    %7867 = vmatpush.msra.mxu0 %v6355
    %7868 = vmatpush.msra.mxu0 %v6351
    %7869 = vmatmul.f32.gmra.mxu0 %v7694
    %v7870 = vpop.f32.mrf.mxu0
    %v7871 = vadd.f32 %v6417, %v7870
    %7872 = vdwg.mxu0
    %7873 = vmatpush.msra.mxu0 %v6412
    %7874 = vmatpush.msra.mxu0 %v6408
    %7875 = vmatpush.msra.mxu0 %v6404
    %7876 = vmatpush.msra.mxu0 %v6400
    %7877 = vmatpush.msra.mxu0 %v6396
    %7878 = vmatpush.msra.mxu0 %v6392
    %7879 = vmatpush.msra.mxu0 %v6388
    %7880 = vmatpush.msra.mxu0 %v6384
    %7881 = vmatpush.msra.mxu0 %v6380
    %7882 = vmatpush.msra.mxu0 %v6376
    %7883 = vmatpush.msra.mxu0 %v6372
    %7884 = vmatpush.msra.mxu0 %v6368
    %7885 = vmatpush.msra.mxu0 %v6364
    %7886 = vmatpush.msra.mxu0 %v6360
    %7887 = vmatpush.msra.mxu0 %v6356
    %7888 = vmatpush.msra.mxu0 %v6352
    %7889 = vmatmul.f32.gmra.mxu0 %v7694
    %v7890 = vpop.f32.mrf.mxu0
    %v7891 = vadd.f32 %v6418, %v7890
    %7892 = vdwg.mxu0
    %7893 = vmatpush.msra.mxu0 %v6413
    %7894 = vmatpush.msra.mxu0 %v6409
    %7895 = vmatpush.msra.mxu0 %v6405
    %7896 = vmatpush.msra.mxu0 %v6401
    %7897 = vmatpush.msra.mxu0 %v6397
    %7898 = vmatpush.msra.mxu0 %v6393
    %7899 = vmatpush.msra.mxu0 %v6389
    %7900 = vmatpush.msra.mxu0 %v6385
    %7901 = vmatpush.msra.mxu0 %v6381
    %7902 = vmatpush.msra.mxu0 %v6377
    %7903 = vmatpush.msra.mxu0 %v6373
    %7904 = vmatpush.msra.mxu0 %v6369
    %7905 = vmatpush.msra.mxu0 %v6365
    %7906 = vmatpush.msra.mxu0 %v6361
    %7907 = vmatpush.msra.mxu0 %v6357
    %7908 = vmatpush.msra.mxu0 %v6353
    %7909 = vmatmul.f32.gmra.mxu0 %v7694
    %v7910 = vpop.f32.mrf.mxu0
    %v7911 = vadd.f32 %v6419, %v7910
    %7912 = vdwg.mxu0
    %7913 = vmatpush.msra.mxu0 %v6414
    %7914 = vmatpush.msra.mxu0 %v6410
    %7915 = vmatpush.msra.mxu0 %v6406
    %7916 = vmatpush.msra.mxu0 %v6402
    %7917 = vmatpush.msra.mxu0 %v6398
    %7918 = vmatpush.msra.mxu0 %v6394
    %7919 = vmatpush.msra.mxu0 %v6390
    %7920 = vmatpush.msra.mxu0 %v6386
    %7921 = vmatpush.msra.mxu0 %v6382
    %7922 = vmatpush.msra.mxu0 %v6378
    %7923 = vmatpush.msra.mxu0 %v6374
    %7924 = vmatpush.msra.mxu0 %v6370
    %7925 = vmatpush.msra.mxu0 %v6366
    %7926 = vmatpush.msra.mxu0 %v6362
    %7927 = vmatpush.msra.mxu0 %v6358
    %7928 = vmatpush.msra.mxu0 %v6354
    %7929 = vmatmul.f32.gmra.mxu0 %v7694
    %v7930 = vpop.f32.mrf.mxu0
    %v7931 = vadd.f32 %v6420, %v7930
    %7932 = vdwg.mxu0
    %v7933 = vxor.u32 %v7871, 2147483648
    %v7934 = vmul.f32 %v7933, 1.442695
    %v7935 = vpow.pop %v7934
    %v7936 = vadd.f32 %v7935, 1.0
    %v7937 = vrcp.pop %v7936
    %v7938 = vmul.f32 %v7936, %v7937
    %v7939 = vsub.f32 1.0, %v7938
    %v7940 = vmul.f32 %v7937, %v7939
    %v7941 = vadd.f32 %v7937, %v7940
    %vm7942 = vweird.f32 %v7936
    %vm7943 = vweird.f32 %v7937
    %vm7944 = vmor %vm7942, %vm7943
    %v7945 = vsel %vm7944, %v7937, %v7941
    %v7946 = vand.u32 2147483647, %v7936
    %vm7947 = vcmp.eq.f32.partialorder %v7946, 8.507059e+37
    %v7948 = vand.u32 %v7936, 2147483648
    %v7949 = vor.u32 1.1754944e-38, %v7948
    %v7950 = vsel %vm7947, %v7949, %v7945
    %v7951 = vmul.f32 1.0, %v7950
    %v7952 = vxor.u32 %v7891, 2147483648
    %v7953 = vmul.f32 %v7952, 1.442695
    %v7954 = vpow.pop %v7953
    %v7955 = vadd.f32 %v7954, 1.0
    %v7956 = vrcp.pop %v7955
    %v7957 = vmul.f32 %v7955, %v7956
    %v7958 = vsub.f32 1.0, %v7957
    %v7959 = vmul.f32 %v7956, %v7958
    %v7960 = vadd.f32 %v7956, %v7959
    %vm7961 = vweird.f32 %v7955
    %vm7962 = vweird.f32 %v7956
    %vm7963 = vmor %vm7961, %vm7962
    %v7964 = vsel %vm7963, %v7956, %v7960
    %v7965 = vand.u32 2147483647, %v7955
    %vm7966 = vcmp.eq.f32.partialorder %v7965, 8.507059e+37
    %v7967 = vand.u32 %v7955, 2147483648
    %v7968 = vor.u32 1.1754944e-38, %v7967
    %v7969 = vsel %vm7966, %v7968, %v7964
    %v7970 = vmul.f32 1.0, %v7969
    %v7971 = vtanh.pop %v7911
    %v7972 = vxor.u32 %v7931, 2147483648
    %v7973 = vmul.f32 %v7972, 1.442695
    %v7974 = vpow.pop %v7973
    %v7975 = vadd.f32 %v7974, 1.0
    %v7976 = vrcp.pop %v7975
    %v7977 = vmul.f32 %v7975, %v7976
    %v7978 = vsub.f32 1.0, %v7977
    %v7979 = vmul.f32 %v7976, %v7978
    %v7980 = vadd.f32 %v7976, %v7979
    %vm7981 = vweird.f32 %v7975
    %vm7982 = vweird.f32 %v7976
    %vm7983 = vmor %vm7981, %vm7982
    %v7984 = vsel %vm7983, %v7976, %v7980
    %v7985 = vand.u32 2147483647, %v7975
    %vm7986 = vcmp.eq.f32.partialorder %v7985, 8.507059e+37
    %v7987 = vand.u32 %v7975, 2147483648
    %v7988 = vor.u32 1.1754944e-38, %v7987
    %v7989 = vsel %vm7986, %v7988, %v7984
    %v7990 = vmul.f32 1.0, %v7989
    %v7991 = vmul.f32 %v7970, %v7692
    %v7992 = vmul.f32 %v7951, %v7971
    %v7993 = vadd.f32 %v7991, %v7992
    %v7994 = vtanh.pop %v7993
    %v7995 = vmul.f32 %v7990, %v7994
    %7996 = vmatpush.msra.mxu0 %v6485
    %7997 = vmatpush.msra.mxu0 %v6481
    %7998 = vmatpush.msra.mxu0 %v6477
    %7999 = vmatpush.msra.mxu0 %v6473
    %8000 = vmatpush.msra.mxu0 %v6469
    %8001 = vmatpush.msra.mxu0 %v6465
    %8002 = vmatpush.msra.mxu0 %v6461
    %8003 = vmatpush.msra.mxu0 %v6457
    %8004 = vmatpush.msra.mxu0 %v6453
    %8005 = vmatpush.msra.mxu0 %v6449
    %8006 = vmatpush.msra.mxu0 %v6445
    %8007 = vmatpush.msra.mxu0 %v6441
    %8008 = vmatpush.msra.mxu0 %v6437
    %8009 = vmatpush.msra.mxu0 %v6433
    %8010 = vmatpush.msra.mxu0 %v6429
    %8011 = vmatpush.msra.mxu0 %v6425
    %8012 = vmatmul.f32.gmra.mxu0 %v7837
    %v8013 = vpop.f32.mrf.mxu0
    %v8014 = vadd.f32 %v6581, %v8013
    %8015 = vdwg.mxu0
    %8016 = vmatpush.msra.mxu0 %v6486
    %8017 = vmatpush.msra.mxu0 %v6482
    %8018 = vmatpush.msra.mxu0 %v6478
    %8019 = vmatpush.msra.mxu0 %v6474
    %8020 = vmatpush.msra.mxu0 %v6470
    %8021 = vmatpush.msra.mxu0 %v6466
    %8022 = vmatpush.msra.mxu0 %v6462
    %8023 = vmatpush.msra.mxu0 %v6458
    %8024 = vmatpush.msra.mxu0 %v6454
    %8025 = vmatpush.msra.mxu0 %v6450
    %8026 = vmatpush.msra.mxu0 %v6446
    %8027 = vmatpush.msra.mxu0 %v6442
    %8028 = vmatpush.msra.mxu0 %v6438
    %8029 = vmatpush.msra.mxu0 %v6434
    %8030 = vmatpush.msra.mxu0 %v6430
    %8031 = vmatpush.msra.mxu0 %v6426
    %8032 = vmatmul.f32.gmra.mxu0 %v7837
    %v8033 = vpop.f32.mrf.mxu0
    %v8034 = vadd.f32 %v6601, %v8033
    %8035 = vdwg.mxu0
    %8036 = vmatpush.msra.mxu0 %v6487
    %8037 = vmatpush.msra.mxu0 %v6483
    %8038 = vmatpush.msra.mxu0 %v6479
    %8039 = vmatpush.msra.mxu0 %v6475
    %8040 = vmatpush.msra.mxu0 %v6471
    %8041 = vmatpush.msra.mxu0 %v6467
    %8042 = vmatpush.msra.mxu0 %v6463
    %8043 = vmatpush.msra.mxu0 %v6459
    %8044 = vmatpush.msra.mxu0 %v6455
    %8045 = vmatpush.msra.mxu0 %v6451
    %8046 = vmatpush.msra.mxu0 %v6447
    %8047 = vmatpush.msra.mxu0 %v6443
    %8048 = vmatpush.msra.mxu0 %v6439
    %8049 = vmatpush.msra.mxu0 %v6435
    %8050 = vmatpush.msra.mxu0 %v6431
    %8051 = vmatpush.msra.mxu0 %v6427
    %8052 = vmatmul.f32.gmra.mxu0 %v7837
    %v8053 = vpop.f32.mrf.mxu0
    %v8054 = vadd.f32 %v6621, %v8053
    %8055 = vdwg.mxu0
    %8056 = vmatpush.msra.mxu0 %v6488
    %8057 = vmatpush.msra.mxu0 %v6484
    %8058 = vmatpush.msra.mxu0 %v6480
    %8059 = vmatpush.msra.mxu0 %v6476
    %8060 = vmatpush.msra.mxu0 %v6472
    %8061 = vmatpush.msra.mxu0 %v6468
    %8062 = vmatpush.msra.mxu0 %v6464
    %8063 = vmatpush.msra.mxu0 %v6460
    %8064 = vmatpush.msra.mxu0 %v6456
    %8065 = vmatpush.msra.mxu0 %v6452
    %8066 = vmatpush.msra.mxu0 %v6448
    %8067 = vmatpush.msra.mxu0 %v6444
    %8068 = vmatpush.msra.mxu0 %v6440
    %8069 = vmatpush.msra.mxu0 %v6436
    %8070 = vmatpush.msra.mxu0 %v6432
    %8071 = vmatpush.msra.mxu0 %v6428
    %8072 = vmatmul.f32.gmra.mxu0 %v7837
    %v8073 = vpop.f32.mrf.mxu0
    %v8074 = vadd.f32 %v6641, %v8073
    %8075 = vdwg.mxu0
    %v8076 = vxor.u32 %v8014, 2147483648
    %v8077 = vmul.f32 %v8076, 1.442695
    %v8078 = vpow.pop %v8077
    %v8079 = vadd.f32 %v8078, 1.0
    %v8080 = vrcp.pop %v8079
    %v8081 = vmul.f32 %v8079, %v8080
    %v8082 = vsub.f32 1.0, %v8081
    %v8083 = vmul.f32 %v8080, %v8082
    %v8084 = vadd.f32 %v8080, %v8083
    %vm8085 = vweird.f32 %v8079
    %vm8086 = vweird.f32 %v8080
    %vm8087 = vmor %vm8085, %vm8086
    %v8088 = vsel %vm8087, %v8080, %v8084
    %v8089 = vand.u32 2147483647, %v8079
    %vm8090 = vcmp.eq.f32.partialorder %v8089, 8.507059e+37
    %v8091 = vand.u32 %v8079, 2147483648
    %v8092 = vor.u32 1.1754944e-38, %v8091
    %v8093 = vsel %vm8090, %v8092, %v8088
    %v8094 = vmul.f32 1.0, %v8093
    %v8095 = vxor.u32 %v8034, 2147483648
    %v8096 = vmul.f32 %v8095, 1.442695
    %v8097 = vpow.pop %v8096
    %v8098 = vadd.f32 %v8097, 1.0
    %v8099 = vrcp.pop %v8098
    %v8100 = vmul.f32 %v8098, %v8099
    %v8101 = vsub.f32 1.0, %v8100
    %v8102 = vmul.f32 %v8099, %v8101
    %v8103 = vadd.f32 %v8099, %v8102
    %vm8104 = vweird.f32 %v8098
    %vm8105 = vweird.f32 %v8099
    %vm8106 = vmor %vm8104, %vm8105
    %v8107 = vsel %vm8106, %v8099, %v8103
    %v8108 = vand.u32 2147483647, %v8098
    %vm8109 = vcmp.eq.f32.partialorder %v8108, 8.507059e+37
    %v8110 = vand.u32 %v8098, 2147483648
    %v8111 = vor.u32 1.1754944e-38, %v8110
    %v8112 = vsel %vm8109, %v8111, %v8107
    %v8113 = vmul.f32 1.0, %v8112
    %v8114 = vtanh.pop %v8054
    %v8115 = vxor.u32 %v8074, 2147483648
    %v8116 = vmul.f32 %v8115, 1.442695
    %v8117 = vpow.pop %v8116
    %v8118 = vadd.f32 %v8117, 1.0
    %v8119 = vrcp.pop %v8118
    %v8120 = vmul.f32 %v8118, %v8119
    %v8121 = vsub.f32 1.0, %v8120
    %v8122 = vmul.f32 %v8119, %v8121
    %v8123 = vadd.f32 %v8119, %v8122
    %vm8124 = vweird.f32 %v8118
    %vm8125 = vweird.f32 %v8119
    %vm8126 = vmor %vm8124, %vm8125
    %v8127 = vsel %vm8126, %v8119, %v8123
    %v8128 = vand.u32 2147483647, %v8118
    %vm8129 = vcmp.eq.f32.partialorder %v8128, 8.507059e+37
    %v8130 = vand.u32 %v8118, 2147483648
    %v8131 = vor.u32 1.1754944e-38, %v8130
    %v8132 = vsel %vm8129, %v8131, %v8127
    %v8133 = vmul.f32 1.0, %v8132
    %v8134 = vmul.f32 %v8113, %v6928
    %v8135 = vmul.f32 %v8094, %v8114
    %v8136 = vadd.f32 %v8134, %v8135
    %v8137 = vtanh.pop %v8136
    %v8138 = vmul.f32 %v8133, %v8137
    %v8139 = vsub.f32 %v220, %v7995
    %v8140 = vmul.f32 %v8139, %v8139
    %v8141 = vadd.f32 %v7846, %v8140
    %v8143 = vrot.slane %v8138, 2
    %v8145 = vsub.f32 %v219, %v8143
    %v8146 = vmul.f32 %v8145, %v8145
    %v8147 = vadd.f32 %v7852, %v8146
    %8148 = vmatpush.msra.mxu0 %v6411
    %8149 = vmatpush.msra.mxu0 %v6407
    %8150 = vmatpush.msra.mxu0 %v6403
    %8151 = vmatpush.msra.mxu0 %v6399
    %8152 = vmatpush.msra.mxu0 %v6395
    %8153 = vmatpush.msra.mxu0 %v6391
    %8154 = vmatpush.msra.mxu0 %v6387
    %8155 = vmatpush.msra.mxu0 %v6383
    %8156 = vmatpush.msra.mxu0 %v6379
    %8157 = vmatpush.msra.mxu0 %v6375
    %8158 = vmatpush.msra.mxu0 %v6371
    %8159 = vmatpush.msra.mxu0 %v6367
    %8160 = vmatpush.msra.mxu0 %v6363
    %8161 = vmatpush.msra.mxu0 %v6359
    %8162 = vmatpush.msra.mxu0 %v6355
    %8163 = vmatpush.msra.mxu0 %v6351
    %8164 = vmatmul.f32.gmra.mxu0 %v7995
    %v8165 = vpop.f32.mrf.mxu0
    %v8166 = vadd.f32 %v6417, %v8165
    %8167 = vdwg.mxu0
    %8168 = vmatpush.msra.mxu0 %v6412
    %8169 = vmatpush.msra.mxu0 %v6408
    %8170 = vmatpush.msra.mxu0 %v6404
    %8171 = vmatpush.msra.mxu0 %v6400
    %8172 = vmatpush.msra.mxu0 %v6396
    %8173 = vmatpush.msra.mxu0 %v6392
    %8174 = vmatpush.msra.mxu0 %v6388
    %8175 = vmatpush.msra.mxu0 %v6384
    %8176 = vmatpush.msra.mxu0 %v6380
    %8177 = vmatpush.msra.mxu0 %v6376
    %8178 = vmatpush.msra.mxu0 %v6372
    %8179 = vmatpush.msra.mxu0 %v6368
    %8180 = vmatpush.msra.mxu0 %v6364
    %8181 = vmatpush.msra.mxu0 %v6360
    %8182 = vmatpush.msra.mxu0 %v6356
    %8183 = vmatpush.msra.mxu0 %v6352
    %8184 = vmatmul.f32.gmra.mxu0 %v7995
    %v8185 = vpop.f32.mrf.mxu0
    %v8186 = vadd.f32 %v6418, %v8185
    %8187 = vdwg.mxu0
    %8188 = vmatpush.msra.mxu0 %v6413
    %8189 = vmatpush.msra.mxu0 %v6409
    %8190 = vmatpush.msra.mxu0 %v6405
    %8191 = vmatpush.msra.mxu0 %v6401
    %8192 = vmatpush.msra.mxu0 %v6397
    %8193 = vmatpush.msra.mxu0 %v6393
    %8194 = vmatpush.msra.mxu0 %v6389
    %8195 = vmatpush.msra.mxu0 %v6385
    %8196 = vmatpush.msra.mxu0 %v6381
    %8197 = vmatpush.msra.mxu0 %v6377
    %8198 = vmatpush.msra.mxu0 %v6373
    %8199 = vmatpush.msra.mxu0 %v6369
    %8200 = vmatpush.msra.mxu0 %v6365
    %8201 = vmatpush.msra.mxu0 %v6361
    %8202 = vmatpush.msra.mxu0 %v6357
    %8203 = vmatpush.msra.mxu0 %v6353
    %8204 = vmatmul.f32.gmra.mxu0 %v7995
    %v8205 = vpop.f32.mrf.mxu0
    %v8206 = vadd.f32 %v6419, %v8205
    %8207 = vdwg.mxu0
    %8208 = vmatpush.msra.mxu0 %v6414
    %8209 = vmatpush.msra.mxu0 %v6410
    %8210 = vmatpush.msra.mxu0 %v6406
    %8211 = vmatpush.msra.mxu0 %v6402
    %8212 = vmatpush.msra.mxu0 %v6398
    %8213 = vmatpush.msra.mxu0 %v6394
    %8214 = vmatpush.msra.mxu0 %v6390
    %8215 = vmatpush.msra.mxu0 %v6386
    %8216 = vmatpush.msra.mxu0 %v6382
    %8217 = vmatpush.msra.mxu0 %v6378
    %8218 = vmatpush.msra.mxu0 %v6374
    %8219 = vmatpush.msra.mxu0 %v6370
    %8220 = vmatpush.msra.mxu0 %v6366
    %8221 = vmatpush.msra.mxu0 %v6362
    %8222 = vmatpush.msra.mxu0 %v6358
    %8223 = vmatpush.msra.mxu0 %v6354
    %8224 = vmatmul.f32.gmra.mxu0 %v7995
    %v8225 = vpop.f32.mrf.mxu0
    %v8226 = vadd.f32 %v6420, %v8225
    %8227 = vdwg.mxu0
    %v8228 = vxor.u32 %v8166, 2147483648
    %v8229 = vmul.f32 %v8228, 1.442695
    %v8230 = vpow.pop %v8229
    %v8231 = vadd.f32 %v8230, 1.0
    %v8232 = vrcp.pop %v8231
    %v8233 = vmul.f32 %v8231, %v8232
    %v8234 = vsub.f32 1.0, %v8233
    %v8235 = vmul.f32 %v8232, %v8234
    %v8236 = vadd.f32 %v8232, %v8235
    %vm8237 = vweird.f32 %v8231
    %vm8238 = vweird.f32 %v8232
    %vm8239 = vmor %vm8237, %vm8238
    %v8240 = vsel %vm8239, %v8232, %v8236
    %v8241 = vand.u32 2147483647, %v8231
    %vm8242 = vcmp.eq.f32.partialorder %v8241, 8.507059e+37
    %v8243 = vand.u32 %v8231, 2147483648
    %v8244 = vor.u32 1.1754944e-38, %v8243
    %v8245 = vsel %vm8242, %v8244, %v8240
    %v8246 = vmul.f32 1.0, %v8245
    %v8247 = vxor.u32 %v8186, 2147483648
    %v8248 = vmul.f32 %v8247, 1.442695
    %v8249 = vpow.pop %v8248
    %v8250 = vadd.f32 %v8249, 1.0
    %v8251 = vrcp.pop %v8250
    %v8252 = vmul.f32 %v8250, %v8251
    %v8253 = vsub.f32 1.0, %v8252
    %v8254 = vmul.f32 %v8251, %v8253
    %v8255 = vadd.f32 %v8251, %v8254
    %vm8256 = vweird.f32 %v8250
    %vm8257 = vweird.f32 %v8251
    %vm8258 = vmor %vm8256, %vm8257
    %v8259 = vsel %vm8258, %v8251, %v8255
    %v8260 = vand.u32 2147483647, %v8250
    %vm8261 = vcmp.eq.f32.partialorder %v8260, 8.507059e+37
    %v8262 = vand.u32 %v8250, 2147483648
    %v8263 = vor.u32 1.1754944e-38, %v8262
    %v8264 = vsel %vm8261, %v8263, %v8259
    %v8265 = vmul.f32 1.0, %v8264
    %v8266 = vtanh.pop %v8206
    %v8267 = vxor.u32 %v8226, 2147483648
    %v8268 = vmul.f32 %v8267, 1.442695
    %v8269 = vpow.pop %v8268
    %v8270 = vadd.f32 %v8269, 1.0
    %v8271 = vrcp.pop %v8270
    %v8272 = vmul.f32 %v8270, %v8271
    %v8273 = vsub.f32 1.0, %v8272
    %v8274 = vmul.f32 %v8271, %v8273
    %v8275 = vadd.f32 %v8271, %v8274
    %vm8276 = vweird.f32 %v8270
    %vm8277 = vweird.f32 %v8271
    %vm8278 = vmor %vm8276, %vm8277
    %v8279 = vsel %vm8278, %v8271, %v8275
    %v8280 = vand.u32 2147483647, %v8270
    %vm8281 = vcmp.eq.f32.partialorder %v8280, 8.507059e+37
    %v8282 = vand.u32 %v8270, 2147483648
    %v8283 = vor.u32 1.1754944e-38, %v8282
    %v8284 = vsel %vm8281, %v8283, %v8279
    %v8285 = vmul.f32 1.0, %v8284
    %v8286 = vmul.f32 %v8265, %v7993
    %v8287 = vmul.f32 %v8246, %v8266
    %v8288 = vadd.f32 %v8286, %v8287
    %v8289 = vtanh.pop %v8288
    %v8290 = vmul.f32 %v8285, %v8289
    %8291 = vmatpush.msra.mxu0 %v6485
    %8292 = vmatpush.msra.mxu0 %v6481
    %8293 = vmatpush.msra.mxu0 %v6477
    %8294 = vmatpush.msra.mxu0 %v6473
    %8295 = vmatpush.msra.mxu0 %v6469
    %8296 = vmatpush.msra.mxu0 %v6465
    %8297 = vmatpush.msra.mxu0 %v6461
    %8298 = vmatpush.msra.mxu0 %v6457
    %8299 = vmatpush.msra.mxu0 %v6453
    %8300 = vmatpush.msra.mxu0 %v6449
    %8301 = vmatpush.msra.mxu0 %v6445
    %8302 = vmatpush.msra.mxu0 %v6441
    %8303 = vmatpush.msra.mxu0 %v6437
    %8304 = vmatpush.msra.mxu0 %v6433
    %8305 = vmatpush.msra.mxu0 %v6429
    %8306 = vmatpush.msra.mxu0 %v6425
    %8307 = vmatmul.f32.gmra.mxu0 %v8138
    %v8308 = vpop.f32.mrf.mxu0
    %v8309 = vadd.f32 %v6581, %v8308
    %8310 = vdwg.mxu0
    %8311 = vmatpush.msra.mxu0 %v6486
    %8312 = vmatpush.msra.mxu0 %v6482
    %8313 = vmatpush.msra.mxu0 %v6478
    %8314 = vmatpush.msra.mxu0 %v6474
    %8315 = vmatpush.msra.mxu0 %v6470
    %8316 = vmatpush.msra.mxu0 %v6466
    %8317 = vmatpush.msra.mxu0 %v6462
    %8318 = vmatpush.msra.mxu0 %v6458
    %8319 = vmatpush.msra.mxu0 %v6454
    %8320 = vmatpush.msra.mxu0 %v6450
    %8321 = vmatpush.msra.mxu0 %v6446
    %8322 = vmatpush.msra.mxu0 %v6442
    %8323 = vmatpush.msra.mxu0 %v6438
    %8324 = vmatpush.msra.mxu0 %v6434
    %8325 = vmatpush.msra.mxu0 %v6430
    %8326 = vmatpush.msra.mxu0 %v6426
    %8327 = vmatmul.f32.gmra.mxu0 %v8138
    %v8328 = vpop.f32.mrf.mxu0
    %v8329 = vadd.f32 %v6601, %v8328
    %8330 = vdwg.mxu0
    %8331 = vmatpush.msra.mxu0 %v6487
    %8332 = vmatpush.msra.mxu0 %v6483
    %8333 = vmatpush.msra.mxu0 %v6479
    %8334 = vmatpush.msra.mxu0 %v6475
    %8335 = vmatpush.msra.mxu0 %v6471
    %8336 = vmatpush.msra.mxu0 %v6467
    %8337 = vmatpush.msra.mxu0 %v6463
    %8338 = vmatpush.msra.mxu0 %v6459
    %8339 = vmatpush.msra.mxu0 %v6455
    %8340 = vmatpush.msra.mxu0 %v6451
    %8341 = vmatpush.msra.mxu0 %v6447
    %8342 = vmatpush.msra.mxu0 %v6443
    %8343 = vmatpush.msra.mxu0 %v6439
    %8344 = vmatpush.msra.mxu0 %v6435
    %8345 = vmatpush.msra.mxu0 %v6431
    %8346 = vmatpush.msra.mxu0 %v6427
    %8347 = vmatmul.f32.gmra.mxu0 %v8138
    %v8348 = vpop.f32.mrf.mxu0
    %v8349 = vadd.f32 %v6621, %v8348
    %8350 = vdwg.mxu0
    %8351 = vmatpush.msra.mxu0 %v6488
    %8352 = vmatpush.msra.mxu0 %v6484
    %8353 = vmatpush.msra.mxu0 %v6480
    %8354 = vmatpush.msra.mxu0 %v6476
    %8355 = vmatpush.msra.mxu0 %v6472
    %8356 = vmatpush.msra.mxu0 %v6468
    %8357 = vmatpush.msra.mxu0 %v6464
    %8358 = vmatpush.msra.mxu0 %v6460
    %8359 = vmatpush.msra.mxu0 %v6456
    %8360 = vmatpush.msra.mxu0 %v6452
    %8361 = vmatpush.msra.mxu0 %v6448
    %8362 = vmatpush.msra.mxu0 %v6444
    %8363 = vmatpush.msra.mxu0 %v6440
    %8364 = vmatpush.msra.mxu0 %v6436
    %8365 = vmatpush.msra.mxu0 %v6432
    %8366 = vmatpush.msra.mxu0 %v6428
    %8367 = vmatmul.f32.gmra.mxu0 %v8138
    %v8368 = vpop.f32.mrf.mxu0
    %v8369 = vadd.f32 %v6641, %v8368
    %8370 = vdwg.mxu0
    %v8371 = vxor.u32 %v8309, 2147483648
    %v8372 = vmul.f32 %v8371, 1.442695
    %v8373 = vpow.pop %v8372
    %v8374 = vadd.f32 %v8373, 1.0
    %v8375 = vrcp.pop %v8374
    %v8376 = vmul.f32 %v8374, %v8375
    %v8377 = vsub.f32 1.0, %v8376
    %v8378 = vmul.f32 %v8375, %v8377
    %v8379 = vadd.f32 %v8375, %v8378
    %vm8380 = vweird.f32 %v8374
    %vm8381 = vweird.f32 %v8375
    %vm8382 = vmor %vm8380, %vm8381
    %v8383 = vsel %vm8382, %v8375, %v8379
    %v8384 = vand.u32 2147483647, %v8374
    %vm8385 = vcmp.eq.f32.partialorder %v8384, 8.507059e+37
    %v8386 = vand.u32 %v8374, 2147483648
    %v8387 = vor.u32 1.1754944e-38, %v8386
    %v8388 = vsel %vm8385, %v8387, %v8383
    %v8389 = vmul.f32 1.0, %v8388
    %v8390 = vxor.u32 %v8329, 2147483648
    %v8391 = vmul.f32 %v8390, 1.442695
    %v8392 = vpow.pop %v8391
    %v8393 = vadd.f32 %v8392, 1.0
    %v8394 = vrcp.pop %v8393
    %v8395 = vmul.f32 %v8393, %v8394
    %v8396 = vsub.f32 1.0, %v8395
    %v8397 = vmul.f32 %v8394, %v8396
    %v8398 = vadd.f32 %v8394, %v8397
    %vm8399 = vweird.f32 %v8393
    %vm8400 = vweird.f32 %v8394
    %vm8401 = vmor %vm8399, %vm8400
    %v8402 = vsel %vm8401, %v8394, %v8398
    %v8403 = vand.u32 2147483647, %v8393
    %vm8404 = vcmp.eq.f32.partialorder %v8403, 8.507059e+37
    %v8405 = vand.u32 %v8393, 2147483648
    %v8406 = vor.u32 1.1754944e-38, %v8405
    %v8407 = vsel %vm8404, %v8406, %v8402
    %v8408 = vmul.f32 1.0, %v8407
    %v8409 = vtanh.pop %v8349
    %v8410 = vxor.u32 %v8369, 2147483648
    %v8411 = vmul.f32 %v8410, 1.442695
    %v8412 = vpow.pop %v8411
    %v8413 = vadd.f32 %v8412, 1.0
    %v8414 = vrcp.pop %v8413
    %v8415 = vmul.f32 %v8413, %v8414
    %v8416 = vsub.f32 1.0, %v8415
    %v8417 = vmul.f32 %v8414, %v8416
    %v8418 = vadd.f32 %v8414, %v8417
    %vm8419 = vweird.f32 %v8413
    %vm8420 = vweird.f32 %v8414
    %vm8421 = vmor %vm8419, %vm8420
    %v8422 = vsel %vm8421, %v8414, %v8418
    %v8423 = vand.u32 2147483647, %v8413
    %vm8424 = vcmp.eq.f32.partialorder %v8423, 8.507059e+37
    %v8425 = vand.u32 %v8413, 2147483648
    %v8426 = vor.u32 1.1754944e-38, %v8425
    %v8427 = vsel %vm8424, %v8426, %v8422
    %v8428 = vmul.f32 1.0, %v8427
    %v8429 = vmul.f32 %v8408, %v6928
    %v8430 = vmul.f32 %v8389, %v8409
    %v8431 = vadd.f32 %v8429, %v8430
    %v8432 = vtanh.pop %v8431
    %v8433 = vmul.f32 %v8428, %v8432
    %v8435 = vrot.slane %v8290, 6
    %v8437 = vsub.f32 %v220, %v8435
    %v8438 = vmul.f32 %v8437, %v8437
    %v8440 = vrot.slane %v8438, 2
    %v8442 = vadd.f32 %v8141, %v8440
    %v8444 = vrot.slane %v8433, 4
    %v8446 = vsub.f32 %v219, %v8444
    %v8447 = vmul.f32 %v8446, %v8446
    %v8449 = vrot.slane %v8447, 6
    %v8451 = vadd.f32 %v8147, %v8449
    %8452 = vmatpush.msra.mxu0 %v6411
    %8453 = vmatpush.msra.mxu0 %v6407
    %8454 = vmatpush.msra.mxu0 %v6403
    %8455 = vmatpush.msra.mxu0 %v6399
    %8456 = vmatpush.msra.mxu0 %v6395
    %8457 = vmatpush.msra.mxu0 %v6391
    %8458 = vmatpush.msra.mxu0 %v6387
    %8459 = vmatpush.msra.mxu0 %v6383
    %8460 = vmatpush.msra.mxu0 %v6379
    %8461 = vmatpush.msra.mxu0 %v6375
    %8462 = vmatpush.msra.mxu0 %v6371
    %8463 = vmatpush.msra.mxu0 %v6367
    %8464 = vmatpush.msra.mxu0 %v6363
    %8465 = vmatpush.msra.mxu0 %v6359
    %8466 = vmatpush.msra.mxu0 %v6355
    %8467 = vmatpush.msra.mxu0 %v6351
    %8468 = vmatmul.f32.gmra.mxu0 %v8290
    %v8469 = vpop.f32.mrf.mxu0
    %v8470 = vadd.f32 %v6417, %v8469
    %8471 = vdwg.mxu0
    %8472 = vmatpush.msra.mxu0 %v6412
    %8473 = vmatpush.msra.mxu0 %v6408
    %8474 = vmatpush.msra.mxu0 %v6404
    %8475 = vmatpush.msra.mxu0 %v6400
    %8476 = vmatpush.msra.mxu0 %v6396
    %8477 = vmatpush.msra.mxu0 %v6392
    %8478 = vmatpush.msra.mxu0 %v6388
    %8479 = vmatpush.msra.mxu0 %v6384
    %8480 = vmatpush.msra.mxu0 %v6380
    %8481 = vmatpush.msra.mxu0 %v6376
    %8482 = vmatpush.msra.mxu0 %v6372
    %8483 = vmatpush.msra.mxu0 %v6368
    %8484 = vmatpush.msra.mxu0 %v6364
    %8485 = vmatpush.msra.mxu0 %v6360
    %8486 = vmatpush.msra.mxu0 %v6356
    %8487 = vmatpush.msra.mxu0 %v6352
    %8488 = vmatmul.f32.gmra.mxu0 %v8290
    %v8489 = vpop.f32.mrf.mxu0
    %v8490 = vadd.f32 %v6418, %v8489
    %8491 = vdwg.mxu0
    %8492 = vmatpush.msra.mxu0 %v6413
    %8493 = vmatpush.msra.mxu0 %v6409
    %8494 = vmatpush.msra.mxu0 %v6405
    %8495 = vmatpush.msra.mxu0 %v6401
    %8496 = vmatpush.msra.mxu0 %v6397
    %8497 = vmatpush.msra.mxu0 %v6393
    %8498 = vmatpush.msra.mxu0 %v6389
    %8499 = vmatpush.msra.mxu0 %v6385
    %8500 = vmatpush.msra.mxu0 %v6381
    %8501 = vmatpush.msra.mxu0 %v6377
    %8502 = vmatpush.msra.mxu0 %v6373
    %8503 = vmatpush.msra.mxu0 %v6369
    %8504 = vmatpush.msra.mxu0 %v6365
    %8505 = vmatpush.msra.mxu0 %v6361
    %8506 = vmatpush.msra.mxu0 %v6357
    %8507 = vmatpush.msra.mxu0 %v6353
    %8508 = vmatmul.f32.gmra.mxu0 %v8290
    %v8509 = vpop.f32.mrf.mxu0
    %v8510 = vadd.f32 %v6419, %v8509
    %8511 = vdwg.mxu0
    %8512 = vmatpush.msra.mxu0 %v6414
    %8513 = vmatpush.msra.mxu0 %v6410
    %8514 = vmatpush.msra.mxu0 %v6406
    %8515 = vmatpush.msra.mxu0 %v6402
    %8516 = vmatpush.msra.mxu0 %v6398
    %8517 = vmatpush.msra.mxu0 %v6394
    %8518 = vmatpush.msra.mxu0 %v6390
    %8519 = vmatpush.msra.mxu0 %v6386
    %8520 = vmatpush.msra.mxu0 %v6382
    %8521 = vmatpush.msra.mxu0 %v6378
    %8522 = vmatpush.msra.mxu0 %v6374
    %8523 = vmatpush.msra.mxu0 %v6370
    %8524 = vmatpush.msra.mxu0 %v6366
    %8525 = vmatpush.msra.mxu0 %v6362
    %8526 = vmatpush.msra.mxu0 %v6358
    %8527 = vmatpush.msra.mxu0 %v6354
    %8528 = vmatmul.f32.gmra.mxu0 %v8290
    %v8529 = vpop.f32.mrf.mxu0
    %v8530 = vadd.f32 %v6420, %v8529
    %8531 = vdwg.mxu0
    %v8532 = vxor.u32 %v8470, 2147483648
    %v8533 = vmul.f32 %v8532, 1.442695
    %v8534 = vpow.pop %v8533
    %v8535 = vadd.f32 %v8534, 1.0
    %v8536 = vrcp.pop %v8535
    %v8537 = vmul.f32 %v8535, %v8536
    %v8538 = vsub.f32 1.0, %v8537
    %v8539 = vmul.f32 %v8536, %v8538
    %v8540 = vadd.f32 %v8536, %v8539
    %vm8541 = vweird.f32 %v8535
    %vm8542 = vweird.f32 %v8536
    %vm8543 = vmor %vm8541, %vm8542
    %v8544 = vsel %vm8543, %v8536, %v8540
    %v8545 = vand.u32 2147483647, %v8535
    %vm8546 = vcmp.eq.f32.partialorder %v8545, 8.507059e+37
    %v8547 = vand.u32 %v8535, 2147483648
    %v8548 = vor.u32 1.1754944e-38, %v8547
    %v8549 = vsel %vm8546, %v8548, %v8544
    %v8550 = vmul.f32 1.0, %v8549
    %v8551 = vxor.u32 %v8490, 2147483648
    %v8552 = vmul.f32 %v8551, 1.442695
    %v8553 = vpow.pop %v8552
    %v8554 = vadd.f32 %v8553, 1.0
    %v8555 = vrcp.pop %v8554
    %v8556 = vmul.f32 %v8554, %v8555
    %v8557 = vsub.f32 1.0, %v8556
    %v8558 = vmul.f32 %v8555, %v8557
    %v8559 = vadd.f32 %v8555, %v8558
    %vm8560 = vweird.f32 %v8554
    %vm8561 = vweird.f32 %v8555
    %vm8562 = vmor %vm8560, %vm8561
    %v8563 = vsel %vm8562, %v8555, %v8559
    %v8564 = vand.u32 2147483647, %v8554
    %vm8565 = vcmp.eq.f32.partialorder %v8564, 8.507059e+37
    %v8566 = vand.u32 %v8554, 2147483648
    %v8567 = vor.u32 1.1754944e-38, %v8566
    %v8568 = vsel %vm8565, %v8567, %v8563
    %v8569 = vmul.f32 1.0, %v8568
    %v8570 = vtanh.pop %v8510
    %v8571 = vxor.u32 %v8530, 2147483648
    %v8572 = vmul.f32 %v8571, 1.442695
    %v8573 = vpow.pop %v8572
    %v8574 = vadd.f32 %v8573, 1.0
    %v8575 = vrcp.pop %v8574
    %v8576 = vmul.f32 %v8574, %v8575
    %v8577 = vsub.f32 1.0, %v8576
    %v8578 = vmul.f32 %v8575, %v8577
    %v8579 = vadd.f32 %v8575, %v8578
    %vm8580 = vweird.f32 %v8574
    %vm8581 = vweird.f32 %v8575
    %vm8582 = vmor %vm8580, %vm8581
    %v8583 = vsel %vm8582, %v8575, %v8579
    %v8584 = vand.u32 2147483647, %v8574
    %vm8585 = vcmp.eq.f32.partialorder %v8584, 8.507059e+37
    %v8586 = vand.u32 %v8574, 2147483648
    %v8587 = vor.u32 1.1754944e-38, %v8586
    %v8588 = vsel %vm8585, %v8587, %v8583
    %v8589 = vmul.f32 1.0, %v8588
    %v8590 = vmul.f32 %v8569, %v8288
    %v8591 = vmul.f32 %v8550, %v8570
    %v8592 = vadd.f32 %v8590, %v8591
    %v8593 = vtanh.pop %v8592
    %v8594 = vmul.f32 %v8589, %v8593
    %8595 = vmatpush.msra.mxu0 %v6485
    %8596 = vmatpush.msra.mxu0 %v6481
    %8597 = vmatpush.msra.mxu0 %v6477
    %8598 = vmatpush.msra.mxu0 %v6473
    %8599 = vmatpush.msra.mxu0 %v6469
    %8600 = vmatpush.msra.mxu0 %v6465
    %8601 = vmatpush.msra.mxu0 %v6461
    %8602 = vmatpush.msra.mxu0 %v6457
    %8603 = vmatpush.msra.mxu0 %v6453
    %8604 = vmatpush.msra.mxu0 %v6449
    %8605 = vmatpush.msra.mxu0 %v6445
    %8606 = vmatpush.msra.mxu0 %v6441
    %8607 = vmatpush.msra.mxu0 %v6437
    %8608 = vmatpush.msra.mxu0 %v6433
    %8609 = vmatpush.msra.mxu0 %v6429
    %8610 = vmatpush.msra.mxu0 %v6425
    %8611 = vmatmul.f32.gmra.mxu0 %v8433
    %v8612 = vpop.f32.mrf.mxu0
    %v8613 = vadd.f32 %v6581, %v8612
    %8614 = vdwg.mxu0
    %8615 = vmatpush.msra.mxu0 %v6486
    %8616 = vmatpush.msra.mxu0 %v6482
    %8617 = vmatpush.msra.mxu0 %v6478
    %8618 = vmatpush.msra.mxu0 %v6474
    %8619 = vmatpush.msra.mxu0 %v6470
    %8620 = vmatpush.msra.mxu0 %v6466
    %8621 = vmatpush.msra.mxu0 %v6462
    %8622 = vmatpush.msra.mxu0 %v6458
    %8623 = vmatpush.msra.mxu0 %v6454
    %8624 = vmatpush.msra.mxu0 %v6450
    %8625 = vmatpush.msra.mxu0 %v6446
    %8626 = vmatpush.msra.mxu0 %v6442
    %8627 = vmatpush.msra.mxu0 %v6438
    %8628 = vmatpush.msra.mxu0 %v6434
    %8629 = vmatpush.msra.mxu0 %v6430
    %8630 = vmatpush.msra.mxu0 %v6426
    %8631 = vmatmul.f32.gmra.mxu0 %v8433
    %v8632 = vpop.f32.mrf.mxu0
    %v8633 = vadd.f32 %v6601, %v8632
    %8634 = vdwg.mxu0
    %8635 = vmatpush.msra.mxu0 %v6487
    %8636 = vmatpush.msra.mxu0 %v6483
    %8637 = vmatpush.msra.mxu0 %v6479
    %8638 = vmatpush.msra.mxu0 %v6475
    %8639 = vmatpush.msra.mxu0 %v6471
    %8640 = vmatpush.msra.mxu0 %v6467
    %8641 = vmatpush.msra.mxu0 %v6463
    %8642 = vmatpush.msra.mxu0 %v6459
    %8643 = vmatpush.msra.mxu0 %v6455
    %8644 = vmatpush.msra.mxu0 %v6451
    %8645 = vmatpush.msra.mxu0 %v6447
    %8646 = vmatpush.msra.mxu0 %v6443
    %8647 = vmatpush.msra.mxu0 %v6439
    %8648 = vmatpush.msra.mxu0 %v6435
    %8649 = vmatpush.msra.mxu0 %v6431
    %8650 = vmatpush.msra.mxu0 %v6427
    %8651 = vmatmul.f32.gmra.mxu0 %v8433
    %v8652 = vpop.f32.mrf.mxu0
    %v8653 = vadd.f32 %v6621, %v8652
    %8654 = vdwg.mxu0
    %8655 = vmatpush.msra.mxu0 %v6488
    %8656 = vmatpush.msra.mxu0 %v6484
    %8657 = vmatpush.msra.mxu0 %v6480
    %8658 = vmatpush.msra.mxu0 %v6476
    %8659 = vmatpush.msra.mxu0 %v6472
    %8660 = vmatpush.msra.mxu0 %v6468
    %8661 = vmatpush.msra.mxu0 %v6464
    %8662 = vmatpush.msra.mxu0 %v6460
    %8663 = vmatpush.msra.mxu0 %v6456
    %8664 = vmatpush.msra.mxu0 %v6452
    %8665 = vmatpush.msra.mxu0 %v6448
    %8666 = vmatpush.msra.mxu0 %v6444
    %8667 = vmatpush.msra.mxu0 %v6440
    %8668 = vmatpush.msra.mxu0 %v6436
    %8669 = vmatpush.msra.mxu0 %v6432
    %8670 = vmatpush.msra.mxu0 %v6428
    %8671 = vmatmul.f32.gmra.mxu0 %v8433
    %v8672 = vpop.f32.mrf.mxu0
    %v8673 = vadd.f32 %v6641, %v8672
    %8674 = vdwg.mxu0
    %v8675 = vxor.u32 %v8613, 2147483648
    %v8676 = vmul.f32 %v8675, 1.442695
    %v8677 = vpow.pop %v8676
    %v8678 = vadd.f32 %v8677, 1.0
    %v8679 = vrcp.pop %v8678
    %v8680 = vmul.f32 %v8678, %v8679
    %v8681 = vsub.f32 1.0, %v8680
    %v8682 = vmul.f32 %v8679, %v8681
    %v8683 = vadd.f32 %v8679, %v8682
    %vm8684 = vweird.f32 %v8678
    %vm8685 = vweird.f32 %v8679
    %vm8686 = vmor %vm8684, %vm8685
    %v8687 = vsel %vm8686, %v8679, %v8683
    %v8688 = vand.u32 2147483647, %v8678
    %vm8689 = vcmp.eq.f32.partialorder %v8688, 8.507059e+37
    %v8690 = vand.u32 %v8678, 2147483648
    %v8691 = vor.u32 1.1754944e-38, %v8690
    %v8692 = vsel %vm8689, %v8691, %v8687
    %v8693 = vmul.f32 1.0, %v8692
    %v8694 = vxor.u32 %v8633, 2147483648
    %v8695 = vmul.f32 %v8694, 1.442695
    %v8696 = vpow.pop %v8695
    %v8697 = vadd.f32 %v8696, 1.0
    %v8698 = vrcp.pop %v8697
    %v8699 = vmul.f32 %v8697, %v8698
    %v8700 = vsub.f32 1.0, %v8699
    %v8701 = vmul.f32 %v8698, %v8700
    %v8702 = vadd.f32 %v8698, %v8701
    %vm8703 = vweird.f32 %v8697
    %vm8704 = vweird.f32 %v8698
    %vm8705 = vmor %vm8703, %vm8704
    %v8706 = vsel %vm8705, %v8698, %v8702
    %v8707 = vand.u32 2147483647, %v8697
    %vm8708 = vcmp.eq.f32.partialorder %v8707, 8.507059e+37
    %v8709 = vand.u32 %v8697, 2147483648
    %v8710 = vor.u32 1.1754944e-38, %v8709
    %v8711 = vsel %vm8708, %v8710, %v8706
    %v8712 = vmul.f32 1.0, %v8711
    %v8713 = vtanh.pop %v8653
    %v8714 = vxor.u32 %v8673, 2147483648
    %v8715 = vmul.f32 %v8714, 1.442695
    %v8716 = vpow.pop %v8715
    %v8717 = vadd.f32 %v8716, 1.0
    %v8718 = vrcp.pop %v8717
    %v8719 = vmul.f32 %v8717, %v8718
    %v8720 = vsub.f32 1.0, %v8719
    %v8721 = vmul.f32 %v8718, %v8720
    %v8722 = vadd.f32 %v8718, %v8721
    %vm8723 = vweird.f32 %v8717
    %vm8724 = vweird.f32 %v8718
    %vm8725 = vmor %vm8723, %vm8724
    %v8726 = vsel %vm8725, %v8718, %v8722
    %v8727 = vand.u32 2147483647, %v8717
    %vm8728 = vcmp.eq.f32.partialorder %v8727, 8.507059e+37
    %v8729 = vand.u32 %v8717, 2147483648
    %v8730 = vor.u32 1.1754944e-38, %v8729
    %v8731 = vsel %vm8728, %v8730, %v8726
    %v8732 = vmul.f32 1.0, %v8731
    %v8733 = vmul.f32 %v8712, %v6928
    %v8734 = vmul.f32 %v8693, %v8713
    %v8735 = vadd.f32 %v8733, %v8734
    %v8736 = vtanh.pop %v8735
    %v8737 = vmul.f32 %v8732, %v8736
    %v8739 = vrot.slane %v8594, 4
    %v8741 = vsub.f32 %v220, %v8739
    %v8742 = vmul.f32 %v8741, %v8741
    %v8744 = vrot.slane %v8742, 4
    %v8746 = vadd.f32 %v8442, %v8744
    %v8748 = vrot.slane %v8737, 6
    %v8750 = vsub.f32 %v219, %v8748
    %v8751 = vmul.f32 %v8750, %v8750
    %v8753 = vrot.slane %v8751, 4
    %v8755 = vadd.f32 %v8451, %v8753
    %8756 = vmatpush.msra.mxu0 %v6411
    %8757 = vmatpush.msra.mxu0 %v6407
    %8758 = vmatpush.msra.mxu0 %v6403
    %8759 = vmatpush.msra.mxu0 %v6399
    %8760 = vmatpush.msra.mxu0 %v6395
    %8761 = vmatpush.msra.mxu0 %v6391
    %8762 = vmatpush.msra.mxu0 %v6387
    %8763 = vmatpush.msra.mxu0 %v6383
    %8764 = vmatpush.msra.mxu0 %v6379
    %8765 = vmatpush.msra.mxu0 %v6375
    %8766 = vmatpush.msra.mxu0 %v6371
    %8767 = vmatpush.msra.mxu0 %v6367
    %8768 = vmatpush.msra.mxu0 %v6363
    %8769 = vmatpush.msra.mxu0 %v6359
    %8770 = vmatpush.msra.mxu0 %v6355
    %8771 = vmatpush.msra.mxu0 %v6351
    %8772 = vmatmul.f32.gmra.mxu0 %v8594
    %v8773 = vpop.f32.mrf.mxu0
    %v8774 = vadd.f32 %v6417, %v8773
    %8775 = vdwg.mxu0
    %8776 = vmatpush.msra.mxu0 %v6412
    %8777 = vmatpush.msra.mxu0 %v6408
    %8778 = vmatpush.msra.mxu0 %v6404
    %8779 = vmatpush.msra.mxu0 %v6400
    %8780 = vmatpush.msra.mxu0 %v6396
    %8781 = vmatpush.msra.mxu0 %v6392
    %8782 = vmatpush.msra.mxu0 %v6388
    %8783 = vmatpush.msra.mxu0 %v6384
    %8784 = vmatpush.msra.mxu0 %v6380
    %8785 = vmatpush.msra.mxu0 %v6376
    %8786 = vmatpush.msra.mxu0 %v6372
    %8787 = vmatpush.msra.mxu0 %v6368
    %8788 = vmatpush.msra.mxu0 %v6364
    %8789 = vmatpush.msra.mxu0 %v6360
    %8790 = vmatpush.msra.mxu0 %v6356
    %8791 = vmatpush.msra.mxu0 %v6352
    %8792 = vmatmul.f32.gmra.mxu0 %v8594
    %v8793 = vpop.f32.mrf.mxu0
    %v8794 = vadd.f32 %v6418, %v8793
    %8795 = vdwg.mxu0
    %8796 = vmatpush.msra.mxu0 %v6413
    %8797 = vmatpush.msra.mxu0 %v6409
    %8798 = vmatpush.msra.mxu0 %v6405
    %8799 = vmatpush.msra.mxu0 %v6401
    %8800 = vmatpush.msra.mxu0 %v6397
    %8801 = vmatpush.msra.mxu0 %v6393
    %8802 = vmatpush.msra.mxu0 %v6389
    %8803 = vmatpush.msra.mxu0 %v6385
    %8804 = vmatpush.msra.mxu0 %v6381
    %8805 = vmatpush.msra.mxu0 %v6377
    %8806 = vmatpush.msra.mxu0 %v6373
    %8807 = vmatpush.msra.mxu0 %v6369
    %8808 = vmatpush.msra.mxu0 %v6365
    %8809 = vmatpush.msra.mxu0 %v6361
    %8810 = vmatpush.msra.mxu0 %v6357
    %8811 = vmatpush.msra.mxu0 %v6353
    %8812 = vmatmul.f32.gmra.mxu0 %v8594
    %v8813 = vpop.f32.mrf.mxu0
    %v8814 = vadd.f32 %v6419, %v8813
    %8815 = vdwg.mxu0
    %8816 = vmatpush.msra.mxu0 %v6414
    %8817 = vmatpush.msra.mxu0 %v6410
    %8818 = vmatpush.msra.mxu0 %v6406
    %8819 = vmatpush.msra.mxu0 %v6402
    %8820 = vmatpush.msra.mxu0 %v6398
    %8821 = vmatpush.msra.mxu0 %v6394
    %8822 = vmatpush.msra.mxu0 %v6390
    %8823 = vmatpush.msra.mxu0 %v6386
    %8824 = vmatpush.msra.mxu0 %v6382
    %8825 = vmatpush.msra.mxu0 %v6378
    %8826 = vmatpush.msra.mxu0 %v6374
    %8827 = vmatpush.msra.mxu0 %v6370
    %8828 = vmatpush.msra.mxu0 %v6366
    %8829 = vmatpush.msra.mxu0 %v6362
    %8830 = vmatpush.msra.mxu0 %v6358
    %8831 = vmatpush.msra.mxu0 %v6354
    %8832 = vmatmul.f32.gmra.mxu0 %v8594
    %v8833 = vpop.f32.mrf.mxu0
    %v8834 = vadd.f32 %v6420, %v8833
    %8835 = vdwg.mxu0
    %v8836 = vxor.u32 %v8774, 2147483648
    %v8837 = vmul.f32 %v8836, 1.442695
    %v8838 = vpow.pop %v8837
    %v8839 = vadd.f32 %v8838, 1.0
    %v8840 = vrcp.pop %v8839
    %v8841 = vmul.f32 %v8839, %v8840
    %v8842 = vsub.f32 1.0, %v8841
    %v8843 = vmul.f32 %v8840, %v8842
    %v8844 = vadd.f32 %v8840, %v8843
    %vm8845 = vweird.f32 %v8839
    %vm8846 = vweird.f32 %v8840
    %vm8847 = vmor %vm8845, %vm8846
    %v8848 = vsel %vm8847, %v8840, %v8844
    %v8849 = vand.u32 2147483647, %v8839
    %vm8850 = vcmp.eq.f32.partialorder %v8849, 8.507059e+37
    %v8851 = vand.u32 %v8839, 2147483648
    %v8852 = vor.u32 1.1754944e-38, %v8851
    %v8853 = vsel %vm8850, %v8852, %v8848
    %v8854 = vmul.f32 1.0, %v8853
    %v8855 = vxor.u32 %v8794, 2147483648
    %v8856 = vmul.f32 %v8855, 1.442695
    %v8857 = vpow.pop %v8856
    %v8858 = vadd.f32 %v8857, 1.0
    %v8859 = vrcp.pop %v8858
    %v8860 = vmul.f32 %v8858, %v8859
    %v8861 = vsub.f32 1.0, %v8860
    %v8862 = vmul.f32 %v8859, %v8861
    %v8863 = vadd.f32 %v8859, %v8862
    %vm8864 = vweird.f32 %v8858
    %vm8865 = vweird.f32 %v8859
    %vm8866 = vmor %vm8864, %vm8865
    %v8867 = vsel %vm8866, %v8859, %v8863
    %v8868 = vand.u32 2147483647, %v8858
    %vm8869 = vcmp.eq.f32.partialorder %v8868, 8.507059e+37
    %v8870 = vand.u32 %v8858, 2147483648
    %v8871 = vor.u32 1.1754944e-38, %v8870
    %v8872 = vsel %vm8869, %v8871, %v8867
    %v8873 = vmul.f32 1.0, %v8872
    %v8874 = vtanh.pop %v8814
    %v8875 = vxor.u32 %v8834, 2147483648
    %v8876 = vmul.f32 %v8875, 1.442695
    %v8877 = vpow.pop %v8876
    %v8878 = vadd.f32 %v8877, 1.0
    %v8879 = vrcp.pop %v8878
    %v8880 = vmul.f32 %v8878, %v8879
    %v8881 = vsub.f32 1.0, %v8880
    %v8882 = vmul.f32 %v8879, %v8881
    %v8883 = vadd.f32 %v8879, %v8882
    %vm8884 = vweird.f32 %v8878
    %vm8885 = vweird.f32 %v8879
    %vm8886 = vmor %vm8884, %vm8885
    %v8887 = vsel %vm8886, %v8879, %v8883
    %v8888 = vand.u32 2147483647, %v8878
    %vm8889 = vcmp.eq.f32.partialorder %v8888, 8.507059e+37
    %v8890 = vand.u32 %v8878, 2147483648
    %v8891 = vor.u32 1.1754944e-38, %v8890
    %v8892 = vsel %vm8889, %v8891, %v8887
    %v8893 = vmul.f32 1.0, %v8892
    %v8894 = vmul.f32 %v8873, %v8592
    %v8895 = vmul.f32 %v8854, %v8874
    %v8896 = vadd.f32 %v8894, %v8895
    %v8897 = vtanh.pop %v8896
    %v8898 = vmul.f32 %v8893, %v8897
    %8899 = vmatpush.msra.mxu0 %v6485
    %8900 = vmatpush.msra.mxu0 %v6481
    %8901 = vmatpush.msra.mxu0 %v6477
    %8902 = vmatpush.msra.mxu0 %v6473
    %8903 = vmatpush.msra.mxu0 %v6469
    %8904 = vmatpush.msra.mxu0 %v6465
    %8905 = vmatpush.msra.mxu0 %v6461
    %8906 = vmatpush.msra.mxu0 %v6457
    %8907 = vmatpush.msra.mxu0 %v6453
    %8908 = vmatpush.msra.mxu0 %v6449
    %8909 = vmatpush.msra.mxu0 %v6445
    %8910 = vmatpush.msra.mxu0 %v6441
    %8911 = vmatpush.msra.mxu0 %v6437
    %8912 = vmatpush.msra.mxu0 %v6433
    %8913 = vmatpush.msra.mxu0 %v6429
    %8914 = vmatpush.msra.mxu0 %v6425
    %8915 = vmatmul.f32.gmra.mxu0 %v8737
    %v8916 = vpop.f32.mrf.mxu0
    %v8917 = vadd.f32 %v6581, %v8916
    %8918 = vdwg.mxu0
    %8919 = vmatpush.msra.mxu0 %v6486
    %8920 = vmatpush.msra.mxu0 %v6482
    %8921 = vmatpush.msra.mxu0 %v6478
    %8922 = vmatpush.msra.mxu0 %v6474
    %8923 = vmatpush.msra.mxu0 %v6470
    %8924 = vmatpush.msra.mxu0 %v6466
    %8925 = vmatpush.msra.mxu0 %v6462
    %8926 = vmatpush.msra.mxu0 %v6458
    %8927 = vmatpush.msra.mxu0 %v6454
    %8928 = vmatpush.msra.mxu0 %v6450
    %8929 = vmatpush.msra.mxu0 %v6446
    %8930 = vmatpush.msra.mxu0 %v6442
    %8931 = vmatpush.msra.mxu0 %v6438
    %8932 = vmatpush.msra.mxu0 %v6434
    %8933 = vmatpush.msra.mxu0 %v6430
    %8934 = vmatpush.msra.mxu0 %v6426
    %8935 = vmatmul.f32.gmra.mxu0 %v8737
    %v8936 = vpop.f32.mrf.mxu0
    %v8937 = vadd.f32 %v6601, %v8936
    %8938 = vdwg.mxu0
    %8939 = vmatpush.msra.mxu0 %v6487
    %8940 = vmatpush.msra.mxu0 %v6483
    %8941 = vmatpush.msra.mxu0 %v6479
    %8942 = vmatpush.msra.mxu0 %v6475
    %8943 = vmatpush.msra.mxu0 %v6471
    %8944 = vmatpush.msra.mxu0 %v6467
    %8945 = vmatpush.msra.mxu0 %v6463
    %8946 = vmatpush.msra.mxu0 %v6459
    %8947 = vmatpush.msra.mxu0 %v6455
    %8948 = vmatpush.msra.mxu0 %v6451
    %8949 = vmatpush.msra.mxu0 %v6447
    %8950 = vmatpush.msra.mxu0 %v6443
    %8951 = vmatpush.msra.mxu0 %v6439
    %8952 = vmatpush.msra.mxu0 %v6435
    %8953 = vmatpush.msra.mxu0 %v6431
    %8954 = vmatpush.msra.mxu0 %v6427
    %8955 = vmatmul.f32.gmra.mxu0 %v8737
    %v8956 = vpop.f32.mrf.mxu0
    %v8957 = vadd.f32 %v6621, %v8956
    %8958 = vdwg.mxu0
    %8959 = vmatpush.msra.mxu0 %v6488
    %8960 = vmatpush.msra.mxu0 %v6484
    %8961 = vmatpush.msra.mxu0 %v6480
    %8962 = vmatpush.msra.mxu0 %v6476
    %8963 = vmatpush.msra.mxu0 %v6472
    %8964 = vmatpush.msra.mxu0 %v6468
    %8965 = vmatpush.msra.mxu0 %v6464
    %8966 = vmatpush.msra.mxu0 %v6460
    %8967 = vmatpush.msra.mxu0 %v6456
    %8968 = vmatpush.msra.mxu0 %v6452
    %8969 = vmatpush.msra.mxu0 %v6448
    %8970 = vmatpush.msra.mxu0 %v6444
    %8971 = vmatpush.msra.mxu0 %v6440
    %8972 = vmatpush.msra.mxu0 %v6436
    %8973 = vmatpush.msra.mxu0 %v6432
    %8974 = vmatpush.msra.mxu0 %v6428
    %8975 = vmatmul.f32.gmra.mxu0 %v8737
    %v8976 = vpop.f32.mrf.mxu0
    %v8977 = vadd.f32 %v6641, %v8976
    %8978 = vdwg.mxu0
    %v8979 = vxor.u32 %v8917, 2147483648
    %v8980 = vmul.f32 %v8979, 1.442695
    %v8981 = vpow.pop %v8980
    %v8982 = vadd.f32 %v8981, 1.0
    %v8983 = vrcp.pop %v8982
    %v8984 = vmul.f32 %v8982, %v8983
    %v8985 = vsub.f32 1.0, %v8984
    %v8986 = vmul.f32 %v8983, %v8985
    %v8987 = vadd.f32 %v8983, %v8986
    %vm8988 = vweird.f32 %v8982
    %vm8989 = vweird.f32 %v8983
    %vm8990 = vmor %vm8988, %vm8989
    %v8991 = vsel %vm8990, %v8983, %v8987
    %v8992 = vand.u32 2147483647, %v8982
    %vm8993 = vcmp.eq.f32.partialorder %v8992, 8.507059e+37
    %v8994 = vand.u32 %v8982, 2147483648
    %v8995 = vor.u32 1.1754944e-38, %v8994
    %v8996 = vsel %vm8993, %v8995, %v8991
    %v8997 = vmul.f32 1.0, %v8996
    %v8998 = vxor.u32 %v8937, 2147483648
    %v8999 = vmul.f32 %v8998, 1.442695
    %v9000 = vpow.pop %v8999
    %v9001 = vadd.f32 %v9000, 1.0
    %v9002 = vrcp.pop %v9001
    %v9003 = vmul.f32 %v9001, %v9002
    %v9004 = vsub.f32 1.0, %v9003
    %v9005 = vmul.f32 %v9002, %v9004
    %v9006 = vadd.f32 %v9002, %v9005
    %vm9007 = vweird.f32 %v9001
    %vm9008 = vweird.f32 %v9002
    %vm9009 = vmor %vm9007, %vm9008
    %v9010 = vsel %vm9009, %v9002, %v9006
    %v9011 = vand.u32 2147483647, %v9001
    %vm9012 = vcmp.eq.f32.partialorder %v9011, 8.507059e+37
    %v9013 = vand.u32 %v9001, 2147483648
    %v9014 = vor.u32 1.1754944e-38, %v9013
    %v9015 = vsel %vm9012, %v9014, %v9010
    %v9016 = vmul.f32 1.0, %v9015
    %v9017 = vtanh.pop %v8957
    %v9018 = vxor.u32 %v8977, 2147483648
    %v9019 = vmul.f32 %v9018, 1.442695
    %v9020 = vpow.pop %v9019
    %v9021 = vadd.f32 %v9020, 1.0
    %v9022 = vrcp.pop %v9021
    %v9023 = vmul.f32 %v9021, %v9022
    %v9024 = vsub.f32 1.0, %v9023
    %v9025 = vmul.f32 %v9022, %v9024
    %v9026 = vadd.f32 %v9022, %v9025
    %vm9027 = vweird.f32 %v9021
    %vm9028 = vweird.f32 %v9022
    %vm9029 = vmor %vm9027, %vm9028
    %v9030 = vsel %vm9029, %v9022, %v9026
    %v9031 = vand.u32 2147483647, %v9021
    %vm9032 = vcmp.eq.f32.partialorder %v9031, 8.507059e+37
    %v9033 = vand.u32 %v9021, 2147483648
    %v9034 = vor.u32 1.1754944e-38, %v9033
    %v9035 = vsel %vm9032, %v9034, %v9030
    %v9036 = vmul.f32 1.0, %v9035
    %v9037 = vmul.f32 %v9016, %v6928
    %v9038 = vmul.f32 %v8997, %v9017
    %v9039 = vadd.f32 %v9037, %v9038
    %v9040 = vtanh.pop %v9039
    %v9041 = vmul.f32 %v9036, %v9040
    %v9043 = vrot.slane %v8898, 2
    %v9045 = vsub.f32 %v220, %v9043
    %v9046 = vmul.f32 %v9045, %v9045
    %v9048 = vrot.slane %v9046, 6
    %v9050 = vadd.f32 %v8746, %v9048
    %v9051 = vsub.f32 %v219, %v9041
    %v9052 = vmul.f32 %v9051, %v9051
    %v9054 = vrot.slane %v9052, 2
    %v9056 = vadd.f32 %v8755, %v9054
    %v9057 = vsel %vm3250, %v9050, 0.0
    %9058 = vadd.xlane.f32.xlu0 %v9057
    %v9059 = vpop.xlane.xlu0 %9058
    %v9060 = vrot.slane %v9059, 4
    %v9061 = vadd.f32 %v9059, %v9060
    %v9062 = vrot.slane %v9061, 2
    %v9063 = vadd.f32 %v9061, %v9062
    %v9064 = vrot.slane %v9063, 1
    %v9065 = vadd.f32 %v9063, %v9064
    %s9066 = vtos %v9065
    %v9068 = vrot.slane %v9056, 6
    %v9070 = vsel %vm3250, %v9068, 0.0
    %9071 = vadd.xlane.f32.xlu0 %v9070
    %v9072 = vpop.xlane.xlu0 %9071
    %v9073 = vrot.slane %v9072, 4
    %v9074 = vadd.f32 %v9072, %v9073
    %v9075 = vrot.slane %v9074, 2
    %v9076 = vadd.f32 %v9074, %v9075
    %v9077 = vrot.slane %v9076, 1
    %v9078 = vadd.f32 %v9076, %v9077
    %s9079 = vtos %v9078
    %s9080 = sadd.f32 %s9066, %s9079
    %v9081 = vrcp.pop 2048.0
    %v9082 = vmul.f32 2048.0, %v9081
    %v9083 = vsub.f32 1.0, %v9082
    %v9084 = vmul.f32 %v9081, %v9083
    %v9085 = vadd.f32 %v9081, %v9084
    %vm9086 = vweird.f32 %v9081
    %v9087 = vsel %vm9086, %v9081, %v9085
    %s9088 = vtos %v9087
    %s9089 = smul.f32 %s9080, %s9088
    %v9090 = vld [vmem:[%s16] sm:$0xff]
    %v9091 = vld [vmem:[%s16 + $0x8] sm:$0xff]
    %v9092 = vld [vmem:[%s16 + $0x10] sm:$0xff]
    %v9093 = vld [vmem:[%s16 + $0x18] sm:$0xff]
    %v9094 = vld [vmem:[%s16 + $0x20] sm:$0xff]
    %v9095 = vld [vmem:[%s16 + $0x28] sm:$0xff]
    %v9096 = vld [vmem:[%s16 + $0x30] sm:$0xff]
    %v9097 = vld [vmem:[%s16 + $0x38] sm:$0xff]
    %v9098 = vld [vmem:[%s16 + $0x40] sm:$0xff]
    %v9099 = vld [vmem:[%s16 + $0x48] sm:$0xff]
    %v9100 = vld [vmem:[%s16 + $0x50] sm:$0xff]
    %v9101 = vld [vmem:[%s16 + $0x58] sm:$0xff]
    %v9102 = vld [vmem:[%s16 + $0x60] sm:$0xff]
    %v9103 = vld [vmem:[%s16 + $0x68] sm:$0xff]
    %v9104 = vld [vmem:[%s16 + $0x70] sm:$0xff]
    %v9105 = vld [vmem:[%s16 + $0x78] sm:$0xff]
    %v9106 = vld [vmem:[%s17] sm:$0x1]
    %v9108 = vperm.slane %v9106, 0
    %9110 = vmatpush.msra.mxu0 %v9105
    %9111 = vmatpush.msra.mxu0 %v9104
    %9112 = vmatpush.msra.mxu0 %v9103
    %9113 = vmatpush.msra.mxu0 %v9102
    %9114 = vmatpush.msra.mxu0 %v9101
    %9115 = vmatpush.msra.mxu0 %v9100
    %9116 = vmatpush.msra.mxu0 %v9099
    %9117 = vmatpush.msra.mxu0 %v9098
    %9118 = vmatpush.msra.mxu0 %v9097
    %9119 = vmatpush.msra.mxu0 %v9096
    %9120 = vmatpush.msra.mxu0 %v9095
    %9121 = vmatpush.msra.mxu0 %v9094
    %9122 = vmatpush.msra.mxu0 %v9093
    %9123 = vmatpush.msra.mxu0 %v9092
    %9124 = vmatpush.msra.mxu0 %v9091
    %9125 = vmatpush.msra.mxu0 %v9090
    %9126 = vmatmul.f32.gmra.mxu0 %v6350
    %v9127 = vpop.f32.mrf.mxu0
    %v9128 = vadd.f32 %v9108, %v9127
    %9129 = vdwg.mxu0
    %vm9130 = vcmask 517120
    %9131 = vst.msk [vmem:[#allocation19] sm:$0x3] %vm9130, %v9128
    %v9132 = vstv %s9089
    %vm9133 = vcmask 0
    %9134 = vst.msk [vmem:[#allocation20] sm:$0x1] %vm9133, %v9132
    // Predicated region
    $region114: #{tpu_custom_call.1} parent=1 // pred_check
      _
    $region115: #{tpu_custom_call.1} parent=1 // pred_check_branch
      %9136 = sbr.rel (0) target = $region117
    $region116: #{tpu_custom_call.1} parent=1 // pred_region
      %9138 = vsyncadd [#allocation4], 0
      %s9140 = sshll.u32 [#allocation19], 4
      %s9141 = int_to_ptr.vmem [resolvable:$true] %s9140
      %s9142 = sshll.u32 %s18, 4
      %s9143 = int_to_ptr.hbm [resolvable:$true] %s9142
      %9145 = dma.vmem_to_hbm [thread:$0]  %s9141, 32, %s9143, [#allocation4]
    $region117: #{tpu_custom_call.1} parent=1 // pred_fallthru
      _
    // Predicated region
    $region118: #{tpu_custom_call.1} parent=1 // pred_check
      _
    $region119: #{tpu_custom_call.1} parent=1 // pred_check_branch
      %9147 = sbr.rel (0) target = $region121
    $region120: #{tpu_custom_call.1} parent=1 // pred_region
      %9149 = vsyncadd [#allocation21], 0
      %s9151 = sshll.u32 [#allocation20], 4
      %s9152 = int_to_ptr.vmem [resolvable:$true] %s9151
      %s9153 = sshll.u32 %s19, 4
      %s9154 = int_to_ptr.hbm [resolvable:$true] %s9153
      %9156 = dma.vmem_to_hbm [thread:$0]  %s9152, 16, %s9154, [#allocation21]
    $region121: #{tpu_custom_call.1} parent=1 // pred_fallthru
      _
    // Predicated region
    $region122: #{tpu_custom_call.1} parent=1 // pred_check
      _
    $region123: #{tpu_custom_call.1} parent=1 // pred_check_branch
      %9158 = sbr.rel (0) target = $region125
    $region124: #{tpu_custom_call.1} parent=1 // pred_region
      %9160 = dma.done [#allocation4], 32
    $region125: #{tpu_custom_call.1} parent=1 // pred_fallthru
      _
    // Predicated region
    $region126: #{tpu_custom_call.1} parent=1 // pred_check
      _
    $region127: #{tpu_custom_call.1} parent=1 // pred_check_branch
      %9162 = sbr.rel (0) target = $region129
    $region128: #{tpu_custom_call.1} parent=1 // pred_region
      %9164 = dma.done [#allocation21], 16
    $region129: #{tpu_custom_call.1} parent=1 // pred_fallthru
      _
    %9165 = vsyncpa [#allocation3], 1
    %9166 = vsyncpa [#allocation6], 1
    %9167 = vsyncpa [#allocation9], 1
    %9168 = vsyncpa [#allocation12], 1
    %9169 = vsyncpa [#allocation15], 1
    %9170 = vsyncpa [#allocation18], 1
    %9171 = vsyncpa [#allocation4], 1
    %9172 = vsyncpa [#allocation21], 1

</llo_original>
